<compile_context>
chip_gen: v7x
topology: tpu7x:2x2x1
jax: 0.10.0
libtpu: 0.0.40
codegen_flags: <defaults>
</compile_context>

<pallas_src>
import functools

import jax
import jax.numpy as jnp
from jax import lax
from jax.experimental import pallas as pl
from jax.experimental.pallas import tpu as pltpu


def _round_up(v, m):
    return (v + m - 1) // m * m


# ----------------------------------------------------------------------------
# Fused DN forward kernel: one grid step == one batch element.
# ----------------------------------------------------------------------------
def _dn_fused_kernel(xb_ref, w1_ref, b1_ref, mask_ref, what_ref, bhat_ref,
                     out_ref, x1_scr, *, taps, L):
    # xb_ref:   (1, R, Cin_p)   zero-padded input, spatial flattened, channels-last
    # w1_ref:   (Cin_p, temp)   l1 1x1 weights
    # b1_ref:   (1, temp)       l1 bias
    # mask_ref: (R, 1)          1 on l1's output footprint, 0 elsewhere
    # what_ref: (T, Cout, temp) combine-folded per-tap branch weights
    # bhat_ref: (Cout, 1)       combine-folded bias
    # out_ref:  (1, Cout, L)    final output (flat spatial, row stride Wp)
    # x1_scr:   (R, temp)       VMEM scratch holding x1 on the dmax-padded grid

    # l1 (1x1 conv) over the whole padded grid in one matmul.  The mask keeps the
    # outer dmax ring and the flat tail rows exactly 0 (== branch-conv zero padding)
    # while the d0 ring gets bias-only values, matching PyTorch padding semantics.
    x1_scr[...] = (
        jnp.dot(xb_ref[0], w1_ref[...], preferred_element_type=jnp.float32)
        + mask_ref[...] * b1_ref[...]
    )

    cout = out_ref.shape[1]
    acc = jnp.zeros((cout, L), jnp.float32)
    # Every (branch, tap) is one whole-image matmul on a shifted flat slice of x1:
    #   acc[o, q] += sum_c W_hat[t][o, c] * x1[q + off_t, c]
    for t, off in taps:
        acc = acc + lax.dot_general(
            what_ref[t],                      # (Cout, temp)
            x1_scr[pl.ds(off, L), :],         # (L, temp)
            (((1,), (1,)), ((), ())),         # contract temp with temp
            preferred_element_type=jnp.float32,
        )
    out_ref[0] = acc + bhat_ref[...]


# ----------------------------------------------------------------------------
# Wrapper: weight folding + layout prep in plain (tiny) XLA, all compute in Pallas.
# ----------------------------------------------------------------------------
def dn_forward(x_nchw, params, dilations, filters):
    x = x_nchw.astype(jnp.float32)
    N, Cin, H, W = x.shape
    d0 = int(dilations[0])
    temp = params["w1"].shape[0]
    Cout = params["wc"].shape[0]
    branch_ds = [int(d) for d in dilations[1:]]
    branch_fs = [int(f) for f in filters[1:]]
    dmax = max(branch_ds)

    # l1 output spatial size (k=1, padding=d0; dilation is a no-op for k=1).
    H1, W1 = H + 2 * d0, W + 2 * d0
    # Branch output spatial sizes (stride 1, padding == dilation); cat requires equal.
    houts = [H1 + 2 * d - d * (f - 1) for d, f in zip(branch_ds, branch_fs)]
    wouts = [W1 + 2 * d - d * (f - 1) for d, f in zip(branch_ds, branch_fs)]
    assert len(set(houts)) == 1 and len(set(wouts)) == 1, (houts, wouts)
    Hout, Wout = houts[0], wouts[0]

    # Common padded grid for all branches: x1 zero-padded by dmax on each side.
    Hp, Wp = H1 + 2 * dmax, W1 + 2 * dmax
    L = Hout * Wp                     # flat output length (row stride Wp)

    # Fold `combine` into the branch tap weights and collect flat tap offsets.
    hi = jax.lax.Precision.HIGHEST
    taps = []
    what_list = []
    bhat = params["bc"].astype(jnp.float32)
    t = 0
    for b, (d, f) in enumerate(zip(branch_ds, branch_fs)):
        wb, bb = params["branches"][b]                               # (cb, temp, f, f), (cb,)
        cb = wb.shape[0]
        wc_b = params["wc"][:, b * cb:(b + 1) * cb, 0, 0].astype(jnp.float32)  # (Cout, cb)
        bhat = bhat + jnp.dot(wc_b, bb.astype(jnp.float32), precision=hi)
        wh = jnp.einsum("om,mcij->ocij", wc_b, wb.astype(jnp.float32),
                        precision=hi)                                # (Cout, temp, f, f)
        for ki in range(f):
            for kj in range(f):
                what_list.append(wh[:, :, ki, kj])                   # (Cout, temp)
                taps.append((t, (dmax - d) * (Wp + 1) + d * (ki * Wp + kj)))
                t += 1
    what = jnp.stack(what_list, axis=0)                              # (T, Cout, temp)
    T = what.shape[0]
    max_off = max(o for _, o in taps)
    R = _round_up(max(L + max_off, Hp * Wp), 128)

    # Input: channels-last, spatially padded by d0 + dmax, flattened, zero tail rows.
    Cin_p = _round_up(Cin, 8)
    p = d0 + dmax
    xb = jnp.transpose(x, (0, 2, 3, 1))                              # (N, H, W, Cin)
    xb = jnp.pad(xb, ((0, 0), (p, p), (p, p), (0, Cin_p - Cin)))     # (N, Hp, Wp, Cin_p)
    xb = xb.reshape(N, Hp * Wp, Cin_p)
    xb = jnp.pad(xb, ((0, 0), (0, R - Hp * Wp), (0, 0)))             # (N, R, Cin_p)

    # Mask: 1 on l1's output footprint (the H1 x W1 region), 0 on the outer dmax ring
    # and on the flat tail rows.
    mask = jnp.pad(jnp.ones((H1, W1), jnp.float32), ((dmax, dmax), (dmax, dmax)))
    mask = jnp.pad(mask.reshape(Hp * Wp, 1), ((0, R - Hp * Wp), (0, 0)))   # (R, 1)

    w1 = jnp.pad(params["w1"][:, :, 0, 0].astype(jnp.float32).T,
                 ((0, Cin_p - Cin), (0, 0)))                         # (Cin_p, temp)
    b1 = params["b1"].astype(jnp.float32).reshape(1, temp)           # (1, temp)
    bhat = bhat.reshape(Cout, 1)                                     # (Cout, 1)

    kernel = functools.partial(_dn_fused_kernel, taps=tuple(taps), L=L)
    out_flat = pl.pallas_call(
        kernel,
        out_shape=jax.ShapeDtypeStruct((N, Cout, L), jnp.float32),
        grid_spec=pltpu.PrefetchScalarGridSpec(
            num_scalar_prefetch=0,
            grid=(N,),
            in_specs=[
                pl.BlockSpec((1, R, Cin_p), lambda n: (n, 0, 0)),
                pl.BlockSpec((Cin_p, temp), lambda n: (0, 0)),
                pl.BlockSpec((1, temp), lambda n: (0, 0)),
                pl.BlockSpec((R, 1), lambda n: (0, 0)),
                pl.BlockSpec((T, Cout, temp), lambda n: (0, 0, 0)),
                pl.BlockSpec((Cout, 1), lambda n: (0, 0)),
            ],
            out_specs=pl.BlockSpec((1, Cout, L), lambda n: (n, 0, 0)),
            scratch_shapes=[pltpu.VMEM((R, temp), jnp.float32)],
        ),
        compiler_params=pltpu.CompilerParams(dimension_semantics=("parallel",)),
    )(xb, w1, b1, mask, what, bhat)

    # (N, Cout, Hout*Wp) -> NCHW: un-flatten rows and drop the row-stride junk columns.
    return out_flat.reshape(N, Cout, Hout, Wp)[:, :, :, :Wout]


# ----------------------------------------------------------------------------
# Pure-JAX reference (mirrors the PyTorch forward) for correctness checking.
# ----------------------------------------------------------------------------
def ref_forward(x_nchw, params, dilations, filters):
    def conv(x, w, b, d, p):
        y = lax.conv_general_dilated(
            x, w, window_strides=(1, 1), padding=((p, p), (p, p)),
            rhs_dilation=(d, d), dimension_numbers=("NCHW", "OIHW", "NCHW"),
            precision=lax.Precision.HIGHEST,
        )
        return y + b[None, :, None, None]

    x1 = conv(x_nchw, params["w1"], params["b1"], dilations[0], dilations[0])
    outs = [conv(x1, w, b, d, d)
            for (w, b), d in zip(params["branches"], dilations[1:])]
    cat = jnp.concatenate(outs, axis=1)
    return conv(cat, params["wc"], params["bc"], 1, 0)


if __name__ == "__main__":
    input_channels, output_channels = 4, 8
    dilations = [1, 2, 3]
    filters = [1, 3, 3]
    N, H, W = 2, 16, 16
    temp = 64

    key = jax.random.PRNGKey(0)
    keys = jax.random.split(key, 16)

    params = {
        "w1": jax.random.normal(keys[0], (temp, input_channels, 1, 1), jnp.float32) * 0.1,
        "b1": jax.random.normal(keys[1], (temp,), jnp.float32) * 0.1,
        "branches": [],
    }
    ki = 2
    for d, f in zip(dilations[1:], filters[1:]):
        w = jax.random.normal(keys[ki], (output_channels, temp, f, f), jnp.float32) * 0.05
        b = jax.random.normal(keys[ki + 1], (output_channels,), jnp.float32) * 0.1
        params["branches"].append((w, b))
        ki += 2

    n_branches = len(dilations) - 1
    # TODO(synk): DN.__init__ sizes `combine` for output_channels*len(dilations) input
    # channels, but the forward only concatenates len(dilations)-1 branch outputs
    # (a bug in the reference module); we use the channel count the forward actually
    # produces so the graph is runnable.
    params["wc"] = (
        jax.random.normal(
            keys[ki], (output_channels, output_channels * n_branches, 1, 1), jnp.float32
        )
        * 0.1
    )
    params["bc"] = jax.random.normal(keys[ki + 1], (output_channels,), jnp.float32) * 0.1

    x = jax.random.normal(keys[ki + 2], (N, input_channels, H, W), jnp.float32)

    out = dn_forward(x, params, dilations, filters)
    out = jax.block_until_ready(out)

    ref = ref_forward(x, params, dilations, filters)
    assert out.shape == ref.shape, (out.shape, ref.shape)
    max_err = float(jnp.max(jnp.abs(out - ref)))
    assert jnp.allclose(out, ref, rtol=2e-3, atol=2e-3), max_err
    print("KERNEL_OK")
</pallas_src>

<mosaic_0001>
module attributes {stable_mosaic.version = 11 : i64} {
  func.func @_dn_fused_kernel(%arg0: i32, %arg1: memref<1x640x8xf32, #tpu.memory_space<vmem>>, %arg2: memref<8x64xf32, #tpu.memory_space<vmem>>, %arg3: memref<1x64xf32, #tpu.memory_space<vmem>>, %arg4: memref<640x1xf32, #tpu.memory_space<vmem>>, %arg5: memref<18x8x64xf32, #tpu.memory_space<vmem>>, %arg6: memref<8x1xf32, #tpu.memory_space<vmem>>, %arg7: memref<1x8x432xf32, #tpu.memory_space<vmem>>, %arg8: memref<640x64xf32, #tpu.memory_space<vmem>>) attributes {dimension_semantics = [#tpu.dimension_semantics<parallel>], iteration_bounds = array<i64: 2>, scalar_prefetch = 0 : i64, scratch_operands = 1 : i64, tpu.core_type = #tpu.core_type<tc>, window_params = [{transform_indices = @transform_0, window_bounds = array<i64: 1, 640, 8>}, {pipeline_mode = #tpu.pipeline_mode<synchronous>, transform_indices = @transform_1, window_bounds = array<i64: 8, 64>}, {pipeline_mode = #tpu.pipeline_mode<synchronous>, transform_indices = @transform_2, window_bounds = array<i64: 1, 64>}, {pipeline_mode = #tpu.pipeline_mode<synchronous>, transform_indices = @transform_3, window_bounds = array<i64: 640, 1>}, {pipeline_mode = #tpu.pipeline_mode<synchronous>, transform_indices = @transform_4, window_bounds = array<i64: 18, 8, 64>}, {pipeline_mode = #tpu.pipeline_mode<synchronous>, transform_indices = @transform_5, window_bounds = array<i64: 8, 1>}, {transform_indices = @transform_6, window_bounds = array<i64: 1, 8, 432>}]} {
    %c0 = arith.constant 0 : index
    %c0_0 = arith.constant 0 : index
    %c0_1 = arith.constant 0 : index
    %0 = vector.load %arg1[%c0, %c0_0, %c0_1] : memref<1x640x8xf32, #tpu.memory_space<vmem>>, vector<1x640x8xf32>
    %1 = vector.shape_cast %0 : vector<1x640x8xf32> to vector<640x8xf32>
    %c0_2 = arith.constant 0 : index
    %c0_3 = arith.constant 0 : index
    %2 = vector.load %arg2[%c0_2, %c0_3] : memref<8x64xf32, #tpu.memory_space<vmem>>, vector<8x64xf32>
    %cst = arith.constant dense<0.000000e+00> : vector<640x64xf32>
    %3 = tpu.matmul %1, %2, %cst {dimension_numbers = #tpu.dot_dimension_numbers<[1], [0], [0], [1], [0, 0, 1, 1], [], []>} : vector<640x8xf32>, vector<8x64xf32>, vector<640x64xf32> -> vector<640x64xf32>
    %c0_4 = arith.constant 0 : index
    %c0_5 = arith.constant 0 : index
    %4 = vector.load %arg4[%c0_4, %c0_5] : memref<640x1xf32, #tpu.memory_space<vmem>>, vector<640x1xf32>
    %c0_6 = arith.constant 0 : index
    %c0_7 = arith.constant 0 : index
    %5 = vector.load %arg3[%c0_6, %c0_7] : memref<1x64xf32, #tpu.memory_space<vmem>>, vector<1x64xf32>
    %6 = vector.broadcast %4 : vector<640x1xf32> to vector<640x64xf32>
    %7 = vector.broadcast %5 : vector<1x64xf32> to vector<640x64xf32>
    %8 = arith.mulf %6, %7 : vector<640x64xf32>
    %9 = arith.addf %3, %8 : vector<640x64xf32>
    %c0_8 = arith.constant 0 : index
    %c0_9 = arith.constant 0 : index
    %10 = vector.load %arg8[%c0_8, %c0_9] : memref<640x64xf32, #tpu.memory_space<vmem>>, vector<640x64xf32>
    tpu.vector_store %arg8[%c0_8, %c0_9], %9 {strides = array<i32>} : memref<640x64xf32, #tpu.memory_space<vmem>>, vector<640x64xf32>,
    %cst_10 = arith.constant 0.000000e+00 : f32
    %11 = vector.broadcast %cst_10 : f32 to vector<8x432xf32>
    %c0_11 = arith.constant 0 : index
    %c0_12 = arith.constant 0 : index
    %c0_13 = arith.constant 0 : index
    %12 = vector.load %arg5[%c0_11, %c0_12, %c0_13] : memref<18x8x64xf32, #tpu.memory_space<vmem>>, vector<1x8x64xf32>
    %13 = vector.shape_cast %12 : vector<1x8x64xf32> to vector<8x64xf32>
    %c25 = arith.constant 25 : index
    %c0_14 = arith.constant 0 : index
    %14 = vector.load %arg8[%c25, %c0_14] : memref<640x64xf32, #tpu.memory_space<vmem>>, vector<432x64xf32>
    %cst_15 = arith.constant dense<0.000000e+00> : vector<8x432xf32>
    %15 = tpu.matmul %13, %14, %cst_15 {dimension_numbers = #tpu.dot_dimension_numbers<[1], [1], [0], [0], [0, 0, 1, 0], [], []>} : vector<8x64xf32>, vector<432x64xf32>, vector<8x432xf32> -> vector<8x432xf32>
    %16 = arith.addf %11, %15 : vector<8x432xf32>
    %c1 = arith.constant 1 : index
    %c0_16 = arith.constant 0 : index
    %c0_17 = arith.constant 0 : index
    %17 = vector.load %arg5[%c1, %c0_16, %c0_17] : memref<18x8x64xf32, #tpu.memory_space<vmem>>, vector<1x8x64xf32>
    %18 = vector.shape_cast %17 : vector<1x8x64xf32> to vector<8x64xf32>
    %c27 = arith.constant 27 : index
    %c0_18 = arith.constant 0 : index
    %19 = vector.load %arg8[%c27, %c0_18] : memref<640x64xf32, #tpu.memory_space<vmem>>, vector<432x64xf32>
    %cst_19 = arith.constant dense<0.000000e+00> : vector<8x432xf32>
    %20 = tpu.matmul %18, %19, %cst_19 {dimension_numbers = #tpu.dot_dimension_numbers<[1], [1], [0], [0], [0, 0, 1, 0], [], []>} : vector<8x64xf32>, vector<432x64xf32>, vector<8x432xf32> -> vector<8x432xf32>
    %21 = arith.addf %16, %20 : vector<8x432xf32>
    %c2 = arith.constant 2 : index
    %c0_20 = arith.constant 0 : index
    %c0_21 = arith.constant 0 : index
    %22 = vector.load %arg5[%c2, %c0_20, %c0_21] : memref<18x8x64xf32, #tpu.memory_space<vmem>>, vector<1x8x64xf32>
    %23 = vector.shape_cast %22 : vector<1x8x64xf32> to vector<8x64xf32>
    %c29 = arith.constant 29 : index
    %c0_22 = arith.constant 0 : index
    %24 = vector.load %arg8[%c29, %c0_22] : memref<640x64xf32, #tpu.memory_space<vmem>>, vector<432x64xf32>
    %cst_23 = arith.constant dense<0.000000e+00> : vector<8x432xf32>
    %25 = tpu.matmul %23, %24, %cst_23 {dimension_numbers = #tpu.dot_dimension_numbers<[1], [1], [0], [0], [0, 0, 1, 0], [], []>} : vector<8x64xf32>, vector<432x64xf32>, vector<8x432xf32> -> vector<8x432xf32>
    %26 = arith.addf %21, %25 : vector<8x432xf32>
    %c3 = arith.constant 3 : index
    %c0_24 = arith.constant 0 : index
    %c0_25 = arith.constant 0 : index
    %27 = vector.load %arg5[%c3, %c0_24, %c0_25] : memref<18x8x64xf32, #tpu.memory_space<vmem>>, vector<1x8x64xf32>
    %28 = vector.shape_cast %27 : vector<1x8x64xf32> to vector<8x64xf32>
    %c73 = arith.constant 73 : index
    %c0_26 = arith.constant 0 : index
    %29 = vector.load %arg8[%c73, %c0_26] : memref<640x64xf32, #tpu.memory_space<vmem>>, vector<432x64xf32>
    %cst_27 = arith.constant dense<0.000000e+00> : vector<8x432xf32>
    %30 = tpu.matmul %28, %29, %cst_27 {dimension_numbers = #tpu.dot_dimension_numbers<[1], [1], [0], [0], [0, 0, 1, 0], [], []>} : vector<8x64xf32>, vector<432x64xf32>, vector<8x432xf32> -> vector<8x432xf32>
    %31 = arith.addf %26, %30 : vector<8x432xf32>
    %c4 = arith.constant 4 : index
    %c0_28 = arith.constant 0 : index
    %c0_29 = arith.constant 0 : index
    %32 = vector.load %arg5[%c4, %c0_28, %c0_29] : memref<18x8x64xf32, #tpu.memory_space<vmem>>, vector<1x8x64xf32>
    %33 = vector.shape_cast %32 : vector<1x8x64xf32> to vector<8x64xf32>
    %c75 = arith.constant 75 : index
    %c0_30 = arith.constant 0 : index
    %34 = vector.load %arg8[%c75, %c0_30] : memref<640x64xf32, #tpu.memory_space<vmem>>, vector<432x64xf32>
    %cst_31 = arith.constant dense<0.000000e+00> : vector<8x432xf32>
    %35 = tpu.matmul %33, %34, %cst_31 {dimension_numbers = #tpu.dot_dimension_numbers<[1], [1], [0], [0], [0, 0, 1, 0], [], []>} : vector<8x64xf32>, vector<432x64xf32>, vector<8x432xf32> -> vector<8x432xf32>
    %36 = arith.addf %31, %35 : vector<8x432xf32>
    %c5 = arith.constant 5 : index
    %c0_32 = arith.constant 0 : index
    %c0_33 = arith.constant 0 : index
    %37 = vector.load %arg5[%c5, %c0_32, %c0_33] : memref<18x8x64xf32, #tpu.memory_space<vmem>>, vector<1x8x64xf32>
    %38 = vector.shape_cast %37 : vector<1x8x64xf32> to vector<8x64xf32>
    %c77 = arith.constant 77 : index
    %c0_34 = arith.constant 0 : index
    %39 = vector.load %arg8[%c77, %c0_34] : memref<640x64xf32, #tpu.memory_space<vmem>>, vector<432x64xf32>
    %cst_35 = arith.constant dense<0.000000e+00> : vector<8x432xf32>
    %40 = tpu.matmul %38, %39, %cst_35 {dimension_numbers = #tpu.dot_dimension_numbers<[1], [1], [0], [0], [0, 0, 1, 0], [], []>} : vector<8x64xf32>, vector<432x64xf32>, vector<8x432xf32> -> vector<8x432xf32>
    %41 = arith.addf %36, %40 : vector<8x432xf32>
    %c6 = arith.constant 6 : index
    %c0_36 = arith.constant 0 : index
    %c0_37 = arith.constant 0 : index
    %42 = vector.load %arg5[%c6, %c0_36, %c0_37] : memref<18x8x64xf32, #tpu.memory_space<vmem>>, vector<1x8x64xf32>
    %43 = vector.shape_cast %42 : vector<1x8x64xf32> to vector<8x64xf32>
    %c121 = arith.constant 121 : index
    %c0_38 = arith.constant 0 : index
    %44 = vector.load %arg8[%c121, %c0_38] : memref<640x64xf32, #tpu.memory_space<vmem>>, vector<432x64xf32>
    %cst_39 = arith.constant dense<0.000000e+00> : vector<8x432xf32>
    %45 = tpu.matmul %43, %44, %cst_39 {dimension_numbers = #tpu.dot_dimension_numbers<[1], [1], [0], [0], [0, 0, 1, 0], [], []>} : vector<8x64xf32>, vector<432x64xf32>, vector<8x432xf32> -> vector<8x432xf32>
    %46 = arith.addf %41, %45 : vector<8x432xf32>
    %c7 = arith.constant 7 : index
    %c0_40 = arith.constant 0 : index
    %c0_41 = arith.constant 0 : index
    %47 = vector.load %arg5[%c7, %c0_40, %c0_41] : memref<18x8x64xf32, #tpu.memory_space<vmem>>, vector<1x8x64xf32>
    %48 = vector.shape_cast %47 : vector<1x8x64xf32> to vector<8x64xf32>
    %c123 = arith.constant 123 : index
    %c0_42 = arith.constant 0 : index
    %49 = vector.load %arg8[%c123, %c0_42] : memref<640x64xf32, #tpu.memory_space<vmem>>, vector<432x64xf32>
    %cst_43 = arith.constant dense<0.000000e+00> : vector<8x432xf32>
    %50 = tpu.matmul %48, %49, %cst_43 {dimension_numbers = #tpu.dot_dimension_numbers<[1], [1], [0], [0], [0, 0, 1, 0], [], []>} : vector<8x64xf32>, vector<432x64xf32>, vector<8x432xf32> -> vector<8x432xf32>
    %51 = arith.addf %46, %50 : vector<8x432xf32>
    %c8 = arith.constant 8 : index
    %c0_44 = arith.constant 0 : index
    %c0_45 = arith.constant 0 : index
    %52 = vector.load %arg5[%c8, %c0_44, %c0_45] : memref<18x8x64xf32, #tpu.memory_space<vmem>>, vector<1x8x64xf32>
    %53 = vector.shape_cast %52 : vector<1x8x64xf32> to vector<8x64xf32>
    %c125 = arith.constant 125 : index
    %c0_46 = arith.constant 0 : index
    %54 = vector.load %arg8[%c125, %c0_46] : memref<640x64xf32, #tpu.memory_space<vmem>>, vector<432x64xf32>
    %cst_47 = arith.constant dense<0.000000e+00> : vector<8x432xf32>
    %55 = tpu.matmul %53, %54, %cst_47 {dimension_numbers = #tpu.dot_dimension_numbers<[1], [1], [0], [0], [0, 0, 1, 0], [], []>} : vector<8x64xf32>, vector<432x64xf32>, vector<8x432xf32> -> vector<8x432xf32>
    %56 = arith.addf %51, %55 : vector<8x432xf32>
    %c9 = arith.constant 9 : index
    %c0_48 = arith.constant 0 : index
    %c0_49 = arith.constant 0 : index
    %57 = vector.load %arg5[%c9, %c0_48, %c0_49] : memref<18x8x64xf32, #tpu.memory_space<vmem>>, vector<1x8x64xf32>
    %58 = vector.shape_cast %57 : vector<1x8x64xf32> to vector<8x64xf32>
    %c0_50 = arith.constant 0 : index
    %c0_51 = arith.constant 0 : index
    %59 = vector.load %arg8[%c0_50, %c0_51] : memref<640x64xf32, #tpu.memory_space<vmem>>, vector<432x64xf32>
    %cst_52 = arith.constant dense<0.000000e+00> : vector<8x432xf32>
    %60 = tpu.matmul %58, %59, %cst_52 {dimension_numbers = #tpu.dot_dimension_numbers<[1], [1], [0], [0], [0, 0, 1, 0], [], []>} : vector<8x64xf32>, vector<432x64xf32>, vector<8x432xf32> -> vector<8x432xf32>
    %61 = arith.addf %56, %60 : vector<8x432xf32>
    %c10 = arith.constant 10 : index
    %c0_53 = arith.constant 0 : index
    %c0_54 = arith.constant 0 : index
    %62 = vector.load %arg5[%c10, %c0_53, %c0_54] : memref<18x8x64xf32, #tpu.memory_space<vmem>>, vector<1x8x64xf32>
    %63 = vector.shape_cast %62 : vector<1x8x64xf32> to vector<8x64xf32>
    %c3_55 = arith.constant 3 : index
    %c0_56 = arith.constant 0 : index
    %64 = vector.load %arg8[%c3_55, %c0_56] : memref<640x64xf32, #tpu.memory_space<vmem>>, vector<432x64xf32>
    %cst_57 = arith.constant dense<0.000000e+00> : vector<8x432xf32>
    %65 = tpu.matmul %63, %64, %cst_57 {dimension_numbers = #tpu.dot_dimension_numbers<[1], [1], [0], [0], [0, 0, 1, 0], [], []>} : vector<8x64xf32>, vector<432x64xf32>, vector<8x432xf32> -> vector<8x432xf32>
    %66 = arith.addf %61, %65 : vector<8x432xf32>
    %c11 = arith.constant 11 : index
    %c0_58 = arith.constant 0 : index
    %c0_59 = arith.constant 0 : index
    %67 = vector.load %arg5[%c11, %c0_58, %c0_59] : memref<18x8x64xf32, #tpu.memory_space<vmem>>, vector<1x8x64xf32>
    %68 = vector.shape_cast %67 : vector<1x8x64xf32> to vector<8x64xf32>
    %c6_60 = arith.constant 6 : index
    %c0_61 = arith.constant 0 : index
    %69 = vector.load %arg8[%c6_60, %c0_61] : memref<640x64xf32, #tpu.memory_space<vmem>>, vector<432x64xf32>
    %cst_62 = arith.constant dense<0.000000e+00> : vector<8x432xf32>
    %70 = tpu.matmul %68, %69, %cst_62 {dimension_numbers = #tpu.dot_dimension_numbers<[1], [1], [0], [0], [0, 0, 1, 0], [], []>} : vector<8x64xf32>, vector<432x64xf32>, vector<8x432xf32> -> vector<8x432xf32>
    %71 = arith.addf %66, %70 : vector<8x432xf32>
    %c12 = arith.constant 12 : index
    %c0_63 = arith.constant 0 : index
    %c0_64 = arith.constant 0 : index
    %72 = vector.load %arg5[%c12, %c0_63, %c0_64] : memref<18x8x64xf32, #tpu.memory_space<vmem>>, vector<1x8x64xf32>
    %73 = vector.shape_cast %72 : vector<1x8x64xf32> to vector<8x64xf32>
    %c72 = arith.constant 72 : index
    %c0_65 = arith.constant 0 : index
    %74 = vector.load %arg8[%c72, %c0_65] : memref<640x64xf32, #tpu.memory_space<vmem>>, vector<432x64xf32>
    %cst_66 = arith.constant dense<0.000000e+00> : vector<8x432xf32>
    %75 = tpu.matmul %73, %74, %cst_66 {dimension_numbers = #tpu.dot_dimension_numbers<[1], [1], [0], [0], [0, 0, 1, 0], [], []>} : vector<8x64xf32>, vector<432x64xf32>, vector<8x432xf32> -> vector<8x432xf32>
    %76 = arith.addf %71, %75 : vector<8x432xf32>
    %c13 = arith.constant 13 : index
    %c0_67 = arith.constant 0 : index
    %c0_68 = arith.constant 0 : index
    %77 = vector.load %arg5[%c13, %c0_67, %c0_68] : memref<18x8x64xf32, #tpu.memory_space<vmem>>, vector<1x8x64xf32>
    %78 = vector.shape_cast %77 : vector<1x8x64xf32> to vector<8x64xf32>
    %c75_69 = arith.constant 75 : index
    %c0_70 = arith.constant 0 : index
    %79 = vector.load %arg8[%c75_69, %c0_70] : memref<640x64xf32, #tpu.memory_space<vmem>>, vector<432x64xf32>
    %cst_71 = arith.constant dense<0.000000e+00> : vector<8x432xf32>
    %80 = tpu.matmul %78, %79, %cst_71 {dimension_numbers = #tpu.dot_dimension_numbers<[1], [1], [0], [0], [0, 0, 1, 0], [], []>} : vector<8x64xf32>, vector<432x64xf32>, vector<8x432xf32> -> vector<8x432xf32>
    %81 = arith.addf %76, %80 : vector<8x432xf32>
    %c14 = arith.constant 14 : index
    %c0_72 = arith.constant 0 : index
    %c0_73 = arith.constant 0 : index
    %82 = vector.load %arg5[%c14, %c0_72, %c0_73] : memref<18x8x64xf32, #tpu.memory_space<vmem>>, vector<1x8x64xf32>
    %83 = vector.shape_cast %82 : vector<1x8x64xf32> to vector<8x64xf32>
    %c78 = arith.constant 78 : index
    %c0_74 = arith.constant 0 : index
    %84 = vector.load %arg8[%c78, %c0_74] : memref<640x64xf32, #tpu.memory_space<vmem>>, vector<432x64xf32>
    %cst_75 = arith.constant dense<0.000000e+00> : vector<8x432xf32>
    %85 = tpu.matmul %83, %84, %cst_75 {dimension_numbers = #tpu.dot_dimension_numbers<[1], [1], [0], [0], [0, 0, 1, 0], [], []>} : vector<8x64xf32>, vector<432x64xf32>, vector<8x432xf32> -> vector<8x432xf32>
    %86 = arith.addf %81, %85 : vector<8x432xf32>
    %c15 = arith.constant 15 : index
    %c0_76 = arith.constant 0 : index
    %c0_77 = arith.constant 0 : index
    %87 = vector.load %arg5[%c15, %c0_76, %c0_77] : memref<18x8x64xf32, #tpu.memory_space<vmem>>, vector<1x8x64xf32>
    %88 = vector.shape_cast %87 : vector<1x8x64xf32> to vector<8x64xf32>
    %c144 = arith.constant 144 : index
    %c0_78 = arith.constant 0 : index
    %89 = vector.load %arg8[%c144, %c0_78] : memref<640x64xf32, #tpu.memory_space<vmem>>, vector<432x64xf32>
    %cst_79 = arith.constant dense<0.000000e+00> : vector<8x432xf32>
    %90 = tpu.matmul %88, %89, %cst_79 {dimension_numbers = #tpu.dot_dimension_numbers<[1], [1], [0], [0], [0, 0, 1, 0], [], []>} : vector<8x64xf32>, vector<432x64xf32>, vector<8x432xf32> -> vector<8x432xf32>
    %91 = arith.addf %86, %90 : vector<8x432xf32>
    %c16 = arith.constant 16 : index
    %c0_80 = arith.constant 0 : index
    %c0_81 = arith.constant 0 : index
    %92 = vector.load %arg5[%c16, %c0_80, %c0_81] : memref<18x8x64xf32, #tpu.memory_space<vmem>>, vector<1x8x64xf32>
    %93 = vector.shape_cast %92 : vector<1x8x64xf32> to vector<8x64xf32>
    %c147 = arith.constant 147 : index
    %c0_82 = arith.constant 0 : index
    %94 = vector.load %arg8[%c147, %c0_82] : memref<640x64xf32, #tpu.memory_space<vmem>>, vector<432x64xf32>
    %cst_83 = arith.constant dense<0.000000e+00> : vector<8x432xf32>
    %95 = tpu.matmul %93, %94, %cst_83 {dimension_numbers = #tpu.dot_dimension_numbers<[1], [1], [0], [0], [0, 0, 1, 0], [], []>} : vector<8x64xf32>, vector<432x64xf32>, vector<8x432xf32> -> vector<8x432xf32>
    %96 = arith.addf %91, %95 : vector<8x432xf32>
    %c17 = arith.constant 17 : index
    %c0_84 = arith.constant 0 : index
    %c0_85 = arith.constant 0 : index
    %97 = vector.load %arg5[%c17, %c0_84, %c0_85] : memref<18x8x64xf32, #tpu.memory_space<vmem>>, vector<1x8x64xf32>
    %98 = vector.shape_cast %97 : vector<1x8x64xf32> to vector<8x64xf32>
    %c150 = arith.constant 150 : index
    %c0_86 = arith.constant 0 : index
    %99 = vector.load %arg8[%c150, %c0_86] : memref<640x64xf32, #tpu.memory_space<vmem>>, vector<432x64xf32>
    %cst_87 = arith.constant dense<0.000000e+00> : vector<8x432xf32>
    %100 = tpu.matmul %98, %99, %cst_87 {dimension_numbers = #tpu.dot_dimension_numbers<[1], [1], [0], [0], [0, 0, 1, 0], [], []>} : vector<8x64xf32>, vector<432x64xf32>, vector<8x432xf32> -> vector<8x432xf32>
    %101 = arith.addf %96, %100 : vector<8x432xf32>
    %c0_88 = arith.constant 0 : index
    %c0_89 = arith.constant 0 : index
    %102 = vector.load %arg6[%c0_88, %c0_89] : memref<8x1xf32, #tpu.memory_space<vmem>>, vector<8x1xf32>
    %103 = vector.broadcast %102 : vector<8x1xf32> to vector<8x432xf32>
    %104 = arith.addf %101, %103 : vector<8x432xf32>
    %c0_90 = arith.constant 0 : index
    %c0_91 = arith.constant 0 : index
    %c0_92 = arith.constant 0 : index
    %105 = vector.load %arg7[%c0_90, %c0_91, %c0_92] : memref<1x8x432xf32, #tpu.memory_space<vmem>>, vector<1x8x432xf32>
    %106 = vector.shape_cast %105 : vector<1x8x432xf32> to vector<8x432xf32>
    %107 = vector.shape_cast %104 : vector<8x432xf32> to vector<1x8x432xf32>
    tpu.vector_store %arg7[%c0_90, %c0_91, %c0_92], %107 {strides = array<i32>} : memref<1x8x432xf32, #tpu.memory_space<vmem>>, vector<1x8x432xf32>,
    return
  }
  func.func @transform_0(%arg0: i32) -> (i32, i32, i32) {
    %c0_i32 = arith.constant 0 : i32
    %c0_i32_0 = arith.constant 0 : i32
    %c0_i32_1 = arith.constant 0 : i32
    return %arg0, %c0_i32, %c0_i32_0 : i32, i32, i32
  }
  func.func @transform_1(%arg0: i32) -> (i32, i32) {
    %c0_i32 = arith.constant 0 : i32
    %c0_i32_0 = arith.constant 0 : i32
    %c0_i32_1 = arith.constant 0 : i32
    return %c0_i32, %c0_i32_0 : i32, i32
  }
  func.func @transform_2(%arg0: i32) -> (i32, i32) {
    %c0_i32 = arith.constant 0 : i32
    %c0_i32_0 = arith.constant 0 : i32
    %c0_i32_1 = arith.constant 0 : i32
    return %c0_i32, %c0_i32_0 : i32, i32
  }
  func.func @transform_3(%arg0: i32) -> (i32, i32) {
    %c0_i32 = arith.constant 0 : i32
    %c0_i32_0 = arith.constant 0 : i32
    %c0_i32_1 = arith.constant 0 : i32
    return %c0_i32, %c0_i32_0 : i32, i32
  }
  func.func @transform_4(%arg0: i32) -> (i32, i32, i32) {
    %c0_i32 = arith.constant 0 : i32
    %c0_i32_0 = arith.constant 0 : i32
    %c0_i32_1 = arith.constant 0 : i32
    %c0_i32_2 = arith.constant 0 : i32
    return %c0_i32, %c0_i32_0, %c0_i32_1 : i32, i32, i32
  }
  func.func @transform_5(%arg0: i32) -> (i32, i32) {
    %c0_i32 = arith.constant 0 : i32
    %c0_i32_0 = arith.constant 0 : i32
    %c0_i32_1 = arith.constant 0 : i32
    return %c0_i32, %c0_i32_0 : i32, i32
  }
  func.func @transform_6(%arg0: i32) -> (i32, i32, i32) {
    %c0_i32 = arith.constant 0 : i32
    %c0_i32_0 = arith.constant 0 : i32
    %c0_i32_1 = arith.constant 0 : i32
    return %arg0, %c0_i32, %c0_i32_0 : i32, i32, i32
  }
}

</mosaic_0001>

<llo_original>
// kernel: tpu_custom_call.1
$region0: #{tpu_custom_call.1}
  #allocation0 [shape = 'u32[]', space=smem, size = 0x4, offset = 0x4, fixed_abs, tag = 'smem constant byte address 0x4 - core index']
  #allocation1 [shape = 'u32[144,128]{1,0:T(1,128)}', space=vmem, size = 0x12000, scoped, tag = 'internal scratch']
  #allocation2 [shape = 'f32[640,64]{1,0:T(8,128)}', space=vmem, size = 0x50000, scoped, tag = 'scratch operand']
  %s0 = inlined_call_operand.vmem [shape: f32[2,640,8], index: 0, kind: input, shape index: {}]
  %s1 = inlined_call_operand.vmem [shape: f32[8,64], index: 1, kind: input, shape index: {}]
  %s2 = inlined_call_operand.vmem [shape: f32[1,64], index: 2, kind: input, shape index: {}]
  %s3 = inlined_call_operand.vmem [shape: f32[640,1], index: 3, kind: input, shape index: {}]
  %s4 = inlined_call_operand.vmem [shape: f32[18,8,64], index: 4, kind: input, shape index: {}]
  %s5 = inlined_call_operand.vmem [shape: f32[8,1], index: 5, kind: input, shape index: {}]
  %s6 = inlined_call_operand.hbm [shape: f32[2,8,432], index: 6, kind: output, shape index: {}]
  %s7 = sld [smem:[#allocation0]]
  $region57: #{tpu_custom_call.1} parent=0
    _
  %s9 = ssub.s32 1, %s7
  %s10 = scalar_select 0, %s9, %s7
  $region1: #{tpu_custom_call.1} parent=0
    #allocation3 [shape = 'u8[32768]{0}', space=vmem, size = 0x8000, scoped, tag = 'output window, operand 0']
    #allocation4 [shape = 's32[2]{0}', space=sflag, size = 0x8, scoped, tag = 'scoped memory for tpu_custom_call.1']
    %11 = vsyncpa [#allocation4], 0
    %s12 = scalar_lea.sflag [#allocation4], 1
    %13 = vsyncpa %s12, 0
    loop: start=0, step=1, limit=4
    $region2: #{tpu_custom_call.1} parent=1 // loop_pre_header
      _
    $region3: #{tpu_custom_call.1} parent=1 // loop_header
      %s15 = sphi 0, %s19
      %p16 = scmp.ge.s32.totalorder %s15, 4
      %s25 = sphi 0, %s27
      %s28 = sphi 0, %s25
      %s29 = sphi 0, %s28
      %s45 = sphi 0, %s29
      %s49 = sphi 0, %s49
      %s51 = sphi 0, %s49
      %s52 = sphi 0, %s51
      %s66 = sphi 0, %s52
      %s70 = sphi 0, %s70
      %s72 = sphi 0, %s70
      %s73 = sphi 0, %s72
      %s87 = sphi 0, %s73
      %s91 = sphi 0, %s91
      %s93 = sphi 0, %s91
      %s94 = sphi 0, %s93
      %s108 = sphi 0, %s94
      %s112 = sphi 0, %s112
      %s114 = sphi 0, %s112
      %s115 = sphi 0, %s114
      %s129 = sphi 0, %s115
      %s133 = sphi 0, %s133
      %s135 = sphi 0, %s133
      %s136 = sphi 0, %s135
      %s150 = sphi 0, %s136
      %s156 = sphi 0, %s158
      %s159 = sphi 0, %s156
      %s160 = sphi 0, %s159
      %s176 = sphi 0, %s160
    $region4: #{tpu_custom_call.1} parent=1 // loop_header_branch
      %18 = sbr.rel (%p16) target = $region8
    $region5: #{tpu_custom_call.1} parent=1 // loop_body
      %s20 = ssub.s32 %s15, 1
      %s21 = ssub.s32 %s15, 2
      %s22 = sadd.s32 %s15, 1
      %s23 = ssub.s32 %s15, %s22
      %p24 = scmp.eq.s32.totalorder %s23, 0
      %s26 = sadd.s32 %s25, 1
      %s27 = scalar_select %p24, %s25, %s26
      %p30 = pneg %p24
      %p31 = scmp.eq.s32.totalorder %s15, 1
      %p32 = por %p30, %p31
      %p33 = scmp.ne.s32.totalorder %s25, %s28
      %p34 = scmp.eq.s32.totalorder %s15, 0
      %p35 = por %p33, %p34
      %p36 = scmp.ne.s32.totalorder %s25, %s28
      %p37 = scmp.eq.s32.totalorder %s20, 1
      %p38 = por %p36, %p37
      %p39 = scmp.ne.s32.totalorder %s28, %s29
      %p40 = scmp.eq.s32.totalorder %s20, 0
      %p41 = por %p39, %p40
      %p42 = scmp.ne.s32.totalorder %s28, %s29
      %p43 = scmp.eq.s32.totalorder %s21, 1
      %p44 = por %p42, %p43
      %p46 = scmp.ne.s32.totalorder %s29, %s45
      %p47 = scmp.eq.s32.totalorder %s21, 0
      %p48 = por %p46, %p47
      %s50 = sadd.s32 %s49, 1
      %p53 = scmp.eq.s32.totalorder %s15, 1
      %p54 = scmp.ne.s32.totalorder %s49, %s51
      %p55 = scmp.eq.s32.totalorder %s15, 0
      %p56 = por %p54, %p55
      %p57 = scmp.ne.s32.totalorder %s49, %s51
      %p58 = scmp.eq.s32.totalorder %s20, 1
      %p59 = por %p57, %p58
      %p60 = scmp.ne.s32.totalorder %s51, %s52
      %p61 = scmp.eq.s32.totalorder %s20, 0
      %p62 = por %p60, %p61
      %p63 = scmp.ne.s32.totalorder %s51, %s52
      %p64 = scmp.eq.s32.totalorder %s21, 1
      %p65 = por %p63, %p64
      %p67 = scmp.ne.s32.totalorder %s52, %s66
      %p68 = scmp.eq.s32.totalorder %s21, 0
      %p69 = por %p67, %p68
      %s71 = sadd.s32 %s70, 1
      %p74 = scmp.eq.s32.totalorder %s15, 1
      %p75 = scmp.ne.s32.totalorder %s70, %s72
      %p76 = scmp.eq.s32.totalorder %s15, 0
      %p77 = por %p75, %p76
      %p78 = scmp.ne.s32.totalorder %s70, %s72
      %p79 = scmp.eq.s32.totalorder %s20, 1
      %p80 = por %p78, %p79
      %p81 = scmp.ne.s32.totalorder %s72, %s73
      %p82 = scmp.eq.s32.totalorder %s20, 0
      %p83 = por %p81, %p82
      %p84 = scmp.ne.s32.totalorder %s72, %s73
      %p85 = scmp.eq.s32.totalorder %s21, 1
      %p86 = por %p84, %p85
      %p88 = scmp.ne.s32.totalorder %s73, %s87
      %p89 = scmp.eq.s32.totalorder %s21, 0
      %p90 = por %p88, %p89
      %s92 = sadd.s32 %s91, 1
      %p95 = scmp.eq.s32.totalorder %s15, 1
      %p96 = scmp.ne.s32.totalorder %s91, %s93
      %p97 = scmp.eq.s32.totalorder %s15, 0
      %p98 = por %p96, %p97
      %p99 = scmp.ne.s32.totalorder %s91, %s93
      %p100 = scmp.eq.s32.totalorder %s20, 1
      %p101 = por %p99, %p100
      %p102 = scmp.ne.s32.totalorder %s93, %s94
      %p103 = scmp.eq.s32.totalorder %s20, 0
      %p104 = por %p102, %p103
      %p105 = scmp.ne.s32.totalorder %s93, %s94
      %p106 = scmp.eq.s32.totalorder %s21, 1
      %p107 = por %p105, %p106
      %p109 = scmp.ne.s32.totalorder %s94, %s108
      %p110 = scmp.eq.s32.totalorder %s21, 0
      %p111 = por %p109, %p110
      %s113 = sadd.s32 %s112, 1
      %p116 = scmp.eq.s32.totalorder %s15, 1
      %p117 = scmp.ne.s32.totalorder %s112, %s114
      %p118 = scmp.eq.s32.totalorder %s15, 0
      %p119 = por %p117, %p118
      %p120 = scmp.ne.s32.totalorder %s112, %s114
      %p121 = scmp.eq.s32.totalorder %s20, 1
      %p122 = por %p120, %p121
      %p123 = scmp.ne.s32.totalorder %s114, %s115
      %p124 = scmp.eq.s32.totalorder %s20, 0
      %p125 = por %p123, %p124
      %p126 = scmp.ne.s32.totalorder %s114, %s115
      %p127 = scmp.eq.s32.totalorder %s21, 1
      %p128 = por %p126, %p127
      %p130 = scmp.ne.s32.totalorder %s115, %s129
      %p131 = scmp.eq.s32.totalorder %s21, 0
      %p132 = por %p130, %p131
      %s134 = sadd.s32 %s133, 1
      %p137 = scmp.eq.s32.totalorder %s15, 1
      %p138 = scmp.ne.s32.totalorder %s133, %s135
      %p139 = scmp.eq.s32.totalorder %s15, 0
      %p140 = por %p138, %p139
      %p141 = scmp.ne.s32.totalorder %s133, %s135
      %p142 = scmp.eq.s32.totalorder %s20, 1
      %p143 = por %p141, %p142
      %p144 = scmp.ne.s32.totalorder %s135, %s136
      %p145 = scmp.eq.s32.totalorder %s20, 0
      %p146 = por %p144, %p145
      %p147 = scmp.ne.s32.totalorder %s135, %s136
      %p148 = scmp.eq.s32.totalorder %s21, 1
      %p149 = por %p147, %p148
      %p151 = scmp.ne.s32.totalorder %s136, %s150
      %p152 = scmp.eq.s32.totalorder %s21, 0
      %p153 = por %p151, %p152
      %s154 = ssub.s32 %s15, %s22
      %p155 = scmp.eq.s32.totalorder %s154, 0
      %s157 = sadd.s32 %s156, 1
      %s158 = scalar_select %p155, %s156, %s157
      %p161 = pneg %p155
      %p162 = scmp.eq.s32.totalorder %s15, 1
      %p163 = por %p161, %p162
      %p164 = scmp.ne.s32.totalorder %s156, %s159
      %p165 = scmp.eq.s32.totalorder %s15, 0
      %p166 = por %p164, %p165
      %p167 = scmp.ne.s32.totalorder %s156, %s159
      %p168 = scmp.eq.s32.totalorder %s20, 1
      %p169 = por %p167, %p168
      %p170 = scmp.ne.s32.totalorder %s159, %s160
      %p171 = scmp.eq.s32.totalorder %s20, 0
      %p172 = por %p170, %p171
      %p173 = scmp.ne.s32.totalorder %s159, %s160
      %p174 = scmp.eq.s32.totalorder %s21, 1
      %p175 = por %p173, %p174
      %p177 = scmp.ne.s32.totalorder %s160, %s176
      %p178 = scmp.eq.s32.totalorder %s21, 0
      %p179 = por %p177, %p178
      %p180 = scmp.le.s32.totalorder 1, %s15
      %p181 = scmp.lt.s32.totalorder %s15, 3
      %p182 = pnand %p180, %p181
      %p183 = pneg %p182
      // Predicated region
      $region9: #{tpu_custom_call.1} parent=5 // pred_check
        _
      $region10: #{tpu_custom_call.1} parent=5 // pred_check_branch
        %185 = sbr.rel (%p182) target = $region12
      $region11: #{tpu_custom_call.1} parent=5 // pred_region
        %s186 = ssub.s32 %s15, 1
        // Predicated region
        $region13: #{tpu_custom_call.1} parent=11 // pred_check
          %p187 = pneg %p62
        $region14: #{tpu_custom_call.1} parent=11 // pred_check_branch
          %189 = sbr.rel (%p187) target = $region16
        $region15: #{tpu_custom_call.1} parent=11 // pred_region
          _
        $region16: #{tpu_custom_call.1} parent=11 // pred_fallthru
          _
        // Predicated region
        $region17: #{tpu_custom_call.1} parent=11 // pred_check
          %p190 = pneg %p83
        $region18: #{tpu_custom_call.1} parent=11 // pred_check_branch
          %192 = sbr.rel (%p190) target = $region20
        $region19: #{tpu_custom_call.1} parent=11 // pred_region
          _
        $region20: #{tpu_custom_call.1} parent=11 // pred_fallthru
          _
        // Predicated region
        $region21: #{tpu_custom_call.1} parent=11 // pred_check
          %p193 = pneg %p104
        $region22: #{tpu_custom_call.1} parent=11 // pred_check_branch
          %195 = sbr.rel (%p193) target = $region24
        $region23: #{tpu_custom_call.1} parent=11 // pred_region
          _
        $region24: #{tpu_custom_call.1} parent=11 // pred_fallthru
          _
        // Predicated region
        $region25: #{tpu_custom_call.1} parent=11 // pred_check
          %p196 = pneg %p125
        $region26: #{tpu_custom_call.1} parent=11 // pred_check_branch
          %198 = sbr.rel (%p196) target = $region28
        $region27: #{tpu_custom_call.1} parent=11 // pred_region
          _
        $region28: #{tpu_custom_call.1} parent=11 // pred_fallthru
          _
        // Predicated region
        $region29: #{tpu_custom_call.1} parent=11 // pred_check
          %p199 = pneg %p146
        $region30: #{tpu_custom_call.1} parent=11 // pred_check_branch
          %201 = sbr.rel (%p199) target = $region32
        $region31: #{tpu_custom_call.1} parent=11 // pred_region
          _
        $region32: #{tpu_custom_call.1} parent=11 // pred_fallthru
          _
      $region12: #{tpu_custom_call.1} parent=5 // pred_fallthru
        _
      %p202 = scmp.lt.s32.totalorder %s15, 2
      // Predicated region
      $region33: #{tpu_custom_call.1} parent=5 // pred_check
        %p203 = pneg %p202
      $region34: #{tpu_custom_call.1} parent=5 // pred_check_branch
        %205 = sbr.rel (%p203) target = $region36
      $region35: #{tpu_custom_call.1} parent=5 // pred_region
        // Predicated region
        $region37: #{tpu_custom_call.1} parent=35 // pred_check
          %p206 = pneg %p35
        $region38: #{tpu_custom_call.1} parent=35 // pred_check_branch
          %208 = sbr.rel (%p206) target = $region40
        $region39: #{tpu_custom_call.1} parent=35 // pred_region
          %p209 = scmp.lt.s32.totalorder %s15, 1
          %s210 = scalar_select %p209, %s15, 1
          %s211 = smul.addr %s210, 80
          %s212 = smul.addr %s211, 8
          %s213 = scalar_lea.vmem %s0, %s212
        $region40: #{tpu_custom_call.1} parent=35 // pred_fallthru
          _
      $region36: #{tpu_custom_call.1} parent=5 // pred_fallthru
        _
      %p214 = scmp.le.s32.totalorder 1, %s15
      %p215 = scmp.lt.s32.totalorder %s15, 3
      %p216 = pnand %p214, %p215
      %p217 = pneg %p216
      // Predicated region
      $region41: #{tpu_custom_call.1} parent=5 // pred_check
        _
      $region42: #{tpu_custom_call.1} parent=5 // pred_check_branch
        %219 = sbr.rel (%p216) target = $region44
      $region43: #{tpu_custom_call.1} parent=5 // pred_region
        %s220 = ssub.s32 %s15, 1
        %p221 = scmp.lt.s32.totalorder %s20, 1
        %s222 = scalar_select %p221, %s20, 1
        %s223 = smul.addr %s222, 80
        %s224 = smul.addr %s223, 8
        %s225 = scalar_lea.vmem %s0, %s224
        %p226 = pneg %p41
        %p227 = pneg %p38
        %p228 = pneg %p62
        %p229 = pneg %p59
        %p230 = pneg %p83
        %p231 = pneg %p80
        %p232 = pneg %p104
        %p233 = pneg %p101
        %p234 = pneg %p125
        %p235 = pneg %p122
        %p236 = pneg %p146
        %p237 = pneg %p143
        %p238 = pneg %p172
        %p239 = pneg %p169
        %s240 = sand.u32 %s159, 1
        %s241 = scalar_lea.sflag [#allocation4], %s240
        %s242 = sand.u32 %s159, 1
        %s243 = smul.addr %s242, 32
        %s244 = scalar_lea.vmem [#allocation3], %s243
        %p245 = scmp.lt.s32.totalorder %s20, 1
        %s246 = scalar_select %p245, %s20, 1
        %s247 = smul.addr %s246, 80
        %s248 = smul.addr %s247, 8
        %s249 = scalar_lea.vmem %s0, %s248
        %v250 = vld [vmem:[%s249] sm:$0xff]
        %v251 = vld [vmem:[%s249 + $0x8] sm:$0xff]
        %v252 = vld [vmem:[%s249 + $0x10] sm:$0xff]
        %v253 = vld [vmem:[%s249 + $0x18] sm:$0xff]
        %v254 = vld [vmem:[%s249 + $0x20] sm:$0xff]
        %v255 = vld [vmem:[%s249 + $0x28] sm:$0xff]
        %v256 = vld [vmem:[%s249 + $0x30] sm:$0xff]
        %v257 = vld [vmem:[%s249 + $0x38] sm:$0xff]
        %v258 = vld [vmem:[%s249 + $0x40] sm:$0xff]
        %v259 = vld [vmem:[%s249 + $0x48] sm:$0xff]
        %v260 = vld [vmem:[%s249 + $0x50] sm:$0xff]
        %v261 = vld [vmem:[%s249 + $0x58] sm:$0xff]
        %v262 = vld [vmem:[%s249 + $0x60] sm:$0xff]
        %v263 = vld [vmem:[%s249 + $0x68] sm:$0xff]
        %v264 = vld [vmem:[%s249 + $0x70] sm:$0xff]
        %v265 = vld [vmem:[%s249 + $0x78] sm:$0xff]
        %v266 = vld [vmem:[%s249 + $0x80] sm:$0xff]
        %v267 = vld [vmem:[%s249 + $0x88] sm:$0xff]
        %v268 = vld [vmem:[%s249 + $0x90] sm:$0xff]
        %v269 = vld [vmem:[%s249 + $0x98] sm:$0xff]
        %v270 = vld [vmem:[%s249 + $0xa0] sm:$0xff]
        %v271 = vld [vmem:[%s249 + $0xa8] sm:$0xff]
        %v272 = vld [vmem:[%s249 + $0xb0] sm:$0xff]
        %v273 = vld [vmem:[%s249 + $0xb8] sm:$0xff]
        %v274 = vld [vmem:[%s249 + $0xc0] sm:$0xff]
        %v275 = vld [vmem:[%s249 + $0xc8] sm:$0xff]
        %v276 = vld [vmem:[%s249 + $0xd0] sm:$0xff]
        %v277 = vld [vmem:[%s249 + $0xd8] sm:$0xff]
        %v278 = vld [vmem:[%s249 + $0xe0] sm:$0xff]
        %v279 = vld [vmem:[%s249 + $0xe8] sm:$0xff]
        %v280 = vld [vmem:[%s249 + $0xf0] sm:$0xff]
        %v281 = vld [vmem:[%s249 + $0xf8] sm:$0xff]
        %v282 = vld [vmem:[%s249 + $0x100] sm:$0xff]
        %v283 = vld [vmem:[%s249 + $0x108] sm:$0xff]
        %v284 = vld [vmem:[%s249 + $0x110] sm:$0xff]
        %v285 = vld [vmem:[%s249 + $0x118] sm:$0xff]
        %v286 = vld [vmem:[%s249 + $0x120] sm:$0xff]
        %v287 = vld [vmem:[%s249 + $0x128] sm:$0xff]
        %v288 = vld [vmem:[%s249 + $0x130] sm:$0xff]
        %v289 = vld [vmem:[%s249 + $0x138] sm:$0xff]
        %v290 = vld [vmem:[%s249 + $0x140] sm:$0xff]
        %v291 = vld [vmem:[%s249 + $0x148] sm:$0xff]
        %v292 = vld [vmem:[%s249 + $0x150] sm:$0xff]
        %v293 = vld [vmem:[%s249 + $0x158] sm:$0xff]
        %v294 = vld [vmem:[%s249 + $0x160] sm:$0xff]
        %v295 = vld [vmem:[%s249 + $0x168] sm:$0xff]
        %v296 = vld [vmem:[%s249 + $0x170] sm:$0xff]
        %v297 = vld [vmem:[%s249 + $0x178] sm:$0xff]
        %v298 = vld [vmem:[%s249 + $0x180] sm:$0xff]
        %v299 = vld [vmem:[%s249 + $0x188] sm:$0xff]
        %v300 = vld [vmem:[%s249 + $0x190] sm:$0xff]
        %v301 = vld [vmem:[%s249 + $0x198] sm:$0xff]
        %v302 = vld [vmem:[%s249 + $0x1a0] sm:$0xff]
        %v303 = vld [vmem:[%s249 + $0x1a8] sm:$0xff]
        %v304 = vld [vmem:[%s249 + $0x1b0] sm:$0xff]
        %v305 = vld [vmem:[%s249 + $0x1b8] sm:$0xff]
        %v306 = vld [vmem:[%s249 + $0x1c0] sm:$0xff]
        %v307 = vld [vmem:[%s249 + $0x1c8] sm:$0xff]
        %v308 = vld [vmem:[%s249 + $0x1d0] sm:$0xff]
        %v309 = vld [vmem:[%s249 + $0x1d8] sm:$0xff]
        %v310 = vld [vmem:[%s249 + $0x1e0] sm:$0xff]
        %v311 = vld [vmem:[%s249 + $0x1e8] sm:$0xff]
        %v312 = vld [vmem:[%s249 + $0x1f0] sm:$0xff]
        %v313 = vld [vmem:[%s249 + $0x1f8] sm:$0xff]
        %v314 = vld [vmem:[%s249 + $0x200] sm:$0xff]
        %v315 = vld [vmem:[%s249 + $0x208] sm:$0xff]
        %v316 = vld [vmem:[%s249 + $0x210] sm:$0xff]
        %v317 = vld [vmem:[%s249 + $0x218] sm:$0xff]
        %v318 = vld [vmem:[%s249 + $0x220] sm:$0xff]
        %v319 = vld [vmem:[%s249 + $0x228] sm:$0xff]
        %v320 = vld [vmem:[%s249 + $0x230] sm:$0xff]
        %v321 = vld [vmem:[%s249 + $0x238] sm:$0xff]
        %v322 = vld [vmem:[%s249 + $0x240] sm:$0xff]
        %v323 = vld [vmem:[%s249 + $0x248] sm:$0xff]
        %v324 = vld [vmem:[%s249 + $0x250] sm:$0xff]
        %v325 = vld [vmem:[%s249 + $0x258] sm:$0xff]
        %v326 = vld [vmem:[%s249 + $0x260] sm:$0xff]
        %v327 = vld [vmem:[%s249 + $0x268] sm:$0xff]
        %v328 = vld [vmem:[%s249 + $0x270] sm:$0xff]
        %v329 = vld [vmem:[%s249 + $0x278] sm:$0xff]
        %v330 = vld [vmem:[%s1] sm:$0xff]
        %v331 = vld [vmem:[%s3] sm:$0xff]
        %v332 = vld [vmem:[%s3 + $0x8] sm:$0xff]
        %v333 = vld [vmem:[%s3 + $0x10] sm:$0xff]
        %v334 = vld [vmem:[%s3 + $0x18] sm:$0xff]
        %v335 = vld [vmem:[%s3 + $0x20] sm:$0xff]
        %v336 = vld [vmem:[%s3 + $0x28] sm:$0xff]
        %v337 = vld [vmem:[%s3 + $0x30] sm:$0xff]
        %v338 = vld [vmem:[%s3 + $0x38] sm:$0xff]
        %v339 = vld [vmem:[%s3 + $0x40] sm:$0xff]
        %v340 = vld [vmem:[%s3 + $0x48] sm:$0xff]
        %v341 = vld [vmem:[%s3 + $0x50] sm:$0xff]
        %v342 = vld [vmem:[%s3 + $0x58] sm:$0xff]
        %v343 = vld [vmem:[%s3 + $0x60] sm:$0xff]
        %v344 = vld [vmem:[%s3 + $0x68] sm:$0xff]
        %v345 = vld [vmem:[%s3 + $0x70] sm:$0xff]
        %v346 = vld [vmem:[%s3 + $0x78] sm:$0xff]
        %v347 = vld [vmem:[%s3 + $0x80] sm:$0xff]
        %v348 = vld [vmem:[%s3 + $0x88] sm:$0xff]
        %v349 = vld [vmem:[%s3 + $0x90] sm:$0xff]
        %v350 = vld [vmem:[%s3 + $0x98] sm:$0xff]
        %v351 = vld [vmem:[%s3 + $0xa0] sm:$0xff]
        %v352 = vld [vmem:[%s3 + $0xa8] sm:$0xff]
        %v353 = vld [vmem:[%s3 + $0xb0] sm:$0xff]
        %v354 = vld [vmem:[%s3 + $0xb8] sm:$0xff]
        %v355 = vld [vmem:[%s3 + $0xc0] sm:$0xff]
        %v356 = vld [vmem:[%s3 + $0xc8] sm:$0xff]
        %v357 = vld [vmem:[%s3 + $0xd0] sm:$0xff]
        %v358 = vld [vmem:[%s3 + $0xd8] sm:$0xff]
        %v359 = vld [vmem:[%s3 + $0xe0] sm:$0xff]
        %v360 = vld [vmem:[%s3 + $0xe8] sm:$0xff]
        %v361 = vld [vmem:[%s3 + $0xf0] sm:$0xff]
        %v362 = vld [vmem:[%s3 + $0xf8] sm:$0xff]
        %v363 = vld [vmem:[%s3 + $0x100] sm:$0xff]
        %v364 = vld [vmem:[%s3 + $0x108] sm:$0xff]
        %v365 = vld [vmem:[%s3 + $0x110] sm:$0xff]
        %v366 = vld [vmem:[%s3 + $0x118] sm:$0xff]
        %v367 = vld [vmem:[%s3 + $0x120] sm:$0xff]
        %v368 = vld [vmem:[%s3 + $0x128] sm:$0xff]
        %v369 = vld [vmem:[%s3 + $0x130] sm:$0xff]
        %v370 = vld [vmem:[%s3 + $0x138] sm:$0xff]
        %v371 = vld [vmem:[%s3 + $0x140] sm:$0xff]
        %v372 = vld [vmem:[%s3 + $0x148] sm:$0xff]
        %v373 = vld [vmem:[%s3 + $0x150] sm:$0xff]
        %v374 = vld [vmem:[%s3 + $0x158] sm:$0xff]
        %v375 = vld [vmem:[%s3 + $0x160] sm:$0xff]
        %v376 = vld [vmem:[%s3 + $0x168] sm:$0xff]
        %v377 = vld [vmem:[%s3 + $0x170] sm:$0xff]
        %v378 = vld [vmem:[%s3 + $0x178] sm:$0xff]
        %v379 = vld [vmem:[%s3 + $0x180] sm:$0xff]
        %v380 = vld [vmem:[%s3 + $0x188] sm:$0xff]
        %v381 = vld [vmem:[%s3 + $0x190] sm:$0xff]
        %v382 = vld [vmem:[%s3 + $0x198] sm:$0xff]
        %v383 = vld [vmem:[%s3 + $0x1a0] sm:$0xff]
        %v384 = vld [vmem:[%s3 + $0x1a8] sm:$0xff]
        %v385 = vld [vmem:[%s3 + $0x1b0] sm:$0xff]
        %v386 = vld [vmem:[%s3 + $0x1b8] sm:$0xff]
        %v387 = vld [vmem:[%s3 + $0x1c0] sm:$0xff]
        %v388 = vld [vmem:[%s3 + $0x1c8] sm:$0xff]
        %v389 = vld [vmem:[%s3 + $0x1d0] sm:$0xff]
        %v390 = vld [vmem:[%s3 + $0x1d8] sm:$0xff]
        %v391 = vld [vmem:[%s3 + $0x1e0] sm:$0xff]
        %v392 = vld [vmem:[%s3 + $0x1e8] sm:$0xff]
        %v393 = vld [vmem:[%s3 + $0x1f0] sm:$0xff]
        %v394 = vld [vmem:[%s3 + $0x1f8] sm:$0xff]
        %v395 = vld [vmem:[%s3 + $0x200] sm:$0xff]
        %v396 = vld [vmem:[%s3 + $0x208] sm:$0xff]
        %v397 = vld [vmem:[%s3 + $0x210] sm:$0xff]
        %v398 = vld [vmem:[%s3 + $0x218] sm:$0xff]
        %v399 = vld [vmem:[%s3 + $0x220] sm:$0xff]
        %v400 = vld [vmem:[%s3 + $0x228] sm:$0xff]
        %v401 = vld [vmem:[%s3 + $0x230] sm:$0xff]
        %v402 = vld [vmem:[%s3 + $0x238] sm:$0xff]
        %v403 = vld [vmem:[%s3 + $0x240] sm:$0xff]
        %v404 = vld [vmem:[%s3 + $0x248] sm:$0xff]
        %v405 = vld [vmem:[%s3 + $0x250] sm:$0xff]
        %v406 = vld [vmem:[%s3 + $0x258] sm:$0xff]
        %v407 = vld [vmem:[%s3 + $0x260] sm:$0xff]
        %v408 = vld [vmem:[%s3 + $0x268] sm:$0xff]
        %v409 = vld [vmem:[%s3 + $0x270] sm:$0xff]
        %v410 = vld [vmem:[%s3 + $0x278] sm:$0xff]
        %v411 = vld [vmem:[%s2] sm:$0x1]
        %413 = vset.pattern.permute.xlu0 0
        %414 = vperm.xlu0 %413, %v331
        %v415 = vpop.permute.xlu0 %414
        %418 = vset.pattern.permute.xlu0 0
        %419 = vperm.xlu0 %418, %v332
        %v420 = vpop.permute.xlu0 %419
        %423 = vset.pattern.permute.xlu0 0
        %424 = vperm.xlu0 %423, %v333
        %v425 = vpop.permute.xlu0 %424
        %428 = vset.pattern.permute.xlu0 0
        %429 = vperm.xlu0 %428, %v334
        %v430 = vpop.permute.xlu0 %429
        %433 = vset.pattern.permute.xlu0 0
        %434 = vperm.xlu0 %433, %v335
        %v435 = vpop.permute.xlu0 %434
        %438 = vset.pattern.permute.xlu0 0
        %439 = vperm.xlu0 %438, %v336
        %v440 = vpop.permute.xlu0 %439
        %443 = vset.pattern.permute.xlu0 0
        %444 = vperm.xlu0 %443, %v337
        %v445 = vpop.permute.xlu0 %444
        %448 = vset.pattern.permute.xlu0 0
        %449 = vperm.xlu0 %448, %v338
        %v450 = vpop.permute.xlu0 %449
        %453 = vset.pattern.permute.xlu0 0
        %454 = vperm.xlu0 %453, %v339
        %v455 = vpop.permute.xlu0 %454
        %458 = vset.pattern.permute.xlu0 0
        %459 = vperm.xlu0 %458, %v340
        %v460 = vpop.permute.xlu0 %459
        %463 = vset.pattern.permute.xlu0 0
        %464 = vperm.xlu0 %463, %v341
        %v465 = vpop.permute.xlu0 %464
        %468 = vset.pattern.permute.xlu0 0
        %469 = vperm.xlu0 %468, %v342
        %v470 = vpop.permute.xlu0 %469
        %473 = vset.pattern.permute.xlu0 0
        %474 = vperm.xlu0 %473, %v343
        %v475 = vpop.permute.xlu0 %474
        %478 = vset.pattern.permute.xlu0 0
        %479 = vperm.xlu0 %478, %v344
        %v480 = vpop.permute.xlu0 %479
        %483 = vset.pattern.permute.xlu0 0
        %484 = vperm.xlu0 %483, %v345
        %v485 = vpop.permute.xlu0 %484
        %488 = vset.pattern.permute.xlu0 0
        %489 = vperm.xlu0 %488, %v346
        %v490 = vpop.permute.xlu0 %489
        %493 = vset.pattern.permute.xlu0 0
        %494 = vperm.xlu0 %493, %v347
        %v495 = vpop.permute.xlu0 %494
        %498 = vset.pattern.permute.xlu0 0
        %499 = vperm.xlu0 %498, %v348
        %v500 = vpop.permute.xlu0 %499
        %503 = vset.pattern.permute.xlu0 0
        %504 = vperm.xlu0 %503, %v349
        %v505 = vpop.permute.xlu0 %504
        %508 = vset.pattern.permute.xlu0 0
        %509 = vperm.xlu0 %508, %v350
        %v510 = vpop.permute.xlu0 %509
        %513 = vset.pattern.permute.xlu0 0
        %514 = vperm.xlu0 %513, %v351
        %v515 = vpop.permute.xlu0 %514
        %518 = vset.pattern.permute.xlu0 0
        %519 = vperm.xlu0 %518, %v352
        %v520 = vpop.permute.xlu0 %519
        %523 = vset.pattern.permute.xlu0 0
        %524 = vperm.xlu0 %523, %v353
        %v525 = vpop.permute.xlu0 %524
        %528 = vset.pattern.permute.xlu0 0
        %529 = vperm.xlu0 %528, %v354
        %v530 = vpop.permute.xlu0 %529
        %533 = vset.pattern.permute.xlu0 0
        %534 = vperm.xlu0 %533, %v355
        %v535 = vpop.permute.xlu0 %534
        %538 = vset.pattern.permute.xlu0 0
        %539 = vperm.xlu0 %538, %v356
        %v540 = vpop.permute.xlu0 %539
        %543 = vset.pattern.permute.xlu0 0
        %544 = vperm.xlu0 %543, %v357
        %v545 = vpop.permute.xlu0 %544
        %548 = vset.pattern.permute.xlu0 0
        %549 = vperm.xlu0 %548, %v358
        %v550 = vpop.permute.xlu0 %549
        %553 = vset.pattern.permute.xlu0 0
        %554 = vperm.xlu0 %553, %v359
        %v555 = vpop.permute.xlu0 %554
        %558 = vset.pattern.permute.xlu0 0
        %559 = vperm.xlu0 %558, %v360
        %v560 = vpop.permute.xlu0 %559
        %563 = vset.pattern.permute.xlu0 0
        %564 = vperm.xlu0 %563, %v361
        %v565 = vpop.permute.xlu0 %564
        %568 = vset.pattern.permute.xlu0 0
        %569 = vperm.xlu0 %568, %v362
        %v570 = vpop.permute.xlu0 %569
        %573 = vset.pattern.permute.xlu0 0
        %574 = vperm.xlu0 %573, %v363
        %v575 = vpop.permute.xlu0 %574
        %578 = vset.pattern.permute.xlu0 0
        %579 = vperm.xlu0 %578, %v364
        %v580 = vpop.permute.xlu0 %579
        %583 = vset.pattern.permute.xlu0 0
        %584 = vperm.xlu0 %583, %v365
        %v585 = vpop.permute.xlu0 %584
        %588 = vset.pattern.permute.xlu0 0
        %589 = vperm.xlu0 %588, %v366
        %v590 = vpop.permute.xlu0 %589
        %593 = vset.pattern.permute.xlu0 0
        %594 = vperm.xlu0 %593, %v367
        %v595 = vpop.permute.xlu0 %594
        %598 = vset.pattern.permute.xlu0 0
        %599 = vperm.xlu0 %598, %v368
        %v600 = vpop.permute.xlu0 %599
        %603 = vset.pattern.permute.xlu0 0
        %604 = vperm.xlu0 %603, %v369
        %v605 = vpop.permute.xlu0 %604
        %608 = vset.pattern.permute.xlu0 0
        %609 = vperm.xlu0 %608, %v370
        %v610 = vpop.permute.xlu0 %609
        %613 = vset.pattern.permute.xlu0 0
        %614 = vperm.xlu0 %613, %v371
        %v615 = vpop.permute.xlu0 %614
        %618 = vset.pattern.permute.xlu0 0
        %619 = vperm.xlu0 %618, %v372
        %v620 = vpop.permute.xlu0 %619
        %623 = vset.pattern.permute.xlu0 0
        %624 = vperm.xlu0 %623, %v373
        %v625 = vpop.permute.xlu0 %624
        %628 = vset.pattern.permute.xlu0 0
        %629 = vperm.xlu0 %628, %v374
        %v630 = vpop.permute.xlu0 %629
        %633 = vset.pattern.permute.xlu0 0
        %634 = vperm.xlu0 %633, %v375
        %v635 = vpop.permute.xlu0 %634
        %638 = vset.pattern.permute.xlu0 0
        %639 = vperm.xlu0 %638, %v376
        %v640 = vpop.permute.xlu0 %639
        %643 = vset.pattern.permute.xlu0 0
        %644 = vperm.xlu0 %643, %v377
        %v645 = vpop.permute.xlu0 %644
        %648 = vset.pattern.permute.xlu0 0
        %649 = vperm.xlu0 %648, %v378
        %v650 = vpop.permute.xlu0 %649
        %653 = vset.pattern.permute.xlu0 0
        %654 = vperm.xlu0 %653, %v379
        %v655 = vpop.permute.xlu0 %654
        %658 = vset.pattern.permute.xlu0 0
        %659 = vperm.xlu0 %658, %v380
        %v660 = vpop.permute.xlu0 %659
        %663 = vset.pattern.permute.xlu0 0
        %664 = vperm.xlu0 %663, %v381
        %v665 = vpop.permute.xlu0 %664
        %668 = vset.pattern.permute.xlu0 0
        %669 = vperm.xlu0 %668, %v382
        %v670 = vpop.permute.xlu0 %669
        %673 = vset.pattern.permute.xlu0 0
        %674 = vperm.xlu0 %673, %v383
        %v675 = vpop.permute.xlu0 %674
        %678 = vset.pattern.permute.xlu0 0
        %679 = vperm.xlu0 %678, %v384
        %v680 = vpop.permute.xlu0 %679
        %683 = vset.pattern.permute.xlu0 0
        %684 = vperm.xlu0 %683, %v385
        %v685 = vpop.permute.xlu0 %684
        %688 = vset.pattern.permute.xlu0 0
        %689 = vperm.xlu0 %688, %v386
        %v690 = vpop.permute.xlu0 %689
        %693 = vset.pattern.permute.xlu0 0
        %694 = vperm.xlu0 %693, %v387
        %v695 = vpop.permute.xlu0 %694
        %698 = vset.pattern.permute.xlu0 0
        %699 = vperm.xlu0 %698, %v388
        %v700 = vpop.permute.xlu0 %699
        %703 = vset.pattern.permute.xlu0 0
        %704 = vperm.xlu0 %703, %v389
        %v705 = vpop.permute.xlu0 %704
        %708 = vset.pattern.permute.xlu0 0
        %709 = vperm.xlu0 %708, %v390
        %v710 = vpop.permute.xlu0 %709
        %713 = vset.pattern.permute.xlu0 0
        %714 = vperm.xlu0 %713, %v391
        %v715 = vpop.permute.xlu0 %714
        %718 = vset.pattern.permute.xlu0 0
        %719 = vperm.xlu0 %718, %v392
        %v720 = vpop.permute.xlu0 %719
        %723 = vset.pattern.permute.xlu0 0
        %724 = vperm.xlu0 %723, %v393
        %v725 = vpop.permute.xlu0 %724
        %728 = vset.pattern.permute.xlu0 0
        %729 = vperm.xlu0 %728, %v394
        %v730 = vpop.permute.xlu0 %729
        %733 = vset.pattern.permute.xlu0 0
        %734 = vperm.xlu0 %733, %v395
        %v735 = vpop.permute.xlu0 %734
        %738 = vset.pattern.permute.xlu0 0
        %739 = vperm.xlu0 %738, %v396
        %v740 = vpop.permute.xlu0 %739
        %743 = vset.pattern.permute.xlu0 0
        %744 = vperm.xlu0 %743, %v397
        %v745 = vpop.permute.xlu0 %744
        %748 = vset.pattern.permute.xlu0 0
        %749 = vperm.xlu0 %748, %v398
        %v750 = vpop.permute.xlu0 %749
        %753 = vset.pattern.permute.xlu0 0
        %754 = vperm.xlu0 %753, %v399
        %v755 = vpop.permute.xlu0 %754
        %758 = vset.pattern.permute.xlu0 0
        %759 = vperm.xlu0 %758, %v400
        %v760 = vpop.permute.xlu0 %759
        %763 = vset.pattern.permute.xlu0 0
        %764 = vperm.xlu0 %763, %v401
        %v765 = vpop.permute.xlu0 %764
        %768 = vset.pattern.permute.xlu0 0
        %769 = vperm.xlu0 %768, %v402
        %v770 = vpop.permute.xlu0 %769
        %773 = vset.pattern.permute.xlu0 0
        %774 = vperm.xlu0 %773, %v403
        %v775 = vpop.permute.xlu0 %774
        %778 = vset.pattern.permute.xlu0 0
        %779 = vperm.xlu0 %778, %v404
        %v780 = vpop.permute.xlu0 %779
        %783 = vset.pattern.permute.xlu0 0
        %784 = vperm.xlu0 %783, %v405
        %v785 = vpop.permute.xlu0 %784
        %788 = vset.pattern.permute.xlu0 0
        %789 = vperm.xlu0 %788, %v406
        %v790 = vpop.permute.xlu0 %789
        %793 = vset.pattern.permute.xlu0 0
        %794 = vperm.xlu0 %793, %v407
        %v795 = vpop.permute.xlu0 %794
        %798 = vset.pattern.permute.xlu0 0
        %799 = vperm.xlu0 %798, %v408
        %v800 = vpop.permute.xlu0 %799
        %803 = vset.pattern.permute.xlu0 0
        %804 = vperm.xlu0 %803, %v409
        %v805 = vpop.permute.xlu0 %804
        %808 = vset.pattern.permute.xlu0 0
        %809 = vperm.xlu0 %808, %v410
        %v810 = vpop.permute.xlu0 %809
        %v813 = vlaneseq
        %v814 = vshrl.u32 %v813, 7
        %v815 = vsub.s32 0, %v814
        %v816 = vrot.slane %v411, %v815
        %v818 = vmul.f32 %v415, %v816
        %v819 = vmul.f32 %v420, %v816
        %v820 = vmul.f32 %v425, %v816
        %v821 = vmul.f32 %v430, %v816
        %v822 = vmul.f32 %v435, %v816
        %v823 = vmul.f32 %v440, %v816
        %v824 = vmul.f32 %v445, %v816
        %v825 = vmul.f32 %v450, %v816
        %v826 = vmul.f32 %v455, %v816
        %v827 = vmul.f32 %v460, %v816
        %v828 = vmul.f32 %v465, %v816
        %v829 = vmul.f32 %v470, %v816
        %v830 = vmul.f32 %v475, %v816
        %v831 = vmul.f32 %v480, %v816
        %v832 = vmul.f32 %v485, %v816
        %v833 = vmul.f32 %v490, %v816
        %v834 = vmul.f32 %v495, %v816
        %v835 = vmul.f32 %v500, %v816
        %v836 = vmul.f32 %v505, %v816
        %v837 = vmul.f32 %v510, %v816
        %v838 = vmul.f32 %v515, %v816
        %v839 = vmul.f32 %v520, %v816
        %v840 = vmul.f32 %v525, %v816
        %v841 = vmul.f32 %v530, %v816
        %v842 = vmul.f32 %v535, %v816
        %v843 = vmul.f32 %v540, %v816
        %v844 = vmul.f32 %v545, %v816
        %v845 = vmul.f32 %v550, %v816
        %v846 = vmul.f32 %v555, %v816
        %v847 = vmul.f32 %v560, %v816
        %v848 = vmul.f32 %v565, %v816
        %v849 = vmul.f32 %v570, %v816
        %v850 = vmul.f32 %v575, %v816
        %v851 = vmul.f32 %v580, %v816
        %v852 = vmul.f32 %v585, %v816
        %v853 = vmul.f32 %v590, %v816
        %v854 = vmul.f32 %v595, %v816
        %v855 = vmul.f32 %v600, %v816
        %v856 = vmul.f32 %v605, %v816
        %v857 = vmul.f32 %v610, %v816
        %v858 = vmul.f32 %v615, %v816
        %v859 = vmul.f32 %v620, %v816
        %v860 = vmul.f32 %v625, %v816
        %v861 = vmul.f32 %v630, %v816
        %v862 = vmul.f32 %v635, %v816
        %v863 = vmul.f32 %v640, %v816
        %v864 = vmul.f32 %v645, %v816
        %v865 = vmul.f32 %v650, %v816
        %v866 = vmul.f32 %v655, %v816
        %v867 = vmul.f32 %v660, %v816
        %v868 = vmul.f32 %v665, %v816
        %v869 = vmul.f32 %v670, %v816
        %v870 = vmul.f32 %v675, %v816
        %v871 = vmul.f32 %v680, %v816
        %v872 = vmul.f32 %v685, %v816
        %v873 = vmul.f32 %v690, %v816
        %v874 = vmul.f32 %v695, %v816
        %v875 = vmul.f32 %v700, %v816
        %v876 = vmul.f32 %v705, %v816
        %v877 = vmul.f32 %v710, %v816
        %v878 = vmul.f32 %v715, %v816
        %v879 = vmul.f32 %v720, %v816
        %v880 = vmul.f32 %v725, %v816
        %v881 = vmul.f32 %v730, %v816
        %v882 = vmul.f32 %v735, %v816
        %v883 = vmul.f32 %v740, %v816
        %v884 = vmul.f32 %v745, %v816
        %v885 = vmul.f32 %v750, %v816
        %v886 = vmul.f32 %v755, %v816
        %v887 = vmul.f32 %v760, %v816
        %v888 = vmul.f32 %v765, %v816
        %v889 = vmul.f32 %v770, %v816
        %v890 = vmul.f32 %v775, %v816
        %v891 = vmul.f32 %v780, %v816
        %v892 = vmul.f32 %v785, %v816
        %v893 = vmul.f32 %v790, %v816
        %v894 = vmul.f32 %v795, %v816
        %v895 = vmul.f32 %v800, %v816
        %v896 = vmul.f32 %v805, %v816
        %v897 = vmul.f32 %v810, %v816
        %vm898 = vcmask 64512
        %v900 = vsel %vm898, %v250, 0
        %v903 = vsel %vm898, %v251, 0
        %v906 = vsel %vm898, %v252, 0
        %v909 = vsel %vm898, %v253, 0
        %v912 = vsel %vm898, %v254, 0
        %v915 = vsel %vm898, %v255, 0
        %v918 = vsel %vm898, %v256, 0
        %v921 = vsel %vm898, %v257, 0
        %v924 = vsel %vm898, %v258, 0
        %v927 = vsel %vm898, %v259, 0
        %v930 = vsel %vm898, %v260, 0
        %v933 = vsel %vm898, %v261, 0
        %v936 = vsel %vm898, %v262, 0
        %v939 = vsel %vm898, %v263, 0
        %v942 = vsel %vm898, %v264, 0
        %v945 = vsel %vm898, %v265, 0
        %v948 = vsel %vm898, %v266, 0
        %v951 = vsel %vm898, %v267, 0
        %v954 = vsel %vm898, %v268, 0
        %v957 = vsel %vm898, %v269, 0
        %v960 = vsel %vm898, %v270, 0
        %v963 = vsel %vm898, %v271, 0
        %v966 = vsel %vm898, %v272, 0
        %v969 = vsel %vm898, %v273, 0
        %v972 = vsel %vm898, %v274, 0
        %v975 = vsel %vm898, %v275, 0
        %v978 = vsel %vm898, %v276, 0
        %v981 = vsel %vm898, %v277, 0
        %v984 = vsel %vm898, %v278, 0
        %v987 = vsel %vm898, %v279, 0
        %v990 = vsel %vm898, %v280, 0
        %v993 = vsel %vm898, %v281, 0
        %v996 = vsel %vm898, %v282, 0
        %v999 = vsel %vm898, %v283, 0
        %v1002 = vsel %vm898, %v284, 0
        %v1005 = vsel %vm898, %v285, 0
        %v1008 = vsel %vm898, %v286, 0
        %v1011 = vsel %vm898, %v287, 0
        %v1014 = vsel %vm898, %v288, 0
        %v1017 = vsel %vm898, %v289, 0
        %v1020 = vsel %vm898, %v290, 0
        %v1023 = vsel %vm898, %v291, 0
        %v1026 = vsel %vm898, %v292, 0
        %v1029 = vsel %vm898, %v293, 0
        %v1032 = vsel %vm898, %v294, 0
        %v1035 = vsel %vm898, %v295, 0
        %v1038 = vsel %vm898, %v296, 0
        %v1041 = vsel %vm898, %v297, 0
        %v1044 = vsel %vm898, %v298, 0
        %v1047 = vsel %vm898, %v299, 0
        %v1050 = vsel %vm898, %v300, 0
        %v1053 = vsel %vm898, %v301, 0
        %v1056 = vsel %vm898, %v302, 0
        %v1059 = vsel %vm898, %v303, 0
        %v1062 = vsel %vm898, %v304, 0
        %v1065 = vsel %vm898, %v305, 0
        %v1068 = vsel %vm898, %v306, 0
        %v1071 = vsel %vm898, %v307, 0
        %v1074 = vsel %vm898, %v308, 0
        %v1077 = vsel %vm898, %v309, 0
        %v1080 = vsel %vm898, %v310, 0
        %v1083 = vsel %vm898, %v311, 0
        %v1086 = vsel %vm898, %v312, 0
        %v1089 = vsel %vm898, %v313, 0
        %v1092 = vsel %vm898, %v314, 0
        %v1095 = vsel %vm898, %v315, 0
        %v1098 = vsel %vm898, %v316, 0
        %v1101 = vsel %vm898, %v317, 0
        %v1104 = vsel %vm898, %v318, 0
        %v1107 = vsel %vm898, %v319, 0
        %v1110 = vsel %vm898, %v320, 0
        %v1113 = vsel %vm898, %v321, 0
        %v1116 = vsel %vm898, %v322, 0
        %v1119 = vsel %vm898, %v323, 0
        %v1122 = vsel %vm898, %v324, 0
        %v1125 = vsel %vm898, %v325, 0
        %v1128 = vsel %vm898, %v326, 0
        %v1131 = vsel %vm898, %v327, 0
        %v1134 = vsel %vm898, %v328, 0
        %v1137 = vsel %vm898, %v329, 0
        %1139 = vmatprep.subr.mxu0 0.0
        %1140 = vmatpush1.msra.mxu0 %v330
        %1141 = vmatprep.subr.mxu0 0.0
        %1142 = vmatpush1.msra.mxu0 0.0
        %1143 = vmatprep.subr.mxu0 0.0
        %1144 = vmatpush1.msra.mxu0 0.0
        %1145 = vmatprep.subr.mxu0 0.0
        %1146 = vmatpush1.msra.mxu0 0.0
        %1147 = vmatprep.subr.mxu0 0.0
        %1148 = vmatpush1.msra.mxu0 0.0
        %1149 = vmatprep.subr.mxu0 0.0
        %1150 = vmatpush1.msra.mxu0 0.0
        %1151 = vmatprep.subr.mxu0 0.0
        %1152 = vmatpush1.msra.mxu0 0.0
        %1153 = vmatprep.subr.mxu0 0.0
        %1154 = vmatpush1.msra.mxu0 0.0
        %1155 = vmatprep.subr.mxu0 0.0
        %1156 = vmatpush1.msra.mxu0 0.0
        %1157 = vmatprep.subr.mxu0 0.0
        %1158 = vmatpush1.msra.mxu0 0.0
        %1159 = vmatprep.subr.mxu0 0.0
        %1160 = vmatpush1.msra.mxu0 0.0
        %1161 = vmatprep.subr.mxu0 0.0
        %1162 = vmatpush1.msra.mxu0 0.0
        %1163 = vmatprep.subr.mxu0 0.0
        %1164 = vmatpush1.msra.mxu0 0.0
        %1165 = vmatprep.subr.mxu0 0.0
        %1166 = vmatpush1.msra.mxu0 0.0
        %1167 = vmatprep.subr.mxu0 0.0
        %1168 = vmatpush1.msra.mxu0 0.0
        %1169 = vmatprep.subr.mxu0 0.0
        %1170 = vmatpush1.msra.mxu0 0.0
        %1171 = vmatprep.subr.mxu0 0.0
        %1172 = vmatpush1.msra.mxu0 0.0
        %1173 = vmatprep.subr.mxu0 0.0
        %1174 = vmatpush1.msra.mxu0 0.0
        %1175 = vmatprep.subr.mxu0 0.0
        %1176 = vmatpush1.msra.mxu0 0.0
        %1177 = vmatprep.subr.mxu0 0.0
        %1178 = vmatpush1.msra.mxu0 0.0
        %1179 = vmatprep.subr.mxu0 0.0
        %1180 = vmatpush1.msra.mxu0 0.0
        %1181 = vmatprep.subr.mxu0 0.0
        %1182 = vmatpush1.msra.mxu0 0.0
        %1183 = vmatprep.subr.mxu0 0.0
        %1184 = vmatpush1.msra.mxu0 0.0
        %1185 = vmatprep.subr.mxu0 0.0
        %1186 = vmatpush1.msra.mxu0 0.0
        %1187 = vmatprep.subr.mxu0 0.0
        %1188 = vmatpush1.msra.mxu0 0.0
        %1189 = vmatprep.subr.mxu0 0.0
        %1190 = vmatpush1.msra.mxu0 0.0
        %1191 = vmatprep.subr.mxu0 0.0
        %1192 = vmatpush1.msra.mxu0 0.0
        %1193 = vmatprep.subr.mxu0 0.0
        %1194 = vmatpush1.msra.mxu0 0.0
        %1195 = vmatprep.subr.mxu0 0.0
        %1196 = vmatpush1.msra.mxu0 0.0
        %1197 = vmatprep.subr.mxu0 0.0
        %1198 = vmatpush1.msra.mxu0 0.0
        %1199 = vmatprep.subr.mxu0 0.0
        %1200 = vmatpush1.msra.mxu0 0.0
        %1201 = vmatprep.subr.mxu0 0.0
        %1202 = vmatpush1.msra.mxu0 0.0
        %1203 = vmatprep.mubr.f32.mxu0 0.0
        %1204 = vmatmul.mubr.f32.gmra.mrb[0].mxu0 %v900
        %v1205 = vpop.f32.mrb[0].mxu0
        %v1206 = vadd.f32 %v818, %v1205
        %v1207 = vpop.f32.mrb[0].mxu0
        %1208 = vmatprep.mubr.f32.mxu0 0.0
        %1209 = vmatmul.mubr.f32.gmra.mrb[0].mxu0 %v903
        %v1210 = vpop.f32.mrb[0].mxu0
        %v1211 = vadd.f32 %v819, %v1210
        %v1212 = vpop.f32.mrb[0].mxu0
        %1213 = vmatprep.mubr.f32.mxu0 0.0
        %1214 = vmatmul.mubr.f32.gmra.mrb[0].mxu0 %v906
        %v1215 = vpop.f32.mrb[0].mxu0
        %v1216 = vadd.f32 %v820, %v1215
        %v1217 = vpop.f32.mrb[0].mxu0
        %1218 = vmatprep.mubr.f32.mxu0 0.0
        %1219 = vmatmul.mubr.f32.gmra.mrb[0].mxu0 %v909
        %v1220 = vpop.f32.mrb[0].mxu0
        %v1221 = vadd.f32 %v821, %v1220
        %v1222 = vpop.f32.mrb[0].mxu0
        %1223 = vmatprep.mubr.f32.mxu0 0.0
        %1224 = vmatmul.mubr.f32.gmra.mrb[0].mxu0 %v912
        %v1225 = vpop.f32.mrb[0].mxu0
        %v1226 = vadd.f32 %v822, %v1225
        %v1227 = vpop.f32.mrb[0].mxu0
        %1228 = vmatprep.mubr.f32.mxu0 0.0
        %1229 = vmatmul.mubr.f32.gmra.mrb[0].mxu0 %v915
        %v1230 = vpop.f32.mrb[0].mxu0
        %v1231 = vadd.f32 %v823, %v1230
        %v1232 = vpop.f32.mrb[0].mxu0
        %1233 = vmatprep.mubr.f32.mxu0 0.0
        %1234 = vmatmul.mubr.f32.gmra.mrb[0].mxu0 %v918
        %v1235 = vpop.f32.mrb[0].mxu0
        %v1236 = vadd.f32 %v824, %v1235
        %v1237 = vpop.f32.mrb[0].mxu0
        %1238 = vmatprep.mubr.f32.mxu0 0.0
        %1239 = vmatmul.mubr.f32.gmra.mrb[0].mxu0 %v921
        %v1240 = vpop.f32.mrb[0].mxu0
        %v1241 = vadd.f32 %v825, %v1240
        %v1242 = vpop.f32.mrb[0].mxu0
        %1243 = vmatprep.mubr.f32.mxu0 0.0
        %1244 = vmatmul.mubr.f32.gmra.mrb[0].mxu0 %v924
        %v1245 = vpop.f32.mrb[0].mxu0
        %v1246 = vadd.f32 %v826, %v1245
        %v1247 = vpop.f32.mrb[0].mxu0
        %1248 = vmatprep.mubr.f32.mxu0 0.0
        %1249 = vmatmul.mubr.f32.gmra.mrb[0].mxu0 %v927
        %v1250 = vpop.f32.mrb[0].mxu0
        %v1251 = vadd.f32 %v827, %v1250
        %v1252 = vpop.f32.mrb[0].mxu0
        %1253 = vmatprep.mubr.f32.mxu0 0.0
        %1254 = vmatmul.mubr.f32.gmra.mrb[0].mxu0 %v930
        %v1255 = vpop.f32.mrb[0].mxu0
        %v1256 = vadd.f32 %v828, %v1255
        %v1257 = vpop.f32.mrb[0].mxu0
        %1258 = vmatprep.mubr.f32.mxu0 0.0
        %1259 = vmatmul.mubr.f32.gmra.mrb[0].mxu0 %v933
        %v1260 = vpop.f32.mrb[0].mxu0
        %v1261 = vadd.f32 %v829, %v1260
        %v1262 = vpop.f32.mrb[0].mxu0
        %1263 = vmatprep.mubr.f32.mxu0 0.0
        %1264 = vmatmul.mubr.f32.gmra.mrb[0].mxu0 %v936
        %v1265 = vpop.f32.mrb[0].mxu0
        %v1266 = vadd.f32 %v830, %v1265
        %v1267 = vpop.f32.mrb[0].mxu0
        %1268 = vmatprep.mubr.f32.mxu0 0.0
        %1269 = vmatmul.mubr.f32.gmra.mrb[0].mxu0 %v939
        %v1270 = vpop.f32.mrb[0].mxu0
        %v1271 = vadd.f32 %v831, %v1270
        %v1272 = vpop.f32.mrb[0].mxu0
        %1273 = vmatprep.mubr.f32.mxu0 0.0
        %1274 = vmatmul.mubr.f32.gmra.mrb[0].mxu0 %v942
        %v1275 = vpop.f32.mrb[0].mxu0
        %v1276 = vadd.f32 %v832, %v1275
        %v1277 = vpop.f32.mrb[0].mxu0
        %1278 = vmatprep.mubr.f32.mxu0 0.0
        %1279 = vmatmul.mubr.f32.gmra.mrb[0].mxu0 %v945
        %v1280 = vpop.f32.mrb[0].mxu0
        %v1281 = vadd.f32 %v833, %v1280
        %v1282 = vpop.f32.mrb[0].mxu0
        %1283 = vmatprep.mubr.f32.mxu0 0.0
        %1284 = vmatmul.mubr.f32.gmra.mrb[0].mxu0 %v948
        %v1285 = vpop.f32.mrb[0].mxu0
        %v1286 = vadd.f32 %v834, %v1285
        %v1287 = vpop.f32.mrb[0].mxu0
        %1288 = vmatprep.mubr.f32.mxu0 0.0
        %1289 = vmatmul.mubr.f32.gmra.mrb[0].mxu0 %v951
        %v1290 = vpop.f32.mrb[0].mxu0
        %v1291 = vadd.f32 %v835, %v1290
        %v1292 = vpop.f32.mrb[0].mxu0
        %1293 = vmatprep.mubr.f32.mxu0 0.0
        %1294 = vmatmul.mubr.f32.gmra.mrb[0].mxu0 %v954
        %v1295 = vpop.f32.mrb[0].mxu0
        %v1296 = vadd.f32 %v836, %v1295
        %v1297 = vpop.f32.mrb[0].mxu0
        %1298 = vmatprep.mubr.f32.mxu0 0.0
        %1299 = vmatmul.mubr.f32.gmra.mrb[0].mxu0 %v957
        %v1300 = vpop.f32.mrb[0].mxu0
        %v1301 = vadd.f32 %v837, %v1300
        %v1302 = vpop.f32.mrb[0].mxu0
        %1303 = vmatprep.mubr.f32.mxu0 0.0
        %1304 = vmatmul.mubr.f32.gmra.mrb[0].mxu0 %v960
        %v1305 = vpop.f32.mrb[0].mxu0
        %v1306 = vadd.f32 %v838, %v1305
        %v1307 = vpop.f32.mrb[0].mxu0
        %1308 = vmatprep.mubr.f32.mxu0 0.0
        %1309 = vmatmul.mubr.f32.gmra.mrb[0].mxu0 %v963
        %v1310 = vpop.f32.mrb[0].mxu0
        %v1311 = vadd.f32 %v839, %v1310
        %v1312 = vpop.f32.mrb[0].mxu0
        %1313 = vmatprep.mubr.f32.mxu0 0.0
        %1314 = vmatmul.mubr.f32.gmra.mrb[0].mxu0 %v966
        %v1315 = vpop.f32.mrb[0].mxu0
        %v1316 = vadd.f32 %v840, %v1315
        %v1317 = vpop.f32.mrb[0].mxu0
        %1318 = vmatprep.mubr.f32.mxu0 0.0
        %1319 = vmatmul.mubr.f32.gmra.mrb[0].mxu0 %v969
        %v1320 = vpop.f32.mrb[0].mxu0
        %v1321 = vadd.f32 %v841, %v1320
        %v1322 = vpop.f32.mrb[0].mxu0
        %1323 = vmatprep.mubr.f32.mxu0 0.0
        %1324 = vmatmul.mubr.f32.gmra.mrb[0].mxu0 %v972
        %v1325 = vpop.f32.mrb[0].mxu0
        %v1326 = vadd.f32 %v842, %v1325
        %v1327 = vpop.f32.mrb[0].mxu0
        %1328 = vmatprep.mubr.f32.mxu0 0.0
        %1329 = vmatmul.mubr.f32.gmra.mrb[0].mxu0 %v975
        %v1330 = vpop.f32.mrb[0].mxu0
        %v1331 = vadd.f32 %v843, %v1330
        %v1332 = vpop.f32.mrb[0].mxu0
        %1333 = vmatprep.mubr.f32.mxu0 0.0
        %1334 = vmatmul.mubr.f32.gmra.mrb[0].mxu0 %v978
        %v1335 = vpop.f32.mrb[0].mxu0
        %v1336 = vadd.f32 %v844, %v1335
        %v1337 = vpop.f32.mrb[0].mxu0
        %1338 = vmatprep.mubr.f32.mxu0 0.0
        %1339 = vmatmul.mubr.f32.gmra.mrb[0].mxu0 %v981
        %v1340 = vpop.f32.mrb[0].mxu0
        %v1341 = vadd.f32 %v845, %v1340
        %v1342 = vpop.f32.mrb[0].mxu0
        %1343 = vmatprep.mubr.f32.mxu0 0.0
        %1344 = vmatmul.mubr.f32.gmra.mrb[0].mxu0 %v984
        %v1345 = vpop.f32.mrb[0].mxu0
        %v1346 = vadd.f32 %v846, %v1345
        %v1347 = vpop.f32.mrb[0].mxu0
        %1348 = vmatprep.mubr.f32.mxu0 0.0
        %1349 = vmatmul.mubr.f32.gmra.mrb[0].mxu0 %v987
        %v1350 = vpop.f32.mrb[0].mxu0
        %v1351 = vadd.f32 %v847, %v1350
        %v1352 = vpop.f32.mrb[0].mxu0
        %1353 = vmatprep.mubr.f32.mxu0 0.0
        %1354 = vmatmul.mubr.f32.gmra.mrb[0].mxu0 %v990
        %v1355 = vpop.f32.mrb[0].mxu0
        %v1356 = vadd.f32 %v848, %v1355
        %v1357 = vpop.f32.mrb[0].mxu0
        %1358 = vmatprep.mubr.f32.mxu0 0.0
        %1359 = vmatmul.mubr.f32.gmra.mrb[0].mxu0 %v993
        %v1360 = vpop.f32.mrb[0].mxu0
        %v1361 = vadd.f32 %v849, %v1360
        %v1362 = vpop.f32.mrb[0].mxu0
        %1363 = vmatprep.mubr.f32.mxu0 0.0
        %1364 = vmatmul.mubr.f32.gmra.mrb[0].mxu0 %v996
        %v1365 = vpop.f32.mrb[0].mxu0
        %v1366 = vadd.f32 %v850, %v1365
        %v1367 = vpop.f32.mrb[0].mxu0
        %1368 = vmatprep.mubr.f32.mxu0 0.0
        %1369 = vmatmul.mubr.f32.gmra.mrb[0].mxu0 %v999
        %v1370 = vpop.f32.mrb[0].mxu0
        %v1371 = vadd.f32 %v851, %v1370
        %v1372 = vpop.f32.mrb[0].mxu0
        %1373 = vmatprep.mubr.f32.mxu0 0.0
        %1374 = vmatmul.mubr.f32.gmra.mrb[0].mxu0 %v1002
        %v1375 = vpop.f32.mrb[0].mxu0
        %v1376 = vadd.f32 %v852, %v1375
        %v1377 = vpop.f32.mrb[0].mxu0
        %1378 = vmatprep.mubr.f32.mxu0 0.0
        %1379 = vmatmul.mubr.f32.gmra.mrb[0].mxu0 %v1005
        %v1380 = vpop.f32.mrb[0].mxu0
        %v1381 = vadd.f32 %v853, %v1380
        %v1382 = vpop.f32.mrb[0].mxu0
        %1383 = vmatprep.mubr.f32.mxu0 0.0
        %1384 = vmatmul.mubr.f32.gmra.mrb[0].mxu0 %v1008
        %v1385 = vpop.f32.mrb[0].mxu0
        %v1386 = vadd.f32 %v854, %v1385
        %v1387 = vpop.f32.mrb[0].mxu0
        %1388 = vmatprep.mubr.f32.mxu0 0.0
        %1389 = vmatmul.mubr.f32.gmra.mrb[0].mxu0 %v1011
        %v1390 = vpop.f32.mrb[0].mxu0
        %v1391 = vadd.f32 %v855, %v1390
        %v1392 = vpop.f32.mrb[0].mxu0
        %1393 = vmatprep.mubr.f32.mxu0 0.0
        %1394 = vmatmul.mubr.f32.gmra.mrb[0].mxu0 %v1014
        %v1395 = vpop.f32.mrb[0].mxu0
        %v1396 = vadd.f32 %v856, %v1395
        %v1397 = vpop.f32.mrb[0].mxu0
        %1398 = vmatprep.mubr.f32.mxu0 0.0
        %1399 = vmatmul.mubr.f32.gmra.mrb[0].mxu0 %v1017
        %v1400 = vpop.f32.mrb[0].mxu0
        %v1401 = vadd.f32 %v857, %v1400
        %v1402 = vpop.f32.mrb[0].mxu0
        %1403 = vmatprep.mubr.f32.mxu0 0.0
        %1404 = vmatmul.mubr.f32.gmra.mrb[0].mxu0 %v1020
        %v1405 = vpop.f32.mrb[0].mxu0
        %v1406 = vadd.f32 %v858, %v1405
        %v1407 = vpop.f32.mrb[0].mxu0
        %1408 = vmatprep.mubr.f32.mxu0 0.0
        %1409 = vmatmul.mubr.f32.gmra.mrb[0].mxu0 %v1023
        %v1410 = vpop.f32.mrb[0].mxu0
        %v1411 = vadd.f32 %v859, %v1410
        %v1412 = vpop.f32.mrb[0].mxu0
        %1413 = vmatprep.mubr.f32.mxu0 0.0
        %1414 = vmatmul.mubr.f32.gmra.mrb[0].mxu0 %v1026
        %v1415 = vpop.f32.mrb[0].mxu0
        %v1416 = vadd.f32 %v860, %v1415
        %v1417 = vpop.f32.mrb[0].mxu0
        %1418 = vmatprep.mubr.f32.mxu0 0.0
        %1419 = vmatmul.mubr.f32.gmra.mrb[0].mxu0 %v1029
        %v1420 = vpop.f32.mrb[0].mxu0
        %v1421 = vadd.f32 %v861, %v1420
        %v1422 = vpop.f32.mrb[0].mxu0
        %1423 = vmatprep.mubr.f32.mxu0 0.0
        %1424 = vmatmul.mubr.f32.gmra.mrb[0].mxu0 %v1032
        %v1425 = vpop.f32.mrb[0].mxu0
        %v1426 = vadd.f32 %v862, %v1425
        %v1427 = vpop.f32.mrb[0].mxu0
        %1428 = vmatprep.mubr.f32.mxu0 0.0
        %1429 = vmatmul.mubr.f32.gmra.mrb[0].mxu0 %v1035
        %v1430 = vpop.f32.mrb[0].mxu0
        %v1431 = vadd.f32 %v863, %v1430
        %v1432 = vpop.f32.mrb[0].mxu0
        %1433 = vmatprep.mubr.f32.mxu0 0.0
        %1434 = vmatmul.mubr.f32.gmra.mrb[0].mxu0 %v1038
        %v1435 = vpop.f32.mrb[0].mxu0
        %v1436 = vadd.f32 %v864, %v1435
        %v1437 = vpop.f32.mrb[0].mxu0
        %1438 = vmatprep.mubr.f32.mxu0 0.0
        %1439 = vmatmul.mubr.f32.gmra.mrb[0].mxu0 %v1041
        %v1440 = vpop.f32.mrb[0].mxu0
        %v1441 = vadd.f32 %v865, %v1440
        %v1442 = vpop.f32.mrb[0].mxu0
        %1443 = vmatprep.mubr.f32.mxu0 0.0
        %1444 = vmatmul.mubr.f32.gmra.mrb[0].mxu0 %v1044
        %v1445 = vpop.f32.mrb[0].mxu0
        %v1446 = vadd.f32 %v866, %v1445
        %v1447 = vpop.f32.mrb[0].mxu0
        %1448 = vmatprep.mubr.f32.mxu0 0.0
        %1449 = vmatmul.mubr.f32.gmra.mrb[0].mxu0 %v1047
        %v1450 = vpop.f32.mrb[0].mxu0
        %v1451 = vadd.f32 %v867, %v1450
        %v1452 = vpop.f32.mrb[0].mxu0
        %1453 = vmatprep.mubr.f32.mxu0 0.0
        %1454 = vmatmul.mubr.f32.gmra.mrb[0].mxu0 %v1050
        %v1455 = vpop.f32.mrb[0].mxu0
        %v1456 = vadd.f32 %v868, %v1455
        %v1457 = vpop.f32.mrb[0].mxu0
        %1458 = vmatprep.mubr.f32.mxu0 0.0
        %1459 = vmatmul.mubr.f32.gmra.mrb[0].mxu0 %v1053
        %v1460 = vpop.f32.mrb[0].mxu0
        %v1461 = vadd.f32 %v869, %v1460
        %v1462 = vpop.f32.mrb[0].mxu0
        %1463 = vmatprep.mubr.f32.mxu0 0.0
        %1464 = vmatmul.mubr.f32.gmra.mrb[0].mxu0 %v1056
        %v1465 = vpop.f32.mrb[0].mxu0
        %v1466 = vadd.f32 %v870, %v1465
        %v1467 = vpop.f32.mrb[0].mxu0
        %1468 = vmatprep.mubr.f32.mxu0 0.0
        %1469 = vmatmul.mubr.f32.gmra.mrb[0].mxu0 %v1059
        %v1470 = vpop.f32.mrb[0].mxu0
        %v1471 = vadd.f32 %v871, %v1470
        %v1472 = vpop.f32.mrb[0].mxu0
        %1473 = vmatprep.mubr.f32.mxu0 0.0
        %1474 = vmatmul.mubr.f32.gmra.mrb[0].mxu0 %v1062
        %v1475 = vpop.f32.mrb[0].mxu0
        %v1476 = vadd.f32 %v872, %v1475
        %v1477 = vpop.f32.mrb[0].mxu0
        %1478 = vmatprep.mubr.f32.mxu0 0.0
        %1479 = vmatmul.mubr.f32.gmra.mrb[0].mxu0 %v1065
        %v1480 = vpop.f32.mrb[0].mxu0
        %v1481 = vadd.f32 %v873, %v1480
        %v1482 = vpop.f32.mrb[0].mxu0
        %1483 = vmatprep.mubr.f32.mxu0 0.0
        %1484 = vmatmul.mubr.f32.gmra.mrb[0].mxu0 %v1068
        %v1485 = vpop.f32.mrb[0].mxu0
        %v1486 = vadd.f32 %v874, %v1485
        %v1487 = vpop.f32.mrb[0].mxu0
        %1488 = vmatprep.mubr.f32.mxu0 0.0
        %1489 = vmatmul.mubr.f32.gmra.mrb[0].mxu0 %v1071
        %v1490 = vpop.f32.mrb[0].mxu0
        %v1491 = vadd.f32 %v875, %v1490
        %v1492 = vpop.f32.mrb[0].mxu0
        %1493 = vmatprep.mubr.f32.mxu0 0.0
        %1494 = vmatmul.mubr.f32.gmra.mrb[0].mxu0 %v1074
        %v1495 = vpop.f32.mrb[0].mxu0
        %v1496 = vadd.f32 %v876, %v1495
        %v1497 = vpop.f32.mrb[0].mxu0
        %1498 = vmatprep.mubr.f32.mxu0 0.0
        %1499 = vmatmul.mubr.f32.gmra.mrb[0].mxu0 %v1077
        %v1500 = vpop.f32.mrb[0].mxu0
        %v1501 = vadd.f32 %v877, %v1500
        %v1502 = vpop.f32.mrb[0].mxu0
        %1503 = vmatprep.mubr.f32.mxu0 0.0
        %1504 = vmatmul.mubr.f32.gmra.mrb[0].mxu0 %v1080
        %v1505 = vpop.f32.mrb[0].mxu0
        %v1506 = vadd.f32 %v878, %v1505
        %v1507 = vpop.f32.mrb[0].mxu0
        %1508 = vmatprep.mubr.f32.mxu0 0.0
        %1509 = vmatmul.mubr.f32.gmra.mrb[0].mxu0 %v1083
        %v1510 = vpop.f32.mrb[0].mxu0
        %v1511 = vadd.f32 %v879, %v1510
        %v1512 = vpop.f32.mrb[0].mxu0
        %1513 = vmatprep.mubr.f32.mxu0 0.0
        %1514 = vmatmul.mubr.f32.gmra.mrb[0].mxu0 %v1086
        %v1515 = vpop.f32.mrb[0].mxu0
        %v1516 = vadd.f32 %v880, %v1515
        %v1517 = vpop.f32.mrb[0].mxu0
        %1518 = vmatprep.mubr.f32.mxu0 0.0
        %1519 = vmatmul.mubr.f32.gmra.mrb[0].mxu0 %v1089
        %v1520 = vpop.f32.mrb[0].mxu0
        %v1521 = vadd.f32 %v881, %v1520
        %v1522 = vpop.f32.mrb[0].mxu0
        %1523 = vmatprep.mubr.f32.mxu0 0.0
        %1524 = vmatmul.mubr.f32.gmra.mrb[0].mxu0 %v1092
        %v1525 = vpop.f32.mrb[0].mxu0
        %v1526 = vadd.f32 %v882, %v1525
        %v1527 = vpop.f32.mrb[0].mxu0
        %1528 = vmatprep.mubr.f32.mxu0 0.0
        %1529 = vmatmul.mubr.f32.gmra.mrb[0].mxu0 %v1095
        %v1530 = vpop.f32.mrb[0].mxu0
        %v1531 = vadd.f32 %v883, %v1530
        %v1532 = vpop.f32.mrb[0].mxu0
        %1533 = vmatprep.mubr.f32.mxu0 0.0
        %1534 = vmatmul.mubr.f32.gmra.mrb[0].mxu0 %v1098
        %v1535 = vpop.f32.mrb[0].mxu0
        %v1536 = vadd.f32 %v884, %v1535
        %v1537 = vpop.f32.mrb[0].mxu0
        %1538 = vmatprep.mubr.f32.mxu0 0.0
        %1539 = vmatmul.mubr.f32.gmra.mrb[0].mxu0 %v1101
        %v1540 = vpop.f32.mrb[0].mxu0
        %v1541 = vadd.f32 %v885, %v1540
        %v1542 = vpop.f32.mrb[0].mxu0
        %1543 = vmatprep.mubr.f32.mxu0 0.0
        %1544 = vmatmul.mubr.f32.gmra.mrb[0].mxu0 %v1104
        %v1545 = vpop.f32.mrb[0].mxu0
        %v1546 = vadd.f32 %v886, %v1545
        %v1547 = vpop.f32.mrb[0].mxu0
        %1548 = vmatprep.mubr.f32.mxu0 0.0
        %1549 = vmatmul.mubr.f32.gmra.mrb[0].mxu0 %v1107
        %v1550 = vpop.f32.mrb[0].mxu0
        %v1551 = vadd.f32 %v887, %v1550
        %v1552 = vpop.f32.mrb[0].mxu0
        %1553 = vmatprep.mubr.f32.mxu0 0.0
        %1554 = vmatmul.mubr.f32.gmra.mrb[0].mxu0 %v1110
        %v1555 = vpop.f32.mrb[0].mxu0
        %v1556 = vadd.f32 %v888, %v1555
        %v1557 = vpop.f32.mrb[0].mxu0
        %1558 = vmatprep.mubr.f32.mxu0 0.0
        %1559 = vmatmul.mubr.f32.gmra.mrb[0].mxu0 %v1113
        %v1560 = vpop.f32.mrb[0].mxu0
        %v1561 = vadd.f32 %v889, %v1560
        %v1562 = vpop.f32.mrb[0].mxu0
        %1563 = vmatprep.mubr.f32.mxu0 0.0
        %1564 = vmatmul.mubr.f32.gmra.mrb[0].mxu0 %v1116
        %v1565 = vpop.f32.mrb[0].mxu0
        %v1566 = vadd.f32 %v890, %v1565
        %v1567 = vpop.f32.mrb[0].mxu0
        %1568 = vmatprep.mubr.f32.mxu0 0.0
        %1569 = vmatmul.mubr.f32.gmra.mrb[0].mxu0 %v1119
        %v1570 = vpop.f32.mrb[0].mxu0
        %v1571 = vadd.f32 %v891, %v1570
        %v1572 = vpop.f32.mrb[0].mxu0
        %1573 = vmatprep.mubr.f32.mxu0 0.0
        %1574 = vmatmul.mubr.f32.gmra.mrb[0].mxu0 %v1122
        %v1575 = vpop.f32.mrb[0].mxu0
        %v1576 = vadd.f32 %v892, %v1575
        %v1577 = vpop.f32.mrb[0].mxu0
        %1578 = vmatprep.mubr.f32.mxu0 0.0
        %1579 = vmatmul.mubr.f32.gmra.mrb[0].mxu0 %v1125
        %v1580 = vpop.f32.mrb[0].mxu0
        %v1581 = vadd.f32 %v893, %v1580
        %v1582 = vpop.f32.mrb[0].mxu0
        %1583 = vmatprep.mubr.f32.mxu0 0.0
        %1584 = vmatmul.mubr.f32.gmra.mrb[0].mxu0 %v1128
        %v1585 = vpop.f32.mrb[0].mxu0
        %v1586 = vadd.f32 %v894, %v1585
        %v1587 = vpop.f32.mrb[0].mxu0
        %1588 = vmatprep.mubr.f32.mxu0 0.0
        %1589 = vmatmul.mubr.f32.gmra.mrb[0].mxu0 %v1131
        %v1590 = vpop.f32.mrb[0].mxu0
        %v1591 = vadd.f32 %v895, %v1590
        %v1592 = vpop.f32.mrb[0].mxu0
        %1593 = vmatprep.mubr.f32.mxu0 0.0
        %1594 = vmatmul.mubr.f32.gmra.mrb[0].mxu0 %v1134
        %v1595 = vpop.f32.mrb[0].mxu0
        %v1596 = vadd.f32 %v896, %v1595
        %v1597 = vpop.f32.mrb[0].mxu0
        %1598 = vmatprep.mubr.f32.mxu0 0.0
        %1599 = vmatmul.mubr.f32.gmra.mrb[0].mxu0 %v1137
        %v1600 = vpop.f32.mrb[0].mxu0
        %v1601 = vadd.f32 %v897, %v1600
        %v1602 = vpop.f32.mrb[0].mxu0
        %1603 = vdwg.mxu0
        %vm1604 = vcmask 523264
        %1605 = vst.msk [vmem:[#allocation2] sm:$0xff] %vm1604, %v1206
        %1606 = vst.msk [vmem:[#allocation2 + $0x8] sm:$0xff] %vm1604, %v1211
        %1607 = vst.msk [vmem:[#allocation2 + $0x10] sm:$0xff] %vm1604, %v1216
        %1608 = vst.msk [vmem:[#allocation2 + $0x18] sm:$0xff] %vm1604, %v1221
        %1609 = vst.msk [vmem:[#allocation2 + $0x20] sm:$0xff] %vm1604, %v1226
        %1610 = vst.msk [vmem:[#allocation2 + $0x28] sm:$0xff] %vm1604, %v1231
        %1611 = vst.msk [vmem:[#allocation2 + $0x30] sm:$0xff] %vm1604, %v1236
        %1612 = vst.msk [vmem:[#allocation2 + $0x38] sm:$0xff] %vm1604, %v1241
        %1613 = vst.msk [vmem:[#allocation2 + $0x40] sm:$0xff] %vm1604, %v1246
        %1614 = vst.msk [vmem:[#allocation2 + $0x48] sm:$0xff] %vm1604, %v1251
        %1615 = vst.msk [vmem:[#allocation2 + $0x50] sm:$0xff] %vm1604, %v1256
        %1616 = vst.msk [vmem:[#allocation2 + $0x58] sm:$0xff] %vm1604, %v1261
        %1617 = vst.msk [vmem:[#allocation2 + $0x60] sm:$0xff] %vm1604, %v1266
        %1618 = vst.msk [vmem:[#allocation2 + $0x68] sm:$0xff] %vm1604, %v1271
        %1619 = vst.msk [vmem:[#allocation2 + $0x70] sm:$0xff] %vm1604, %v1276
        %1620 = vst.msk [vmem:[#allocation2 + $0x78] sm:$0xff] %vm1604, %v1281
        %1621 = vst.msk [vmem:[#allocation2 + $0x80] sm:$0xff] %vm1604, %v1286
        %1622 = vst.msk [vmem:[#allocation2 + $0x88] sm:$0xff] %vm1604, %v1291
        %1623 = vst.msk [vmem:[#allocation2 + $0x90] sm:$0xff] %vm1604, %v1296
        %1624 = vst.msk [vmem:[#allocation2 + $0x98] sm:$0xff] %vm1604, %v1301
        %1625 = vst.msk [vmem:[#allocation2 + $0xa0] sm:$0xff] %vm1604, %v1306
        %1626 = vst.msk [vmem:[#allocation2 + $0xa8] sm:$0xff] %vm1604, %v1311
        %1627 = vst.msk [vmem:[#allocation2 + $0xb0] sm:$0xff] %vm1604, %v1316
        %1628 = vst.msk [vmem:[#allocation2 + $0xb8] sm:$0xff] %vm1604, %v1321
        %1629 = vst.msk [vmem:[#allocation2 + $0xc0] sm:$0xff] %vm1604, %v1326
        %1630 = vst.msk [vmem:[#allocation2 + $0xc8] sm:$0xff] %vm1604, %v1331
        %1631 = vst.msk [vmem:[#allocation2 + $0xd0] sm:$0xff] %vm1604, %v1336
        %1632 = vst.msk [vmem:[#allocation2 + $0xd8] sm:$0xff] %vm1604, %v1341
        %1633 = vst.msk [vmem:[#allocation2 + $0xe0] sm:$0xff] %vm1604, %v1346
        %1634 = vst.msk [vmem:[#allocation2 + $0xe8] sm:$0xff] %vm1604, %v1351
        %1635 = vst.msk [vmem:[#allocation2 + $0xf0] sm:$0xff] %vm1604, %v1356
        %1636 = vst.msk [vmem:[#allocation2 + $0xf8] sm:$0xff] %vm1604, %v1361
        %1637 = vst.msk [vmem:[#allocation2 + $0x100] sm:$0xff] %vm1604, %v1366
        %1638 = vst.msk [vmem:[#allocation2 + $0x108] sm:$0xff] %vm1604, %v1371
        %1639 = vst.msk [vmem:[#allocation2 + $0x110] sm:$0xff] %vm1604, %v1376
        %1640 = vst.msk [vmem:[#allocation2 + $0x118] sm:$0xff] %vm1604, %v1381
        %1641 = vst.msk [vmem:[#allocation2 + $0x120] sm:$0xff] %vm1604, %v1386
        %1642 = vst.msk [vmem:[#allocation2 + $0x128] sm:$0xff] %vm1604, %v1391
        %1643 = vst.msk [vmem:[#allocation2 + $0x130] sm:$0xff] %vm1604, %v1396
        %1644 = vst.msk [vmem:[#allocation2 + $0x138] sm:$0xff] %vm1604, %v1401
        %1645 = vst.msk [vmem:[#allocation2 + $0x140] sm:$0xff] %vm1604, %v1406
        %1646 = vst.msk [vmem:[#allocation2 + $0x148] sm:$0xff] %vm1604, %v1411
        %1647 = vst.msk [vmem:[#allocation2 + $0x150] sm:$0xff] %vm1604, %v1416
        %1648 = vst.msk [vmem:[#allocation2 + $0x158] sm:$0xff] %vm1604, %v1421
        %1649 = vst.msk [vmem:[#allocation2 + $0x160] sm:$0xff] %vm1604, %v1426
        %1650 = vst.msk [vmem:[#allocation2 + $0x168] sm:$0xff] %vm1604, %v1431
        %1651 = vst.msk [vmem:[#allocation2 + $0x170] sm:$0xff] %vm1604, %v1436
        %1652 = vst.msk [vmem:[#allocation2 + $0x178] sm:$0xff] %vm1604, %v1441
        %1653 = vst.msk [vmem:[#allocation2 + $0x180] sm:$0xff] %vm1604, %v1446
        %1654 = vst.msk [vmem:[#allocation2 + $0x188] sm:$0xff] %vm1604, %v1451
        %1655 = vst.msk [vmem:[#allocation2 + $0x190] sm:$0xff] %vm1604, %v1456
        %1656 = vst.msk [vmem:[#allocation2 + $0x198] sm:$0xff] %vm1604, %v1461
        %1657 = vst.msk [vmem:[#allocation2 + $0x1a0] sm:$0xff] %vm1604, %v1466
        %1658 = vst.msk [vmem:[#allocation2 + $0x1a8] sm:$0xff] %vm1604, %v1471
        %1659 = vst.msk [vmem:[#allocation2 + $0x1b0] sm:$0xff] %vm1604, %v1476
        %1660 = vst.msk [vmem:[#allocation2 + $0x1b8] sm:$0xff] %vm1604, %v1481
        %1661 = vst.msk [vmem:[#allocation2 + $0x1c0] sm:$0xff] %vm1604, %v1486
        %1662 = vst.msk [vmem:[#allocation2 + $0x1c8] sm:$0xff] %vm1604, %v1491
        %1663 = vst.msk [vmem:[#allocation2 + $0x1d0] sm:$0xff] %vm1604, %v1496
        %1664 = vst.msk [vmem:[#allocation2 + $0x1d8] sm:$0xff] %vm1604, %v1501
        %1665 = vst.msk [vmem:[#allocation2 + $0x1e0] sm:$0xff] %vm1604, %v1506
        %1666 = vst.msk [vmem:[#allocation2 + $0x1e8] sm:$0xff] %vm1604, %v1511
        %1667 = vst.msk [vmem:[#allocation2 + $0x1f0] sm:$0xff] %vm1604, %v1516
        %1668 = vst.msk [vmem:[#allocation2 + $0x1f8] sm:$0xff] %vm1604, %v1521
        %1669 = vst.msk [vmem:[#allocation2 + $0x200] sm:$0xff] %vm1604, %v1526
        %1670 = vst.msk [vmem:[#allocation2 + $0x208] sm:$0xff] %vm1604, %v1531
        %1671 = vst.msk [vmem:[#allocation2 + $0x210] sm:$0xff] %vm1604, %v1536
        %1672 = vst.msk [vmem:[#allocation2 + $0x218] sm:$0xff] %vm1604, %v1541
        %1673 = vst.msk [vmem:[#allocation2 + $0x220] sm:$0xff] %vm1604, %v1546
        %1674 = vst.msk [vmem:[#allocation2 + $0x228] sm:$0xff] %vm1604, %v1551
        %1675 = vst.msk [vmem:[#allocation2 + $0x230] sm:$0xff] %vm1604, %v1556
        %1676 = vst.msk [vmem:[#allocation2 + $0x238] sm:$0xff] %vm1604, %v1561
        %1677 = vst.msk [vmem:[#allocation2 + $0x240] sm:$0xff] %vm1604, %v1566
        %1678 = vst.msk [vmem:[#allocation2 + $0x248] sm:$0xff] %vm1604, %v1571
        %1679 = vst.msk [vmem:[#allocation2 + $0x250] sm:$0xff] %vm1604, %v1576
        %1680 = vst.msk [vmem:[#allocation2 + $0x258] sm:$0xff] %vm1604, %v1581
        %1681 = vst.msk [vmem:[#allocation2 + $0x260] sm:$0xff] %vm1604, %v1586
        %1682 = vst.msk [vmem:[#allocation2 + $0x268] sm:$0xff] %vm1604, %v1591
        %1683 = vst.msk [vmem:[#allocation2 + $0x270] sm:$0xff] %vm1604, %v1596
        %1684 = vst.msk [vmem:[#allocation2 + $0x278] sm:$0xff] %vm1604, %v1601
        %v1685 = vld [vmem:[%s4] sm:$0xff]
        %v1686 = vld [vmem:[#allocation2 + $0x19] sm:$0xff]
        %v1687 = vld [vmem:[#allocation2 + $0x21] sm:$0xff]
        %v1688 = vld [vmem:[#allocation2 + $0x29] sm:$0xff]
        %v1689 = vld [vmem:[#allocation2 + $0x31] sm:$0xff]
        %v1690 = vld [vmem:[#allocation2 + $0x39] sm:$0xff]
        %v1691 = vld [vmem:[#allocation2 + $0x41] sm:$0xff]
        %v1692 = vld [vmem:[#allocation2 + $0x49] sm:$0xff]
        %v1693 = vld [vmem:[#allocation2 + $0x51] sm:$0xff]
        %v1694 = vld [vmem:[#allocation2 + $0x59] sm:$0xff]
        %v1695 = vld [vmem:[#allocation2 + $0x61] sm:$0xff]
        %v1696 = vld [vmem:[#allocation2 + $0x69] sm:$0xff]
        %v1697 = vld [vmem:[#allocation2 + $0x71] sm:$0xff]
        %v1698 = vld [vmem:[#allocation2 + $0x79] sm:$0xff]
        %v1699 = vld [vmem:[#allocation2 + $0x81] sm:$0xff]
        %v1700 = vld [vmem:[#allocation2 + $0x89] sm:$0xff]
        %v1701 = vld [vmem:[#allocation2 + $0x91] sm:$0xff]
        %v1702 = vld [vmem:[#allocation2 + $0x99] sm:$0xff]
        %v1703 = vld [vmem:[#allocation2 + $0xa1] sm:$0xff]
        %v1704 = vld [vmem:[#allocation2 + $0xa9] sm:$0xff]
        %v1705 = vld [vmem:[#allocation2 + $0xb1] sm:$0xff]
        %v1706 = vld [vmem:[#allocation2 + $0xb9] sm:$0xff]
        %v1707 = vld [vmem:[#allocation2 + $0xc1] sm:$0xff]
        %v1708 = vld [vmem:[#allocation2 + $0xc9] sm:$0xff]
        %v1709 = vld [vmem:[#allocation2 + $0xd1] sm:$0xff]
        %v1710 = vld [vmem:[#allocation2 + $0xd9] sm:$0xff]
        %v1711 = vld [vmem:[#allocation2 + $0xe1] sm:$0xff]
        %v1712 = vld [vmem:[#allocation2 + $0xe9] sm:$0xff]
        %v1713 = vld [vmem:[#allocation2 + $0xf1] sm:$0xff]
        %v1714 = vld [vmem:[#allocation2 + $0xf9] sm:$0xff]
        %v1715 = vld [vmem:[#allocation2 + $0x101] sm:$0xff]
        %v1716 = vld [vmem:[#allocation2 + $0x109] sm:$0xff]
        %v1717 = vld [vmem:[#allocation2 + $0x111] sm:$0xff]
        %v1718 = vld [vmem:[#allocation2 + $0x119] sm:$0xff]
        %v1719 = vld [vmem:[#allocation2 + $0x121] sm:$0xff]
        %v1720 = vld [vmem:[#allocation2 + $0x129] sm:$0xff]
        %v1721 = vld [vmem:[#allocation2 + $0x131] sm:$0xff]
        %v1722 = vld [vmem:[#allocation2 + $0x139] sm:$0xff]
        %v1723 = vld [vmem:[#allocation2 + $0x141] sm:$0xff]
        %v1724 = vld [vmem:[#allocation2 + $0x149] sm:$0xff]
        %v1725 = vld [vmem:[#allocation2 + $0x151] sm:$0xff]
        %v1726 = vld [vmem:[#allocation2 + $0x159] sm:$0xff]
        %v1727 = vld [vmem:[#allocation2 + $0x161] sm:$0xff]
        %v1728 = vld [vmem:[#allocation2 + $0x169] sm:$0xff]
        %v1729 = vld [vmem:[#allocation2 + $0x171] sm:$0xff]
        %v1730 = vld [vmem:[#allocation2 + $0x179] sm:$0xff]
        %v1731 = vld [vmem:[#allocation2 + $0x181] sm:$0xff]
        %v1732 = vld [vmem:[#allocation2 + $0x189] sm:$0xff]
        %v1733 = vld [vmem:[#allocation2 + $0x191] sm:$0xff]
        %v1734 = vld [vmem:[#allocation2 + $0x199] sm:$0xff]
        %v1735 = vld [vmem:[#allocation2 + $0x1a1] sm:$0xff]
        %v1736 = vld [vmem:[#allocation2 + $0x1a9] sm:$0xff]
        %v1737 = vld [vmem:[#allocation2 + $0x1b1] sm:$0xff]
        %v1738 = vld [vmem:[#allocation2 + $0x1b9] sm:$0xff]
        %v1739 = vld [vmem:[#allocation2 + $0x1c1] sm:$0xff]
        %s1740 = scalar_lea.vmem %s4, 8
        %v1741 = vld [vmem:[%s1740] sm:$0xff]
        %v1742 = vld [vmem:[#allocation2 + $0x1b] sm:$0xff]
        %v1743 = vld [vmem:[#allocation2 + $0x23] sm:$0xff]
        %v1744 = vld [vmem:[#allocation2 + $0x2b] sm:$0xff]
        %v1745 = vld [vmem:[#allocation2 + $0x33] sm:$0xff]
        %v1746 = vld [vmem:[#allocation2 + $0x3b] sm:$0xff]
        %v1747 = vld [vmem:[#allocation2 + $0x43] sm:$0xff]
        %v1748 = vld [vmem:[#allocation2 + $0x4b] sm:$0xff]
        %v1749 = vld [vmem:[#allocation2 + $0x53] sm:$0xff]
        %v1750 = vld [vmem:[#allocation2 + $0x5b] sm:$0xff]
        %v1751 = vld [vmem:[#allocation2 + $0x63] sm:$0xff]
        %v1752 = vld [vmem:[#allocation2 + $0x6b] sm:$0xff]
        %v1753 = vld [vmem:[#allocation2 + $0x73] sm:$0xff]
        %v1754 = vld [vmem:[#allocation2 + $0x7b] sm:$0xff]
        %v1755 = vld [vmem:[#allocation2 + $0x83] sm:$0xff]
        %v1756 = vld [vmem:[#allocation2 + $0x8b] sm:$0xff]
        %v1757 = vld [vmem:[#allocation2 + $0x93] sm:$0xff]
        %v1758 = vld [vmem:[#allocation2 + $0x9b] sm:$0xff]
        %v1759 = vld [vmem:[#allocation2 + $0xa3] sm:$0xff]
        %v1760 = vld [vmem:[#allocation2 + $0xab] sm:$0xff]
        %v1761 = vld [vmem:[#allocation2 + $0xb3] sm:$0xff]
        %v1762 = vld [vmem:[#allocation2 + $0xbb] sm:$0xff]
        %v1763 = vld [vmem:[#allocation2 + $0xc3] sm:$0xff]
        %v1764 = vld [vmem:[#allocation2 + $0xcb] sm:$0xff]
        %v1765 = vld [vmem:[#allocation2 + $0xd3] sm:$0xff]
        %v1766 = vld [vmem:[#allocation2 + $0xdb] sm:$0xff]
        %v1767 = vld [vmem:[#allocation2 + $0xe3] sm:$0xff]
        %v1768 = vld [vmem:[#allocation2 + $0xeb] sm:$0xff]
        %v1769 = vld [vmem:[#allocation2 + $0xf3] sm:$0xff]
        %v1770 = vld [vmem:[#allocation2 + $0xfb] sm:$0xff]
        %v1771 = vld [vmem:[#allocation2 + $0x103] sm:$0xff]
        %v1772 = vld [vmem:[#allocation2 + $0x10b] sm:$0xff]
        %v1773 = vld [vmem:[#allocation2 + $0x113] sm:$0xff]
        %v1774 = vld [vmem:[#allocation2 + $0x11b] sm:$0xff]
        %v1775 = vld [vmem:[#allocation2 + $0x123] sm:$0xff]
        %v1776 = vld [vmem:[#allocation2 + $0x12b] sm:$0xff]
        %v1777 = vld [vmem:[#allocation2 + $0x133] sm:$0xff]
        %v1778 = vld [vmem:[#allocation2 + $0x13b] sm:$0xff]
        %v1779 = vld [vmem:[#allocation2 + $0x143] sm:$0xff]
        %v1780 = vld [vmem:[#allocation2 + $0x14b] sm:$0xff]
        %v1781 = vld [vmem:[#allocation2 + $0x153] sm:$0xff]
        %v1782 = vld [vmem:[#allocation2 + $0x15b] sm:$0xff]
        %v1783 = vld [vmem:[#allocation2 + $0x163] sm:$0xff]
        %v1784 = vld [vmem:[#allocation2 + $0x16b] sm:$0xff]
        %v1785 = vld [vmem:[#allocation2 + $0x173] sm:$0xff]
        %v1786 = vld [vmem:[#allocation2 + $0x17b] sm:$0xff]
        %v1787 = vld [vmem:[#allocation2 + $0x183] sm:$0xff]
        %v1788 = vld [vmem:[#allocation2 + $0x18b] sm:$0xff]
        %v1789 = vld [vmem:[#allocation2 + $0x193] sm:$0xff]
        %v1790 = vld [vmem:[#allocation2 + $0x19b] sm:$0xff]
        %v1791 = vld [vmem:[#allocation2 + $0x1a3] sm:$0xff]
        %v1792 = vld [vmem:[#allocation2 + $0x1ab] sm:$0xff]
        %v1793 = vld [vmem:[#allocation2 + $0x1b3] sm:$0xff]
        %v1794 = vld [vmem:[#allocation2 + $0x1bb] sm:$0xff]
        %v1795 = vld [vmem:[#allocation2 + $0x1c3] sm:$0xff]
        %v1797 = vsel %vm1604, %v1741, 0
        %v1800 = vsel %vm1604, %v1742, 0
        %v1803 = vsel %vm1604, %v1743, 0
        %v1806 = vsel %vm1604, %v1744, 0
        %v1809 = vsel %vm1604, %v1745, 0
        %v1812 = vsel %vm1604, %v1746, 0
        %v1815 = vsel %vm1604, %v1747, 0
        %v1818 = vsel %vm1604, %v1748, 0
        %v1821 = vsel %vm1604, %v1749, 0
        %v1824 = vsel %vm1604, %v1750, 0
        %v1827 = vsel %vm1604, %v1751, 0
        %v1830 = vsel %vm1604, %v1752, 0
        %v1833 = vsel %vm1604, %v1753, 0
        %v1836 = vsel %vm1604, %v1754, 0
        %v1839 = vsel %vm1604, %v1755, 0
        %v1842 = vsel %vm1604, %v1756, 0
        %v1845 = vsel %vm1604, %v1757, 0
        %v1848 = vsel %vm1604, %v1758, 0
        %v1851 = vsel %vm1604, %v1759, 0
        %v1854 = vsel %vm1604, %v1760, 0
        %v1857 = vsel %vm1604, %v1761, 0
        %v1860 = vsel %vm1604, %v1762, 0
        %v1863 = vsel %vm1604, %v1763, 0
        %v1866 = vsel %vm1604, %v1764, 0
        %v1869 = vsel %vm1604, %v1765, 0
        %v1872 = vsel %vm1604, %v1766, 0
        %v1875 = vsel %vm1604, %v1767, 0
        %v1878 = vsel %vm1604, %v1768, 0
        %v1881 = vsel %vm1604, %v1769, 0
        %v1884 = vsel %vm1604, %v1770, 0
        %v1887 = vsel %vm1604, %v1771, 0
        %v1890 = vsel %vm1604, %v1772, 0
        %v1893 = vsel %vm1604, %v1773, 0
        %v1896 = vsel %vm1604, %v1774, 0
        %v1899 = vsel %vm1604, %v1775, 0
        %v1902 = vsel %vm1604, %v1776, 0
        %v1905 = vsel %vm1604, %v1777, 0
        %v1908 = vsel %vm1604, %v1778, 0
        %v1911 = vsel %vm1604, %v1779, 0
        %v1914 = vsel %vm1604, %v1780, 0
        %v1917 = vsel %vm1604, %v1781, 0
        %v1920 = vsel %vm1604, %v1782, 0
        %v1923 = vsel %vm1604, %v1783, 0
        %v1926 = vsel %vm1604, %v1784, 0
        %v1929 = vsel %vm1604, %v1785, 0
        %v1932 = vsel %vm1604, %v1786, 0
        %v1935 = vsel %vm1604, %v1787, 0
        %v1938 = vsel %vm1604, %v1788, 0
        %v1941 = vsel %vm1604, %v1789, 0
        %v1944 = vsel %vm1604, %v1790, 0
        %v1947 = vsel %vm1604, %v1791, 0
        %v1950 = vsel %vm1604, %v1792, 0
        %v1953 = vsel %vm1604, %v1793, 0
        %v1956 = vsel %vm1604, %v1794, 0
        %v1959 = vsel %vm1604, %v1795, 0
        %1961 = vmatprep.subr.mxu0 0.0
        %1962 = vmatpush1.xpose.msra.mxu0 %v1800
        %1963 = vmatprep.subr.mxu0 0.0
        %1964 = vmatpush1.xpose.msra.mxu0 %v1803
        %1965 = vmatprep.subr.mxu0 0.0
        %1966 = vmatpush1.xpose.msra.mxu0 %v1806
        %1967 = vmatprep.subr.mxu0 0.0
        %1968 = vmatpush1.xpose.msra.mxu0 %v1809
        %1969 = vmatprep.subr.mxu0 0.0
        %1970 = vmatpush1.xpose.msra.mxu0 %v1812
        %1971 = vmatprep.subr.mxu0 0.0
        %1972 = vmatpush1.xpose.msra.mxu0 %v1815
        %1973 = vmatprep.subr.mxu0 0.0
        %1974 = vmatpush1.xpose.msra.mxu0 %v1818
        %1975 = vmatprep.subr.mxu0 0.0
        %1976 = vmatpush1.xpose.msra.mxu0 %v1821
        %1977 = vmatprep.subr.mxu0 0.0
        %1978 = vmatpush1.xpose.msra.mxu0 %v1824
        %1979 = vmatprep.subr.mxu0 0.0
        %1980 = vmatpush1.xpose.msra.mxu0 %v1827
        %1981 = vmatprep.subr.mxu0 0.0
        %1982 = vmatpush1.xpose.msra.mxu0 %v1830
        %1983 = vmatprep.subr.mxu0 0.0
        %1984 = vmatpush1.xpose.msra.mxu0 %v1833
        %1985 = vmatprep.subr.mxu0 0.0
        %1986 = vmatpush1.xpose.msra.mxu0 %v1836
        %1987 = vmatprep.subr.mxu0 0.0
        %1988 = vmatpush1.xpose.msra.mxu0 %v1839
        %1989 = vmatprep.subr.mxu0 0.0
        %1990 = vmatpush1.xpose.msra.mxu0 %v1842
        %1991 = vmatprep.subr.mxu0 0.0
        %1992 = vmatpush1.xpose.msra.mxu0 %v1845
        %1993 = vmatprep.subr.mxu0 0.0
        %1994 = vmatpush1.xpose.msra.mxu0 %v1848
        %1995 = vmatprep.subr.mxu0 0.0
        %1996 = vmatpush1.xpose.msra.mxu0 %v1851
        %1997 = vmatprep.subr.mxu0 0.0
        %1998 = vmatpush1.xpose.msra.mxu0 %v1854
        %1999 = vmatprep.subr.mxu0 0.0
        %2000 = vmatpush1.xpose.msra.mxu0 %v1857
        %2001 = vmatprep.subr.mxu0 0.0
        %2002 = vmatpush1.xpose.msra.mxu0 %v1860
        %2003 = vmatprep.subr.mxu0 0.0
        %2004 = vmatpush1.xpose.msra.mxu0 %v1863
        %2005 = vmatprep.subr.mxu0 0.0
        %2006 = vmatpush1.xpose.msra.mxu0 %v1866
        %2007 = vmatprep.subr.mxu0 0.0
        %2008 = vmatpush1.xpose.msra.mxu0 %v1869
        %2009 = vmatprep.subr.mxu0 0.0
        %2010 = vmatpush1.xpose.msra.mxu0 %v1872
        %2011 = vmatprep.subr.mxu0 0.0
        %2012 = vmatpush1.xpose.msra.mxu0 %v1875
        %2013 = vmatprep.subr.mxu0 0.0
        %2014 = vmatpush1.xpose.msra.mxu0 %v1878
        %2015 = vmatprep.subr.mxu0 0.0
        %2016 = vmatpush1.xpose.msra.mxu0 %v1881
        %2017 = vmatprep.subr.mxu0 0.0
        %2018 = vmatpush1.xpose.msra.mxu0 %v1884
        %2019 = vmatprep.subr.mxu0 0.0
        %2020 = vmatpush1.xpose.msra.mxu0 %v1887
        %2021 = vmatprep.subr.mxu0 0.0
        %2022 = vmatpush1.xpose.msra.mxu0 %v1890
        %2023 = vmatprep.subr.mxu0 0.0
        %2024 = vmatpush1.xpose.msra.mxu0 %v1893
        %2025 = vmatprep.mubr.f32.mxu0 0.0
        %2026 = vmatmul.mubr.f32.gmra.mrb[0].mxu0 %v1797
        %v2027 = vpop.f32.mrb[0].mxu0
        %v2028 = vadd.f32 0.0, %v2027
        %v2029 = vpop.f32.mrb[0].mxu0
        %v2030 = vadd.f32 0.0, %v2029
        %2031 = vdwg.mxu0
        %2032 = vmatprep.subr.mxu0 0.0
        %2033 = vmatpush1.xpose.msra.mxu0 %v1896
        %2034 = vmatprep.subr.mxu0 0.0
        %2035 = vmatpush1.xpose.msra.mxu0 %v1899
        %2036 = vmatprep.subr.mxu0 0.0
        %2037 = vmatpush1.xpose.msra.mxu0 %v1902
        %2038 = vmatprep.subr.mxu0 0.0
        %2039 = vmatpush1.xpose.msra.mxu0 %v1905
        %2040 = vmatprep.subr.mxu0 0.0
        %2041 = vmatpush1.xpose.msra.mxu0 %v1908
        %2042 = vmatprep.subr.mxu0 0.0
        %2043 = vmatpush1.xpose.msra.mxu0 %v1911
        %2044 = vmatprep.subr.mxu0 0.0
        %2045 = vmatpush1.xpose.msra.mxu0 %v1914
        %2046 = vmatprep.subr.mxu0 0.0
        %2047 = vmatpush1.xpose.msra.mxu0 %v1917
        %2048 = vmatprep.subr.mxu0 0.0
        %2049 = vmatpush1.xpose.msra.mxu0 %v1920
        %2050 = vmatprep.subr.mxu0 0.0
        %2051 = vmatpush1.xpose.msra.mxu0 %v1923
        %2052 = vmatprep.subr.mxu0 0.0
        %2053 = vmatpush1.xpose.msra.mxu0 %v1926
        %2054 = vmatprep.subr.mxu0 0.0
        %2055 = vmatpush1.xpose.msra.mxu0 %v1929
        %2056 = vmatprep.subr.mxu0 0.0
        %2057 = vmatpush1.xpose.msra.mxu0 %v1932
        %2058 = vmatprep.subr.mxu0 0.0
        %2059 = vmatpush1.xpose.msra.mxu0 %v1935
        %2060 = vmatprep.subr.mxu0 0.0
        %2061 = vmatpush1.xpose.msra.mxu0 %v1938
        %2062 = vmatprep.subr.mxu0 0.0
        %2063 = vmatpush1.xpose.msra.mxu0 %v1941
        %2064 = vmatprep.subr.mxu0 0.0
        %2065 = vmatpush1.xpose.msra.mxu0 %v1944
        %2066 = vmatprep.subr.mxu0 0.0
        %2067 = vmatpush1.xpose.msra.mxu0 %v1947
        %2068 = vmatprep.subr.mxu0 0.0
        %2069 = vmatpush1.xpose.msra.mxu0 %v1950
        %2070 = vmatprep.subr.mxu0 0.0
        %2071 = vmatpush1.xpose.msra.mxu0 %v1953
        %2072 = vmatprep.subr.mxu0 0.0
        %2073 = vmatpush1.xpose.msra.mxu0 %v1956
        %2074 = vmatprep.subr.mxu0 0.0
        %2075 = vmatpush1.xpose.msra.mxu0 %v1959
        %2076 = vmatprep.subr.mxu0 0.0
        %2077 = vmatpush1.xpose.msra.mxu0 0.0
        %2078 = vmatprep.subr.mxu0 0.0
        %2079 = vmatpush1.xpose.msra.mxu0 0.0
        %2080 = vmatprep.subr.mxu0 0.0
        %2081 = vmatpush1.xpose.msra.mxu0 0.0
        %2082 = vmatprep.subr.mxu0 0.0
        %2083 = vmatpush1.xpose.msra.mxu0 0.0
        %2084 = vmatprep.subr.mxu0 0.0
        %2085 = vmatpush1.xpose.msra.mxu0 0.0
        %2086 = vmatprep.subr.mxu0 0.0
        %2087 = vmatpush1.xpose.msra.mxu0 0.0
        %2088 = vmatprep.subr.mxu0 0.0
        %2089 = vmatpush1.xpose.msra.mxu0 0.0
        %2090 = vmatprep.subr.mxu0 0.0
        %2091 = vmatpush1.xpose.msra.mxu0 0.0
        %2092 = vmatprep.subr.mxu0 0.0
        %2093 = vmatpush1.xpose.msra.mxu0 0.0
        %2094 = vmatprep.subr.mxu0 0.0
        %2095 = vmatpush1.xpose.msra.mxu0 0.0
        %2096 = vmatprep.mubr.f32.mxu0 0.0
        %2097 = vmatmul.mubr.f32.gmra.mrb[0].mxu0 %v1797
        %v2098 = vpop.f32.mrb[0].mxu0
        %v2099 = vadd.f32 0.0, %v2098
        %v2100 = vpop.f32.mrb[0].mxu0
        %v2101 = vadd.f32 0.0, %v2100
        %2102 = vdwg.mxu0
        %v2104 = vsel %vm1604, %v1685, 0
        %v2107 = vsel %vm1604, %v1686, 0
        %v2110 = vsel %vm1604, %v1687, 0
        %v2113 = vsel %vm1604, %v1688, 0
        %v2116 = vsel %vm1604, %v1689, 0
        %v2119 = vsel %vm1604, %v1690, 0
        %v2122 = vsel %vm1604, %v1691, 0
        %v2125 = vsel %vm1604, %v1692, 0
        %v2128 = vsel %vm1604, %v1693, 0
        %v2131 = vsel %vm1604, %v1694, 0
        %v2134 = vsel %vm1604, %v1695, 0
        %v2137 = vsel %vm1604, %v1696, 0
        %v2140 = vsel %vm1604, %v1697, 0
        %v2143 = vsel %vm1604, %v1698, 0
        %v2146 = vsel %vm1604, %v1699, 0
        %v2149 = vsel %vm1604, %v1700, 0
        %v2152 = vsel %vm1604, %v1701, 0
        %v2155 = vsel %vm1604, %v1702, 0
        %v2158 = vsel %vm1604, %v1703, 0
        %v2161 = vsel %vm1604, %v1704, 0
        %v2164 = vsel %vm1604, %v1705, 0
        %v2167 = vsel %vm1604, %v1706, 0
        %v2170 = vsel %vm1604, %v1707, 0
        %v2173 = vsel %vm1604, %v1708, 0
        %v2176 = vsel %vm1604, %v1709, 0
        %v2179 = vsel %vm1604, %v1710, 0
        %v2182 = vsel %vm1604, %v1711, 0
        %v2185 = vsel %vm1604, %v1712, 0
        %v2188 = vsel %vm1604, %v1713, 0
        %v2191 = vsel %vm1604, %v1714, 0
        %v2194 = vsel %vm1604, %v1715, 0
        %v2197 = vsel %vm1604, %v1716, 0
        %v2200 = vsel %vm1604, %v1717, 0
        %v2203 = vsel %vm1604, %v1718, 0
        %v2206 = vsel %vm1604, %v1719, 0
        %v2209 = vsel %vm1604, %v1720, 0
        %v2212 = vsel %vm1604, %v1721, 0
        %v2215 = vsel %vm1604, %v1722, 0
        %v2218 = vsel %vm1604, %v1723, 0
        %v2221 = vsel %vm1604, %v1724, 0
        %v2224 = vsel %vm1604, %v1725, 0
        %v2227 = vsel %vm1604, %v1726, 0
        %v2230 = vsel %vm1604, %v1727, 0
        %v2233 = vsel %vm1604, %v1728, 0
        %v2236 = vsel %vm1604, %v1729, 0
        %v2239 = vsel %vm1604, %v1730, 0
        %v2242 = vsel %vm1604, %v1731, 0
        %v2245 = vsel %vm1604, %v1732, 0
        %v2248 = vsel %vm1604, %v1733, 0
        %v2251 = vsel %vm1604, %v1734, 0
        %v2254 = vsel %vm1604, %v1735, 0
        %v2257 = vsel %vm1604, %v1736, 0
        %v2260 = vsel %vm1604, %v1737, 0
        %v2263 = vsel %vm1604, %v1738, 0
        %v2266 = vsel %vm1604, %v1739, 0
        %2268 = vmatprep.subr.mxu0 0.0
        %2269 = vmatpush1.xpose.msra.mxu0 %v2107
        %2270 = vmatprep.subr.mxu0 0.0
        %2271 = vmatpush1.xpose.msra.mxu0 %v2110
        %2272 = vmatprep.subr.mxu0 0.0
        %2273 = vmatpush1.xpose.msra.mxu0 %v2113
        %2274 = vmatprep.subr.mxu0 0.0
        %2275 = vmatpush1.xpose.msra.mxu0 %v2116
        %2276 = vmatprep.subr.mxu0 0.0
        %2277 = vmatpush1.xpose.msra.mxu0 %v2119
        %2278 = vmatprep.subr.mxu0 0.0
        %2279 = vmatpush1.xpose.msra.mxu0 %v2122
        %2280 = vmatprep.subr.mxu0 0.0
        %2281 = vmatpush1.xpose.msra.mxu0 %v2125
        %2282 = vmatprep.subr.mxu0 0.0
        %2283 = vmatpush1.xpose.msra.mxu0 %v2128
        %2284 = vmatprep.subr.mxu0 0.0
        %2285 = vmatpush1.xpose.msra.mxu0 %v2131
        %2286 = vmatprep.subr.mxu0 0.0
        %2287 = vmatpush1.xpose.msra.mxu0 %v2134
        %2288 = vmatprep.subr.mxu0 0.0
        %2289 = vmatpush1.xpose.msra.mxu0 %v2137
        %2290 = vmatprep.subr.mxu0 0.0
        %2291 = vmatpush1.xpose.msra.mxu0 %v2140
        %2292 = vmatprep.subr.mxu0 0.0
        %2293 = vmatpush1.xpose.msra.mxu0 %v2143
        %2294 = vmatprep.subr.mxu0 0.0
        %2295 = vmatpush1.xpose.msra.mxu0 %v2146
        %2296 = vmatprep.subr.mxu0 0.0
        %2297 = vmatpush1.xpose.msra.mxu0 %v2149
        %2298 = vmatprep.subr.mxu0 0.0
        %2299 = vmatpush1.xpose.msra.mxu0 %v2152
        %2300 = vmatprep.subr.mxu0 0.0
        %2301 = vmatpush1.xpose.msra.mxu0 %v2155
        %2302 = vmatprep.subr.mxu0 0.0
        %2303 = vmatpush1.xpose.msra.mxu0 %v2158
        %2304 = vmatprep.subr.mxu0 0.0
        %2305 = vmatpush1.xpose.msra.mxu0 %v2161
        %2306 = vmatprep.subr.mxu0 0.0
        %2307 = vmatpush1.xpose.msra.mxu0 %v2164
        %2308 = vmatprep.subr.mxu0 0.0
        %2309 = vmatpush1.xpose.msra.mxu0 %v2167
        %2310 = vmatprep.subr.mxu0 0.0
        %2311 = vmatpush1.xpose.msra.mxu0 %v2170
        %2312 = vmatprep.subr.mxu0 0.0
        %2313 = vmatpush1.xpose.msra.mxu0 %v2173
        %2314 = vmatprep.subr.mxu0 0.0
        %2315 = vmatpush1.xpose.msra.mxu0 %v2176
        %2316 = vmatprep.subr.mxu0 0.0
        %2317 = vmatpush1.xpose.msra.mxu0 %v2179
        %2318 = vmatprep.subr.mxu0 0.0
        %2319 = vmatpush1.xpose.msra.mxu0 %v2182
        %2320 = vmatprep.subr.mxu0 0.0
        %2321 = vmatpush1.xpose.msra.mxu0 %v2185
        %2322 = vmatprep.subr.mxu0 0.0
        %2323 = vmatpush1.xpose.msra.mxu0 %v2188
        %2324 = vmatprep.subr.mxu0 0.0
        %2325 = vmatpush1.xpose.msra.mxu0 %v2191
        %2326 = vmatprep.subr.mxu0 0.0
        %2327 = vmatpush1.xpose.msra.mxu0 %v2194
        %2328 = vmatprep.subr.mxu0 0.0
        %2329 = vmatpush1.xpose.msra.mxu0 %v2197
        %2330 = vmatprep.subr.mxu0 0.0
        %2331 = vmatpush1.xpose.msra.mxu0 %v2200
        %2332 = vmatprep.mubr.f32.mxu0 0.0
        %2333 = vmatmul.mubr.f32.gmra.mrb[0].mxu0 %v2104
        %v2334 = vpop.f32.mrb[0].mxu0
        %v2335 = vadd.f32 %v2028, %v2334
        %v2336 = vpop.f32.mrb[0].mxu0
        %v2337 = vadd.f32 %v2030, %v2336
        %2338 = vdwg.mxu0
        %2339 = vmatprep.subr.mxu0 0.0
        %2340 = vmatpush1.xpose.msra.mxu0 %v2203
        %2341 = vmatprep.subr.mxu0 0.0
        %2342 = vmatpush1.xpose.msra.mxu0 %v2206
        %2343 = vmatprep.subr.mxu0 0.0
        %2344 = vmatpush1.xpose.msra.mxu0 %v2209
        %2345 = vmatprep.subr.mxu0 0.0
        %2346 = vmatpush1.xpose.msra.mxu0 %v2212
        %2347 = vmatprep.subr.mxu0 0.0
        %2348 = vmatpush1.xpose.msra.mxu0 %v2215
        %2349 = vmatprep.subr.mxu0 0.0
        %2350 = vmatpush1.xpose.msra.mxu0 %v2218
        %2351 = vmatprep.subr.mxu0 0.0
        %2352 = vmatpush1.xpose.msra.mxu0 %v2221
        %2353 = vmatprep.subr.mxu0 0.0
        %2354 = vmatpush1.xpose.msra.mxu0 %v2224
        %2355 = vmatprep.subr.mxu0 0.0
        %2356 = vmatpush1.xpose.msra.mxu0 %v2227
        %2357 = vmatprep.subr.mxu0 0.0
        %2358 = vmatpush1.xpose.msra.mxu0 %v2230
        %2359 = vmatprep.subr.mxu0 0.0
        %2360 = vmatpush1.xpose.msra.mxu0 %v2233
        %2361 = vmatprep.subr.mxu0 0.0
        %2362 = vmatpush1.xpose.msra.mxu0 %v2236
        %2363 = vmatprep.subr.mxu0 0.0
        %2364 = vmatpush1.xpose.msra.mxu0 %v2239
        %2365 = vmatprep.subr.mxu0 0.0
        %2366 = vmatpush1.xpose.msra.mxu0 %v2242
        %2367 = vmatprep.subr.mxu0 0.0
        %2368 = vmatpush1.xpose.msra.mxu0 %v2245
        %2369 = vmatprep.subr.mxu0 0.0
        %2370 = vmatpush1.xpose.msra.mxu0 %v2248
        %2371 = vmatprep.subr.mxu0 0.0
        %2372 = vmatpush1.xpose.msra.mxu0 %v2251
        %2373 = vmatprep.subr.mxu0 0.0
        %2374 = vmatpush1.xpose.msra.mxu0 %v2254
        %2375 = vmatprep.subr.mxu0 0.0
        %2376 = vmatpush1.xpose.msra.mxu0 %v2257
        %2377 = vmatprep.subr.mxu0 0.0
        %2378 = vmatpush1.xpose.msra.mxu0 %v2260
        %2379 = vmatprep.subr.mxu0 0.0
        %2380 = vmatpush1.xpose.msra.mxu0 %v2263
        %2381 = vmatprep.subr.mxu0 0.0
        %2382 = vmatpush1.xpose.msra.mxu0 %v2266
        %2383 = vmatprep.subr.mxu0 0.0
        %2384 = vmatpush1.xpose.msra.mxu0 0.0
        %2385 = vmatprep.subr.mxu0 0.0
        %2386 = vmatpush1.xpose.msra.mxu0 0.0
        %2387 = vmatprep.subr.mxu0 0.0
        %2388 = vmatpush1.xpose.msra.mxu0 0.0
        %2389 = vmatprep.subr.mxu0 0.0
        %2390 = vmatpush1.xpose.msra.mxu0 0.0
        %2391 = vmatprep.subr.mxu0 0.0
        %2392 = vmatpush1.xpose.msra.mxu0 0.0
        %2393 = vmatprep.subr.mxu0 0.0
        %2394 = vmatpush1.xpose.msra.mxu0 0.0
        %2395 = vmatprep.subr.mxu0 0.0
        %2396 = vmatpush1.xpose.msra.mxu0 0.0
        %2397 = vmatprep.subr.mxu0 0.0
        %2398 = vmatpush1.xpose.msra.mxu0 0.0
        %2399 = vmatprep.subr.mxu0 0.0
        %2400 = vmatpush1.xpose.msra.mxu0 0.0
        %2401 = vmatprep.subr.mxu0 0.0
        %2402 = vmatpush1.xpose.msra.mxu0 0.0
        %2403 = vmatprep.mubr.f32.mxu0 0.0
        %2404 = vmatmul.mubr.f32.gmra.mrb[0].mxu0 %v2104
        %v2405 = vpop.f32.mrb[0].mxu0
        %v2406 = vadd.f32 %v2099, %v2405
        %v2407 = vpop.f32.mrb[0].mxu0
        %v2408 = vadd.f32 %v2101, %v2407
        %2409 = vdwg.mxu0
        %s2410 = scalar_lea.vmem %s4, 16
        %v2411 = vld [vmem:[%s2410] sm:$0xff]
        %v2412 = vld [vmem:[#allocation2 + $0x1d] sm:$0xff]
        %v2413 = vld [vmem:[#allocation2 + $0x25] sm:$0xff]
        %v2414 = vld [vmem:[#allocation2 + $0x2d] sm:$0xff]
        %v2415 = vld [vmem:[#allocation2 + $0x35] sm:$0xff]
        %v2416 = vld [vmem:[#allocation2 + $0x3d] sm:$0xff]
        %v2417 = vld [vmem:[#allocation2 + $0x45] sm:$0xff]
        %v2418 = vld [vmem:[#allocation2 + $0x4d] sm:$0xff]
        %v2419 = vld [vmem:[#allocation2 + $0x55] sm:$0xff]
        %v2420 = vld [vmem:[#allocation2 + $0x5d] sm:$0xff]
        %v2421 = vld [vmem:[#allocation2 + $0x65] sm:$0xff]
        %v2422 = vld [vmem:[#allocation2 + $0x6d] sm:$0xff]
        %v2423 = vld [vmem:[#allocation2 + $0x75] sm:$0xff]
        %v2424 = vld [vmem:[#allocation2 + $0x7d] sm:$0xff]
        %v2425 = vld [vmem:[#allocation2 + $0x85] sm:$0xff]
        %v2426 = vld [vmem:[#allocation2 + $0x8d] sm:$0xff]
        %v2427 = vld [vmem:[#allocation2 + $0x95] sm:$0xff]
        %v2428 = vld [vmem:[#allocation2 + $0x9d] sm:$0xff]
        %v2429 = vld [vmem:[#allocation2 + $0xa5] sm:$0xff]
        %v2430 = vld [vmem:[#allocation2 + $0xad] sm:$0xff]
        %v2431 = vld [vmem:[#allocation2 + $0xb5] sm:$0xff]
        %v2432 = vld [vmem:[#allocation2 + $0xbd] sm:$0xff]
        %v2433 = vld [vmem:[#allocation2 + $0xc5] sm:$0xff]
        %v2434 = vld [vmem:[#allocation2 + $0xcd] sm:$0xff]
        %v2435 = vld [vmem:[#allocation2 + $0xd5] sm:$0xff]
        %v2436 = vld [vmem:[#allocation2 + $0xdd] sm:$0xff]
        %v2437 = vld [vmem:[#allocation2 + $0xe5] sm:$0xff]
        %v2438 = vld [vmem:[#allocation2 + $0xed] sm:$0xff]
        %v2439 = vld [vmem:[#allocation2 + $0xf5] sm:$0xff]
        %v2440 = vld [vmem:[#allocation2 + $0xfd] sm:$0xff]
        %v2441 = vld [vmem:[#allocation2 + $0x105] sm:$0xff]
        %v2442 = vld [vmem:[#allocation2 + $0x10d] sm:$0xff]
        %v2443 = vld [vmem:[#allocation2 + $0x115] sm:$0xff]
        %v2444 = vld [vmem:[#allocation2 + $0x11d] sm:$0xff]
        %v2445 = vld [vmem:[#allocation2 + $0x125] sm:$0xff]
        %v2446 = vld [vmem:[#allocation2 + $0x12d] sm:$0xff]
        %v2447 = vld [vmem:[#allocation2 + $0x135] sm:$0xff]
        %v2448 = vld [vmem:[#allocation2 + $0x13d] sm:$0xff]
        %v2449 = vld [vmem:[#allocation2 + $0x145] sm:$0xff]
        %v2450 = vld [vmem:[#allocation2 + $0x14d] sm:$0xff]
        %v2451 = vld [vmem:[#allocation2 + $0x155] sm:$0xff]
        %v2452 = vld [vmem:[#allocation2 + $0x15d] sm:$0xff]
        %v2453 = vld [vmem:[#allocation2 + $0x165] sm:$0xff]
        %v2454 = vld [vmem:[#allocation2 + $0x16d] sm:$0xff]
        %v2455 = vld [vmem:[#allocation2 + $0x175] sm:$0xff]
        %v2456 = vld [vmem:[#allocation2 + $0x17d] sm:$0xff]
        %v2457 = vld [vmem:[#allocation2 + $0x185] sm:$0xff]
        %v2458 = vld [vmem:[#allocation2 + $0x18d] sm:$0xff]
        %v2459 = vld [vmem:[#allocation2 + $0x195] sm:$0xff]
        %v2460 = vld [vmem:[#allocation2 + $0x19d] sm:$0xff]
        %v2461 = vld [vmem:[#allocation2 + $0x1a5] sm:$0xff]
        %v2462 = vld [vmem:[#allocation2 + $0x1ad] sm:$0xff]
        %v2463 = vld [vmem:[#allocation2 + $0x1b5] sm:$0xff]
        %v2464 = vld [vmem:[#allocation2 + $0x1bd] sm:$0xff]
        %v2465 = vld [vmem:[#allocation2 + $0x1c5] sm:$0xff]
        %v2467 = vsel %vm1604, %v2411, 0
        %v2470 = vsel %vm1604, %v2412, 0
        %v2473 = vsel %vm1604, %v2413, 0
        %v2476 = vsel %vm1604, %v2414, 0
        %v2479 = vsel %vm1604, %v2415, 0
        %v2482 = vsel %vm1604, %v2416, 0
        %v2485 = vsel %vm1604, %v2417, 0
        %v2488 = vsel %vm1604, %v2418, 0
        %v2491 = vsel %vm1604, %v2419, 0
        %v2494 = vsel %vm1604, %v2420, 0
        %v2497 = vsel %vm1604, %v2421, 0
        %v2500 = vsel %vm1604, %v2422, 0
        %v2503 = vsel %vm1604, %v2423, 0
        %v2506 = vsel %vm1604, %v2424, 0
        %v2509 = vsel %vm1604, %v2425, 0
        %v2512 = vsel %vm1604, %v2426, 0
        %v2515 = vsel %vm1604, %v2427, 0
        %v2518 = vsel %vm1604, %v2428, 0
        %v2521 = vsel %vm1604, %v2429, 0
        %v2524 = vsel %vm1604, %v2430, 0
        %v2527 = vsel %vm1604, %v2431, 0
        %v2530 = vsel %vm1604, %v2432, 0
        %v2533 = vsel %vm1604, %v2433, 0
        %v2536 = vsel %vm1604, %v2434, 0
        %v2539 = vsel %vm1604, %v2435, 0
        %v2542 = vsel %vm1604, %v2436, 0
        %v2545 = vsel %vm1604, %v2437, 0
        %v2548 = vsel %vm1604, %v2438, 0
        %v2551 = vsel %vm1604, %v2439, 0
        %v2554 = vsel %vm1604, %v2440, 0
        %v2557 = vsel %vm1604, %v2441, 0
        %v2560 = vsel %vm1604, %v2442, 0
        %v2563 = vsel %vm1604, %v2443, 0
        %v2566 = vsel %vm1604, %v2444, 0
        %v2569 = vsel %vm1604, %v2445, 0
        %v2572 = vsel %vm1604, %v2446, 0
        %v2575 = vsel %vm1604, %v2447, 0
        %v2578 = vsel %vm1604, %v2448, 0
        %v2581 = vsel %vm1604, %v2449, 0
        %v2584 = vsel %vm1604, %v2450, 0
        %v2587 = vsel %vm1604, %v2451, 0
        %v2590 = vsel %vm1604, %v2452, 0
        %v2593 = vsel %vm1604, %v2453, 0
        %v2596 = vsel %vm1604, %v2454, 0
        %v2599 = vsel %vm1604, %v2455, 0
        %v2602 = vsel %vm1604, %v2456, 0
        %v2605 = vsel %vm1604, %v2457, 0
        %v2608 = vsel %vm1604, %v2458, 0
        %v2611 = vsel %vm1604, %v2459, 0
        %v2614 = vsel %vm1604, %v2460, 0
        %v2617 = vsel %vm1604, %v2461, 0
        %v2620 = vsel %vm1604, %v2462, 0
        %v2623 = vsel %vm1604, %v2463, 0
        %v2626 = vsel %vm1604, %v2464, 0
        %v2629 = vsel %vm1604, %v2465, 0
        %2631 = vmatprep.subr.mxu0 0.0
        %2632 = vmatpush1.xpose.msra.mxu0 %v2470
        %2633 = vmatprep.subr.mxu0 0.0
        %2634 = vmatpush1.xpose.msra.mxu0 %v2473
        %2635 = vmatprep.subr.mxu0 0.0
        %2636 = vmatpush1.xpose.msra.mxu0 %v2476
        %2637 = vmatprep.subr.mxu0 0.0
        %2638 = vmatpush1.xpose.msra.mxu0 %v2479
        %2639 = vmatprep.subr.mxu0 0.0
        %2640 = vmatpush1.xpose.msra.mxu0 %v2482
        %2641 = vmatprep.subr.mxu0 0.0
        %2642 = vmatpush1.xpose.msra.mxu0 %v2485
        %2643 = vmatprep.subr.mxu0 0.0
        %2644 = vmatpush1.xpose.msra.mxu0 %v2488
        %2645 = vmatprep.subr.mxu0 0.0
        %2646 = vmatpush1.xpose.msra.mxu0 %v2491
        %2647 = vmatprep.subr.mxu0 0.0
        %2648 = vmatpush1.xpose.msra.mxu0 %v2494
        %2649 = vmatprep.subr.mxu0 0.0
        %2650 = vmatpush1.xpose.msra.mxu0 %v2497
        %2651 = vmatprep.subr.mxu0 0.0
        %2652 = vmatpush1.xpose.msra.mxu0 %v2500
        %2653 = vmatprep.subr.mxu0 0.0
        %2654 = vmatpush1.xpose.msra.mxu0 %v2503
        %2655 = vmatprep.subr.mxu0 0.0
        %2656 = vmatpush1.xpose.msra.mxu0 %v2506
        %2657 = vmatprep.subr.mxu0 0.0
        %2658 = vmatpush1.xpose.msra.mxu0 %v2509
        %2659 = vmatprep.subr.mxu0 0.0
        %2660 = vmatpush1.xpose.msra.mxu0 %v2512
        %2661 = vmatprep.subr.mxu0 0.0
        %2662 = vmatpush1.xpose.msra.mxu0 %v2515
        %2663 = vmatprep.subr.mxu0 0.0
        %2664 = vmatpush1.xpose.msra.mxu0 %v2518
        %2665 = vmatprep.subr.mxu0 0.0
        %2666 = vmatpush1.xpose.msra.mxu0 %v2521
        %2667 = vmatprep.subr.mxu0 0.0
        %2668 = vmatpush1.xpose.msra.mxu0 %v2524
        %2669 = vmatprep.subr.mxu0 0.0
        %2670 = vmatpush1.xpose.msra.mxu0 %v2527
        %2671 = vmatprep.subr.mxu0 0.0
        %2672 = vmatpush1.xpose.msra.mxu0 %v2530
        %2673 = vmatprep.subr.mxu0 0.0
        %2674 = vmatpush1.xpose.msra.mxu0 %v2533
        %2675 = vmatprep.subr.mxu0 0.0
        %2676 = vmatpush1.xpose.msra.mxu0 %v2536
        %2677 = vmatprep.subr.mxu0 0.0
        %2678 = vmatpush1.xpose.msra.mxu0 %v2539
        %2679 = vmatprep.subr.mxu0 0.0
        %2680 = vmatpush1.xpose.msra.mxu0 %v2542
        %2681 = vmatprep.subr.mxu0 0.0
        %2682 = vmatpush1.xpose.msra.mxu0 %v2545
        %2683 = vmatprep.subr.mxu0 0.0
        %2684 = vmatpush1.xpose.msra.mxu0 %v2548
        %2685 = vmatprep.subr.mxu0 0.0
        %2686 = vmatpush1.xpose.msra.mxu0 %v2551
        %2687 = vmatprep.subr.mxu0 0.0
        %2688 = vmatpush1.xpose.msra.mxu0 %v2554
        %2689 = vmatprep.subr.mxu0 0.0
        %2690 = vmatpush1.xpose.msra.mxu0 %v2557
        %2691 = vmatprep.subr.mxu0 0.0
        %2692 = vmatpush1.xpose.msra.mxu0 %v2560
        %2693 = vmatprep.subr.mxu0 0.0
        %2694 = vmatpush1.xpose.msra.mxu0 %v2563
        %2695 = vmatprep.mubr.f32.mxu0 0.0
        %2696 = vmatmul.mubr.f32.gmra.mrb[0].mxu0 %v2467
        %v2697 = vpop.f32.mrb[0].mxu0
        %v2698 = vadd.f32 0.0, %v2697
        %v2699 = vpop.f32.mrb[0].mxu0
        %v2700 = vadd.f32 0.0, %v2699
        %2701 = vdwg.mxu0
        %2702 = vmatprep.subr.mxu0 0.0
        %2703 = vmatpush1.xpose.msra.mxu0 %v2566
        %2704 = vmatprep.subr.mxu0 0.0
        %2705 = vmatpush1.xpose.msra.mxu0 %v2569
        %2706 = vmatprep.subr.mxu0 0.0
        %2707 = vmatpush1.xpose.msra.mxu0 %v2572
        %2708 = vmatprep.subr.mxu0 0.0
        %2709 = vmatpush1.xpose.msra.mxu0 %v2575
        %2710 = vmatprep.subr.mxu0 0.0
        %2711 = vmatpush1.xpose.msra.mxu0 %v2578
        %2712 = vmatprep.subr.mxu0 0.0
        %2713 = vmatpush1.xpose.msra.mxu0 %v2581
        %2714 = vmatprep.subr.mxu0 0.0
        %2715 = vmatpush1.xpose.msra.mxu0 %v2584
        %2716 = vmatprep.subr.mxu0 0.0
        %2717 = vmatpush1.xpose.msra.mxu0 %v2587
        %2718 = vmatprep.subr.mxu0 0.0
        %2719 = vmatpush1.xpose.msra.mxu0 %v2590
        %2720 = vmatprep.subr.mxu0 0.0
        %2721 = vmatpush1.xpose.msra.mxu0 %v2593
        %2722 = vmatprep.subr.mxu0 0.0
        %2723 = vmatpush1.xpose.msra.mxu0 %v2596
        %2724 = vmatprep.subr.mxu0 0.0
        %2725 = vmatpush1.xpose.msra.mxu0 %v2599
        %2726 = vmatprep.subr.mxu0 0.0
        %2727 = vmatpush1.xpose.msra.mxu0 %v2602
        %2728 = vmatprep.subr.mxu0 0.0
        %2729 = vmatpush1.xpose.msra.mxu0 %v2605
        %2730 = vmatprep.subr.mxu0 0.0
        %2731 = vmatpush1.xpose.msra.mxu0 %v2608
        %2732 = vmatprep.subr.mxu0 0.0
        %2733 = vmatpush1.xpose.msra.mxu0 %v2611
        %2734 = vmatprep.subr.mxu0 0.0
        %2735 = vmatpush1.xpose.msra.mxu0 %v2614
        %2736 = vmatprep.subr.mxu0 0.0
        %2737 = vmatpush1.xpose.msra.mxu0 %v2617
        %2738 = vmatprep.subr.mxu0 0.0
        %2739 = vmatpush1.xpose.msra.mxu0 %v2620
        %2740 = vmatprep.subr.mxu0 0.0
        %2741 = vmatpush1.xpose.msra.mxu0 %v2623
        %2742 = vmatprep.subr.mxu0 0.0
        %2743 = vmatpush1.xpose.msra.mxu0 %v2626
        %2744 = vmatprep.subr.mxu0 0.0
        %2745 = vmatpush1.xpose.msra.mxu0 %v2629
        %2746 = vmatprep.subr.mxu0 0.0
        %2747 = vmatpush1.xpose.msra.mxu0 0.0
        %2748 = vmatprep.subr.mxu0 0.0
        %2749 = vmatpush1.xpose.msra.mxu0 0.0
        %2750 = vmatprep.subr.mxu0 0.0
        %2751 = vmatpush1.xpose.msra.mxu0 0.0
        %2752 = vmatprep.subr.mxu0 0.0
        %2753 = vmatpush1.xpose.msra.mxu0 0.0
        %2754 = vmatprep.subr.mxu0 0.0
        %2755 = vmatpush1.xpose.msra.mxu0 0.0
        %2756 = vmatprep.subr.mxu0 0.0
        %2757 = vmatpush1.xpose.msra.mxu0 0.0
        %2758 = vmatprep.subr.mxu0 0.0
        %2759 = vmatpush1.xpose.msra.mxu0 0.0
        %2760 = vmatprep.subr.mxu0 0.0
        %2761 = vmatpush1.xpose.msra.mxu0 0.0
        %2762 = vmatprep.subr.mxu0 0.0
        %2763 = vmatpush1.xpose.msra.mxu0 0.0
        %2764 = vmatprep.subr.mxu0 0.0
        %2765 = vmatpush1.xpose.msra.mxu0 0.0
        %2766 = vmatprep.mubr.f32.mxu0 0.0
        %2767 = vmatmul.mubr.f32.gmra.mrb[0].mxu0 %v2467
        %v2768 = vpop.f32.mrb[0].mxu0
        %v2769 = vadd.f32 0.0, %v2768
        %v2770 = vpop.f32.mrb[0].mxu0
        %v2771 = vadd.f32 0.0, %v2770
        %2772 = vdwg.mxu0
        %v2773 = vadd.f32 %v2335, %v2698
        %v2774 = vadd.f32 %v2337, %v2700
        %v2775 = vadd.f32 %v2406, %v2769
        %v2776 = vadd.f32 %v2408, %v2771
        %s2777 = scalar_lea.vmem %s4, 24
        %v2778 = vld [vmem:[%s2777] sm:$0xff]
        %v2779 = vld [vmem:[#allocation2 + $0x49] sm:$0xff]
        %v2780 = vld [vmem:[#allocation2 + $0x51] sm:$0xff]
        %v2781 = vld [vmem:[#allocation2 + $0x59] sm:$0xff]
        %v2782 = vld [vmem:[#allocation2 + $0x61] sm:$0xff]
        %v2783 = vld [vmem:[#allocation2 + $0x69] sm:$0xff]
        %v2784 = vld [vmem:[#allocation2 + $0x71] sm:$0xff]
        %v2785 = vld [vmem:[#allocation2 + $0x79] sm:$0xff]
        %v2786 = vld [vmem:[#allocation2 + $0x81] sm:$0xff]
        %v2787 = vld [vmem:[#allocation2 + $0x89] sm:$0xff]
        %v2788 = vld [vmem:[#allocation2 + $0x91] sm:$0xff]
        %v2789 = vld [vmem:[#allocation2 + $0x99] sm:$0xff]
        %v2790 = vld [vmem:[#allocation2 + $0xa1] sm:$0xff]
        %v2791 = vld [vmem:[#allocation2 + $0xa9] sm:$0xff]
        %v2792 = vld [vmem:[#allocation2 + $0xb1] sm:$0xff]
        %v2793 = vld [vmem:[#allocation2 + $0xb9] sm:$0xff]
        %v2794 = vld [vmem:[#allocation2 + $0xc1] sm:$0xff]
        %v2795 = vld [vmem:[#allocation2 + $0xc9] sm:$0xff]
        %v2796 = vld [vmem:[#allocation2 + $0xd1] sm:$0xff]
        %v2797 = vld [vmem:[#allocation2 + $0xd9] sm:$0xff]
        %v2798 = vld [vmem:[#allocation2 + $0xe1] sm:$0xff]
        %v2799 = vld [vmem:[#allocation2 + $0xe9] sm:$0xff]
        %v2800 = vld [vmem:[#allocation2 + $0xf1] sm:$0xff]
        %v2801 = vld [vmem:[#allocation2 + $0xf9] sm:$0xff]
        %v2802 = vld [vmem:[#allocation2 + $0x101] sm:$0xff]
        %v2803 = vld [vmem:[#allocation2 + $0x109] sm:$0xff]
        %v2804 = vld [vmem:[#allocation2 + $0x111] sm:$0xff]
        %v2805 = vld [vmem:[#allocation2 + $0x119] sm:$0xff]
        %v2806 = vld [vmem:[#allocation2 + $0x121] sm:$0xff]
        %v2807 = vld [vmem:[#allocation2 + $0x129] sm:$0xff]
        %v2808 = vld [vmem:[#allocation2 + $0x131] sm:$0xff]
        %v2809 = vld [vmem:[#allocation2 + $0x139] sm:$0xff]
        %v2810 = vld [vmem:[#allocation2 + $0x141] sm:$0xff]
        %v2811 = vld [vmem:[#allocation2 + $0x149] sm:$0xff]
        %v2812 = vld [vmem:[#allocation2 + $0x151] sm:$0xff]
        %v2813 = vld [vmem:[#allocation2 + $0x159] sm:$0xff]
        %v2814 = vld [vmem:[#allocation2 + $0x161] sm:$0xff]
        %v2815 = vld [vmem:[#allocation2 + $0x169] sm:$0xff]
        %v2816 = vld [vmem:[#allocation2 + $0x171] sm:$0xff]
        %v2817 = vld [vmem:[#allocation2 + $0x179] sm:$0xff]
        %v2818 = vld [vmem:[#allocation2 + $0x181] sm:$0xff]
        %v2819 = vld [vmem:[#allocation2 + $0x189] sm:$0xff]
        %v2820 = vld [vmem:[#allocation2 + $0x191] sm:$0xff]
        %v2821 = vld [vmem:[#allocation2 + $0x199] sm:$0xff]
        %v2822 = vld [vmem:[#allocation2 + $0x1a1] sm:$0xff]
        %v2823 = vld [vmem:[#allocation2 + $0x1a9] sm:$0xff]
        %v2824 = vld [vmem:[#allocation2 + $0x1b1] sm:$0xff]
        %v2825 = vld [vmem:[#allocation2 + $0x1b9] sm:$0xff]
        %v2826 = vld [vmem:[#allocation2 + $0x1c1] sm:$0xff]
        %v2827 = vld [vmem:[#allocation2 + $0x1c9] sm:$0xff]
        %v2828 = vld [vmem:[#allocation2 + $0x1d1] sm:$0xff]
        %v2829 = vld [vmem:[#allocation2 + $0x1d9] sm:$0xff]
        %v2830 = vld [vmem:[#allocation2 + $0x1e1] sm:$0xff]
        %v2831 = vld [vmem:[#allocation2 + $0x1e9] sm:$0xff]
        %v2832 = vld [vmem:[#allocation2 + $0x1f1] sm:$0xff]
        %v2834 = vsel %vm1604, %v2778, 0
        %v2837 = vsel %vm1604, %v2779, 0
        %v2840 = vsel %vm1604, %v2780, 0
        %v2843 = vsel %vm1604, %v2781, 0
        %v2846 = vsel %vm1604, %v2782, 0
        %v2849 = vsel %vm1604, %v2783, 0
        %v2852 = vsel %vm1604, %v2784, 0
        %v2855 = vsel %vm1604, %v2785, 0
        %v2858 = vsel %vm1604, %v2786, 0
        %v2861 = vsel %vm1604, %v2787, 0
        %v2864 = vsel %vm1604, %v2788, 0
        %v2867 = vsel %vm1604, %v2789, 0
        %v2870 = vsel %vm1604, %v2790, 0
        %v2873 = vsel %vm1604, %v2791, 0
        %v2876 = vsel %vm1604, %v2792, 0
        %v2879 = vsel %vm1604, %v2793, 0
        %v2882 = vsel %vm1604, %v2794, 0
        %v2885 = vsel %vm1604, %v2795, 0
        %v2888 = vsel %vm1604, %v2796, 0
        %v2891 = vsel %vm1604, %v2797, 0
        %v2894 = vsel %vm1604, %v2798, 0
        %v2897 = vsel %vm1604, %v2799, 0
        %v2900 = vsel %vm1604, %v2800, 0
        %v2903 = vsel %vm1604, %v2801, 0
        %v2906 = vsel %vm1604, %v2802, 0
        %v2909 = vsel %vm1604, %v2803, 0
        %v2912 = vsel %vm1604, %v2804, 0
        %v2915 = vsel %vm1604, %v2805, 0
        %v2918 = vsel %vm1604, %v2806, 0
        %v2921 = vsel %vm1604, %v2807, 0
        %v2924 = vsel %vm1604, %v2808, 0
        %v2927 = vsel %vm1604, %v2809, 0
        %v2930 = vsel %vm1604, %v2810, 0
        %v2933 = vsel %vm1604, %v2811, 0
        %v2936 = vsel %vm1604, %v2812, 0
        %v2939 = vsel %vm1604, %v2813, 0
        %v2942 = vsel %vm1604, %v2814, 0
        %v2945 = vsel %vm1604, %v2815, 0
        %v2948 = vsel %vm1604, %v2816, 0
        %v2951 = vsel %vm1604, %v2817, 0
        %v2954 = vsel %vm1604, %v2818, 0
        %v2957 = vsel %vm1604, %v2819, 0
        %v2960 = vsel %vm1604, %v2820, 0
        %v2963 = vsel %vm1604, %v2821, 0
        %v2966 = vsel %vm1604, %v2822, 0
        %v2969 = vsel %vm1604, %v2823, 0
        %v2972 = vsel %vm1604, %v2824, 0
        %v2975 = vsel %vm1604, %v2825, 0
        %v2978 = vsel %vm1604, %v2826, 0
        %v2981 = vsel %vm1604, %v2827, 0
        %v2984 = vsel %vm1604, %v2828, 0
        %v2987 = vsel %vm1604, %v2829, 0
        %v2990 = vsel %vm1604, %v2830, 0
        %v2993 = vsel %vm1604, %v2831, 0
        %v2996 = vsel %vm1604, %v2832, 0
        %2998 = vmatprep.subr.mxu0 0.0
        %2999 = vmatpush1.xpose.msra.mxu0 %v2837
        %3000 = vmatprep.subr.mxu0 0.0
        %3001 = vmatpush1.xpose.msra.mxu0 %v2840
        %3002 = vmatprep.subr.mxu0 0.0
        %3003 = vmatpush1.xpose.msra.mxu0 %v2843
        %3004 = vmatprep.subr.mxu0 0.0
        %3005 = vmatpush1.xpose.msra.mxu0 %v2846
        %3006 = vmatprep.subr.mxu0 0.0
        %3007 = vmatpush1.xpose.msra.mxu0 %v2849
        %3008 = vmatprep.subr.mxu0 0.0
        %3009 = vmatpush1.xpose.msra.mxu0 %v2852
        %3010 = vmatprep.subr.mxu0 0.0
        %3011 = vmatpush1.xpose.msra.mxu0 %v2855
        %3012 = vmatprep.subr.mxu0 0.0
        %3013 = vmatpush1.xpose.msra.mxu0 %v2858
        %3014 = vmatprep.subr.mxu0 0.0
        %3015 = vmatpush1.xpose.msra.mxu0 %v2861
        %3016 = vmatprep.subr.mxu0 0.0
        %3017 = vmatpush1.xpose.msra.mxu0 %v2864
        %3018 = vmatprep.subr.mxu0 0.0
        %3019 = vmatpush1.xpose.msra.mxu0 %v2867
        %3020 = vmatprep.subr.mxu0 0.0
        %3021 = vmatpush1.xpose.msra.mxu0 %v2870
        %3022 = vmatprep.subr.mxu0 0.0
        %3023 = vmatpush1.xpose.msra.mxu0 %v2873
        %3024 = vmatprep.subr.mxu0 0.0
        %3025 = vmatpush1.xpose.msra.mxu0 %v2876
        %3026 = vmatprep.subr.mxu0 0.0
        %3027 = vmatpush1.xpose.msra.mxu0 %v2879
        %3028 = vmatprep.subr.mxu0 0.0
        %3029 = vmatpush1.xpose.msra.mxu0 %v2882
        %3030 = vmatprep.subr.mxu0 0.0
        %3031 = vmatpush1.xpose.msra.mxu0 %v2885
        %3032 = vmatprep.subr.mxu0 0.0
        %3033 = vmatpush1.xpose.msra.mxu0 %v2888
        %3034 = vmatprep.subr.mxu0 0.0
        %3035 = vmatpush1.xpose.msra.mxu0 %v2891
        %3036 = vmatprep.subr.mxu0 0.0
        %3037 = vmatpush1.xpose.msra.mxu0 %v2894
        %3038 = vmatprep.subr.mxu0 0.0
        %3039 = vmatpush1.xpose.msra.mxu0 %v2897
        %3040 = vmatprep.subr.mxu0 0.0
        %3041 = vmatpush1.xpose.msra.mxu0 %v2900
        %3042 = vmatprep.subr.mxu0 0.0
        %3043 = vmatpush1.xpose.msra.mxu0 %v2903
        %3044 = vmatprep.subr.mxu0 0.0
        %3045 = vmatpush1.xpose.msra.mxu0 %v2906
        %3046 = vmatprep.subr.mxu0 0.0
        %3047 = vmatpush1.xpose.msra.mxu0 %v2909
        %3048 = vmatprep.subr.mxu0 0.0
        %3049 = vmatpush1.xpose.msra.mxu0 %v2912
        %3050 = vmatprep.subr.mxu0 0.0
        %3051 = vmatpush1.xpose.msra.mxu0 %v2915
        %3052 = vmatprep.subr.mxu0 0.0
        %3053 = vmatpush1.xpose.msra.mxu0 %v2918
        %3054 = vmatprep.subr.mxu0 0.0
        %3055 = vmatpush1.xpose.msra.mxu0 %v2921
        %3056 = vmatprep.subr.mxu0 0.0
        %3057 = vmatpush1.xpose.msra.mxu0 %v2924
        %3058 = vmatprep.subr.mxu0 0.0
        %3059 = vmatpush1.xpose.msra.mxu0 %v2927
        %3060 = vmatprep.subr.mxu0 0.0
        %3061 = vmatpush1.xpose.msra.mxu0 %v2930
        %3062 = vmatprep.mubr.f32.mxu0 0.0
        %3063 = vmatmul.mubr.f32.gmra.mrb[0].mxu0 %v2834
        %v3064 = vpop.f32.mrb[0].mxu0
        %v3065 = vadd.f32 0.0, %v3064
        %v3066 = vpop.f32.mrb[0].mxu0
        %v3067 = vadd.f32 0.0, %v3066
        %3068 = vdwg.mxu0
        %3069 = vmatprep.subr.mxu0 0.0
        %3070 = vmatpush1.xpose.msra.mxu0 %v2933
        %3071 = vmatprep.subr.mxu0 0.0
        %3072 = vmatpush1.xpose.msra.mxu0 %v2936
        %3073 = vmatprep.subr.mxu0 0.0
        %3074 = vmatpush1.xpose.msra.mxu0 %v2939
        %3075 = vmatprep.subr.mxu0 0.0
        %3076 = vmatpush1.xpose.msra.mxu0 %v2942
        %3077 = vmatprep.subr.mxu0 0.0
        %3078 = vmatpush1.xpose.msra.mxu0 %v2945
        %3079 = vmatprep.subr.mxu0 0.0
        %3080 = vmatpush1.xpose.msra.mxu0 %v2948
        %3081 = vmatprep.subr.mxu0 0.0
        %3082 = vmatpush1.xpose.msra.mxu0 %v2951
        %3083 = vmatprep.subr.mxu0 0.0
        %3084 = vmatpush1.xpose.msra.mxu0 %v2954
        %3085 = vmatprep.subr.mxu0 0.0
        %3086 = vmatpush1.xpose.msra.mxu0 %v2957
        %3087 = vmatprep.subr.mxu0 0.0
        %3088 = vmatpush1.xpose.msra.mxu0 %v2960
        %3089 = vmatprep.subr.mxu0 0.0
        %3090 = vmatpush1.xpose.msra.mxu0 %v2963
        %3091 = vmatprep.subr.mxu0 0.0
        %3092 = vmatpush1.xpose.msra.mxu0 %v2966
        %3093 = vmatprep.subr.mxu0 0.0
        %3094 = vmatpush1.xpose.msra.mxu0 %v2969
        %3095 = vmatprep.subr.mxu0 0.0
        %3096 = vmatpush1.xpose.msra.mxu0 %v2972
        %3097 = vmatprep.subr.mxu0 0.0
        %3098 = vmatpush1.xpose.msra.mxu0 %v2975
        %3099 = vmatprep.subr.mxu0 0.0
        %3100 = vmatpush1.xpose.msra.mxu0 %v2978
        %3101 = vmatprep.subr.mxu0 0.0
        %3102 = vmatpush1.xpose.msra.mxu0 %v2981
        %3103 = vmatprep.subr.mxu0 0.0
        %3104 = vmatpush1.xpose.msra.mxu0 %v2984
        %3105 = vmatprep.subr.mxu0 0.0
        %3106 = vmatpush1.xpose.msra.mxu0 %v2987
        %3107 = vmatprep.subr.mxu0 0.0
        %3108 = vmatpush1.xpose.msra.mxu0 %v2990
        %3109 = vmatprep.subr.mxu0 0.0
        %3110 = vmatpush1.xpose.msra.mxu0 %v2993
        %3111 = vmatprep.subr.mxu0 0.0
        %3112 = vmatpush1.xpose.msra.mxu0 %v2996
        %3113 = vmatprep.subr.mxu0 0.0
        %3114 = vmatpush1.xpose.msra.mxu0 0.0
        %3115 = vmatprep.subr.mxu0 0.0
        %3116 = vmatpush1.xpose.msra.mxu0 0.0
        %3117 = vmatprep.subr.mxu0 0.0
        %3118 = vmatpush1.xpose.msra.mxu0 0.0
        %3119 = vmatprep.subr.mxu0 0.0
        %3120 = vmatpush1.xpose.msra.mxu0 0.0
        %3121 = vmatprep.subr.mxu0 0.0
        %3122 = vmatpush1.xpose.msra.mxu0 0.0
        %3123 = vmatprep.subr.mxu0 0.0
        %3124 = vmatpush1.xpose.msra.mxu0 0.0
        %3125 = vmatprep.subr.mxu0 0.0
        %3126 = vmatpush1.xpose.msra.mxu0 0.0
        %3127 = vmatprep.subr.mxu0 0.0
        %3128 = vmatpush1.xpose.msra.mxu0 0.0
        %3129 = vmatprep.subr.mxu0 0.0
        %3130 = vmatpush1.xpose.msra.mxu0 0.0
        %3131 = vmatprep.subr.mxu0 0.0
        %3132 = vmatpush1.xpose.msra.mxu0 0.0
        %3133 = vmatprep.mubr.f32.mxu0 0.0
        %3134 = vmatmul.mubr.f32.gmra.mrb[0].mxu0 %v2834
        %v3135 = vpop.f32.mrb[0].mxu0
        %v3136 = vadd.f32 0.0, %v3135
        %v3137 = vpop.f32.mrb[0].mxu0
        %v3138 = vadd.f32 0.0, %v3137
        %3139 = vdwg.mxu0
        %v3140 = vadd.f32 %v2773, %v3065
        %v3141 = vadd.f32 %v2774, %v3067
        %v3142 = vadd.f32 %v2775, %v3136
        %v3143 = vadd.f32 %v2776, %v3138
        %s3144 = scalar_lea.vmem %s4, 32
        %v3145 = vld [vmem:[%s3144] sm:$0xff]
        %v3146 = vld [vmem:[#allocation2 + $0x4b] sm:$0xff]
        %v3147 = vld [vmem:[#allocation2 + $0x53] sm:$0xff]
        %v3148 = vld [vmem:[#allocation2 + $0x5b] sm:$0xff]
        %v3149 = vld [vmem:[#allocation2 + $0x63] sm:$0xff]
        %v3150 = vld [vmem:[#allocation2 + $0x6b] sm:$0xff]
        %v3151 = vld [vmem:[#allocation2 + $0x73] sm:$0xff]
        %v3152 = vld [vmem:[#allocation2 + $0x7b] sm:$0xff]
        %v3153 = vld [vmem:[#allocation2 + $0x83] sm:$0xff]
        %v3154 = vld [vmem:[#allocation2 + $0x8b] sm:$0xff]
        %v3155 = vld [vmem:[#allocation2 + $0x93] sm:$0xff]
        %v3156 = vld [vmem:[#allocation2 + $0x9b] sm:$0xff]
        %v3157 = vld [vmem:[#allocation2 + $0xa3] sm:$0xff]
        %v3158 = vld [vmem:[#allocation2 + $0xab] sm:$0xff]
        %v3159 = vld [vmem:[#allocation2 + $0xb3] sm:$0xff]
        %v3160 = vld [vmem:[#allocation2 + $0xbb] sm:$0xff]
        %v3161 = vld [vmem:[#allocation2 + $0xc3] sm:$0xff]
        %v3162 = vld [vmem:[#allocation2 + $0xcb] sm:$0xff]
        %v3163 = vld [vmem:[#allocation2 + $0xd3] sm:$0xff]
        %v3164 = vld [vmem:[#allocation2 + $0xdb] sm:$0xff]
        %v3165 = vld [vmem:[#allocation2 + $0xe3] sm:$0xff]
        %v3166 = vld [vmem:[#allocation2 + $0xeb] sm:$0xff]
        %v3167 = vld [vmem:[#allocation2 + $0xf3] sm:$0xff]
        %v3168 = vld [vmem:[#allocation2 + $0xfb] sm:$0xff]
        %v3169 = vld [vmem:[#allocation2 + $0x103] sm:$0xff]
        %v3170 = vld [vmem:[#allocation2 + $0x10b] sm:$0xff]
        %v3171 = vld [vmem:[#allocation2 + $0x113] sm:$0xff]
        %v3172 = vld [vmem:[#allocation2 + $0x11b] sm:$0xff]
        %v3173 = vld [vmem:[#allocation2 + $0x123] sm:$0xff]
        %v3174 = vld [vmem:[#allocation2 + $0x12b] sm:$0xff]
        %v3175 = vld [vmem:[#allocation2 + $0x133] sm:$0xff]
        %v3176 = vld [vmem:[#allocation2 + $0x13b] sm:$0xff]
        %v3177 = vld [vmem:[#allocation2 + $0x143] sm:$0xff]
        %v3178 = vld [vmem:[#allocation2 + $0x14b] sm:$0xff]
        %v3179 = vld [vmem:[#allocation2 + $0x153] sm:$0xff]
        %v3180 = vld [vmem:[#allocation2 + $0x15b] sm:$0xff]
        %v3181 = vld [vmem:[#allocation2 + $0x163] sm:$0xff]
        %v3182 = vld [vmem:[#allocation2 + $0x16b] sm:$0xff]
        %v3183 = vld [vmem:[#allocation2 + $0x173] sm:$0xff]
        %v3184 = vld [vmem:[#allocation2 + $0x17b] sm:$0xff]
        %v3185 = vld [vmem:[#allocation2 + $0x183] sm:$0xff]
        %v3186 = vld [vmem:[#allocation2 + $0x18b] sm:$0xff]
        %v3187 = vld [vmem:[#allocation2 + $0x193] sm:$0xff]
        %v3188 = vld [vmem:[#allocation2 + $0x19b] sm:$0xff]
        %v3189 = vld [vmem:[#allocation2 + $0x1a3] sm:$0xff]
        %v3190 = vld [vmem:[#allocation2 + $0x1ab] sm:$0xff]
        %v3191 = vld [vmem:[#allocation2 + $0x1b3] sm:$0xff]
        %v3192 = vld [vmem:[#allocation2 + $0x1bb] sm:$0xff]
        %v3193 = vld [vmem:[#allocation2 + $0x1c3] sm:$0xff]
        %v3194 = vld [vmem:[#allocation2 + $0x1cb] sm:$0xff]
        %v3195 = vld [vmem:[#allocation2 + $0x1d3] sm:$0xff]
        %v3196 = vld [vmem:[#allocation2 + $0x1db] sm:$0xff]
        %v3197 = vld [vmem:[#allocation2 + $0x1e3] sm:$0xff]
        %v3198 = vld [vmem:[#allocation2 + $0x1eb] sm:$0xff]
        %v3199 = vld [vmem:[#allocation2 + $0x1f3] sm:$0xff]
        %v3201 = vsel %vm1604, %v3145, 0
        %v3204 = vsel %vm1604, %v3146, 0
        %v3207 = vsel %vm1604, %v3147, 0
        %v3210 = vsel %vm1604, %v3148, 0
        %v3213 = vsel %vm1604, %v3149, 0
        %v3216 = vsel %vm1604, %v3150, 0
        %v3219 = vsel %vm1604, %v3151, 0
        %v3222 = vsel %vm1604, %v3152, 0
        %v3225 = vsel %vm1604, %v3153, 0
        %v3228 = vsel %vm1604, %v3154, 0
        %v3231 = vsel %vm1604, %v3155, 0
        %v3234 = vsel %vm1604, %v3156, 0
        %v3237 = vsel %vm1604, %v3157, 0
        %v3240 = vsel %vm1604, %v3158, 0
        %v3243 = vsel %vm1604, %v3159, 0
        %v3246 = vsel %vm1604, %v3160, 0
        %v3249 = vsel %vm1604, %v3161, 0
        %v3252 = vsel %vm1604, %v3162, 0
        %v3255 = vsel %vm1604, %v3163, 0
        %v3258 = vsel %vm1604, %v3164, 0
        %v3261 = vsel %vm1604, %v3165, 0
        %v3264 = vsel %vm1604, %v3166, 0
        %v3267 = vsel %vm1604, %v3167, 0
        %v3270 = vsel %vm1604, %v3168, 0
        %v3273 = vsel %vm1604, %v3169, 0
        %v3276 = vsel %vm1604, %v3170, 0
        %v3279 = vsel %vm1604, %v3171, 0
        %v3282 = vsel %vm1604, %v3172, 0
        %v3285 = vsel %vm1604, %v3173, 0
        %v3288 = vsel %vm1604, %v3174, 0
        %v3291 = vsel %vm1604, %v3175, 0
        %v3294 = vsel %vm1604, %v3176, 0
        %v3297 = vsel %vm1604, %v3177, 0
        %v3300 = vsel %vm1604, %v3178, 0
        %v3303 = vsel %vm1604, %v3179, 0
        %v3306 = vsel %vm1604, %v3180, 0
        %v3309 = vsel %vm1604, %v3181, 0
        %v3312 = vsel %vm1604, %v3182, 0
        %v3315 = vsel %vm1604, %v3183, 0
        %v3318 = vsel %vm1604, %v3184, 0
        %v3321 = vsel %vm1604, %v3185, 0
        %v3324 = vsel %vm1604, %v3186, 0
        %v3327 = vsel %vm1604, %v3187, 0
        %v3330 = vsel %vm1604, %v3188, 0
        %v3333 = vsel %vm1604, %v3189, 0
        %v3336 = vsel %vm1604, %v3190, 0
        %v3339 = vsel %vm1604, %v3191, 0
        %v3342 = vsel %vm1604, %v3192, 0
        %v3345 = vsel %vm1604, %v3193, 0
        %v3348 = vsel %vm1604, %v3194, 0
        %v3351 = vsel %vm1604, %v3195, 0
        %v3354 = vsel %vm1604, %v3196, 0
        %v3357 = vsel %vm1604, %v3197, 0
        %v3360 = vsel %vm1604, %v3198, 0
        %v3363 = vsel %vm1604, %v3199, 0
        %3365 = vmatprep.subr.mxu0 0.0
        %3366 = vmatpush1.xpose.msra.mxu0 %v3204
        %3367 = vmatprep.subr.mxu0 0.0
        %3368 = vmatpush1.xpose.msra.mxu0 %v3207
        %3369 = vmatprep.subr.mxu0 0.0
        %3370 = vmatpush1.xpose.msra.mxu0 %v3210
        %3371 = vmatprep.subr.mxu0 0.0
        %3372 = vmatpush1.xpose.msra.mxu0 %v3213
        %3373 = vmatprep.subr.mxu0 0.0
        %3374 = vmatpush1.xpose.msra.mxu0 %v3216
        %3375 = vmatprep.subr.mxu0 0.0
        %3376 = vmatpush1.xpose.msra.mxu0 %v3219
        %3377 = vmatprep.subr.mxu0 0.0
        %3378 = vmatpush1.xpose.msra.mxu0 %v3222
        %3379 = vmatprep.subr.mxu0 0.0
        %3380 = vmatpush1.xpose.msra.mxu0 %v3225
        %3381 = vmatprep.subr.mxu0 0.0
        %3382 = vmatpush1.xpose.msra.mxu0 %v3228
        %3383 = vmatprep.subr.mxu0 0.0
        %3384 = vmatpush1.xpose.msra.mxu0 %v3231
        %3385 = vmatprep.subr.mxu0 0.0
        %3386 = vmatpush1.xpose.msra.mxu0 %v3234
        %3387 = vmatprep.subr.mxu0 0.0
        %3388 = vmatpush1.xpose.msra.mxu0 %v3237
        %3389 = vmatprep.subr.mxu0 0.0
        %3390 = vmatpush1.xpose.msra.mxu0 %v3240
        %3391 = vmatprep.subr.mxu0 0.0
        %3392 = vmatpush1.xpose.msra.mxu0 %v3243
        %3393 = vmatprep.subr.mxu0 0.0
        %3394 = vmatpush1.xpose.msra.mxu0 %v3246
        %3395 = vmatprep.subr.mxu0 0.0
        %3396 = vmatpush1.xpose.msra.mxu0 %v3249
        %3397 = vmatprep.subr.mxu0 0.0
        %3398 = vmatpush1.xpose.msra.mxu0 %v3252
        %3399 = vmatprep.subr.mxu0 0.0
        %3400 = vmatpush1.xpose.msra.mxu0 %v3255
        %3401 = vmatprep.subr.mxu0 0.0
        %3402 = vmatpush1.xpose.msra.mxu0 %v3258
        %3403 = vmatprep.subr.mxu0 0.0
        %3404 = vmatpush1.xpose.msra.mxu0 %v3261
        %3405 = vmatprep.subr.mxu0 0.0
        %3406 = vmatpush1.xpose.msra.mxu0 %v3264
        %3407 = vmatprep.subr.mxu0 0.0
        %3408 = vmatpush1.xpose.msra.mxu0 %v3267
        %3409 = vmatprep.subr.mxu0 0.0
        %3410 = vmatpush1.xpose.msra.mxu0 %v3270
        %3411 = vmatprep.subr.mxu0 0.0
        %3412 = vmatpush1.xpose.msra.mxu0 %v3273
        %3413 = vmatprep.subr.mxu0 0.0
        %3414 = vmatpush1.xpose.msra.mxu0 %v3276
        %3415 = vmatprep.subr.mxu0 0.0
        %3416 = vmatpush1.xpose.msra.mxu0 %v3279
        %3417 = vmatprep.subr.mxu0 0.0
        %3418 = vmatpush1.xpose.msra.mxu0 %v3282
        %3419 = vmatprep.subr.mxu0 0.0
        %3420 = vmatpush1.xpose.msra.mxu0 %v3285
        %3421 = vmatprep.subr.mxu0 0.0
        %3422 = vmatpush1.xpose.msra.mxu0 %v3288
        %3423 = vmatprep.subr.mxu0 0.0
        %3424 = vmatpush1.xpose.msra.mxu0 %v3291
        %3425 = vmatprep.subr.mxu0 0.0
        %3426 = vmatpush1.xpose.msra.mxu0 %v3294
        %3427 = vmatprep.subr.mxu0 0.0
        %3428 = vmatpush1.xpose.msra.mxu0 %v3297
        %3429 = vmatprep.mubr.f32.mxu0 0.0
        %3430 = vmatmul.mubr.f32.gmra.mrb[0].mxu0 %v3201
        %v3431 = vpop.f32.mrb[0].mxu0
        %v3432 = vadd.f32 0.0, %v3431
        %v3433 = vpop.f32.mrb[0].mxu0
        %v3434 = vadd.f32 0.0, %v3433
        %3435 = vdwg.mxu0
        %3436 = vmatprep.subr.mxu0 0.0
        %3437 = vmatpush1.xpose.msra.mxu0 %v3300
        %3438 = vmatprep.subr.mxu0 0.0
        %3439 = vmatpush1.xpose.msra.mxu0 %v3303
        %3440 = vmatprep.subr.mxu0 0.0
        %3441 = vmatpush1.xpose.msra.mxu0 %v3306
        %3442 = vmatprep.subr.mxu0 0.0
        %3443 = vmatpush1.xpose.msra.mxu0 %v3309
        %3444 = vmatprep.subr.mxu0 0.0
        %3445 = vmatpush1.xpose.msra.mxu0 %v3312
        %3446 = vmatprep.subr.mxu0 0.0
        %3447 = vmatpush1.xpose.msra.mxu0 %v3315
        %3448 = vmatprep.subr.mxu0 0.0
        %3449 = vmatpush1.xpose.msra.mxu0 %v3318
        %3450 = vmatprep.subr.mxu0 0.0
        %3451 = vmatpush1.xpose.msra.mxu0 %v3321
        %3452 = vmatprep.subr.mxu0 0.0
        %3453 = vmatpush1.xpose.msra.mxu0 %v3324
        %3454 = vmatprep.subr.mxu0 0.0
        %3455 = vmatpush1.xpose.msra.mxu0 %v3327
        %3456 = vmatprep.subr.mxu0 0.0
        %3457 = vmatpush1.xpose.msra.mxu0 %v3330
        %3458 = vmatprep.subr.mxu0 0.0
        %3459 = vmatpush1.xpose.msra.mxu0 %v3333
        %3460 = vmatprep.subr.mxu0 0.0
        %3461 = vmatpush1.xpose.msra.mxu0 %v3336
        %3462 = vmatprep.subr.mxu0 0.0
        %3463 = vmatpush1.xpose.msra.mxu0 %v3339
        %3464 = vmatprep.subr.mxu0 0.0
        %3465 = vmatpush1.xpose.msra.mxu0 %v3342
        %3466 = vmatprep.subr.mxu0 0.0
        %3467 = vmatpush1.xpose.msra.mxu0 %v3345
        %3468 = vmatprep.subr.mxu0 0.0
        %3469 = vmatpush1.xpose.msra.mxu0 %v3348
        %3470 = vmatprep.subr.mxu0 0.0
        %3471 = vmatpush1.xpose.msra.mxu0 %v3351
        %3472 = vmatprep.subr.mxu0 0.0
        %3473 = vmatpush1.xpose.msra.mxu0 %v3354
        %3474 = vmatprep.subr.mxu0 0.0
        %3475 = vmatpush1.xpose.msra.mxu0 %v3357
        %3476 = vmatprep.subr.mxu0 0.0
        %3477 = vmatpush1.xpose.msra.mxu0 %v3360
        %3478 = vmatprep.subr.mxu0 0.0
        %3479 = vmatpush1.xpose.msra.mxu0 %v3363
        %3480 = vmatprep.subr.mxu0 0.0
        %3481 = vmatpush1.xpose.msra.mxu0 0.0
        %3482 = vmatprep.subr.mxu0 0.0
        %3483 = vmatpush1.xpose.msra.mxu0 0.0
        %3484 = vmatprep.subr.mxu0 0.0
        %3485 = vmatpush1.xpose.msra.mxu0 0.0
        %3486 = vmatprep.subr.mxu0 0.0
        %3487 = vmatpush1.xpose.msra.mxu0 0.0
        %3488 = vmatprep.subr.mxu0 0.0
        %3489 = vmatpush1.xpose.msra.mxu0 0.0
        %3490 = vmatprep.subr.mxu0 0.0
        %3491 = vmatpush1.xpose.msra.mxu0 0.0
        %3492 = vmatprep.subr.mxu0 0.0
        %3493 = vmatpush1.xpose.msra.mxu0 0.0
        %3494 = vmatprep.subr.mxu0 0.0
        %3495 = vmatpush1.xpose.msra.mxu0 0.0
        %3496 = vmatprep.subr.mxu0 0.0
        %3497 = vmatpush1.xpose.msra.mxu0 0.0
        %3498 = vmatprep.subr.mxu0 0.0
        %3499 = vmatpush1.xpose.msra.mxu0 0.0
        %3500 = vmatprep.mubr.f32.mxu0 0.0
        %3501 = vmatmul.mubr.f32.gmra.mrb[0].mxu0 %v3201
        %v3502 = vpop.f32.mrb[0].mxu0
        %v3503 = vadd.f32 0.0, %v3502
        %v3504 = vpop.f32.mrb[0].mxu0
        %v3505 = vadd.f32 0.0, %v3504
        %3506 = vdwg.mxu0
        %v3507 = vadd.f32 %v3140, %v3432
        %v3508 = vadd.f32 %v3141, %v3434
        %v3509 = vadd.f32 %v3142, %v3503
        %v3510 = vadd.f32 %v3143, %v3505
        %s3511 = scalar_lea.vmem %s4, 40
        %v3512 = vld [vmem:[%s3511] sm:$0xff]
        %v3513 = vld [vmem:[#allocation2 + $0x4d] sm:$0xff]
        %v3514 = vld [vmem:[#allocation2 + $0x55] sm:$0xff]
        %v3515 = vld [vmem:[#allocation2 + $0x5d] sm:$0xff]
        %v3516 = vld [vmem:[#allocation2 + $0x65] sm:$0xff]
        %v3517 = vld [vmem:[#allocation2 + $0x6d] sm:$0xff]
        %v3518 = vld [vmem:[#allocation2 + $0x75] sm:$0xff]
        %v3519 = vld [vmem:[#allocation2 + $0x7d] sm:$0xff]
        %v3520 = vld [vmem:[#allocation2 + $0x85] sm:$0xff]
        %v3521 = vld [vmem:[#allocation2 + $0x8d] sm:$0xff]
        %v3522 = vld [vmem:[#allocation2 + $0x95] sm:$0xff]
        %v3523 = vld [vmem:[#allocation2 + $0x9d] sm:$0xff]
        %v3524 = vld [vmem:[#allocation2 + $0xa5] sm:$0xff]
        %v3525 = vld [vmem:[#allocation2 + $0xad] sm:$0xff]
        %v3526 = vld [vmem:[#allocation2 + $0xb5] sm:$0xff]
        %v3527 = vld [vmem:[#allocation2 + $0xbd] sm:$0xff]
        %v3528 = vld [vmem:[#allocation2 + $0xc5] sm:$0xff]
        %v3529 = vld [vmem:[#allocation2 + $0xcd] sm:$0xff]
        %v3530 = vld [vmem:[#allocation2 + $0xd5] sm:$0xff]
        %v3531 = vld [vmem:[#allocation2 + $0xdd] sm:$0xff]
        %v3532 = vld [vmem:[#allocation2 + $0xe5] sm:$0xff]
        %v3533 = vld [vmem:[#allocation2 + $0xed] sm:$0xff]
        %v3534 = vld [vmem:[#allocation2 + $0xf5] sm:$0xff]
        %v3535 = vld [vmem:[#allocation2 + $0xfd] sm:$0xff]
        %v3536 = vld [vmem:[#allocation2 + $0x105] sm:$0xff]
        %v3537 = vld [vmem:[#allocation2 + $0x10d] sm:$0xff]
        %v3538 = vld [vmem:[#allocation2 + $0x115] sm:$0xff]
        %v3539 = vld [vmem:[#allocation2 + $0x11d] sm:$0xff]
        %v3540 = vld [vmem:[#allocation2 + $0x125] sm:$0xff]
        %v3541 = vld [vmem:[#allocation2 + $0x12d] sm:$0xff]
        %v3542 = vld [vmem:[#allocation2 + $0x135] sm:$0xff]
        %v3543 = vld [vmem:[#allocation2 + $0x13d] sm:$0xff]
        %v3544 = vld [vmem:[#allocation2 + $0x145] sm:$0xff]
        %v3545 = vld [vmem:[#allocation2 + $0x14d] sm:$0xff]
        %v3546 = vld [vmem:[#allocation2 + $0x155] sm:$0xff]
        %v3547 = vld [vmem:[#allocation2 + $0x15d] sm:$0xff]
        %v3548 = vld [vmem:[#allocation2 + $0x165] sm:$0xff]
        %v3549 = vld [vmem:[#allocation2 + $0x16d] sm:$0xff]
        %v3550 = vld [vmem:[#allocation2 + $0x175] sm:$0xff]
        %v3551 = vld [vmem:[#allocation2 + $0x17d] sm:$0xff]
        %v3552 = vld [vmem:[#allocation2 + $0x185] sm:$0xff]
        %v3553 = vld [vmem:[#allocation2 + $0x18d] sm:$0xff]
        %v3554 = vld [vmem:[#allocation2 + $0x195] sm:$0xff]
        %v3555 = vld [vmem:[#allocation2 + $0x19d] sm:$0xff]
        %v3556 = vld [vmem:[#allocation2 + $0x1a5] sm:$0xff]
        %v3557 = vld [vmem:[#allocation2 + $0x1ad] sm:$0xff]
        %v3558 = vld [vmem:[#allocation2 + $0x1b5] sm:$0xff]
        %v3559 = vld [vmem:[#allocation2 + $0x1bd] sm:$0xff]
        %v3560 = vld [vmem:[#allocation2 + $0x1c5] sm:$0xff]
        %v3561 = vld [vmem:[#allocation2 + $0x1cd] sm:$0xff]
        %v3562 = vld [vmem:[#allocation2 + $0x1d5] sm:$0xff]
        %v3563 = vld [vmem:[#allocation2 + $0x1dd] sm:$0xff]
        %v3564 = vld [vmem:[#allocation2 + $0x1e5] sm:$0xff]
        %v3565 = vld [vmem:[#allocation2 + $0x1ed] sm:$0xff]
        %v3566 = vld [vmem:[#allocation2 + $0x1f5] sm:$0xff]
        %v3568 = vsel %vm1604, %v3512, 0
        %v3571 = vsel %vm1604, %v3513, 0
        %v3574 = vsel %vm1604, %v3514, 0
        %v3577 = vsel %vm1604, %v3515, 0
        %v3580 = vsel %vm1604, %v3516, 0
        %v3583 = vsel %vm1604, %v3517, 0
        %v3586 = vsel %vm1604, %v3518, 0
        %v3589 = vsel %vm1604, %v3519, 0
        %v3592 = vsel %vm1604, %v3520, 0
        %v3595 = vsel %vm1604, %v3521, 0
        %v3598 = vsel %vm1604, %v3522, 0
        %v3601 = vsel %vm1604, %v3523, 0
        %v3604 = vsel %vm1604, %v3524, 0
        %v3607 = vsel %vm1604, %v3525, 0
        %v3610 = vsel %vm1604, %v3526, 0
        %v3613 = vsel %vm1604, %v3527, 0
        %v3616 = vsel %vm1604, %v3528, 0
        %v3619 = vsel %vm1604, %v3529, 0
        %v3622 = vsel %vm1604, %v3530, 0
        %v3625 = vsel %vm1604, %v3531, 0
        %v3628 = vsel %vm1604, %v3532, 0
        %v3631 = vsel %vm1604, %v3533, 0
        %v3634 = vsel %vm1604, %v3534, 0
        %v3637 = vsel %vm1604, %v3535, 0
        %v3640 = vsel %vm1604, %v3536, 0
        %v3643 = vsel %vm1604, %v3537, 0
        %v3646 = vsel %vm1604, %v3538, 0
        %v3649 = vsel %vm1604, %v3539, 0
        %v3652 = vsel %vm1604, %v3540, 0
        %v3655 = vsel %vm1604, %v3541, 0
        %v3658 = vsel %vm1604, %v3542, 0
        %v3661 = vsel %vm1604, %v3543, 0
        %v3664 = vsel %vm1604, %v3544, 0
        %v3667 = vsel %vm1604, %v3545, 0
        %v3670 = vsel %vm1604, %v3546, 0
        %v3673 = vsel %vm1604, %v3547, 0
        %v3676 = vsel %vm1604, %v3548, 0
        %v3679 = vsel %vm1604, %v3549, 0
        %v3682 = vsel %vm1604, %v3550, 0
        %v3685 = vsel %vm1604, %v3551, 0
        %v3688 = vsel %vm1604, %v3552, 0
        %v3691 = vsel %vm1604, %v3553, 0
        %v3694 = vsel %vm1604, %v3554, 0
        %v3697 = vsel %vm1604, %v3555, 0
        %v3700 = vsel %vm1604, %v3556, 0
        %v3703 = vsel %vm1604, %v3557, 0
        %v3706 = vsel %vm1604, %v3558, 0
        %v3709 = vsel %vm1604, %v3559, 0
        %v3712 = vsel %vm1604, %v3560, 0
        %v3715 = vsel %vm1604, %v3561, 0
        %v3718 = vsel %vm1604, %v3562, 0
        %v3721 = vsel %vm1604, %v3563, 0
        %v3724 = vsel %vm1604, %v3564, 0
        %v3727 = vsel %vm1604, %v3565, 0
        %v3730 = vsel %vm1604, %v3566, 0
        %3732 = vmatprep.subr.mxu0 0.0
        %3733 = vmatpush1.xpose.msra.mxu0 %v3571
        %3734 = vmatprep.subr.mxu0 0.0
        %3735 = vmatpush1.xpose.msra.mxu0 %v3574
        %3736 = vmatprep.subr.mxu0 0.0
        %3737 = vmatpush1.xpose.msra.mxu0 %v3577
        %3738 = vmatprep.subr.mxu0 0.0
        %3739 = vmatpush1.xpose.msra.mxu0 %v3580
        %3740 = vmatprep.subr.mxu0 0.0
        %3741 = vmatpush1.xpose.msra.mxu0 %v3583
        %3742 = vmatprep.subr.mxu0 0.0
        %3743 = vmatpush1.xpose.msra.mxu0 %v3586
        %3744 = vmatprep.subr.mxu0 0.0
        %3745 = vmatpush1.xpose.msra.mxu0 %v3589
        %3746 = vmatprep.subr.mxu0 0.0
        %3747 = vmatpush1.xpose.msra.mxu0 %v3592
        %3748 = vmatprep.subr.mxu0 0.0
        %3749 = vmatpush1.xpose.msra.mxu0 %v3595
        %3750 = vmatprep.subr.mxu0 0.0
        %3751 = vmatpush1.xpose.msra.mxu0 %v3598
        %3752 = vmatprep.subr.mxu0 0.0
        %3753 = vmatpush1.xpose.msra.mxu0 %v3601
        %3754 = vmatprep.subr.mxu0 0.0
        %3755 = vmatpush1.xpose.msra.mxu0 %v3604
        %3756 = vmatprep.subr.mxu0 0.0
        %3757 = vmatpush1.xpose.msra.mxu0 %v3607
        %3758 = vmatprep.subr.mxu0 0.0
        %3759 = vmatpush1.xpose.msra.mxu0 %v3610
        %3760 = vmatprep.subr.mxu0 0.0
        %3761 = vmatpush1.xpose.msra.mxu0 %v3613
        %3762 = vmatprep.subr.mxu0 0.0
        %3763 = vmatpush1.xpose.msra.mxu0 %v3616
        %3764 = vmatprep.subr.mxu0 0.0
        %3765 = vmatpush1.xpose.msra.mxu0 %v3619
        %3766 = vmatprep.subr.mxu0 0.0
        %3767 = vmatpush1.xpose.msra.mxu0 %v3622
        %3768 = vmatprep.subr.mxu0 0.0
        %3769 = vmatpush1.xpose.msra.mxu0 %v3625
        %3770 = vmatprep.subr.mxu0 0.0
        %3771 = vmatpush1.xpose.msra.mxu0 %v3628
        %3772 = vmatprep.subr.mxu0 0.0
        %3773 = vmatpush1.xpose.msra.mxu0 %v3631
        %3774 = vmatprep.subr.mxu0 0.0
        %3775 = vmatpush1.xpose.msra.mxu0 %v3634
        %3776 = vmatprep.subr.mxu0 0.0
        %3777 = vmatpush1.xpose.msra.mxu0 %v3637
        %3778 = vmatprep.subr.mxu0 0.0
        %3779 = vmatpush1.xpose.msra.mxu0 %v3640
        %3780 = vmatprep.subr.mxu0 0.0
        %3781 = vmatpush1.xpose.msra.mxu0 %v3643
        %3782 = vmatprep.subr.mxu0 0.0
        %3783 = vmatpush1.xpose.msra.mxu0 %v3646
        %3784 = vmatprep.subr.mxu0 0.0
        %3785 = vmatpush1.xpose.msra.mxu0 %v3649
        %3786 = vmatprep.subr.mxu0 0.0
        %3787 = vmatpush1.xpose.msra.mxu0 %v3652
        %3788 = vmatprep.subr.mxu0 0.0
        %3789 = vmatpush1.xpose.msra.mxu0 %v3655
        %3790 = vmatprep.subr.mxu0 0.0
        %3791 = vmatpush1.xpose.msra.mxu0 %v3658
        %3792 = vmatprep.subr.mxu0 0.0
        %3793 = vmatpush1.xpose.msra.mxu0 %v3661
        %3794 = vmatprep.subr.mxu0 0.0
        %3795 = vmatpush1.xpose.msra.mxu0 %v3664
        %3796 = vmatprep.mubr.f32.mxu0 0.0
        %3797 = vmatmul.mubr.f32.gmra.mrb[0].mxu0 %v3568
        %v3798 = vpop.f32.mrb[0].mxu0
        %v3799 = vadd.f32 0.0, %v3798
        %v3800 = vpop.f32.mrb[0].mxu0
        %v3801 = vadd.f32 0.0, %v3800
        %3802 = vdwg.mxu0
        %3803 = vmatprep.subr.mxu0 0.0
        %3804 = vmatpush1.xpose.msra.mxu0 %v3667
        %3805 = vmatprep.subr.mxu0 0.0
        %3806 = vmatpush1.xpose.msra.mxu0 %v3670
        %3807 = vmatprep.subr.mxu0 0.0
        %3808 = vmatpush1.xpose.msra.mxu0 %v3673
        %3809 = vmatprep.subr.mxu0 0.0
        %3810 = vmatpush1.xpose.msra.mxu0 %v3676
        %3811 = vmatprep.subr.mxu0 0.0
        %3812 = vmatpush1.xpose.msra.mxu0 %v3679
        %3813 = vmatprep.subr.mxu0 0.0
        %3814 = vmatpush1.xpose.msra.mxu0 %v3682
        %3815 = vmatprep.subr.mxu0 0.0
        %3816 = vmatpush1.xpose.msra.mxu0 %v3685
        %3817 = vmatprep.subr.mxu0 0.0
        %3818 = vmatpush1.xpose.msra.mxu0 %v3688
        %3819 = vmatprep.subr.mxu0 0.0
        %3820 = vmatpush1.xpose.msra.mxu0 %v3691
        %3821 = vmatprep.subr.mxu0 0.0
        %3822 = vmatpush1.xpose.msra.mxu0 %v3694
        %3823 = vmatprep.subr.mxu0 0.0
        %3824 = vmatpush1.xpose.msra.mxu0 %v3697
        %3825 = vmatprep.subr.mxu0 0.0
        %3826 = vmatpush1.xpose.msra.mxu0 %v3700
        %3827 = vmatprep.subr.mxu0 0.0
        %3828 = vmatpush1.xpose.msra.mxu0 %v3703
        %3829 = vmatprep.subr.mxu0 0.0
        %3830 = vmatpush1.xpose.msra.mxu0 %v3706
        %3831 = vmatprep.subr.mxu0 0.0
        %3832 = vmatpush1.xpose.msra.mxu0 %v3709
        %3833 = vmatprep.subr.mxu0 0.0
        %3834 = vmatpush1.xpose.msra.mxu0 %v3712
        %3835 = vmatprep.subr.mxu0 0.0
        %3836 = vmatpush1.xpose.msra.mxu0 %v3715
        %3837 = vmatprep.subr.mxu0 0.0
        %3838 = vmatpush1.xpose.msra.mxu0 %v3718
        %3839 = vmatprep.subr.mxu0 0.0
        %3840 = vmatpush1.xpose.msra.mxu0 %v3721
        %3841 = vmatprep.subr.mxu0 0.0
        %3842 = vmatpush1.xpose.msra.mxu0 %v3724
        %3843 = vmatprep.subr.mxu0 0.0
        %3844 = vmatpush1.xpose.msra.mxu0 %v3727
        %3845 = vmatprep.subr.mxu0 0.0
        %3846 = vmatpush1.xpose.msra.mxu0 %v3730
        %3847 = vmatprep.subr.mxu0 0.0
        %3848 = vmatpush1.xpose.msra.mxu0 0.0
        %3849 = vmatprep.subr.mxu0 0.0
        %3850 = vmatpush1.xpose.msra.mxu0 0.0
        %3851 = vmatprep.subr.mxu0 0.0
        %3852 = vmatpush1.xpose.msra.mxu0 0.0
        %3853 = vmatprep.subr.mxu0 0.0
        %3854 = vmatpush1.xpose.msra.mxu0 0.0
        %3855 = vmatprep.subr.mxu0 0.0
        %3856 = vmatpush1.xpose.msra.mxu0 0.0
        %3857 = vmatprep.subr.mxu0 0.0
        %3858 = vmatpush1.xpose.msra.mxu0 0.0
        %3859 = vmatprep.subr.mxu0 0.0
        %3860 = vmatpush1.xpose.msra.mxu0 0.0
        %3861 = vmatprep.subr.mxu0 0.0
        %3862 = vmatpush1.xpose.msra.mxu0 0.0
        %3863 = vmatprep.subr.mxu0 0.0
        %3864 = vmatpush1.xpose.msra.mxu0 0.0
        %3865 = vmatprep.subr.mxu0 0.0
        %3866 = vmatpush1.xpose.msra.mxu0 0.0
        %3867 = vmatprep.mubr.f32.mxu0 0.0
        %3868 = vmatmul.mubr.f32.gmra.mrb[0].mxu0 %v3568
        %v3869 = vpop.f32.mrb[0].mxu0
        %v3870 = vadd.f32 0.0, %v3869
        %v3871 = vpop.f32.mrb[0].mxu0
        %v3872 = vadd.f32 0.0, %v3871
        %3873 = vdwg.mxu0
        %v3874 = vadd.f32 %v3507, %v3799
        %v3875 = vadd.f32 %v3508, %v3801
        %v3876 = vadd.f32 %v3509, %v3870
        %v3877 = vadd.f32 %v3510, %v3872
        %s3878 = scalar_lea.vmem %s4, 48
        %v3879 = vld [vmem:[%s3878] sm:$0xff]
        %v3880 = vld [vmem:[#allocation2 + $0x79] sm:$0xff]
        %v3881 = vld [vmem:[#allocation2 + $0x81] sm:$0xff]
        %v3882 = vld [vmem:[#allocation2 + $0x89] sm:$0xff]
        %v3883 = vld [vmem:[#allocation2 + $0x91] sm:$0xff]
        %v3884 = vld [vmem:[#allocation2 + $0x99] sm:$0xff]
        %v3885 = vld [vmem:[#allocation2 + $0xa1] sm:$0xff]
        %v3886 = vld [vmem:[#allocation2 + $0xa9] sm:$0xff]
        %v3887 = vld [vmem:[#allocation2 + $0xb1] sm:$0xff]
        %v3888 = vld [vmem:[#allocation2 + $0xb9] sm:$0xff]
        %v3889 = vld [vmem:[#allocation2 + $0xc1] sm:$0xff]
        %v3890 = vld [vmem:[#allocation2 + $0xc9] sm:$0xff]
        %v3891 = vld [vmem:[#allocation2 + $0xd1] sm:$0xff]
        %v3892 = vld [vmem:[#allocation2 + $0xd9] sm:$0xff]
        %v3893 = vld [vmem:[#allocation2 + $0xe1] sm:$0xff]
        %v3894 = vld [vmem:[#allocation2 + $0xe9] sm:$0xff]
        %v3895 = vld [vmem:[#allocation2 + $0xf1] sm:$0xff]
        %v3896 = vld [vmem:[#allocation2 + $0xf9] sm:$0xff]
        %v3897 = vld [vmem:[#allocation2 + $0x101] sm:$0xff]
        %v3898 = vld [vmem:[#allocation2 + $0x109] sm:$0xff]
        %v3899 = vld [vmem:[#allocation2 + $0x111] sm:$0xff]
        %v3900 = vld [vmem:[#allocation2 + $0x119] sm:$0xff]
        %v3901 = vld [vmem:[#allocation2 + $0x121] sm:$0xff]
        %v3902 = vld [vmem:[#allocation2 + $0x129] sm:$0xff]
        %v3903 = vld [vmem:[#allocation2 + $0x131] sm:$0xff]
        %v3904 = vld [vmem:[#allocation2 + $0x139] sm:$0xff]
        %v3905 = vld [vmem:[#allocation2 + $0x141] sm:$0xff]
        %v3906 = vld [vmem:[#allocation2 + $0x149] sm:$0xff]
        %v3907 = vld [vmem:[#allocation2 + $0x151] sm:$0xff]
        %v3908 = vld [vmem:[#allocation2 + $0x159] sm:$0xff]
        %v3909 = vld [vmem:[#allocation2 + $0x161] sm:$0xff]
        %v3910 = vld [vmem:[#allocation2 + $0x169] sm:$0xff]
        %v3911 = vld [vmem:[#allocation2 + $0x171] sm:$0xff]
        %v3912 = vld [vmem:[#allocation2 + $0x179] sm:$0xff]
        %v3913 = vld [vmem:[#allocation2 + $0x181] sm:$0xff]
        %v3914 = vld [vmem:[#allocation2 + $0x189] sm:$0xff]
        %v3915 = vld [vmem:[#allocation2 + $0x191] sm:$0xff]
        %v3916 = vld [vmem:[#allocation2 + $0x199] sm:$0xff]
        %v3917 = vld [vmem:[#allocation2 + $0x1a1] sm:$0xff]
        %v3918 = vld [vmem:[#allocation2 + $0x1a9] sm:$0xff]
        %v3919 = vld [vmem:[#allocation2 + $0x1b1] sm:$0xff]
        %v3920 = vld [vmem:[#allocation2 + $0x1b9] sm:$0xff]
        %v3921 = vld [vmem:[#allocation2 + $0x1c1] sm:$0xff]
        %v3922 = vld [vmem:[#allocation2 + $0x1c9] sm:$0xff]
        %v3923 = vld [vmem:[#allocation2 + $0x1d1] sm:$0xff]
        %v3924 = vld [vmem:[#allocation2 + $0x1d9] sm:$0xff]
        %v3925 = vld [vmem:[#allocation2 + $0x1e1] sm:$0xff]
        %v3926 = vld [vmem:[#allocation2 + $0x1e9] sm:$0xff]
        %v3927 = vld [vmem:[#allocation2 + $0x1f1] sm:$0xff]
        %v3928 = vld [vmem:[#allocation2 + $0x1f9] sm:$0xff]
        %v3929 = vld [vmem:[#allocation2 + $0x201] sm:$0xff]
        %v3930 = vld [vmem:[#allocation2 + $0x209] sm:$0xff]
        %v3931 = vld [vmem:[#allocation2 + $0x211] sm:$0xff]
        %v3932 = vld [vmem:[#allocation2 + $0x219] sm:$0xff]
        %v3933 = vld [vmem:[#allocation2 + $0x221] sm:$0xff]
        %v3935 = vsel %vm1604, %v3879, 0
        %v3938 = vsel %vm1604, %v3880, 0
        %v3941 = vsel %vm1604, %v3881, 0
        %v3944 = vsel %vm1604, %v3882, 0
        %v3947 = vsel %vm1604, %v3883, 0
        %v3950 = vsel %vm1604, %v3884, 0
        %v3953 = vsel %vm1604, %v3885, 0
        %v3956 = vsel %vm1604, %v3886, 0
        %v3959 = vsel %vm1604, %v3887, 0
        %v3962 = vsel %vm1604, %v3888, 0
        %v3965 = vsel %vm1604, %v3889, 0
        %v3968 = vsel %vm1604, %v3890, 0
        %v3971 = vsel %vm1604, %v3891, 0
        %v3974 = vsel %vm1604, %v3892, 0
        %v3977 = vsel %vm1604, %v3893, 0
        %v3980 = vsel %vm1604, %v3894, 0
        %v3983 = vsel %vm1604, %v3895, 0
        %v3986 = vsel %vm1604, %v3896, 0
        %v3989 = vsel %vm1604, %v3897, 0
        %v3992 = vsel %vm1604, %v3898, 0
        %v3995 = vsel %vm1604, %v3899, 0
        %v3998 = vsel %vm1604, %v3900, 0
        %v4001 = vsel %vm1604, %v3901, 0
        %v4004 = vsel %vm1604, %v3902, 0
        %v4007 = vsel %vm1604, %v3903, 0
        %v4010 = vsel %vm1604, %v3904, 0
        %v4013 = vsel %vm1604, %v3905, 0
        %v4016 = vsel %vm1604, %v3906, 0
        %v4019 = vsel %vm1604, %v3907, 0
        %v4022 = vsel %vm1604, %v3908, 0
        %v4025 = vsel %vm1604, %v3909, 0
        %v4028 = vsel %vm1604, %v3910, 0
        %v4031 = vsel %vm1604, %v3911, 0
        %v4034 = vsel %vm1604, %v3912, 0
        %v4037 = vsel %vm1604, %v3913, 0
        %v4040 = vsel %vm1604, %v3914, 0
        %v4043 = vsel %vm1604, %v3915, 0
        %v4046 = vsel %vm1604, %v3916, 0
        %v4049 = vsel %vm1604, %v3917, 0
        %v4052 = vsel %vm1604, %v3918, 0
        %v4055 = vsel %vm1604, %v3919, 0
        %v4058 = vsel %vm1604, %v3920, 0
        %v4061 = vsel %vm1604, %v3921, 0
        %v4064 = vsel %vm1604, %v3922, 0
        %v4067 = vsel %vm1604, %v3923, 0
        %v4070 = vsel %vm1604, %v3924, 0
        %v4073 = vsel %vm1604, %v3925, 0
        %v4076 = vsel %vm1604, %v3926, 0
        %v4079 = vsel %vm1604, %v3927, 0
        %v4082 = vsel %vm1604, %v3928, 0
        %v4085 = vsel %vm1604, %v3929, 0
        %v4088 = vsel %vm1604, %v3930, 0
        %v4091 = vsel %vm1604, %v3931, 0
        %v4094 = vsel %vm1604, %v3932, 0
        %v4097 = vsel %vm1604, %v3933, 0
        %4099 = vmatprep.subr.mxu0 0.0
        %4100 = vmatpush1.xpose.msra.mxu0 %v3938
        %4101 = vmatprep.subr.mxu0 0.0
        %4102 = vmatpush1.xpose.msra.mxu0 %v3941
        %4103 = vmatprep.subr.mxu0 0.0
        %4104 = vmatpush1.xpose.msra.mxu0 %v3944
        %4105 = vmatprep.subr.mxu0 0.0
        %4106 = vmatpush1.xpose.msra.mxu0 %v3947
        %4107 = vmatprep.subr.mxu0 0.0
        %4108 = vmatpush1.xpose.msra.mxu0 %v3950
        %4109 = vmatprep.subr.mxu0 0.0
        %4110 = vmatpush1.xpose.msra.mxu0 %v3953
        %4111 = vmatprep.subr.mxu0 0.0
        %4112 = vmatpush1.xpose.msra.mxu0 %v3956
        %4113 = vmatprep.subr.mxu0 0.0
        %4114 = vmatpush1.xpose.msra.mxu0 %v3959
        %4115 = vmatprep.subr.mxu0 0.0
        %4116 = vmatpush1.xpose.msra.mxu0 %v3962
        %4117 = vmatprep.subr.mxu0 0.0
        %4118 = vmatpush1.xpose.msra.mxu0 %v3965
        %4119 = vmatprep.subr.mxu0 0.0
        %4120 = vmatpush1.xpose.msra.mxu0 %v3968
        %4121 = vmatprep.subr.mxu0 0.0
        %4122 = vmatpush1.xpose.msra.mxu0 %v3971
        %4123 = vmatprep.subr.mxu0 0.0
        %4124 = vmatpush1.xpose.msra.mxu0 %v3974
        %4125 = vmatprep.subr.mxu0 0.0
        %4126 = vmatpush1.xpose.msra.mxu0 %v3977
        %4127 = vmatprep.subr.mxu0 0.0
        %4128 = vmatpush1.xpose.msra.mxu0 %v3980
        %4129 = vmatprep.subr.mxu0 0.0
        %4130 = vmatpush1.xpose.msra.mxu0 %v3983
        %4131 = vmatprep.subr.mxu0 0.0
        %4132 = vmatpush1.xpose.msra.mxu0 %v3986
        %4133 = vmatprep.subr.mxu0 0.0
        %4134 = vmatpush1.xpose.msra.mxu0 %v3989
        %4135 = vmatprep.subr.mxu0 0.0
        %4136 = vmatpush1.xpose.msra.mxu0 %v3992
        %4137 = vmatprep.subr.mxu0 0.0
        %4138 = vmatpush1.xpose.msra.mxu0 %v3995
        %4139 = vmatprep.subr.mxu0 0.0
        %4140 = vmatpush1.xpose.msra.mxu0 %v3998
        %4141 = vmatprep.subr.mxu0 0.0
        %4142 = vmatpush1.xpose.msra.mxu0 %v4001
        %4143 = vmatprep.subr.mxu0 0.0
        %4144 = vmatpush1.xpose.msra.mxu0 %v4004
        %4145 = vmatprep.subr.mxu0 0.0
        %4146 = vmatpush1.xpose.msra.mxu0 %v4007
        %4147 = vmatprep.subr.mxu0 0.0
        %4148 = vmatpush1.xpose.msra.mxu0 %v4010
        %4149 = vmatprep.subr.mxu0 0.0
        %4150 = vmatpush1.xpose.msra.mxu0 %v4013
        %4151 = vmatprep.subr.mxu0 0.0
        %4152 = vmatpush1.xpose.msra.mxu0 %v4016
        %4153 = vmatprep.subr.mxu0 0.0
        %4154 = vmatpush1.xpose.msra.mxu0 %v4019
        %4155 = vmatprep.subr.mxu0 0.0
        %4156 = vmatpush1.xpose.msra.mxu0 %v4022
        %4157 = vmatprep.subr.mxu0 0.0
        %4158 = vmatpush1.xpose.msra.mxu0 %v4025
        %4159 = vmatprep.subr.mxu0 0.0
        %4160 = vmatpush1.xpose.msra.mxu0 %v4028
        %4161 = vmatprep.subr.mxu0 0.0
        %4162 = vmatpush1.xpose.msra.mxu0 %v4031
        %4163 = vmatprep.mubr.f32.mxu0 0.0
        %4164 = vmatmul.mubr.f32.gmra.mrb[0].mxu0 %v3935
        %v4165 = vpop.f32.mrb[0].mxu0
        %v4166 = vadd.f32 0.0, %v4165
        %v4167 = vpop.f32.mrb[0].mxu0
        %v4168 = vadd.f32 0.0, %v4167
        %4169 = vdwg.mxu0
        %4170 = vmatprep.subr.mxu0 0.0
        %4171 = vmatpush1.xpose.msra.mxu0 %v4034
        %4172 = vmatprep.subr.mxu0 0.0
        %4173 = vmatpush1.xpose.msra.mxu0 %v4037
        %4174 = vmatprep.subr.mxu0 0.0
        %4175 = vmatpush1.xpose.msra.mxu0 %v4040
        %4176 = vmatprep.subr.mxu0 0.0
        %4177 = vmatpush1.xpose.msra.mxu0 %v4043
        %4178 = vmatprep.subr.mxu0 0.0
        %4179 = vmatpush1.xpose.msra.mxu0 %v4046
        %4180 = vmatprep.subr.mxu0 0.0
        %4181 = vmatpush1.xpose.msra.mxu0 %v4049
        %4182 = vmatprep.subr.mxu0 0.0
        %4183 = vmatpush1.xpose.msra.mxu0 %v4052
        %4184 = vmatprep.subr.mxu0 0.0
        %4185 = vmatpush1.xpose.msra.mxu0 %v4055
        %4186 = vmatprep.subr.mxu0 0.0
        %4187 = vmatpush1.xpose.msra.mxu0 %v4058
        %4188 = vmatprep.subr.mxu0 0.0
        %4189 = vmatpush1.xpose.msra.mxu0 %v4061
        %4190 = vmatprep.subr.mxu0 0.0
        %4191 = vmatpush1.xpose.msra.mxu0 %v4064
        %4192 = vmatprep.subr.mxu0 0.0
        %4193 = vmatpush1.xpose.msra.mxu0 %v4067
        %4194 = vmatprep.subr.mxu0 0.0
        %4195 = vmatpush1.xpose.msra.mxu0 %v4070
        %4196 = vmatprep.subr.mxu0 0.0
        %4197 = vmatpush1.xpose.msra.mxu0 %v4073
        %4198 = vmatprep.subr.mxu0 0.0
        %4199 = vmatpush1.xpose.msra.mxu0 %v4076
        %4200 = vmatprep.subr.mxu0 0.0
        %4201 = vmatpush1.xpose.msra.mxu0 %v4079
        %4202 = vmatprep.subr.mxu0 0.0
        %4203 = vmatpush1.xpose.msra.mxu0 %v4082
        %4204 = vmatprep.subr.mxu0 0.0
        %4205 = vmatpush1.xpose.msra.mxu0 %v4085
        %4206 = vmatprep.subr.mxu0 0.0
        %4207 = vmatpush1.xpose.msra.mxu0 %v4088
        %4208 = vmatprep.subr.mxu0 0.0
        %4209 = vmatpush1.xpose.msra.mxu0 %v4091
        %4210 = vmatprep.subr.mxu0 0.0
        %4211 = vmatpush1.xpose.msra.mxu0 %v4094
        %4212 = vmatprep.subr.mxu0 0.0
        %4213 = vmatpush1.xpose.msra.mxu0 %v4097
        %4214 = vmatprep.subr.mxu0 0.0
        %4215 = vmatpush1.xpose.msra.mxu0 0.0
        %4216 = vmatprep.subr.mxu0 0.0
        %4217 = vmatpush1.xpose.msra.mxu0 0.0
        %4218 = vmatprep.subr.mxu0 0.0
        %4219 = vmatpush1.xpose.msra.mxu0 0.0
        %4220 = vmatprep.subr.mxu0 0.0
        %4221 = vmatpush1.xpose.msra.mxu0 0.0
        %4222 = vmatprep.subr.mxu0 0.0
        %4223 = vmatpush1.xpose.msra.mxu0 0.0
        %4224 = vmatprep.subr.mxu0 0.0
        %4225 = vmatpush1.xpose.msra.mxu0 0.0
        %4226 = vmatprep.subr.mxu0 0.0
        %4227 = vmatpush1.xpose.msra.mxu0 0.0
        %4228 = vmatprep.subr.mxu0 0.0
        %4229 = vmatpush1.xpose.msra.mxu0 0.0
        %4230 = vmatprep.subr.mxu0 0.0
        %4231 = vmatpush1.xpose.msra.mxu0 0.0
        %4232 = vmatprep.subr.mxu0 0.0
        %4233 = vmatpush1.xpose.msra.mxu0 0.0
        %4234 = vmatprep.mubr.f32.mxu0 0.0
        %4235 = vmatmul.mubr.f32.gmra.mrb[0].mxu0 %v3935
        %v4236 = vpop.f32.mrb[0].mxu0
        %v4237 = vadd.f32 0.0, %v4236
        %v4238 = vpop.f32.mrb[0].mxu0
        %v4239 = vadd.f32 0.0, %v4238
        %4240 = vdwg.mxu0
        %v4241 = vadd.f32 %v3874, %v4166
        %v4242 = vadd.f32 %v3875, %v4168
        %v4243 = vadd.f32 %v3876, %v4237
        %v4244 = vadd.f32 %v3877, %v4239
        %s4245 = scalar_lea.vmem %s4, 56
        %v4246 = vld [vmem:[%s4245] sm:$0xff]
        %v4247 = vld [vmem:[#allocation2 + $0x7b] sm:$0xff]
        %v4248 = vld [vmem:[#allocation2 + $0x83] sm:$0xff]
        %v4249 = vld [vmem:[#allocation2 + $0x8b] sm:$0xff]
        %v4250 = vld [vmem:[#allocation2 + $0x93] sm:$0xff]
        %v4251 = vld [vmem:[#allocation2 + $0x9b] sm:$0xff]
        %v4252 = vld [vmem:[#allocation2 + $0xa3] sm:$0xff]
        %v4253 = vld [vmem:[#allocation2 + $0xab] sm:$0xff]
        %v4254 = vld [vmem:[#allocation2 + $0xb3] sm:$0xff]
        %v4255 = vld [vmem:[#allocation2 + $0xbb] sm:$0xff]
        %v4256 = vld [vmem:[#allocation2 + $0xc3] sm:$0xff]
        %v4257 = vld [vmem:[#allocation2 + $0xcb] sm:$0xff]
        %v4258 = vld [vmem:[#allocation2 + $0xd3] sm:$0xff]
        %v4259 = vld [vmem:[#allocation2 + $0xdb] sm:$0xff]
        %v4260 = vld [vmem:[#allocation2 + $0xe3] sm:$0xff]
        %v4261 = vld [vmem:[#allocation2 + $0xeb] sm:$0xff]
        %v4262 = vld [vmem:[#allocation2 + $0xf3] sm:$0xff]
        %v4263 = vld [vmem:[#allocation2 + $0xfb] sm:$0xff]
        %v4264 = vld [vmem:[#allocation2 + $0x103] sm:$0xff]
        %v4265 = vld [vmem:[#allocation2 + $0x10b] sm:$0xff]
        %v4266 = vld [vmem:[#allocation2 + $0x113] sm:$0xff]
        %v4267 = vld [vmem:[#allocation2 + $0x11b] sm:$0xff]
        %v4268 = vld [vmem:[#allocation2 + $0x123] sm:$0xff]
        %v4269 = vld [vmem:[#allocation2 + $0x12b] sm:$0xff]
        %v4270 = vld [vmem:[#allocation2 + $0x133] sm:$0xff]
        %v4271 = vld [vmem:[#allocation2 + $0x13b] sm:$0xff]
        %v4272 = vld [vmem:[#allocation2 + $0x143] sm:$0xff]
        %v4273 = vld [vmem:[#allocation2 + $0x14b] sm:$0xff]
        %v4274 = vld [vmem:[#allocation2 + $0x153] sm:$0xff]
        %v4275 = vld [vmem:[#allocation2 + $0x15b] sm:$0xff]
        %v4276 = vld [vmem:[#allocation2 + $0x163] sm:$0xff]
        %v4277 = vld [vmem:[#allocation2 + $0x16b] sm:$0xff]
        %v4278 = vld [vmem:[#allocation2 + $0x173] sm:$0xff]
        %v4279 = vld [vmem:[#allocation2 + $0x17b] sm:$0xff]
        %v4280 = vld [vmem:[#allocation2 + $0x183] sm:$0xff]
        %v4281 = vld [vmem:[#allocation2 + $0x18b] sm:$0xff]
        %v4282 = vld [vmem:[#allocation2 + $0x193] sm:$0xff]
        %v4283 = vld [vmem:[#allocation2 + $0x19b] sm:$0xff]
        %v4284 = vld [vmem:[#allocation2 + $0x1a3] sm:$0xff]
        %v4285 = vld [vmem:[#allocation2 + $0x1ab] sm:$0xff]
        %v4286 = vld [vmem:[#allocation2 + $0x1b3] sm:$0xff]
        %v4287 = vld [vmem:[#allocation2 + $0x1bb] sm:$0xff]
        %v4288 = vld [vmem:[#allocation2 + $0x1c3] sm:$0xff]
        %v4289 = vld [vmem:[#allocation2 + $0x1cb] sm:$0xff]
        %v4290 = vld [vmem:[#allocation2 + $0x1d3] sm:$0xff]
        %v4291 = vld [vmem:[#allocation2 + $0x1db] sm:$0xff]
        %v4292 = vld [vmem:[#allocation2 + $0x1e3] sm:$0xff]
        %v4293 = vld [vmem:[#allocation2 + $0x1eb] sm:$0xff]
        %v4294 = vld [vmem:[#allocation2 + $0x1f3] sm:$0xff]
        %v4295 = vld [vmem:[#allocation2 + $0x1fb] sm:$0xff]
        %v4296 = vld [vmem:[#allocation2 + $0x203] sm:$0xff]
        %v4297 = vld [vmem:[#allocation2 + $0x20b] sm:$0xff]
        %v4298 = vld [vmem:[#allocation2 + $0x213] sm:$0xff]
        %v4299 = vld [vmem:[#allocation2 + $0x21b] sm:$0xff]
        %v4300 = vld [vmem:[#allocation2 + $0x223] sm:$0xff]
        %v4302 = vsel %vm1604, %v4246, 0
        %v4305 = vsel %vm1604, %v4247, 0
        %v4308 = vsel %vm1604, %v4248, 0
        %v4311 = vsel %vm1604, %v4249, 0
        %v4314 = vsel %vm1604, %v4250, 0
        %v4317 = vsel %vm1604, %v4251, 0
        %v4320 = vsel %vm1604, %v4252, 0
        %v4323 = vsel %vm1604, %v4253, 0
        %v4326 = vsel %vm1604, %v4254, 0
        %v4329 = vsel %vm1604, %v4255, 0
        %v4332 = vsel %vm1604, %v4256, 0
        %v4335 = vsel %vm1604, %v4257, 0
        %v4338 = vsel %vm1604, %v4258, 0
        %v4341 = vsel %vm1604, %v4259, 0
        %v4344 = vsel %vm1604, %v4260, 0
        %v4347 = vsel %vm1604, %v4261, 0
        %v4350 = vsel %vm1604, %v4262, 0
        %v4353 = vsel %vm1604, %v4263, 0
        %v4356 = vsel %vm1604, %v4264, 0
        %v4359 = vsel %vm1604, %v4265, 0
        %v4362 = vsel %vm1604, %v4266, 0
        %v4365 = vsel %vm1604, %v4267, 0
        %v4368 = vsel %vm1604, %v4268, 0
        %v4371 = vsel %vm1604, %v4269, 0
        %v4374 = vsel %vm1604, %v4270, 0
        %v4377 = vsel %vm1604, %v4271, 0
        %v4380 = vsel %vm1604, %v4272, 0
        %v4383 = vsel %vm1604, %v4273, 0
        %v4386 = vsel %vm1604, %v4274, 0
        %v4389 = vsel %vm1604, %v4275, 0
        %v4392 = vsel %vm1604, %v4276, 0
        %v4395 = vsel %vm1604, %v4277, 0
        %v4398 = vsel %vm1604, %v4278, 0
        %v4401 = vsel %vm1604, %v4279, 0
        %v4404 = vsel %vm1604, %v4280, 0
        %v4407 = vsel %vm1604, %v4281, 0
        %v4410 = vsel %vm1604, %v4282, 0
        %v4413 = vsel %vm1604, %v4283, 0
        %v4416 = vsel %vm1604, %v4284, 0
        %v4419 = vsel %vm1604, %v4285, 0
        %v4422 = vsel %vm1604, %v4286, 0
        %v4425 = vsel %vm1604, %v4287, 0
        %v4428 = vsel %vm1604, %v4288, 0
        %v4431 = vsel %vm1604, %v4289, 0
        %v4434 = vsel %vm1604, %v4290, 0
        %v4437 = vsel %vm1604, %v4291, 0
        %v4440 = vsel %vm1604, %v4292, 0
        %v4443 = vsel %vm1604, %v4293, 0
        %v4446 = vsel %vm1604, %v4294, 0
        %v4449 = vsel %vm1604, %v4295, 0
        %v4452 = vsel %vm1604, %v4296, 0
        %v4455 = vsel %vm1604, %v4297, 0
        %v4458 = vsel %vm1604, %v4298, 0
        %v4461 = vsel %vm1604, %v4299, 0
        %v4464 = vsel %vm1604, %v4300, 0
        %4466 = vmatprep.subr.mxu0 0.0
        %4467 = vmatpush1.xpose.msra.mxu0 %v4305
        %4468 = vmatprep.subr.mxu0 0.0
        %4469 = vmatpush1.xpose.msra.mxu0 %v4308
        %4470 = vmatprep.subr.mxu0 0.0
        %4471 = vmatpush1.xpose.msra.mxu0 %v4311
        %4472 = vmatprep.subr.mxu0 0.0
        %4473 = vmatpush1.xpose.msra.mxu0 %v4314
        %4474 = vmatprep.subr.mxu0 0.0
        %4475 = vmatpush1.xpose.msra.mxu0 %v4317
        %4476 = vmatprep.subr.mxu0 0.0
        %4477 = vmatpush1.xpose.msra.mxu0 %v4320
        %4478 = vmatprep.subr.mxu0 0.0
        %4479 = vmatpush1.xpose.msra.mxu0 %v4323
        %4480 = vmatprep.subr.mxu0 0.0
        %4481 = vmatpush1.xpose.msra.mxu0 %v4326
        %4482 = vmatprep.subr.mxu0 0.0
        %4483 = vmatpush1.xpose.msra.mxu0 %v4329
        %4484 = vmatprep.subr.mxu0 0.0
        %4485 = vmatpush1.xpose.msra.mxu0 %v4332
        %4486 = vmatprep.subr.mxu0 0.0
        %4487 = vmatpush1.xpose.msra.mxu0 %v4335
        %4488 = vmatprep.subr.mxu0 0.0
        %4489 = vmatpush1.xpose.msra.mxu0 %v4338
        %4490 = vmatprep.subr.mxu0 0.0
        %4491 = vmatpush1.xpose.msra.mxu0 %v4341
        %4492 = vmatprep.subr.mxu0 0.0
        %4493 = vmatpush1.xpose.msra.mxu0 %v4344
        %4494 = vmatprep.subr.mxu0 0.0
        %4495 = vmatpush1.xpose.msra.mxu0 %v4347
        %4496 = vmatprep.subr.mxu0 0.0
        %4497 = vmatpush1.xpose.msra.mxu0 %v4350
        %4498 = vmatprep.subr.mxu0 0.0
        %4499 = vmatpush1.xpose.msra.mxu0 %v4353
        %4500 = vmatprep.subr.mxu0 0.0
        %4501 = vmatpush1.xpose.msra.mxu0 %v4356
        %4502 = vmatprep.subr.mxu0 0.0
        %4503 = vmatpush1.xpose.msra.mxu0 %v4359
        %4504 = vmatprep.subr.mxu0 0.0
        %4505 = vmatpush1.xpose.msra.mxu0 %v4362
        %4506 = vmatprep.subr.mxu0 0.0
        %4507 = vmatpush1.xpose.msra.mxu0 %v4365
        %4508 = vmatprep.subr.mxu0 0.0
        %4509 = vmatpush1.xpose.msra.mxu0 %v4368
        %4510 = vmatprep.subr.mxu0 0.0
        %4511 = vmatpush1.xpose.msra.mxu0 %v4371
        %4512 = vmatprep.subr.mxu0 0.0
        %4513 = vmatpush1.xpose.msra.mxu0 %v4374
        %4514 = vmatprep.subr.mxu0 0.0
        %4515 = vmatpush1.xpose.msra.mxu0 %v4377
        %4516 = vmatprep.subr.mxu0 0.0
        %4517 = vmatpush1.xpose.msra.mxu0 %v4380
        %4518 = vmatprep.subr.mxu0 0.0
        %4519 = vmatpush1.xpose.msra.mxu0 %v4383
        %4520 = vmatprep.subr.mxu0 0.0
        %4521 = vmatpush1.xpose.msra.mxu0 %v4386
        %4522 = vmatprep.subr.mxu0 0.0
        %4523 = vmatpush1.xpose.msra.mxu0 %v4389
        %4524 = vmatprep.subr.mxu0 0.0
        %4525 = vmatpush1.xpose.msra.mxu0 %v4392
        %4526 = vmatprep.subr.mxu0 0.0
        %4527 = vmatpush1.xpose.msra.mxu0 %v4395
        %4528 = vmatprep.subr.mxu0 0.0
        %4529 = vmatpush1.xpose.msra.mxu0 %v4398
        %4530 = vmatprep.mubr.f32.mxu0 0.0
        %4531 = vmatmul.mubr.f32.gmra.mrb[0].mxu0 %v4302
        %v4532 = vpop.f32.mrb[0].mxu0
        %v4533 = vadd.f32 0.0, %v4532
        %v4534 = vpop.f32.mrb[0].mxu0
        %v4535 = vadd.f32 0.0, %v4534
        %4536 = vdwg.mxu0
        %4537 = vmatprep.subr.mxu0 0.0
        %4538 = vmatpush1.xpose.msra.mxu0 %v4401
        %4539 = vmatprep.subr.mxu0 0.0
        %4540 = vmatpush1.xpose.msra.mxu0 %v4404
        %4541 = vmatprep.subr.mxu0 0.0
        %4542 = vmatpush1.xpose.msra.mxu0 %v4407
        %4543 = vmatprep.subr.mxu0 0.0
        %4544 = vmatpush1.xpose.msra.mxu0 %v4410
        %4545 = vmatprep.subr.mxu0 0.0
        %4546 = vmatpush1.xpose.msra.mxu0 %v4413
        %4547 = vmatprep.subr.mxu0 0.0
        %4548 = vmatpush1.xpose.msra.mxu0 %v4416
        %4549 = vmatprep.subr.mxu0 0.0
        %4550 = vmatpush1.xpose.msra.mxu0 %v4419
        %4551 = vmatprep.subr.mxu0 0.0
        %4552 = vmatpush1.xpose.msra.mxu0 %v4422
        %4553 = vmatprep.subr.mxu0 0.0
        %4554 = vmatpush1.xpose.msra.mxu0 %v4425
        %4555 = vmatprep.subr.mxu0 0.0
        %4556 = vmatpush1.xpose.msra.mxu0 %v4428
        %4557 = vmatprep.subr.mxu0 0.0
        %4558 = vmatpush1.xpose.msra.mxu0 %v4431
        %4559 = vmatprep.subr.mxu0 0.0
        %4560 = vmatpush1.xpose.msra.mxu0 %v4434
        %4561 = vmatprep.subr.mxu0 0.0
        %4562 = vmatpush1.xpose.msra.mxu0 %v4437
        %4563 = vmatprep.subr.mxu0 0.0
        %4564 = vmatpush1.xpose.msra.mxu0 %v4440
        %4565 = vmatprep.subr.mxu0 0.0
        %4566 = vmatpush1.xpose.msra.mxu0 %v4443
        %4567 = vmatprep.subr.mxu0 0.0
        %4568 = vmatpush1.xpose.msra.mxu0 %v4446
        %4569 = vmatprep.subr.mxu0 0.0
        %4570 = vmatpush1.xpose.msra.mxu0 %v4449
        %4571 = vmatprep.subr.mxu0 0.0
        %4572 = vmatpush1.xpose.msra.mxu0 %v4452
        %4573 = vmatprep.subr.mxu0 0.0
        %4574 = vmatpush1.xpose.msra.mxu0 %v4455
        %4575 = vmatprep.subr.mxu0 0.0
        %4576 = vmatpush1.xpose.msra.mxu0 %v4458
        %4577 = vmatprep.subr.mxu0 0.0
        %4578 = vmatpush1.xpose.msra.mxu0 %v4461
        %4579 = vmatprep.subr.mxu0 0.0
        %4580 = vmatpush1.xpose.msra.mxu0 %v4464
        %4581 = vmatprep.subr.mxu0 0.0
        %4582 = vmatpush1.xpose.msra.mxu0 0.0
        %4583 = vmatprep.subr.mxu0 0.0
        %4584 = vmatpush1.xpose.msra.mxu0 0.0
        %4585 = vmatprep.subr.mxu0 0.0
        %4586 = vmatpush1.xpose.msra.mxu0 0.0
        %4587 = vmatprep.subr.mxu0 0.0
        %4588 = vmatpush1.xpose.msra.mxu0 0.0
        %4589 = vmatprep.subr.mxu0 0.0
        %4590 = vmatpush1.xpose.msra.mxu0 0.0
        %4591 = vmatprep.subr.mxu0 0.0
        %4592 = vmatpush1.xpose.msra.mxu0 0.0
        %4593 = vmatprep.subr.mxu0 0.0
        %4594 = vmatpush1.xpose.msra.mxu0 0.0
        %4595 = vmatprep.subr.mxu0 0.0
        %4596 = vmatpush1.xpose.msra.mxu0 0.0
        %4597 = vmatprep.subr.mxu0 0.0
        %4598 = vmatpush1.xpose.msra.mxu0 0.0
        %4599 = vmatprep.subr.mxu0 0.0
        %4600 = vmatpush1.xpose.msra.mxu0 0.0
        %4601 = vmatprep.mubr.f32.mxu0 0.0
        %4602 = vmatmul.mubr.f32.gmra.mrb[0].mxu0 %v4302
        %v4603 = vpop.f32.mrb[0].mxu0
        %v4604 = vadd.f32 0.0, %v4603
        %v4605 = vpop.f32.mrb[0].mxu0
        %v4606 = vadd.f32 0.0, %v4605
        %4607 = vdwg.mxu0
        %v4608 = vadd.f32 %v4241, %v4533
        %v4609 = vadd.f32 %v4242, %v4535
        %v4610 = vadd.f32 %v4243, %v4604
        %v4611 = vadd.f32 %v4244, %v4606
        %s4612 = scalar_lea.vmem %s4, 64
        %v4613 = vld [vmem:[%s4612] sm:$0xff]
        %v4614 = vld [vmem:[#allocation2 + $0x7d] sm:$0xff]
        %v4615 = vld [vmem:[#allocation2 + $0x85] sm:$0xff]
        %v4616 = vld [vmem:[#allocation2 + $0x8d] sm:$0xff]
        %v4617 = vld [vmem:[#allocation2 + $0x95] sm:$0xff]
        %v4618 = vld [vmem:[#allocation2 + $0x9d] sm:$0xff]
        %v4619 = vld [vmem:[#allocation2 + $0xa5] sm:$0xff]
        %v4620 = vld [vmem:[#allocation2 + $0xad] sm:$0xff]
        %v4621 = vld [vmem:[#allocation2 + $0xb5] sm:$0xff]
        %v4622 = vld [vmem:[#allocation2 + $0xbd] sm:$0xff]
        %v4623 = vld [vmem:[#allocation2 + $0xc5] sm:$0xff]
        %v4624 = vld [vmem:[#allocation2 + $0xcd] sm:$0xff]
        %v4625 = vld [vmem:[#allocation2 + $0xd5] sm:$0xff]
        %v4626 = vld [vmem:[#allocation2 + $0xdd] sm:$0xff]
        %v4627 = vld [vmem:[#allocation2 + $0xe5] sm:$0xff]
        %v4628 = vld [vmem:[#allocation2 + $0xed] sm:$0xff]
        %v4629 = vld [vmem:[#allocation2 + $0xf5] sm:$0xff]
        %v4630 = vld [vmem:[#allocation2 + $0xfd] sm:$0xff]
        %v4631 = vld [vmem:[#allocation2 + $0x105] sm:$0xff]
        %v4632 = vld [vmem:[#allocation2 + $0x10d] sm:$0xff]
        %v4633 = vld [vmem:[#allocation2 + $0x115] sm:$0xff]
        %v4634 = vld [vmem:[#allocation2 + $0x11d] sm:$0xff]
        %v4635 = vld [vmem:[#allocation2 + $0x125] sm:$0xff]
        %v4636 = vld [vmem:[#allocation2 + $0x12d] sm:$0xff]
        %v4637 = vld [vmem:[#allocation2 + $0x135] sm:$0xff]
        %v4638 = vld [vmem:[#allocation2 + $0x13d] sm:$0xff]
        %v4639 = vld [vmem:[#allocation2 + $0x145] sm:$0xff]
        %v4640 = vld [vmem:[#allocation2 + $0x14d] sm:$0xff]
        %v4641 = vld [vmem:[#allocation2 + $0x155] sm:$0xff]
        %v4642 = vld [vmem:[#allocation2 + $0x15d] sm:$0xff]
        %v4643 = vld [vmem:[#allocation2 + $0x165] sm:$0xff]
        %v4644 = vld [vmem:[#allocation2 + $0x16d] sm:$0xff]
        %v4645 = vld [vmem:[#allocation2 + $0x175] sm:$0xff]
        %v4646 = vld [vmem:[#allocation2 + $0x17d] sm:$0xff]
        %v4647 = vld [vmem:[#allocation2 + $0x185] sm:$0xff]
        %v4648 = vld [vmem:[#allocation2 + $0x18d] sm:$0xff]
        %v4649 = vld [vmem:[#allocation2 + $0x195] sm:$0xff]
        %v4650 = vld [vmem:[#allocation2 + $0x19d] sm:$0xff]
        %v4651 = vld [vmem:[#allocation2 + $0x1a5] sm:$0xff]
        %v4652 = vld [vmem:[#allocation2 + $0x1ad] sm:$0xff]
        %v4653 = vld [vmem:[#allocation2 + $0x1b5] sm:$0xff]
        %v4654 = vld [vmem:[#allocation2 + $0x1bd] sm:$0xff]
        %v4655 = vld [vmem:[#allocation2 + $0x1c5] sm:$0xff]
        %v4656 = vld [vmem:[#allocation2 + $0x1cd] sm:$0xff]
        %v4657 = vld [vmem:[#allocation2 + $0x1d5] sm:$0xff]
        %v4658 = vld [vmem:[#allocation2 + $0x1dd] sm:$0xff]
        %v4659 = vld [vmem:[#allocation2 + $0x1e5] sm:$0xff]
        %v4660 = vld [vmem:[#allocation2 + $0x1ed] sm:$0xff]
        %v4661 = vld [vmem:[#allocation2 + $0x1f5] sm:$0xff]
        %v4662 = vld [vmem:[#allocation2 + $0x1fd] sm:$0xff]
        %v4663 = vld [vmem:[#allocation2 + $0x205] sm:$0xff]
        %v4664 = vld [vmem:[#allocation2 + $0x20d] sm:$0xff]
        %v4665 = vld [vmem:[#allocation2 + $0x215] sm:$0xff]
        %v4666 = vld [vmem:[#allocation2 + $0x21d] sm:$0xff]
        %v4667 = vld [vmem:[#allocation2 + $0x225] sm:$0xff]
        %v4669 = vsel %vm1604, %v4613, 0
        %v4672 = vsel %vm1604, %v4614, 0
        %v4675 = vsel %vm1604, %v4615, 0
        %v4678 = vsel %vm1604, %v4616, 0
        %v4681 = vsel %vm1604, %v4617, 0
        %v4684 = vsel %vm1604, %v4618, 0
        %v4687 = vsel %vm1604, %v4619, 0
        %v4690 = vsel %vm1604, %v4620, 0
        %v4693 = vsel %vm1604, %v4621, 0
        %v4696 = vsel %vm1604, %v4622, 0
        %v4699 = vsel %vm1604, %v4623, 0
        %v4702 = vsel %vm1604, %v4624, 0
        %v4705 = vsel %vm1604, %v4625, 0
        %v4708 = vsel %vm1604, %v4626, 0
        %v4711 = vsel %vm1604, %v4627, 0
        %v4714 = vsel %vm1604, %v4628, 0
        %v4717 = vsel %vm1604, %v4629, 0
        %v4720 = vsel %vm1604, %v4630, 0
        %v4723 = vsel %vm1604, %v4631, 0
        %v4726 = vsel %vm1604, %v4632, 0
        %v4729 = vsel %vm1604, %v4633, 0
        %v4732 = vsel %vm1604, %v4634, 0
        %v4735 = vsel %vm1604, %v4635, 0
        %v4738 = vsel %vm1604, %v4636, 0
        %v4741 = vsel %vm1604, %v4637, 0
        %v4744 = vsel %vm1604, %v4638, 0
        %v4747 = vsel %vm1604, %v4639, 0
        %v4750 = vsel %vm1604, %v4640, 0
        %v4753 = vsel %vm1604, %v4641, 0
        %v4756 = vsel %vm1604, %v4642, 0
        %v4759 = vsel %vm1604, %v4643, 0
        %v4762 = vsel %vm1604, %v4644, 0
        %v4765 = vsel %vm1604, %v4645, 0
        %v4768 = vsel %vm1604, %v4646, 0
        %v4771 = vsel %vm1604, %v4647, 0
        %v4774 = vsel %vm1604, %v4648, 0
        %v4777 = vsel %vm1604, %v4649, 0
        %v4780 = vsel %vm1604, %v4650, 0
        %v4783 = vsel %vm1604, %v4651, 0
        %v4786 = vsel %vm1604, %v4652, 0
        %v4789 = vsel %vm1604, %v4653, 0
        %v4792 = vsel %vm1604, %v4654, 0
        %v4795 = vsel %vm1604, %v4655, 0
        %v4798 = vsel %vm1604, %v4656, 0
        %v4801 = vsel %vm1604, %v4657, 0
        %v4804 = vsel %vm1604, %v4658, 0
        %v4807 = vsel %vm1604, %v4659, 0
        %v4810 = vsel %vm1604, %v4660, 0
        %v4813 = vsel %vm1604, %v4661, 0
        %v4816 = vsel %vm1604, %v4662, 0
        %v4819 = vsel %vm1604, %v4663, 0
        %v4822 = vsel %vm1604, %v4664, 0
        %v4825 = vsel %vm1604, %v4665, 0
        %v4828 = vsel %vm1604, %v4666, 0
        %v4831 = vsel %vm1604, %v4667, 0
        %4833 = vmatprep.subr.mxu0 0.0
        %4834 = vmatpush1.xpose.msra.mxu0 %v4672
        %4835 = vmatprep.subr.mxu0 0.0
        %4836 = vmatpush1.xpose.msra.mxu0 %v4675
        %4837 = vmatprep.subr.mxu0 0.0
        %4838 = vmatpush1.xpose.msra.mxu0 %v4678
        %4839 = vmatprep.subr.mxu0 0.0
        %4840 = vmatpush1.xpose.msra.mxu0 %v4681
        %4841 = vmatprep.subr.mxu0 0.0
        %4842 = vmatpush1.xpose.msra.mxu0 %v4684
        %4843 = vmatprep.subr.mxu0 0.0
        %4844 = vmatpush1.xpose.msra.mxu0 %v4687
        %4845 = vmatprep.subr.mxu0 0.0
        %4846 = vmatpush1.xpose.msra.mxu0 %v4690
        %4847 = vmatprep.subr.mxu0 0.0
        %4848 = vmatpush1.xpose.msra.mxu0 %v4693
        %4849 = vmatprep.subr.mxu0 0.0
        %4850 = vmatpush1.xpose.msra.mxu0 %v4696
        %4851 = vmatprep.subr.mxu0 0.0
        %4852 = vmatpush1.xpose.msra.mxu0 %v4699
        %4853 = vmatprep.subr.mxu0 0.0
        %4854 = vmatpush1.xpose.msra.mxu0 %v4702
        %4855 = vmatprep.subr.mxu0 0.0
        %4856 = vmatpush1.xpose.msra.mxu0 %v4705
        %4857 = vmatprep.subr.mxu0 0.0
        %4858 = vmatpush1.xpose.msra.mxu0 %v4708
        %4859 = vmatprep.subr.mxu0 0.0
        %4860 = vmatpush1.xpose.msra.mxu0 %v4711
        %4861 = vmatprep.subr.mxu0 0.0
        %4862 = vmatpush1.xpose.msra.mxu0 %v4714
        %4863 = vmatprep.subr.mxu0 0.0
        %4864 = vmatpush1.xpose.msra.mxu0 %v4717
        %4865 = vmatprep.subr.mxu0 0.0
        %4866 = vmatpush1.xpose.msra.mxu0 %v4720
        %4867 = vmatprep.subr.mxu0 0.0
        %4868 = vmatpush1.xpose.msra.mxu0 %v4723
        %4869 = vmatprep.subr.mxu0 0.0
        %4870 = vmatpush1.xpose.msra.mxu0 %v4726
        %4871 = vmatprep.subr.mxu0 0.0
        %4872 = vmatpush1.xpose.msra.mxu0 %v4729
        %4873 = vmatprep.subr.mxu0 0.0
        %4874 = vmatpush1.xpose.msra.mxu0 %v4732
        %4875 = vmatprep.subr.mxu0 0.0
        %4876 = vmatpush1.xpose.msra.mxu0 %v4735
        %4877 = vmatprep.subr.mxu0 0.0
        %4878 = vmatpush1.xpose.msra.mxu0 %v4738
        %4879 = vmatprep.subr.mxu0 0.0
        %4880 = vmatpush1.xpose.msra.mxu0 %v4741
        %4881 = vmatprep.subr.mxu0 0.0
        %4882 = vmatpush1.xpose.msra.mxu0 %v4744
        %4883 = vmatprep.subr.mxu0 0.0
        %4884 = vmatpush1.xpose.msra.mxu0 %v4747
        %4885 = vmatprep.subr.mxu0 0.0
        %4886 = vmatpush1.xpose.msra.mxu0 %v4750
        %4887 = vmatprep.subr.mxu0 0.0
        %4888 = vmatpush1.xpose.msra.mxu0 %v4753
        %4889 = vmatprep.subr.mxu0 0.0
        %4890 = vmatpush1.xpose.msra.mxu0 %v4756
        %4891 = vmatprep.subr.mxu0 0.0
        %4892 = vmatpush1.xpose.msra.mxu0 %v4759
        %4893 = vmatprep.subr.mxu0 0.0
        %4894 = vmatpush1.xpose.msra.mxu0 %v4762
        %4895 = vmatprep.subr.mxu0 0.0
        %4896 = vmatpush1.xpose.msra.mxu0 %v4765
        %4897 = vmatprep.mubr.f32.mxu0 0.0
        %4898 = vmatmul.mubr.f32.gmra.mrb[0].mxu0 %v4669
        %v4899 = vpop.f32.mrb[0].mxu0
        %v4900 = vadd.f32 0.0, %v4899
        %v4901 = vpop.f32.mrb[0].mxu0
        %v4902 = vadd.f32 0.0, %v4901
        %4903 = vdwg.mxu0
        %4904 = vmatprep.subr.mxu0 0.0
        %4905 = vmatpush1.xpose.msra.mxu0 %v4768
        %4906 = vmatprep.subr.mxu0 0.0
        %4907 = vmatpush1.xpose.msra.mxu0 %v4771
        %4908 = vmatprep.subr.mxu0 0.0
        %4909 = vmatpush1.xpose.msra.mxu0 %v4774
        %4910 = vmatprep.subr.mxu0 0.0
        %4911 = vmatpush1.xpose.msra.mxu0 %v4777
        %4912 = vmatprep.subr.mxu0 0.0
        %4913 = vmatpush1.xpose.msra.mxu0 %v4780
        %4914 = vmatprep.subr.mxu0 0.0
        %4915 = vmatpush1.xpose.msra.mxu0 %v4783
        %4916 = vmatprep.subr.mxu0 0.0
        %4917 = vmatpush1.xpose.msra.mxu0 %v4786
        %4918 = vmatprep.subr.mxu0 0.0
        %4919 = vmatpush1.xpose.msra.mxu0 %v4789
        %4920 = vmatprep.subr.mxu0 0.0
        %4921 = vmatpush1.xpose.msra.mxu0 %v4792
        %4922 = vmatprep.subr.mxu0 0.0
        %4923 = vmatpush1.xpose.msra.mxu0 %v4795
        %4924 = vmatprep.subr.mxu0 0.0
        %4925 = vmatpush1.xpose.msra.mxu0 %v4798
        %4926 = vmatprep.subr.mxu0 0.0
        %4927 = vmatpush1.xpose.msra.mxu0 %v4801
        %4928 = vmatprep.subr.mxu0 0.0
        %4929 = vmatpush1.xpose.msra.mxu0 %v4804
        %4930 = vmatprep.subr.mxu0 0.0
        %4931 = vmatpush1.xpose.msra.mxu0 %v4807
        %4932 = vmatprep.subr.mxu0 0.0
        %4933 = vmatpush1.xpose.msra.mxu0 %v4810
        %4934 = vmatprep.subr.mxu0 0.0
        %4935 = vmatpush1.xpose.msra.mxu0 %v4813
        %4936 = vmatprep.subr.mxu0 0.0
        %4937 = vmatpush1.xpose.msra.mxu0 %v4816
        %4938 = vmatprep.subr.mxu0 0.0
        %4939 = vmatpush1.xpose.msra.mxu0 %v4819
        %4940 = vmatprep.subr.mxu0 0.0
        %4941 = vmatpush1.xpose.msra.mxu0 %v4822
        %4942 = vmatprep.subr.mxu0 0.0
        %4943 = vmatpush1.xpose.msra.mxu0 %v4825
        %4944 = vmatprep.subr.mxu0 0.0
        %4945 = vmatpush1.xpose.msra.mxu0 %v4828
        %4946 = vmatprep.subr.mxu0 0.0
        %4947 = vmatpush1.xpose.msra.mxu0 %v4831
        %4948 = vmatprep.subr.mxu0 0.0
        %4949 = vmatpush1.xpose.msra.mxu0 0.0
        %4950 = vmatprep.subr.mxu0 0.0
        %4951 = vmatpush1.xpose.msra.mxu0 0.0
        %4952 = vmatprep.subr.mxu0 0.0
        %4953 = vmatpush1.xpose.msra.mxu0 0.0
        %4954 = vmatprep.subr.mxu0 0.0
        %4955 = vmatpush1.xpose.msra.mxu0 0.0
        %4956 = vmatprep.subr.mxu0 0.0
        %4957 = vmatpush1.xpose.msra.mxu0 0.0
        %4958 = vmatprep.subr.mxu0 0.0
        %4959 = vmatpush1.xpose.msra.mxu0 0.0
        %4960 = vmatprep.subr.mxu0 0.0
        %4961 = vmatpush1.xpose.msra.mxu0 0.0
        %4962 = vmatprep.subr.mxu0 0.0
        %4963 = vmatpush1.xpose.msra.mxu0 0.0
        %4964 = vmatprep.subr.mxu0 0.0
        %4965 = vmatpush1.xpose.msra.mxu0 0.0
        %4966 = vmatprep.subr.mxu0 0.0
        %4967 = vmatpush1.xpose.msra.mxu0 0.0
        %4968 = vmatprep.mubr.f32.mxu0 0.0
        %4969 = vmatmul.mubr.f32.gmra.mrb[0].mxu0 %v4669
        %v4970 = vpop.f32.mrb[0].mxu0
        %v4971 = vadd.f32 0.0, %v4970
        %v4972 = vpop.f32.mrb[0].mxu0
        %v4973 = vadd.f32 0.0, %v4972
        %4974 = vdwg.mxu0
        %v4975 = vadd.f32 %v4608, %v4900
        %v4976 = vadd.f32 %v4609, %v4902
        %v4977 = vadd.f32 %v4610, %v4971
        %v4978 = vadd.f32 %v4611, %v4973
        %s4979 = scalar_lea.vmem %s4, 72
        %v4980 = vld [vmem:[%s4979] sm:$0xff]
        %v4981 = vld [vmem:[#allocation2] sm:$0xff]
        %v4982 = vld [vmem:[#allocation2 + $0x8] sm:$0xff]
        %v4983 = vld [vmem:[#allocation2 + $0x10] sm:$0xff]
        %v4984 = vld [vmem:[#allocation2 + $0x18] sm:$0xff]
        %v4985 = vld [vmem:[#allocation2 + $0x20] sm:$0xff]
        %v4986 = vld [vmem:[#allocation2 + $0x28] sm:$0xff]
        %v4987 = vld [vmem:[#allocation2 + $0x30] sm:$0xff]
        %v4988 = vld [vmem:[#allocation2 + $0x38] sm:$0xff]
        %v4989 = vld [vmem:[#allocation2 + $0x40] sm:$0xff]
        %v4990 = vld [vmem:[#allocation2 + $0x48] sm:$0xff]
        %v4991 = vld [vmem:[#allocation2 + $0x50] sm:$0xff]
        %v4992 = vld [vmem:[#allocation2 + $0x58] sm:$0xff]
        %v4993 = vld [vmem:[#allocation2 + $0x60] sm:$0xff]
        %v4994 = vld [vmem:[#allocation2 + $0x68] sm:$0xff]
        %v4995 = vld [vmem:[#allocation2 + $0x70] sm:$0xff]
        %v4996 = vld [vmem:[#allocation2 + $0x78] sm:$0xff]
        %v4997 = vld [vmem:[#allocation2 + $0x80] sm:$0xff]
        %v4998 = vld [vmem:[#allocation2 + $0x88] sm:$0xff]
        %v4999 = vld [vmem:[#allocation2 + $0x90] sm:$0xff]
        %v5000 = vld [vmem:[#allocation2 + $0x98] sm:$0xff]
        %v5001 = vld [vmem:[#allocation2 + $0xa0] sm:$0xff]
        %v5002 = vld [vmem:[#allocation2 + $0xa8] sm:$0xff]
        %v5003 = vld [vmem:[#allocation2 + $0xb0] sm:$0xff]
        %v5004 = vld [vmem:[#allocation2 + $0xb8] sm:$0xff]
        %v5005 = vld [vmem:[#allocation2 + $0xc0] sm:$0xff]
        %v5006 = vld [vmem:[#allocation2 + $0xc8] sm:$0xff]
        %v5007 = vld [vmem:[#allocation2 + $0xd0] sm:$0xff]
        %v5008 = vld [vmem:[#allocation2 + $0xd8] sm:$0xff]
        %v5009 = vld [vmem:[#allocation2 + $0xe0] sm:$0xff]
        %v5010 = vld [vmem:[#allocation2 + $0xe8] sm:$0xff]
        %v5011 = vld [vmem:[#allocation2 + $0xf0] sm:$0xff]
        %v5012 = vld [vmem:[#allocation2 + $0xf8] sm:$0xff]
        %v5013 = vld [vmem:[#allocation2 + $0x100] sm:$0xff]
        %v5014 = vld [vmem:[#allocation2 + $0x108] sm:$0xff]
        %v5015 = vld [vmem:[#allocation2 + $0x110] sm:$0xff]
        %v5016 = vld [vmem:[#allocation2 + $0x118] sm:$0xff]
        %v5017 = vld [vmem:[#allocation2 + $0x120] sm:$0xff]
        %v5018 = vld [vmem:[#allocation2 + $0x128] sm:$0xff]
        %v5019 = vld [vmem:[#allocation2 + $0x130] sm:$0xff]
        %v5020 = vld [vmem:[#allocation2 + $0x138] sm:$0xff]
        %v5021 = vld [vmem:[#allocation2 + $0x140] sm:$0xff]
        %v5022 = vld [vmem:[#allocation2 + $0x148] sm:$0xff]
        %v5023 = vld [vmem:[#allocation2 + $0x150] sm:$0xff]
        %v5024 = vld [vmem:[#allocation2 + $0x158] sm:$0xff]
        %v5025 = vld [vmem:[#allocation2 + $0x160] sm:$0xff]
        %v5026 = vld [vmem:[#allocation2 + $0x168] sm:$0xff]
        %v5027 = vld [vmem:[#allocation2 + $0x170] sm:$0xff]
        %v5028 = vld [vmem:[#allocation2 + $0x178] sm:$0xff]
        %v5029 = vld [vmem:[#allocation2 + $0x180] sm:$0xff]
        %v5030 = vld [vmem:[#allocation2 + $0x188] sm:$0xff]
        %v5031 = vld [vmem:[#allocation2 + $0x190] sm:$0xff]
        %v5032 = vld [vmem:[#allocation2 + $0x198] sm:$0xff]
        %v5033 = vld [vmem:[#allocation2 + $0x1a0] sm:$0xff]
        %v5034 = vld [vmem:[#allocation2 + $0x1a8] sm:$0xff]
        %v5036 = vsel %vm1604, %v4980, 0
        %v5039 = vsel %vm1604, %v4981, 0
        %v5042 = vsel %vm1604, %v4982, 0
        %v5045 = vsel %vm1604, %v4983, 0
        %v5048 = vsel %vm1604, %v4984, 0
        %v5051 = vsel %vm1604, %v4985, 0
        %v5054 = vsel %vm1604, %v4986, 0
        %v5057 = vsel %vm1604, %v4987, 0
        %v5060 = vsel %vm1604, %v4988, 0
        %v5063 = vsel %vm1604, %v4989, 0
        %v5066 = vsel %vm1604, %v4990, 0
        %v5069 = vsel %vm1604, %v4991, 0
        %v5072 = vsel %vm1604, %v4992, 0
        %v5075 = vsel %vm1604, %v4993, 0
        %v5078 = vsel %vm1604, %v4994, 0
        %v5081 = vsel %vm1604, %v4995, 0
        %v5084 = vsel %vm1604, %v4996, 0
        %v5087 = vsel %vm1604, %v4997, 0
        %v5090 = vsel %vm1604, %v4998, 0
        %v5093 = vsel %vm1604, %v4999, 0
        %v5096 = vsel %vm1604, %v5000, 0
        %v5099 = vsel %vm1604, %v5001, 0
        %v5102 = vsel %vm1604, %v5002, 0
        %v5105 = vsel %vm1604, %v5003, 0
        %v5108 = vsel %vm1604, %v5004, 0
        %v5111 = vsel %vm1604, %v5005, 0
        %v5114 = vsel %vm1604, %v5006, 0
        %v5117 = vsel %vm1604, %v5007, 0
        %v5120 = vsel %vm1604, %v5008, 0
        %v5123 = vsel %vm1604, %v5009, 0
        %v5126 = vsel %vm1604, %v5010, 0
        %v5129 = vsel %vm1604, %v5011, 0
        %v5132 = vsel %vm1604, %v5012, 0
        %v5135 = vsel %vm1604, %v5013, 0
        %v5138 = vsel %vm1604, %v5014, 0
        %v5141 = vsel %vm1604, %v5015, 0
        %v5144 = vsel %vm1604, %v5016, 0
        %v5147 = vsel %vm1604, %v5017, 0
        %v5150 = vsel %vm1604, %v5018, 0
        %v5153 = vsel %vm1604, %v5019, 0
        %v5156 = vsel %vm1604, %v5020, 0
        %v5159 = vsel %vm1604, %v5021, 0
        %v5162 = vsel %vm1604, %v5022, 0
        %v5165 = vsel %vm1604, %v5023, 0
        %v5168 = vsel %vm1604, %v5024, 0
        %v5171 = vsel %vm1604, %v5025, 0
        %v5174 = vsel %vm1604, %v5026, 0
        %v5177 = vsel %vm1604, %v5027, 0
        %v5180 = vsel %vm1604, %v5028, 0
        %v5183 = vsel %vm1604, %v5029, 0
        %v5186 = vsel %vm1604, %v5030, 0
        %v5189 = vsel %vm1604, %v5031, 0
        %v5192 = vsel %vm1604, %v5032, 0
        %v5195 = vsel %vm1604, %v5033, 0
        %v5198 = vsel %vm1604, %v5034, 0
        %5200 = vmatprep.subr.mxu0 0.0
        %5201 = vmatpush1.xpose.msra.mxu0 %v5039
        %5202 = vmatprep.subr.mxu0 0.0
        %5203 = vmatpush1.xpose.msra.mxu0 %v5042
        %5204 = vmatprep.subr.mxu0 0.0
        %5205 = vmatpush1.xpose.msra.mxu0 %v5045
        %5206 = vmatprep.subr.mxu0 0.0
        %5207 = vmatpush1.xpose.msra.mxu0 %v5048
        %5208 = vmatprep.subr.mxu0 0.0
        %5209 = vmatpush1.xpose.msra.mxu0 %v5051
        %5210 = vmatprep.subr.mxu0 0.0
        %5211 = vmatpush1.xpose.msra.mxu0 %v5054
        %5212 = vmatprep.subr.mxu0 0.0
        %5213 = vmatpush1.xpose.msra.mxu0 %v5057
        %5214 = vmatprep.subr.mxu0 0.0
        %5215 = vmatpush1.xpose.msra.mxu0 %v5060
        %5216 = vmatprep.subr.mxu0 0.0
        %5217 = vmatpush1.xpose.msra.mxu0 %v5063
        %5218 = vmatprep.subr.mxu0 0.0
        %5219 = vmatpush1.xpose.msra.mxu0 %v5066
        %5220 = vmatprep.subr.mxu0 0.0
        %5221 = vmatpush1.xpose.msra.mxu0 %v5069
        %5222 = vmatprep.subr.mxu0 0.0
        %5223 = vmatpush1.xpose.msra.mxu0 %v5072
        %5224 = vmatprep.subr.mxu0 0.0
        %5225 = vmatpush1.xpose.msra.mxu0 %v5075
        %5226 = vmatprep.subr.mxu0 0.0
        %5227 = vmatpush1.xpose.msra.mxu0 %v5078
        %5228 = vmatprep.subr.mxu0 0.0
        %5229 = vmatpush1.xpose.msra.mxu0 %v5081
        %5230 = vmatprep.subr.mxu0 0.0
        %5231 = vmatpush1.xpose.msra.mxu0 %v5084
        %5232 = vmatprep.subr.mxu0 0.0
        %5233 = vmatpush1.xpose.msra.mxu0 %v5087
        %5234 = vmatprep.subr.mxu0 0.0
        %5235 = vmatpush1.xpose.msra.mxu0 %v5090
        %5236 = vmatprep.subr.mxu0 0.0
        %5237 = vmatpush1.xpose.msra.mxu0 %v5093
        %5238 = vmatprep.subr.mxu0 0.0
        %5239 = vmatpush1.xpose.msra.mxu0 %v5096
        %5240 = vmatprep.subr.mxu0 0.0
        %5241 = vmatpush1.xpose.msra.mxu0 %v5099
        %5242 = vmatprep.subr.mxu0 0.0
        %5243 = vmatpush1.xpose.msra.mxu0 %v5102
        %5244 = vmatprep.subr.mxu0 0.0
        %5245 = vmatpush1.xpose.msra.mxu0 %v5105
        %5246 = vmatprep.subr.mxu0 0.0
        %5247 = vmatpush1.xpose.msra.mxu0 %v5108
        %5248 = vmatprep.subr.mxu0 0.0
        %5249 = vmatpush1.xpose.msra.mxu0 %v5111
        %5250 = vmatprep.subr.mxu0 0.0
        %5251 = vmatpush1.xpose.msra.mxu0 %v5114
        %5252 = vmatprep.subr.mxu0 0.0
        %5253 = vmatpush1.xpose.msra.mxu0 %v5117
        %5254 = vmatprep.subr.mxu0 0.0
        %5255 = vmatpush1.xpose.msra.mxu0 %v5120
        %5256 = vmatprep.subr.mxu0 0.0
        %5257 = vmatpush1.xpose.msra.mxu0 %v5123
        %5258 = vmatprep.subr.mxu0 0.0
        %5259 = vmatpush1.xpose.msra.mxu0 %v5126
        %5260 = vmatprep.subr.mxu0 0.0
        %5261 = vmatpush1.xpose.msra.mxu0 %v5129
        %5262 = vmatprep.subr.mxu0 0.0
        %5263 = vmatpush1.xpose.msra.mxu0 %v5132
        %5264 = vmatprep.mubr.f32.mxu0 0.0
        %5265 = vmatmul.mubr.f32.gmra.mrb[0].mxu0 %v5036
        %v5266 = vpop.f32.mrb[0].mxu0
        %v5267 = vadd.f32 0.0, %v5266
        %v5268 = vpop.f32.mrb[0].mxu0
        %v5269 = vadd.f32 0.0, %v5268
        %5270 = vdwg.mxu0
        %5271 = vmatprep.subr.mxu0 0.0
        %5272 = vmatpush1.xpose.msra.mxu0 %v5135
        %5273 = vmatprep.subr.mxu0 0.0
        %5274 = vmatpush1.xpose.msra.mxu0 %v5138
        %5275 = vmatprep.subr.mxu0 0.0
        %5276 = vmatpush1.xpose.msra.mxu0 %v5141
        %5277 = vmatprep.subr.mxu0 0.0
        %5278 = vmatpush1.xpose.msra.mxu0 %v5144
        %5279 = vmatprep.subr.mxu0 0.0
        %5280 = vmatpush1.xpose.msra.mxu0 %v5147
        %5281 = vmatprep.subr.mxu0 0.0
        %5282 = vmatpush1.xpose.msra.mxu0 %v5150
        %5283 = vmatprep.subr.mxu0 0.0
        %5284 = vmatpush1.xpose.msra.mxu0 %v5153
        %5285 = vmatprep.subr.mxu0 0.0
        %5286 = vmatpush1.xpose.msra.mxu0 %v5156
        %5287 = vmatprep.subr.mxu0 0.0
        %5288 = vmatpush1.xpose.msra.mxu0 %v5159
        %5289 = vmatprep.subr.mxu0 0.0
        %5290 = vmatpush1.xpose.msra.mxu0 %v5162
        %5291 = vmatprep.subr.mxu0 0.0
        %5292 = vmatpush1.xpose.msra.mxu0 %v5165
        %5293 = vmatprep.subr.mxu0 0.0
        %5294 = vmatpush1.xpose.msra.mxu0 %v5168
        %5295 = vmatprep.subr.mxu0 0.0
        %5296 = vmatpush1.xpose.msra.mxu0 %v5171
        %5297 = vmatprep.subr.mxu0 0.0
        %5298 = vmatpush1.xpose.msra.mxu0 %v5174
        %5299 = vmatprep.subr.mxu0 0.0
        %5300 = vmatpush1.xpose.msra.mxu0 %v5177
        %5301 = vmatprep.subr.mxu0 0.0
        %5302 = vmatpush1.xpose.msra.mxu0 %v5180
        %5303 = vmatprep.subr.mxu0 0.0
        %5304 = vmatpush1.xpose.msra.mxu0 %v5183
        %5305 = vmatprep.subr.mxu0 0.0
        %5306 = vmatpush1.xpose.msra.mxu0 %v5186
        %5307 = vmatprep.subr.mxu0 0.0
        %5308 = vmatpush1.xpose.msra.mxu0 %v5189
        %5309 = vmatprep.subr.mxu0 0.0
        %5310 = vmatpush1.xpose.msra.mxu0 %v5192
        %5311 = vmatprep.subr.mxu0 0.0
        %5312 = vmatpush1.xpose.msra.mxu0 %v5195
        %5313 = vmatprep.subr.mxu0 0.0
        %5314 = vmatpush1.xpose.msra.mxu0 %v5198
        %5315 = vmatprep.subr.mxu0 0.0
        %5316 = vmatpush1.xpose.msra.mxu0 0.0
        %5317 = vmatprep.subr.mxu0 0.0
        %5318 = vmatpush1.xpose.msra.mxu0 0.0
        %5319 = vmatprep.subr.mxu0 0.0
        %5320 = vmatpush1.xpose.msra.mxu0 0.0
        %5321 = vmatprep.subr.mxu0 0.0
        %5322 = vmatpush1.xpose.msra.mxu0 0.0
        %5323 = vmatprep.subr.mxu0 0.0
        %5324 = vmatpush1.xpose.msra.mxu0 0.0
        %5325 = vmatprep.subr.mxu0 0.0
        %5326 = vmatpush1.xpose.msra.mxu0 0.0
        %5327 = vmatprep.subr.mxu0 0.0
        %5328 = vmatpush1.xpose.msra.mxu0 0.0
        %5329 = vmatprep.subr.mxu0 0.0
        %5330 = vmatpush1.xpose.msra.mxu0 0.0
        %5331 = vmatprep.subr.mxu0 0.0
        %5332 = vmatpush1.xpose.msra.mxu0 0.0
        %5333 = vmatprep.subr.mxu0 0.0
        %5334 = vmatpush1.xpose.msra.mxu0 0.0
        %5335 = vmatprep.mubr.f32.mxu0 0.0
        %5336 = vmatmul.mubr.f32.gmra.mrb[0].mxu0 %v5036
        %v5337 = vpop.f32.mrb[0].mxu0
        %v5338 = vadd.f32 0.0, %v5337
        %v5339 = vpop.f32.mrb[0].mxu0
        %v5340 = vadd.f32 0.0, %v5339
        %5341 = vdwg.mxu0
        %v5342 = vadd.f32 %v4975, %v5267
        %v5343 = vadd.f32 %v4976, %v5269
        %v5344 = vadd.f32 %v4977, %v5338
        %v5345 = vadd.f32 %v4978, %v5340
        %s5346 = scalar_lea.vmem %s4, 80
        %v5347 = vld [vmem:[%s5346] sm:$0xff]
        %v5348 = vld [vmem:[#allocation2 + $0x3] sm:$0xff]
        %v5349 = vld [vmem:[#allocation2 + $0xb] sm:$0xff]
        %v5350 = vld [vmem:[#allocation2 + $0x13] sm:$0xff]
        %v5351 = vld [vmem:[#allocation2 + $0x1b] sm:$0xff]
        %v5352 = vld [vmem:[#allocation2 + $0x23] sm:$0xff]
        %v5353 = vld [vmem:[#allocation2 + $0x2b] sm:$0xff]
        %v5354 = vld [vmem:[#allocation2 + $0x33] sm:$0xff]
        %v5355 = vld [vmem:[#allocation2 + $0x3b] sm:$0xff]
        %v5356 = vld [vmem:[#allocation2 + $0x43] sm:$0xff]
        %v5357 = vld [vmem:[#allocation2 + $0x4b] sm:$0xff]
        %v5358 = vld [vmem:[#allocation2 + $0x53] sm:$0xff]
        %v5359 = vld [vmem:[#allocation2 + $0x5b] sm:$0xff]
        %v5360 = vld [vmem:[#allocation2 + $0x63] sm:$0xff]
        %v5361 = vld [vmem:[#allocation2 + $0x6b] sm:$0xff]
        %v5362 = vld [vmem:[#allocation2 + $0x73] sm:$0xff]
        %v5363 = vld [vmem:[#allocation2 + $0x7b] sm:$0xff]
        %v5364 = vld [vmem:[#allocation2 + $0x83] sm:$0xff]
        %v5365 = vld [vmem:[#allocation2 + $0x8b] sm:$0xff]
        %v5366 = vld [vmem:[#allocation2 + $0x93] sm:$0xff]
        %v5367 = vld [vmem:[#allocation2 + $0x9b] sm:$0xff]
        %v5368 = vld [vmem:[#allocation2 + $0xa3] sm:$0xff]
        %v5369 = vld [vmem:[#allocation2 + $0xab] sm:$0xff]
        %v5370 = vld [vmem:[#allocation2 + $0xb3] sm:$0xff]
        %v5371 = vld [vmem:[#allocation2 + $0xbb] sm:$0xff]
        %v5372 = vld [vmem:[#allocation2 + $0xc3] sm:$0xff]
        %v5373 = vld [vmem:[#allocation2 + $0xcb] sm:$0xff]
        %v5374 = vld [vmem:[#allocation2 + $0xd3] sm:$0xff]
        %v5375 = vld [vmem:[#allocation2 + $0xdb] sm:$0xff]
        %v5376 = vld [vmem:[#allocation2 + $0xe3] sm:$0xff]
        %v5377 = vld [vmem:[#allocation2 + $0xeb] sm:$0xff]
        %v5378 = vld [vmem:[#allocation2 + $0xf3] sm:$0xff]
        %v5379 = vld [vmem:[#allocation2 + $0xfb] sm:$0xff]
        %v5380 = vld [vmem:[#allocation2 + $0x103] sm:$0xff]
        %v5381 = vld [vmem:[#allocation2 + $0x10b] sm:$0xff]
        %v5382 = vld [vmem:[#allocation2 + $0x113] sm:$0xff]
        %v5383 = vld [vmem:[#allocation2 + $0x11b] sm:$0xff]
        %v5384 = vld [vmem:[#allocation2 + $0x123] sm:$0xff]
        %v5385 = vld [vmem:[#allocation2 + $0x12b] sm:$0xff]
        %v5386 = vld [vmem:[#allocation2 + $0x133] sm:$0xff]
        %v5387 = vld [vmem:[#allocation2 + $0x13b] sm:$0xff]
        %v5388 = vld [vmem:[#allocation2 + $0x143] sm:$0xff]
        %v5389 = vld [vmem:[#allocation2 + $0x14b] sm:$0xff]
        %v5390 = vld [vmem:[#allocation2 + $0x153] sm:$0xff]
        %v5391 = vld [vmem:[#allocation2 + $0x15b] sm:$0xff]
        %v5392 = vld [vmem:[#allocation2 + $0x163] sm:$0xff]
        %v5393 = vld [vmem:[#allocation2 + $0x16b] sm:$0xff]
        %v5394 = vld [vmem:[#allocation2 + $0x173] sm:$0xff]
        %v5395 = vld [vmem:[#allocation2 + $0x17b] sm:$0xff]
        %v5396 = vld [vmem:[#allocation2 + $0x183] sm:$0xff]
        %v5397 = vld [vmem:[#allocation2 + $0x18b] sm:$0xff]
        %v5398 = vld [vmem:[#allocation2 + $0x193] sm:$0xff]
        %v5399 = vld [vmem:[#allocation2 + $0x19b] sm:$0xff]
        %v5400 = vld [vmem:[#allocation2 + $0x1a3] sm:$0xff]
        %v5401 = vld [vmem:[#allocation2 + $0x1ab] sm:$0xff]
        %v5403 = vsel %vm1604, %v5347, 0
        %v5406 = vsel %vm1604, %v5348, 0
        %v5409 = vsel %vm1604, %v5349, 0
        %v5412 = vsel %vm1604, %v5350, 0
        %v5415 = vsel %vm1604, %v5351, 0
        %v5418 = vsel %vm1604, %v5352, 0
        %v5421 = vsel %vm1604, %v5353, 0
        %v5424 = vsel %vm1604, %v5354, 0
        %v5427 = vsel %vm1604, %v5355, 0
        %v5430 = vsel %vm1604, %v5356, 0
        %v5433 = vsel %vm1604, %v5357, 0
        %v5436 = vsel %vm1604, %v5358, 0
        %v5439 = vsel %vm1604, %v5359, 0
        %v5442 = vsel %vm1604, %v5360, 0
        %v5445 = vsel %vm1604, %v5361, 0
        %v5448 = vsel %vm1604, %v5362, 0
        %v5451 = vsel %vm1604, %v5363, 0
        %v5454 = vsel %vm1604, %v5364, 0
        %v5457 = vsel %vm1604, %v5365, 0
        %v5460 = vsel %vm1604, %v5366, 0
        %v5463 = vsel %vm1604, %v5367, 0
        %v5466 = vsel %vm1604, %v5368, 0
        %v5469 = vsel %vm1604, %v5369, 0
        %v5472 = vsel %vm1604, %v5370, 0
        %v5475 = vsel %vm1604, %v5371, 0
        %v5478 = vsel %vm1604, %v5372, 0
        %v5481 = vsel %vm1604, %v5373, 0
        %v5484 = vsel %vm1604, %v5374, 0
        %v5487 = vsel %vm1604, %v5375, 0
        %v5490 = vsel %vm1604, %v5376, 0
        %v5493 = vsel %vm1604, %v5377, 0
        %v5496 = vsel %vm1604, %v5378, 0
        %v5499 = vsel %vm1604, %v5379, 0
        %v5502 = vsel %vm1604, %v5380, 0
        %v5505 = vsel %vm1604, %v5381, 0
        %v5508 = vsel %vm1604, %v5382, 0
        %v5511 = vsel %vm1604, %v5383, 0
        %v5514 = vsel %vm1604, %v5384, 0
        %v5517 = vsel %vm1604, %v5385, 0
        %v5520 = vsel %vm1604, %v5386, 0
        %v5523 = vsel %vm1604, %v5387, 0
        %v5526 = vsel %vm1604, %v5388, 0
        %v5529 = vsel %vm1604, %v5389, 0
        %v5532 = vsel %vm1604, %v5390, 0
        %v5535 = vsel %vm1604, %v5391, 0
        %v5538 = vsel %vm1604, %v5392, 0
        %v5541 = vsel %vm1604, %v5393, 0
        %v5544 = vsel %vm1604, %v5394, 0
        %v5547 = vsel %vm1604, %v5395, 0
        %v5550 = vsel %vm1604, %v5396, 0
        %v5553 = vsel %vm1604, %v5397, 0
        %v5556 = vsel %vm1604, %v5398, 0
        %v5559 = vsel %vm1604, %v5399, 0
        %v5562 = vsel %vm1604, %v5400, 0
        %v5565 = vsel %vm1604, %v5401, 0
        %5567 = vmatprep.subr.mxu0 0.0
        %5568 = vmatpush1.xpose.msra.mxu0 %v5406
        %5569 = vmatprep.subr.mxu0 0.0
        %5570 = vmatpush1.xpose.msra.mxu0 %v5409
        %5571 = vmatprep.subr.mxu0 0.0
        %5572 = vmatpush1.xpose.msra.mxu0 %v5412
        %5573 = vmatprep.subr.mxu0 0.0
        %5574 = vmatpush1.xpose.msra.mxu0 %v5415
        %5575 = vmatprep.subr.mxu0 0.0
        %5576 = vmatpush1.xpose.msra.mxu0 %v5418
        %5577 = vmatprep.subr.mxu0 0.0
        %5578 = vmatpush1.xpose.msra.mxu0 %v5421
        %5579 = vmatprep.subr.mxu0 0.0
        %5580 = vmatpush1.xpose.msra.mxu0 %v5424
        %5581 = vmatprep.subr.mxu0 0.0
        %5582 = vmatpush1.xpose.msra.mxu0 %v5427
        %5583 = vmatprep.subr.mxu0 0.0
        %5584 = vmatpush1.xpose.msra.mxu0 %v5430
        %5585 = vmatprep.subr.mxu0 0.0
        %5586 = vmatpush1.xpose.msra.mxu0 %v5433
        %5587 = vmatprep.subr.mxu0 0.0
        %5588 = vmatpush1.xpose.msra.mxu0 %v5436
        %5589 = vmatprep.subr.mxu0 0.0
        %5590 = vmatpush1.xpose.msra.mxu0 %v5439
        %5591 = vmatprep.subr.mxu0 0.0
        %5592 = vmatpush1.xpose.msra.mxu0 %v5442
        %5593 = vmatprep.subr.mxu0 0.0
        %5594 = vmatpush1.xpose.msra.mxu0 %v5445
        %5595 = vmatprep.subr.mxu0 0.0
        %5596 = vmatpush1.xpose.msra.mxu0 %v5448
        %5597 = vmatprep.subr.mxu0 0.0
        %5598 = vmatpush1.xpose.msra.mxu0 %v5451
        %5599 = vmatprep.subr.mxu0 0.0
        %5600 = vmatpush1.xpose.msra.mxu0 %v5454
        %5601 = vmatprep.subr.mxu0 0.0
        %5602 = vmatpush1.xpose.msra.mxu0 %v5457
        %5603 = vmatprep.subr.mxu0 0.0
        %5604 = vmatpush1.xpose.msra.mxu0 %v5460
        %5605 = vmatprep.subr.mxu0 0.0
        %5606 = vmatpush1.xpose.msra.mxu0 %v5463
        %5607 = vmatprep.subr.mxu0 0.0
        %5608 = vmatpush1.xpose.msra.mxu0 %v5466
        %5609 = vmatprep.subr.mxu0 0.0
        %5610 = vmatpush1.xpose.msra.mxu0 %v5469
        %5611 = vmatprep.subr.mxu0 0.0
        %5612 = vmatpush1.xpose.msra.mxu0 %v5472
        %5613 = vmatprep.subr.mxu0 0.0
        %5614 = vmatpush1.xpose.msra.mxu0 %v5475
        %5615 = vmatprep.subr.mxu0 0.0
        %5616 = vmatpush1.xpose.msra.mxu0 %v5478
        %5617 = vmatprep.subr.mxu0 0.0
        %5618 = vmatpush1.xpose.msra.mxu0 %v5481
        %5619 = vmatprep.subr.mxu0 0.0
        %5620 = vmatpush1.xpose.msra.mxu0 %v5484
        %5621 = vmatprep.subr.mxu0 0.0
        %5622 = vmatpush1.xpose.msra.mxu0 %v5487
        %5623 = vmatprep.subr.mxu0 0.0
        %5624 = vmatpush1.xpose.msra.mxu0 %v5490
        %5625 = vmatprep.subr.mxu0 0.0
        %5626 = vmatpush1.xpose.msra.mxu0 %v5493
        %5627 = vmatprep.subr.mxu0 0.0
        %5628 = vmatpush1.xpose.msra.mxu0 %v5496
        %5629 = vmatprep.subr.mxu0 0.0
        %5630 = vmatpush1.xpose.msra.mxu0 %v5499
        %5631 = vmatprep.mubr.f32.mxu0 0.0
        %5632 = vmatmul.mubr.f32.gmra.mrb[0].mxu0 %v5403
        %v5633 = vpop.f32.mrb[0].mxu0
        %v5634 = vadd.f32 0.0, %v5633
        %v5635 = vpop.f32.mrb[0].mxu0
        %v5636 = vadd.f32 0.0, %v5635
        %5637 = vdwg.mxu0
        %5638 = vmatprep.subr.mxu0 0.0
        %5639 = vmatpush1.xpose.msra.mxu0 %v5502
        %5640 = vmatprep.subr.mxu0 0.0
        %5641 = vmatpush1.xpose.msra.mxu0 %v5505
        %5642 = vmatprep.subr.mxu0 0.0
        %5643 = vmatpush1.xpose.msra.mxu0 %v5508
        %5644 = vmatprep.subr.mxu0 0.0
        %5645 = vmatpush1.xpose.msra.mxu0 %v5511
        %5646 = vmatprep.subr.mxu0 0.0
        %5647 = vmatpush1.xpose.msra.mxu0 %v5514
        %5648 = vmatprep.subr.mxu0 0.0
        %5649 = vmatpush1.xpose.msra.mxu0 %v5517
        %5650 = vmatprep.subr.mxu0 0.0
        %5651 = vmatpush1.xpose.msra.mxu0 %v5520
        %5652 = vmatprep.subr.mxu0 0.0
        %5653 = vmatpush1.xpose.msra.mxu0 %v5523
        %5654 = vmatprep.subr.mxu0 0.0
        %5655 = vmatpush1.xpose.msra.mxu0 %v5526
        %5656 = vmatprep.subr.mxu0 0.0
        %5657 = vmatpush1.xpose.msra.mxu0 %v5529
        %5658 = vmatprep.subr.mxu0 0.0
        %5659 = vmatpush1.xpose.msra.mxu0 %v5532
        %5660 = vmatprep.subr.mxu0 0.0
        %5661 = vmatpush1.xpose.msra.mxu0 %v5535
        %5662 = vmatprep.subr.mxu0 0.0
        %5663 = vmatpush1.xpose.msra.mxu0 %v5538
        %5664 = vmatprep.subr.mxu0 0.0
        %5665 = vmatpush1.xpose.msra.mxu0 %v5541
        %5666 = vmatprep.subr.mxu0 0.0
        %5667 = vmatpush1.xpose.msra.mxu0 %v5544
        %5668 = vmatprep.subr.mxu0 0.0
        %5669 = vmatpush1.xpose.msra.mxu0 %v5547
        %5670 = vmatprep.subr.mxu0 0.0
        %5671 = vmatpush1.xpose.msra.mxu0 %v5550
        %5672 = vmatprep.subr.mxu0 0.0
        %5673 = vmatpush1.xpose.msra.mxu0 %v5553
        %5674 = vmatprep.subr.mxu0 0.0
        %5675 = vmatpush1.xpose.msra.mxu0 %v5556
        %5676 = vmatprep.subr.mxu0 0.0
        %5677 = vmatpush1.xpose.msra.mxu0 %v5559
        %5678 = vmatprep.subr.mxu0 0.0
        %5679 = vmatpush1.xpose.msra.mxu0 %v5562
        %5680 = vmatprep.subr.mxu0 0.0
        %5681 = vmatpush1.xpose.msra.mxu0 %v5565
        %5682 = vmatprep.subr.mxu0 0.0
        %5683 = vmatpush1.xpose.msra.mxu0 0.0
        %5684 = vmatprep.subr.mxu0 0.0
        %5685 = vmatpush1.xpose.msra.mxu0 0.0
        %5686 = vmatprep.subr.mxu0 0.0
        %5687 = vmatpush1.xpose.msra.mxu0 0.0
        %5688 = vmatprep.subr.mxu0 0.0
        %5689 = vmatpush1.xpose.msra.mxu0 0.0
        %5690 = vmatprep.subr.mxu0 0.0
        %5691 = vmatpush1.xpose.msra.mxu0 0.0
        %5692 = vmatprep.subr.mxu0 0.0
        %5693 = vmatpush1.xpose.msra.mxu0 0.0
        %5694 = vmatprep.subr.mxu0 0.0
        %5695 = vmatpush1.xpose.msra.mxu0 0.0
        %5696 = vmatprep.subr.mxu0 0.0
        %5697 = vmatpush1.xpose.msra.mxu0 0.0
        %5698 = vmatprep.subr.mxu0 0.0
        %5699 = vmatpush1.xpose.msra.mxu0 0.0
        %5700 = vmatprep.subr.mxu0 0.0
        %5701 = vmatpush1.xpose.msra.mxu0 0.0
        %5702 = vmatprep.mubr.f32.mxu0 0.0
        %5703 = vmatmul.mubr.f32.gmra.mrb[0].mxu0 %v5403
        %v5704 = vpop.f32.mrb[0].mxu0
        %v5705 = vadd.f32 0.0, %v5704
        %v5706 = vpop.f32.mrb[0].mxu0
        %v5707 = vadd.f32 0.0, %v5706
        %5708 = vdwg.mxu0
        %v5709 = vadd.f32 %v5342, %v5634
        %v5710 = vadd.f32 %v5343, %v5636
        %v5711 = vadd.f32 %v5344, %v5705
        %v5712 = vadd.f32 %v5345, %v5707
        %s5713 = scalar_lea.vmem %s4, 88
        %v5714 = vld [vmem:[%s5713] sm:$0xff]
        %v5715 = vld [vmem:[#allocation2 + $0x6] sm:$0xff]
        %v5716 = vld [vmem:[#allocation2 + $0xe] sm:$0xff]
        %v5717 = vld [vmem:[#allocation2 + $0x16] sm:$0xff]
        %v5718 = vld [vmem:[#allocation2 + $0x1e] sm:$0xff]
        %v5719 = vld [vmem:[#allocation2 + $0x26] sm:$0xff]
        %v5720 = vld [vmem:[#allocation2 + $0x2e] sm:$0xff]
        %v5721 = vld [vmem:[#allocation2 + $0x36] sm:$0xff]
        %v5722 = vld [vmem:[#allocation2 + $0x3e] sm:$0xff]
        %v5723 = vld [vmem:[#allocation2 + $0x46] sm:$0xff]
        %v5724 = vld [vmem:[#allocation2 + $0x4e] sm:$0xff]
        %v5725 = vld [vmem:[#allocation2 + $0x56] sm:$0xff]
        %v5726 = vld [vmem:[#allocation2 + $0x5e] sm:$0xff]
        %v5727 = vld [vmem:[#allocation2 + $0x66] sm:$0xff]
        %v5728 = vld [vmem:[#allocation2 + $0x6e] sm:$0xff]
        %v5729 = vld [vmem:[#allocation2 + $0x76] sm:$0xff]
        %v5730 = vld [vmem:[#allocation2 + $0x7e] sm:$0xff]
        %v5731 = vld [vmem:[#allocation2 + $0x86] sm:$0xff]
        %v5732 = vld [vmem:[#allocation2 + $0x8e] sm:$0xff]
        %v5733 = vld [vmem:[#allocation2 + $0x96] sm:$0xff]
        %v5734 = vld [vmem:[#allocation2 + $0x9e] sm:$0xff]
        %v5735 = vld [vmem:[#allocation2 + $0xa6] sm:$0xff]
        %v5736 = vld [vmem:[#allocation2 + $0xae] sm:$0xff]
        %v5737 = vld [vmem:[#allocation2 + $0xb6] sm:$0xff]
        %v5738 = vld [vmem:[#allocation2 + $0xbe] sm:$0xff]
        %v5739 = vld [vmem:[#allocation2 + $0xc6] sm:$0xff]
        %v5740 = vld [vmem:[#allocation2 + $0xce] sm:$0xff]
        %v5741 = vld [vmem:[#allocation2 + $0xd6] sm:$0xff]
        %v5742 = vld [vmem:[#allocation2 + $0xde] sm:$0xff]
        %v5743 = vld [vmem:[#allocation2 + $0xe6] sm:$0xff]
        %v5744 = vld [vmem:[#allocation2 + $0xee] sm:$0xff]
        %v5745 = vld [vmem:[#allocation2 + $0xf6] sm:$0xff]
        %v5746 = vld [vmem:[#allocation2 + $0xfe] sm:$0xff]
        %v5747 = vld [vmem:[#allocation2 + $0x106] sm:$0xff]
        %v5748 = vld [vmem:[#allocation2 + $0x10e] sm:$0xff]
        %v5749 = vld [vmem:[#allocation2 + $0x116] sm:$0xff]
        %v5750 = vld [vmem:[#allocation2 + $0x11e] sm:$0xff]
        %v5751 = vld [vmem:[#allocation2 + $0x126] sm:$0xff]
        %v5752 = vld [vmem:[#allocation2 + $0x12e] sm:$0xff]
        %v5753 = vld [vmem:[#allocation2 + $0x136] sm:$0xff]
        %v5754 = vld [vmem:[#allocation2 + $0x13e] sm:$0xff]
        %v5755 = vld [vmem:[#allocation2 + $0x146] sm:$0xff]
        %v5756 = vld [vmem:[#allocation2 + $0x14e] sm:$0xff]
        %v5757 = vld [vmem:[#allocation2 + $0x156] sm:$0xff]
        %v5758 = vld [vmem:[#allocation2 + $0x15e] sm:$0xff]
        %v5759 = vld [vmem:[#allocation2 + $0x166] sm:$0xff]
        %v5760 = vld [vmem:[#allocation2 + $0x16e] sm:$0xff]
        %v5761 = vld [vmem:[#allocation2 + $0x176] sm:$0xff]
        %v5762 = vld [vmem:[#allocation2 + $0x17e] sm:$0xff]
        %v5763 = vld [vmem:[#allocation2 + $0x186] sm:$0xff]
        %v5764 = vld [vmem:[#allocation2 + $0x18e] sm:$0xff]
        %v5765 = vld [vmem:[#allocation2 + $0x196] sm:$0xff]
        %v5766 = vld [vmem:[#allocation2 + $0x19e] sm:$0xff]
        %v5767 = vld [vmem:[#allocation2 + $0x1a6] sm:$0xff]
        %v5768 = vld [vmem:[#allocation2 + $0x1ae] sm:$0xff]
        %v5770 = vsel %vm1604, %v5714, 0
        %v5773 = vsel %vm1604, %v5715, 0
        %v5776 = vsel %vm1604, %v5716, 0
        %v5779 = vsel %vm1604, %v5717, 0
        %v5782 = vsel %vm1604, %v5718, 0
        %v5785 = vsel %vm1604, %v5719, 0
        %v5788 = vsel %vm1604, %v5720, 0
        %v5791 = vsel %vm1604, %v5721, 0
        %v5794 = vsel %vm1604, %v5722, 0
        %v5797 = vsel %vm1604, %v5723, 0
        %v5800 = vsel %vm1604, %v5724, 0
        %v5803 = vsel %vm1604, %v5725, 0
        %v5806 = vsel %vm1604, %v5726, 0
        %v5809 = vsel %vm1604, %v5727, 0
        %v5812 = vsel %vm1604, %v5728, 0
        %v5815 = vsel %vm1604, %v5729, 0
        %v5818 = vsel %vm1604, %v5730, 0
        %v5821 = vsel %vm1604, %v5731, 0
        %v5824 = vsel %vm1604, %v5732, 0
        %v5827 = vsel %vm1604, %v5733, 0
        %v5830 = vsel %vm1604, %v5734, 0
        %v5833 = vsel %vm1604, %v5735, 0
        %v5836 = vsel %vm1604, %v5736, 0
        %v5839 = vsel %vm1604, %v5737, 0
        %v5842 = vsel %vm1604, %v5738, 0
        %v5845 = vsel %vm1604, %v5739, 0
        %v5848 = vsel %vm1604, %v5740, 0
        %v5851 = vsel %vm1604, %v5741, 0
        %v5854 = vsel %vm1604, %v5742, 0
        %v5857 = vsel %vm1604, %v5743, 0
        %v5860 = vsel %vm1604, %v5744, 0
        %v5863 = vsel %vm1604, %v5745, 0
        %v5866 = vsel %vm1604, %v5746, 0
        %v5869 = vsel %vm1604, %v5747, 0
        %v5872 = vsel %vm1604, %v5748, 0
        %v5875 = vsel %vm1604, %v5749, 0
        %v5878 = vsel %vm1604, %v5750, 0
        %v5881 = vsel %vm1604, %v5751, 0
        %v5884 = vsel %vm1604, %v5752, 0
        %v5887 = vsel %vm1604, %v5753, 0
        %v5890 = vsel %vm1604, %v5754, 0
        %v5893 = vsel %vm1604, %v5755, 0
        %v5896 = vsel %vm1604, %v5756, 0
        %v5899 = vsel %vm1604, %v5757, 0
        %v5902 = vsel %vm1604, %v5758, 0
        %v5905 = vsel %vm1604, %v5759, 0
        %v5908 = vsel %vm1604, %v5760, 0
        %v5911 = vsel %vm1604, %v5761, 0
        %v5914 = vsel %vm1604, %v5762, 0
        %v5917 = vsel %vm1604, %v5763, 0
        %v5920 = vsel %vm1604, %v5764, 0
        %v5923 = vsel %vm1604, %v5765, 0
        %v5926 = vsel %vm1604, %v5766, 0
        %v5929 = vsel %vm1604, %v5767, 0
        %v5932 = vsel %vm1604, %v5768, 0
        %5934 = vmatprep.subr.mxu0 0.0
        %5935 = vmatpush1.xpose.msra.mxu0 %v5773
        %5936 = vmatprep.subr.mxu0 0.0
        %5937 = vmatpush1.xpose.msra.mxu0 %v5776
        %5938 = vmatprep.subr.mxu0 0.0
        %5939 = vmatpush1.xpose.msra.mxu0 %v5779
        %5940 = vmatprep.subr.mxu0 0.0
        %5941 = vmatpush1.xpose.msra.mxu0 %v5782
        %5942 = vmatprep.subr.mxu0 0.0
        %5943 = vmatpush1.xpose.msra.mxu0 %v5785
        %5944 = vmatprep.subr.mxu0 0.0
        %5945 = vmatpush1.xpose.msra.mxu0 %v5788
        %5946 = vmatprep.subr.mxu0 0.0
        %5947 = vmatpush1.xpose.msra.mxu0 %v5791
        %5948 = vmatprep.subr.mxu0 0.0
        %5949 = vmatpush1.xpose.msra.mxu0 %v5794
        %5950 = vmatprep.subr.mxu0 0.0
        %5951 = vmatpush1.xpose.msra.mxu0 %v5797
        %5952 = vmatprep.subr.mxu0 0.0
        %5953 = vmatpush1.xpose.msra.mxu0 %v5800
        %5954 = vmatprep.subr.mxu0 0.0
        %5955 = vmatpush1.xpose.msra.mxu0 %v5803
        %5956 = vmatprep.subr.mxu0 0.0
        %5957 = vmatpush1.xpose.msra.mxu0 %v5806
        %5958 = vmatprep.subr.mxu0 0.0
        %5959 = vmatpush1.xpose.msra.mxu0 %v5809
        %5960 = vmatprep.subr.mxu0 0.0
        %5961 = vmatpush1.xpose.msra.mxu0 %v5812
        %5962 = vmatprep.subr.mxu0 0.0
        %5963 = vmatpush1.xpose.msra.mxu0 %v5815
        %5964 = vmatprep.subr.mxu0 0.0
        %5965 = vmatpush1.xpose.msra.mxu0 %v5818
        %5966 = vmatprep.subr.mxu0 0.0
        %5967 = vmatpush1.xpose.msra.mxu0 %v5821
        %5968 = vmatprep.subr.mxu0 0.0
        %5969 = vmatpush1.xpose.msra.mxu0 %v5824
        %5970 = vmatprep.subr.mxu0 0.0
        %5971 = vmatpush1.xpose.msra.mxu0 %v5827
        %5972 = vmatprep.subr.mxu0 0.0
        %5973 = vmatpush1.xpose.msra.mxu0 %v5830
        %5974 = vmatprep.subr.mxu0 0.0
        %5975 = vmatpush1.xpose.msra.mxu0 %v5833
        %5976 = vmatprep.subr.mxu0 0.0
        %5977 = vmatpush1.xpose.msra.mxu0 %v5836
        %5978 = vmatprep.subr.mxu0 0.0
        %5979 = vmatpush1.xpose.msra.mxu0 %v5839
        %5980 = vmatprep.subr.mxu0 0.0
        %5981 = vmatpush1.xpose.msra.mxu0 %v5842
        %5982 = vmatprep.subr.mxu0 0.0
        %5983 = vmatpush1.xpose.msra.mxu0 %v5845
        %5984 = vmatprep.subr.mxu0 0.0
        %5985 = vmatpush1.xpose.msra.mxu0 %v5848
        %5986 = vmatprep.subr.mxu0 0.0
        %5987 = vmatpush1.xpose.msra.mxu0 %v5851
        %5988 = vmatprep.subr.mxu0 0.0
        %5989 = vmatpush1.xpose.msra.mxu0 %v5854
        %5990 = vmatprep.subr.mxu0 0.0
        %5991 = vmatpush1.xpose.msra.mxu0 %v5857
        %5992 = vmatprep.subr.mxu0 0.0
        %5993 = vmatpush1.xpose.msra.mxu0 %v5860
        %5994 = vmatprep.subr.mxu0 0.0
        %5995 = vmatpush1.xpose.msra.mxu0 %v5863
        %5996 = vmatprep.subr.mxu0 0.0
        %5997 = vmatpush1.xpose.msra.mxu0 %v5866
        %5998 = vmatprep.mubr.f32.mxu0 0.0
        %5999 = vmatmul.mubr.f32.gmra.mrb[0].mxu0 %v5770
        %v6000 = vpop.f32.mrb[0].mxu0
        %v6001 = vadd.f32 0.0, %v6000
        %v6002 = vpop.f32.mrb[0].mxu0
        %v6003 = vadd.f32 0.0, %v6002
        %6004 = vdwg.mxu0
        %6005 = vmatprep.subr.mxu0 0.0
        %6006 = vmatpush1.xpose.msra.mxu0 %v5869
        %6007 = vmatprep.subr.mxu0 0.0
        %6008 = vmatpush1.xpose.msra.mxu0 %v5872
        %6009 = vmatprep.subr.mxu0 0.0
        %6010 = vmatpush1.xpose.msra.mxu0 %v5875
        %6011 = vmatprep.subr.mxu0 0.0
        %6012 = vmatpush1.xpose.msra.mxu0 %v5878
        %6013 = vmatprep.subr.mxu0 0.0
        %6014 = vmatpush1.xpose.msra.mxu0 %v5881
        %6015 = vmatprep.subr.mxu0 0.0
        %6016 = vmatpush1.xpose.msra.mxu0 %v5884
        %6017 = vmatprep.subr.mxu0 0.0
        %6018 = vmatpush1.xpose.msra.mxu0 %v5887
        %6019 = vmatprep.subr.mxu0 0.0
        %6020 = vmatpush1.xpose.msra.mxu0 %v5890
        %6021 = vmatprep.subr.mxu0 0.0
        %6022 = vmatpush1.xpose.msra.mxu0 %v5893
        %6023 = vmatprep.subr.mxu0 0.0
        %6024 = vmatpush1.xpose.msra.mxu0 %v5896
        %6025 = vmatprep.subr.mxu0 0.0
        %6026 = vmatpush1.xpose.msra.mxu0 %v5899
        %6027 = vmatprep.subr.mxu0 0.0
        %6028 = vmatpush1.xpose.msra.mxu0 %v5902
        %6029 = vmatprep.subr.mxu0 0.0
        %6030 = vmatpush1.xpose.msra.mxu0 %v5905
        %6031 = vmatprep.subr.mxu0 0.0
        %6032 = vmatpush1.xpose.msra.mxu0 %v5908
        %6033 = vmatprep.subr.mxu0 0.0
        %6034 = vmatpush1.xpose.msra.mxu0 %v5911
        %6035 = vmatprep.subr.mxu0 0.0
        %6036 = vmatpush1.xpose.msra.mxu0 %v5914
        %6037 = vmatprep.subr.mxu0 0.0
        %6038 = vmatpush1.xpose.msra.mxu0 %v5917
        %6039 = vmatprep.subr.mxu0 0.0
        %6040 = vmatpush1.xpose.msra.mxu0 %v5920
        %6041 = vmatprep.subr.mxu0 0.0
        %6042 = vmatpush1.xpose.msra.mxu0 %v5923
        %6043 = vmatprep.subr.mxu0 0.0
        %6044 = vmatpush1.xpose.msra.mxu0 %v5926
        %6045 = vmatprep.subr.mxu0 0.0
        %6046 = vmatpush1.xpose.msra.mxu0 %v5929
        %6047 = vmatprep.subr.mxu0 0.0
        %6048 = vmatpush1.xpose.msra.mxu0 %v5932
        %6049 = vmatprep.subr.mxu0 0.0
        %6050 = vmatpush1.xpose.msra.mxu0 0.0
        %6051 = vmatprep.subr.mxu0 0.0
        %6052 = vmatpush1.xpose.msra.mxu0 0.0
        %6053 = vmatprep.subr.mxu0 0.0
        %6054 = vmatpush1.xpose.msra.mxu0 0.0
        %6055 = vmatprep.subr.mxu0 0.0
        %6056 = vmatpush1.xpose.msra.mxu0 0.0
        %6057 = vmatprep.subr.mxu0 0.0
        %6058 = vmatpush1.xpose.msra.mxu0 0.0
        %6059 = vmatprep.subr.mxu0 0.0
        %6060 = vmatpush1.xpose.msra.mxu0 0.0
        %6061 = vmatprep.subr.mxu0 0.0
        %6062 = vmatpush1.xpose.msra.mxu0 0.0
        %6063 = vmatprep.subr.mxu0 0.0
        %6064 = vmatpush1.xpose.msra.mxu0 0.0
        %6065 = vmatprep.subr.mxu0 0.0
        %6066 = vmatpush1.xpose.msra.mxu0 0.0
        %6067 = vmatprep.subr.mxu0 0.0
        %6068 = vmatpush1.xpose.msra.mxu0 0.0
        %6069 = vmatprep.mubr.f32.mxu0 0.0
        %6070 = vmatmul.mubr.f32.gmra.mrb[0].mxu0 %v5770
        %v6071 = vpop.f32.mrb[0].mxu0
        %v6072 = vadd.f32 0.0, %v6071
        %v6073 = vpop.f32.mrb[0].mxu0
        %v6074 = vadd.f32 0.0, %v6073
        %6075 = vdwg.mxu0
        %v6076 = vadd.f32 %v5709, %v6001
        %v6077 = vadd.f32 %v5710, %v6003
        %v6078 = vadd.f32 %v5711, %v6072
        %v6079 = vadd.f32 %v5712, %v6074
        %s6080 = scalar_lea.vmem %s4, 96
        %v6081 = vld [vmem:[%s6080] sm:$0xff]
        %v6082 = vld [vmem:[#allocation2 + $0x48] sm:$0xff]
        %v6083 = vld [vmem:[#allocation2 + $0x50] sm:$0xff]
        %v6084 = vld [vmem:[#allocation2 + $0x58] sm:$0xff]
        %v6085 = vld [vmem:[#allocation2 + $0x60] sm:$0xff]
        %v6086 = vld [vmem:[#allocation2 + $0x68] sm:$0xff]
        %v6087 = vld [vmem:[#allocation2 + $0x70] sm:$0xff]
        %v6088 = vld [vmem:[#allocation2 + $0x78] sm:$0xff]
        %v6089 = vld [vmem:[#allocation2 + $0x80] sm:$0xff]
        %v6090 = vld [vmem:[#allocation2 + $0x88] sm:$0xff]
        %v6091 = vld [vmem:[#allocation2 + $0x90] sm:$0xff]
        %v6092 = vld [vmem:[#allocation2 + $0x98] sm:$0xff]
        %v6093 = vld [vmem:[#allocation2 + $0xa0] sm:$0xff]
        %v6094 = vld [vmem:[#allocation2 + $0xa8] sm:$0xff]
        %v6095 = vld [vmem:[#allocation2 + $0xb0] sm:$0xff]
        %v6096 = vld [vmem:[#allocation2 + $0xb8] sm:$0xff]
        %v6097 = vld [vmem:[#allocation2 + $0xc0] sm:$0xff]
        %v6098 = vld [vmem:[#allocation2 + $0xc8] sm:$0xff]
        %v6099 = vld [vmem:[#allocation2 + $0xd0] sm:$0xff]
        %v6100 = vld [vmem:[#allocation2 + $0xd8] sm:$0xff]
        %v6101 = vld [vmem:[#allocation2 + $0xe0] sm:$0xff]
        %v6102 = vld [vmem:[#allocation2 + $0xe8] sm:$0xff]
        %v6103 = vld [vmem:[#allocation2 + $0xf0] sm:$0xff]
        %v6104 = vld [vmem:[#allocation2 + $0xf8] sm:$0xff]
        %v6105 = vld [vmem:[#allocation2 + $0x100] sm:$0xff]
        %v6106 = vld [vmem:[#allocation2 + $0x108] sm:$0xff]
        %v6107 = vld [vmem:[#allocation2 + $0x110] sm:$0xff]
        %v6108 = vld [vmem:[#allocation2 + $0x118] sm:$0xff]
        %v6109 = vld [vmem:[#allocation2 + $0x120] sm:$0xff]
        %v6110 = vld [vmem:[#allocation2 + $0x128] sm:$0xff]
        %v6111 = vld [vmem:[#allocation2 + $0x130] sm:$0xff]
        %v6112 = vld [vmem:[#allocation2 + $0x138] sm:$0xff]
        %v6113 = vld [vmem:[#allocation2 + $0x140] sm:$0xff]
        %v6114 = vld [vmem:[#allocation2 + $0x148] sm:$0xff]
        %v6115 = vld [vmem:[#allocation2 + $0x150] sm:$0xff]
        %v6116 = vld [vmem:[#allocation2 + $0x158] sm:$0xff]
        %v6117 = vld [vmem:[#allocation2 + $0x160] sm:$0xff]
        %v6118 = vld [vmem:[#allocation2 + $0x168] sm:$0xff]
        %v6119 = vld [vmem:[#allocation2 + $0x170] sm:$0xff]
        %v6120 = vld [vmem:[#allocation2 + $0x178] sm:$0xff]
        %v6121 = vld [vmem:[#allocation2 + $0x180] sm:$0xff]
        %v6122 = vld [vmem:[#allocation2 + $0x188] sm:$0xff]
        %v6123 = vld [vmem:[#allocation2 + $0x190] sm:$0xff]
        %v6124 = vld [vmem:[#allocation2 + $0x198] sm:$0xff]
        %v6125 = vld [vmem:[#allocation2 + $0x1a0] sm:$0xff]
        %v6126 = vld [vmem:[#allocation2 + $0x1a8] sm:$0xff]
        %v6127 = vld [vmem:[#allocation2 + $0x1b0] sm:$0xff]
        %v6128 = vld [vmem:[#allocation2 + $0x1b8] sm:$0xff]
        %v6129 = vld [vmem:[#allocation2 + $0x1c0] sm:$0xff]
        %v6130 = vld [vmem:[#allocation2 + $0x1c8] sm:$0xff]
        %v6131 = vld [vmem:[#allocation2 + $0x1d0] sm:$0xff]
        %v6132 = vld [vmem:[#allocation2 + $0x1d8] sm:$0xff]
        %v6133 = vld [vmem:[#allocation2 + $0x1e0] sm:$0xff]
        %v6134 = vld [vmem:[#allocation2 + $0x1e8] sm:$0xff]
        %v6135 = vld [vmem:[#allocation2 + $0x1f0] sm:$0xff]
        %v6137 = vsel %vm1604, %v6081, 0
        %v6140 = vsel %vm1604, %v6082, 0
        %v6143 = vsel %vm1604, %v6083, 0
        %v6146 = vsel %vm1604, %v6084, 0
        %v6149 = vsel %vm1604, %v6085, 0
        %v6152 = vsel %vm1604, %v6086, 0
        %v6155 = vsel %vm1604, %v6087, 0
        %v6158 = vsel %vm1604, %v6088, 0
        %v6161 = vsel %vm1604, %v6089, 0
        %v6164 = vsel %vm1604, %v6090, 0
        %v6167 = vsel %vm1604, %v6091, 0
        %v6170 = vsel %vm1604, %v6092, 0
        %v6173 = vsel %vm1604, %v6093, 0
        %v6176 = vsel %vm1604, %v6094, 0
        %v6179 = vsel %vm1604, %v6095, 0
        %v6182 = vsel %vm1604, %v6096, 0
        %v6185 = vsel %vm1604, %v6097, 0
        %v6188 = vsel %vm1604, %v6098, 0
        %v6191 = vsel %vm1604, %v6099, 0
        %v6194 = vsel %vm1604, %v6100, 0
        %v6197 = vsel %vm1604, %v6101, 0
        %v6200 = vsel %vm1604, %v6102, 0
        %v6203 = vsel %vm1604, %v6103, 0
        %v6206 = vsel %vm1604, %v6104, 0
        %v6209 = vsel %vm1604, %v6105, 0
        %v6212 = vsel %vm1604, %v6106, 0
        %v6215 = vsel %vm1604, %v6107, 0
        %v6218 = vsel %vm1604, %v6108, 0
        %v6221 = vsel %vm1604, %v6109, 0
        %v6224 = vsel %vm1604, %v6110, 0
        %v6227 = vsel %vm1604, %v6111, 0
        %v6230 = vsel %vm1604, %v6112, 0
        %v6233 = vsel %vm1604, %v6113, 0
        %v6236 = vsel %vm1604, %v6114, 0
        %v6239 = vsel %vm1604, %v6115, 0
        %v6242 = vsel %vm1604, %v6116, 0
        %v6245 = vsel %vm1604, %v6117, 0
        %v6248 = vsel %vm1604, %v6118, 0
        %v6251 = vsel %vm1604, %v6119, 0
        %v6254 = vsel %vm1604, %v6120, 0
        %v6257 = vsel %vm1604, %v6121, 0
        %v6260 = vsel %vm1604, %v6122, 0
        %v6263 = vsel %vm1604, %v6123, 0
        %v6266 = vsel %vm1604, %v6124, 0
        %v6269 = vsel %vm1604, %v6125, 0
        %v6272 = vsel %vm1604, %v6126, 0
        %v6275 = vsel %vm1604, %v6127, 0
        %v6278 = vsel %vm1604, %v6128, 0
        %v6281 = vsel %vm1604, %v6129, 0
        %v6284 = vsel %vm1604, %v6130, 0
        %v6287 = vsel %vm1604, %v6131, 0
        %v6290 = vsel %vm1604, %v6132, 0
        %v6293 = vsel %vm1604, %v6133, 0
        %v6296 = vsel %vm1604, %v6134, 0
        %v6299 = vsel %vm1604, %v6135, 0
        %6301 = vmatprep.subr.mxu0 0.0
        %6302 = vmatpush1.xpose.msra.mxu0 %v6140
        %6303 = vmatprep.subr.mxu0 0.0
        %6304 = vmatpush1.xpose.msra.mxu0 %v6143
        %6305 = vmatprep.subr.mxu0 0.0
        %6306 = vmatpush1.xpose.msra.mxu0 %v6146
        %6307 = vmatprep.subr.mxu0 0.0
        %6308 = vmatpush1.xpose.msra.mxu0 %v6149
        %6309 = vmatprep.subr.mxu0 0.0
        %6310 = vmatpush1.xpose.msra.mxu0 %v6152
        %6311 = vmatprep.subr.mxu0 0.0
        %6312 = vmatpush1.xpose.msra.mxu0 %v6155
        %6313 = vmatprep.subr.mxu0 0.0
        %6314 = vmatpush1.xpose.msra.mxu0 %v6158
        %6315 = vmatprep.subr.mxu0 0.0
        %6316 = vmatpush1.xpose.msra.mxu0 %v6161
        %6317 = vmatprep.subr.mxu0 0.0
        %6318 = vmatpush1.xpose.msra.mxu0 %v6164
        %6319 = vmatprep.subr.mxu0 0.0
        %6320 = vmatpush1.xpose.msra.mxu0 %v6167
        %6321 = vmatprep.subr.mxu0 0.0
        %6322 = vmatpush1.xpose.msra.mxu0 %v6170
        %6323 = vmatprep.subr.mxu0 0.0
        %6324 = vmatpush1.xpose.msra.mxu0 %v6173
        %6325 = vmatprep.subr.mxu0 0.0
        %6326 = vmatpush1.xpose.msra.mxu0 %v6176
        %6327 = vmatprep.subr.mxu0 0.0
        %6328 = vmatpush1.xpose.msra.mxu0 %v6179
        %6329 = vmatprep.subr.mxu0 0.0
        %6330 = vmatpush1.xpose.msra.mxu0 %v6182
        %6331 = vmatprep.subr.mxu0 0.0
        %6332 = vmatpush1.xpose.msra.mxu0 %v6185
        %6333 = vmatprep.subr.mxu0 0.0
        %6334 = vmatpush1.xpose.msra.mxu0 %v6188
        %6335 = vmatprep.subr.mxu0 0.0
        %6336 = vmatpush1.xpose.msra.mxu0 %v6191
        %6337 = vmatprep.subr.mxu0 0.0
        %6338 = vmatpush1.xpose.msra.mxu0 %v6194
        %6339 = vmatprep.subr.mxu0 0.0
        %6340 = vmatpush1.xpose.msra.mxu0 %v6197
        %6341 = vmatprep.subr.mxu0 0.0
        %6342 = vmatpush1.xpose.msra.mxu0 %v6200
        %6343 = vmatprep.subr.mxu0 0.0
        %6344 = vmatpush1.xpose.msra.mxu0 %v6203
        %6345 = vmatprep.subr.mxu0 0.0
        %6346 = vmatpush1.xpose.msra.mxu0 %v6206
        %6347 = vmatprep.subr.mxu0 0.0
        %6348 = vmatpush1.xpose.msra.mxu0 %v6209
        %6349 = vmatprep.subr.mxu0 0.0
        %6350 = vmatpush1.xpose.msra.mxu0 %v6212
        %6351 = vmatprep.subr.mxu0 0.0
        %6352 = vmatpush1.xpose.msra.mxu0 %v6215
        %6353 = vmatprep.subr.mxu0 0.0
        %6354 = vmatpush1.xpose.msra.mxu0 %v6218
        %6355 = vmatprep.subr.mxu0 0.0
        %6356 = vmatpush1.xpose.msra.mxu0 %v6221
        %6357 = vmatprep.subr.mxu0 0.0
        %6358 = vmatpush1.xpose.msra.mxu0 %v6224
        %6359 = vmatprep.subr.mxu0 0.0
        %6360 = vmatpush1.xpose.msra.mxu0 %v6227
        %6361 = vmatprep.subr.mxu0 0.0
        %6362 = vmatpush1.xpose.msra.mxu0 %v6230
        %6363 = vmatprep.subr.mxu0 0.0
        %6364 = vmatpush1.xpose.msra.mxu0 %v6233
        %6365 = vmatprep.mubr.f32.mxu0 0.0
        %6366 = vmatmul.mubr.f32.gmra.mrb[0].mxu0 %v6137
        %v6367 = vpop.f32.mrb[0].mxu0
        %v6368 = vadd.f32 0.0, %v6367
        %v6369 = vpop.f32.mrb[0].mxu0
        %v6370 = vadd.f32 0.0, %v6369
        %6371 = vdwg.mxu0
        %6372 = vmatprep.subr.mxu0 0.0
        %6373 = vmatpush1.xpose.msra.mxu0 %v6236
        %6374 = vmatprep.subr.mxu0 0.0
        %6375 = vmatpush1.xpose.msra.mxu0 %v6239
        %6376 = vmatprep.subr.mxu0 0.0
        %6377 = vmatpush1.xpose.msra.mxu0 %v6242
        %6378 = vmatprep.subr.mxu0 0.0
        %6379 = vmatpush1.xpose.msra.mxu0 %v6245
        %6380 = vmatprep.subr.mxu0 0.0
        %6381 = vmatpush1.xpose.msra.mxu0 %v6248
        %6382 = vmatprep.subr.mxu0 0.0
        %6383 = vmatpush1.xpose.msra.mxu0 %v6251
        %6384 = vmatprep.subr.mxu0 0.0
        %6385 = vmatpush1.xpose.msra.mxu0 %v6254
        %6386 = vmatprep.subr.mxu0 0.0
        %6387 = vmatpush1.xpose.msra.mxu0 %v6257
        %6388 = vmatprep.subr.mxu0 0.0
        %6389 = vmatpush1.xpose.msra.mxu0 %v6260
        %6390 = vmatprep.subr.mxu0 0.0
        %6391 = vmatpush1.xpose.msra.mxu0 %v6263
        %6392 = vmatprep.subr.mxu0 0.0
        %6393 = vmatpush1.xpose.msra.mxu0 %v6266
        %6394 = vmatprep.subr.mxu0 0.0
        %6395 = vmatpush1.xpose.msra.mxu0 %v6269
        %6396 = vmatprep.subr.mxu0 0.0
        %6397 = vmatpush1.xpose.msra.mxu0 %v6272
        %6398 = vmatprep.subr.mxu0 0.0
        %6399 = vmatpush1.xpose.msra.mxu0 %v6275
        %6400 = vmatprep.subr.mxu0 0.0
        %6401 = vmatpush1.xpose.msra.mxu0 %v6278
        %6402 = vmatprep.subr.mxu0 0.0
        %6403 = vmatpush1.xpose.msra.mxu0 %v6281
        %6404 = vmatprep.subr.mxu0 0.0
        %6405 = vmatpush1.xpose.msra.mxu0 %v6284
        %6406 = vmatprep.subr.mxu0 0.0
        %6407 = vmatpush1.xpose.msra.mxu0 %v6287
        %6408 = vmatprep.subr.mxu0 0.0
        %6409 = vmatpush1.xpose.msra.mxu0 %v6290
        %6410 = vmatprep.subr.mxu0 0.0
        %6411 = vmatpush1.xpose.msra.mxu0 %v6293
        %6412 = vmatprep.subr.mxu0 0.0
        %6413 = vmatpush1.xpose.msra.mxu0 %v6296
        %6414 = vmatprep.subr.mxu0 0.0
        %6415 = vmatpush1.xpose.msra.mxu0 %v6299
        %6416 = vmatprep.subr.mxu0 0.0
        %6417 = vmatpush1.xpose.msra.mxu0 0.0
        %6418 = vmatprep.subr.mxu0 0.0
        %6419 = vmatpush1.xpose.msra.mxu0 0.0
        %6420 = vmatprep.subr.mxu0 0.0
        %6421 = vmatpush1.xpose.msra.mxu0 0.0
        %6422 = vmatprep.subr.mxu0 0.0
        %6423 = vmatpush1.xpose.msra.mxu0 0.0
        %6424 = vmatprep.subr.mxu0 0.0
        %6425 = vmatpush1.xpose.msra.mxu0 0.0
        %6426 = vmatprep.subr.mxu0 0.0
        %6427 = vmatpush1.xpose.msra.mxu0 0.0
        %6428 = vmatprep.subr.mxu0 0.0
        %6429 = vmatpush1.xpose.msra.mxu0 0.0
        %6430 = vmatprep.subr.mxu0 0.0
        %6431 = vmatpush1.xpose.msra.mxu0 0.0
        %6432 = vmatprep.subr.mxu0 0.0
        %6433 = vmatpush1.xpose.msra.mxu0 0.0
        %6434 = vmatprep.subr.mxu0 0.0
        %6435 = vmatpush1.xpose.msra.mxu0 0.0
        %6436 = vmatprep.mubr.f32.mxu0 0.0
        %6437 = vmatmul.mubr.f32.gmra.mrb[0].mxu0 %v6137
        %v6438 = vpop.f32.mrb[0].mxu0
        %v6439 = vadd.f32 0.0, %v6438
        %v6440 = vpop.f32.mrb[0].mxu0
        %v6441 = vadd.f32 0.0, %v6440
        %6442 = vdwg.mxu0
        %v6443 = vadd.f32 %v6076, %v6368
        %v6444 = vadd.f32 %v6077, %v6370
        %v6445 = vadd.f32 %v6078, %v6439
        %v6446 = vadd.f32 %v6079, %v6441
        %s6447 = scalar_lea.vmem %s4, 104
        %v6448 = vld [vmem:[%s6447] sm:$0xff]
        %v6450 = vsel %vm1604, %v6448, 0
        %6452 = vmatprep.subr.mxu0 0.0
        %6453 = vmatpush1.xpose.msra.mxu0 %v3204
        %6454 = vmatprep.subr.mxu0 0.0
        %6455 = vmatpush1.xpose.msra.mxu0 %v3207
        %6456 = vmatprep.subr.mxu0 0.0
        %6457 = vmatpush1.xpose.msra.mxu0 %v3210
        %6458 = vmatprep.subr.mxu0 0.0
        %6459 = vmatpush1.xpose.msra.mxu0 %v3213
        %6460 = vmatprep.subr.mxu0 0.0
        %6461 = vmatpush1.xpose.msra.mxu0 %v3216
        %6462 = vmatprep.subr.mxu0 0.0
        %6463 = vmatpush1.xpose.msra.mxu0 %v3219
        %6464 = vmatprep.subr.mxu0 0.0
        %6465 = vmatpush1.xpose.msra.mxu0 %v3222
        %6466 = vmatprep.subr.mxu0 0.0
        %6467 = vmatpush1.xpose.msra.mxu0 %v3225
        %6468 = vmatprep.subr.mxu0 0.0
        %6469 = vmatpush1.xpose.msra.mxu0 %v3228
        %6470 = vmatprep.subr.mxu0 0.0
        %6471 = vmatpush1.xpose.msra.mxu0 %v3231
        %6472 = vmatprep.subr.mxu0 0.0
        %6473 = vmatpush1.xpose.msra.mxu0 %v3234
        %6474 = vmatprep.subr.mxu0 0.0
        %6475 = vmatpush1.xpose.msra.mxu0 %v3237
        %6476 = vmatprep.subr.mxu0 0.0
        %6477 = vmatpush1.xpose.msra.mxu0 %v3240
        %6478 = vmatprep.subr.mxu0 0.0
        %6479 = vmatpush1.xpose.msra.mxu0 %v3243
        %6480 = vmatprep.subr.mxu0 0.0
        %6481 = vmatpush1.xpose.msra.mxu0 %v3246
        %6482 = vmatprep.subr.mxu0 0.0
        %6483 = vmatpush1.xpose.msra.mxu0 %v3249
        %6484 = vmatprep.subr.mxu0 0.0
        %6485 = vmatpush1.xpose.msra.mxu0 %v3252
        %6486 = vmatprep.subr.mxu0 0.0
        %6487 = vmatpush1.xpose.msra.mxu0 %v3255
        %6488 = vmatprep.subr.mxu0 0.0
        %6489 = vmatpush1.xpose.msra.mxu0 %v3258
        %6490 = vmatprep.subr.mxu0 0.0
        %6491 = vmatpush1.xpose.msra.mxu0 %v3261
        %6492 = vmatprep.subr.mxu0 0.0
        %6493 = vmatpush1.xpose.msra.mxu0 %v3264
        %6494 = vmatprep.subr.mxu0 0.0
        %6495 = vmatpush1.xpose.msra.mxu0 %v3267
        %6496 = vmatprep.subr.mxu0 0.0
        %6497 = vmatpush1.xpose.msra.mxu0 %v3270
        %6498 = vmatprep.subr.mxu0 0.0
        %6499 = vmatpush1.xpose.msra.mxu0 %v3273
        %6500 = vmatprep.subr.mxu0 0.0
        %6501 = vmatpush1.xpose.msra.mxu0 %v3276
        %6502 = vmatprep.subr.mxu0 0.0
        %6503 = vmatpush1.xpose.msra.mxu0 %v3279
        %6504 = vmatprep.subr.mxu0 0.0
        %6505 = vmatpush1.xpose.msra.mxu0 %v3282
        %6506 = vmatprep.subr.mxu0 0.0
        %6507 = vmatpush1.xpose.msra.mxu0 %v3285
        %6508 = vmatprep.subr.mxu0 0.0
        %6509 = vmatpush1.xpose.msra.mxu0 %v3288
        %6510 = vmatprep.subr.mxu0 0.0
        %6511 = vmatpush1.xpose.msra.mxu0 %v3291
        %6512 = vmatprep.subr.mxu0 0.0
        %6513 = vmatpush1.xpose.msra.mxu0 %v3294
        %6514 = vmatprep.subr.mxu0 0.0
        %6515 = vmatpush1.xpose.msra.mxu0 %v3297
        %6516 = vmatprep.mubr.f32.mxu0 0.0
        %6517 = vmatmul.mubr.f32.gmra.mrb[0].mxu0 %v6450
        %v6518 = vpop.f32.mrb[0].mxu0
        %v6519 = vadd.f32 0.0, %v6518
        %v6520 = vpop.f32.mrb[0].mxu0
        %v6521 = vadd.f32 0.0, %v6520
        %6522 = vdwg.mxu0
        %6523 = vmatprep.subr.mxu0 0.0
        %6524 = vmatpush1.xpose.msra.mxu0 %v3300
        %6525 = vmatprep.subr.mxu0 0.0
        %6526 = vmatpush1.xpose.msra.mxu0 %v3303
        %6527 = vmatprep.subr.mxu0 0.0
        %6528 = vmatpush1.xpose.msra.mxu0 %v3306
        %6529 = vmatprep.subr.mxu0 0.0
        %6530 = vmatpush1.xpose.msra.mxu0 %v3309
        %6531 = vmatprep.subr.mxu0 0.0
        %6532 = vmatpush1.xpose.msra.mxu0 %v3312
        %6533 = vmatprep.subr.mxu0 0.0
        %6534 = vmatpush1.xpose.msra.mxu0 %v3315
        %6535 = vmatprep.subr.mxu0 0.0
        %6536 = vmatpush1.xpose.msra.mxu0 %v3318
        %6537 = vmatprep.subr.mxu0 0.0
        %6538 = vmatpush1.xpose.msra.mxu0 %v3321
        %6539 = vmatprep.subr.mxu0 0.0
        %6540 = vmatpush1.xpose.msra.mxu0 %v3324
        %6541 = vmatprep.subr.mxu0 0.0
        %6542 = vmatpush1.xpose.msra.mxu0 %v3327
        %6543 = vmatprep.subr.mxu0 0.0
        %6544 = vmatpush1.xpose.msra.mxu0 %v3330
        %6545 = vmatprep.subr.mxu0 0.0
        %6546 = vmatpush1.xpose.msra.mxu0 %v3333
        %6547 = vmatprep.subr.mxu0 0.0
        %6548 = vmatpush1.xpose.msra.mxu0 %v3336
        %6549 = vmatprep.subr.mxu0 0.0
        %6550 = vmatpush1.xpose.msra.mxu0 %v3339
        %6551 = vmatprep.subr.mxu0 0.0
        %6552 = vmatpush1.xpose.msra.mxu0 %v3342
        %6553 = vmatprep.subr.mxu0 0.0
        %6554 = vmatpush1.xpose.msra.mxu0 %v3345
        %6555 = vmatprep.subr.mxu0 0.0
        %6556 = vmatpush1.xpose.msra.mxu0 %v3348
        %6557 = vmatprep.subr.mxu0 0.0
        %6558 = vmatpush1.xpose.msra.mxu0 %v3351
        %6559 = vmatprep.subr.mxu0 0.0
        %6560 = vmatpush1.xpose.msra.mxu0 %v3354
        %6561 = vmatprep.subr.mxu0 0.0
        %6562 = vmatpush1.xpose.msra.mxu0 %v3357
        %6563 = vmatprep.subr.mxu0 0.0
        %6564 = vmatpush1.xpose.msra.mxu0 %v3360
        %6565 = vmatprep.subr.mxu0 0.0
        %6566 = vmatpush1.xpose.msra.mxu0 %v3363
        %6567 = vmatprep.subr.mxu0 0.0
        %6568 = vmatpush1.xpose.msra.mxu0 0.0
        %6569 = vmatprep.subr.mxu0 0.0
        %6570 = vmatpush1.xpose.msra.mxu0 0.0
        %6571 = vmatprep.subr.mxu0 0.0
        %6572 = vmatpush1.xpose.msra.mxu0 0.0
        %6573 = vmatprep.subr.mxu0 0.0
        %6574 = vmatpush1.xpose.msra.mxu0 0.0
        %6575 = vmatprep.subr.mxu0 0.0
        %6576 = vmatpush1.xpose.msra.mxu0 0.0
        %6577 = vmatprep.subr.mxu0 0.0
        %6578 = vmatpush1.xpose.msra.mxu0 0.0
        %6579 = vmatprep.subr.mxu0 0.0
        %6580 = vmatpush1.xpose.msra.mxu0 0.0
        %6581 = vmatprep.subr.mxu0 0.0
        %6582 = vmatpush1.xpose.msra.mxu0 0.0
        %6583 = vmatprep.subr.mxu0 0.0
        %6584 = vmatpush1.xpose.msra.mxu0 0.0
        %6585 = vmatprep.subr.mxu0 0.0
        %6586 = vmatpush1.xpose.msra.mxu0 0.0
        %6587 = vmatprep.mubr.f32.mxu0 0.0
        %6588 = vmatmul.mubr.f32.gmra.mrb[0].mxu0 %v6450
        %v6589 = vpop.f32.mrb[0].mxu0
        %v6590 = vadd.f32 0.0, %v6589
        %v6591 = vpop.f32.mrb[0].mxu0
        %v6592 = vadd.f32 0.0, %v6591
        %6593 = vdwg.mxu0
        %v6594 = vadd.f32 %v6443, %v6519
        %v6595 = vadd.f32 %v6444, %v6521
        %v6596 = vadd.f32 %v6445, %v6590
        %v6597 = vadd.f32 %v6446, %v6592
        %s6598 = scalar_lea.vmem %s4, 112
        %v6599 = vld [vmem:[%s6598] sm:$0xff]
        %v6600 = vld [vmem:[#allocation2 + $0x4e] sm:$0xff]
        %v6601 = vld [vmem:[#allocation2 + $0x56] sm:$0xff]
        %v6602 = vld [vmem:[#allocation2 + $0x5e] sm:$0xff]
        %v6603 = vld [vmem:[#allocation2 + $0x66] sm:$0xff]
        %v6604 = vld [vmem:[#allocation2 + $0x6e] sm:$0xff]
        %v6605 = vld [vmem:[#allocation2 + $0x76] sm:$0xff]
        %v6606 = vld [vmem:[#allocation2 + $0x7e] sm:$0xff]
        %v6607 = vld [vmem:[#allocation2 + $0x86] sm:$0xff]
        %v6608 = vld [vmem:[#allocation2 + $0x8e] sm:$0xff]
        %v6609 = vld [vmem:[#allocation2 + $0x96] sm:$0xff]
        %v6610 = vld [vmem:[#allocation2 + $0x9e] sm:$0xff]
        %v6611 = vld [vmem:[#allocation2 + $0xa6] sm:$0xff]
        %v6612 = vld [vmem:[#allocation2 + $0xae] sm:$0xff]
        %v6613 = vld [vmem:[#allocation2 + $0xb6] sm:$0xff]
        %v6614 = vld [vmem:[#allocation2 + $0xbe] sm:$0xff]
        %v6615 = vld [vmem:[#allocation2 + $0xc6] sm:$0xff]
        %v6616 = vld [vmem:[#allocation2 + $0xce] sm:$0xff]
        %v6617 = vld [vmem:[#allocation2 + $0xd6] sm:$0xff]
        %v6618 = vld [vmem:[#allocation2 + $0xde] sm:$0xff]
        %v6619 = vld [vmem:[#allocation2 + $0xe6] sm:$0xff]
        %v6620 = vld [vmem:[#allocation2 + $0xee] sm:$0xff]
        %v6621 = vld [vmem:[#allocation2 + $0xf6] sm:$0xff]
        %v6622 = vld [vmem:[#allocation2 + $0xfe] sm:$0xff]
        %v6623 = vld [vmem:[#allocation2 + $0x106] sm:$0xff]
        %v6624 = vld [vmem:[#allocation2 + $0x10e] sm:$0xff]
        %v6625 = vld [vmem:[#allocation2 + $0x116] sm:$0xff]
        %v6626 = vld [vmem:[#allocation2 + $0x11e] sm:$0xff]
        %v6627 = vld [vmem:[#allocation2 + $0x126] sm:$0xff]
        %v6628 = vld [vmem:[#allocation2 + $0x12e] sm:$0xff]
        %v6629 = vld [vmem:[#allocation2 + $0x136] sm:$0xff]
        %v6630 = vld [vmem:[#allocation2 + $0x13e] sm:$0xff]
        %v6631 = vld [vmem:[#allocation2 + $0x146] sm:$0xff]
        %v6632 = vld [vmem:[#allocation2 + $0x14e] sm:$0xff]
        %v6633 = vld [vmem:[#allocation2 + $0x156] sm:$0xff]
        %v6634 = vld [vmem:[#allocation2 + $0x15e] sm:$0xff]
        %v6635 = vld [vmem:[#allocation2 + $0x166] sm:$0xff]
        %v6636 = vld [vmem:[#allocation2 + $0x16e] sm:$0xff]
        %v6637 = vld [vmem:[#allocation2 + $0x176] sm:$0xff]
        %v6638 = vld [vmem:[#allocation2 + $0x17e] sm:$0xff]
        %v6639 = vld [vmem:[#allocation2 + $0x186] sm:$0xff]
        %v6640 = vld [vmem:[#allocation2 + $0x18e] sm:$0xff]
        %v6641 = vld [vmem:[#allocation2 + $0x196] sm:$0xff]
        %v6642 = vld [vmem:[#allocation2 + $0x19e] sm:$0xff]
        %v6643 = vld [vmem:[#allocation2 + $0x1a6] sm:$0xff]
        %v6644 = vld [vmem:[#allocation2 + $0x1ae] sm:$0xff]
        %v6645 = vld [vmem:[#allocation2 + $0x1b6] sm:$0xff]
        %v6646 = vld [vmem:[#allocation2 + $0x1be] sm:$0xff]
        %v6647 = vld [vmem:[#allocation2 + $0x1c6] sm:$0xff]
        %v6648 = vld [vmem:[#allocation2 + $0x1ce] sm:$0xff]
        %v6649 = vld [vmem:[#allocation2 + $0x1d6] sm:$0xff]
        %v6650 = vld [vmem:[#allocation2 + $0x1de] sm:$0xff]
        %v6651 = vld [vmem:[#allocation2 + $0x1e6] sm:$0xff]
        %v6652 = vld [vmem:[#allocation2 + $0x1ee] sm:$0xff]
        %v6653 = vld [vmem:[#allocation2 + $0x1f6] sm:$0xff]
        %v6655 = vsel %vm1604, %v6599, 0
        %v6658 = vsel %vm1604, %v6600, 0
        %v6661 = vsel %vm1604, %v6601, 0
        %v6664 = vsel %vm1604, %v6602, 0
        %v6667 = vsel %vm1604, %v6603, 0
        %v6670 = vsel %vm1604, %v6604, 0
        %v6673 = vsel %vm1604, %v6605, 0
        %v6676 = vsel %vm1604, %v6606, 0
        %v6679 = vsel %vm1604, %v6607, 0
        %v6682 = vsel %vm1604, %v6608, 0
        %v6685 = vsel %vm1604, %v6609, 0
        %v6688 = vsel %vm1604, %v6610, 0
        %v6691 = vsel %vm1604, %v6611, 0
        %v6694 = vsel %vm1604, %v6612, 0
        %v6697 = vsel %vm1604, %v6613, 0
        %v6700 = vsel %vm1604, %v6614, 0
        %v6703 = vsel %vm1604, %v6615, 0
        %v6706 = vsel %vm1604, %v6616, 0
        %v6709 = vsel %vm1604, %v6617, 0
        %v6712 = vsel %vm1604, %v6618, 0
        %v6715 = vsel %vm1604, %v6619, 0
        %v6718 = vsel %vm1604, %v6620, 0
        %v6721 = vsel %vm1604, %v6621, 0
        %v6724 = vsel %vm1604, %v6622, 0
        %v6727 = vsel %vm1604, %v6623, 0
        %v6730 = vsel %vm1604, %v6624, 0
        %v6733 = vsel %vm1604, %v6625, 0
        %v6736 = vsel %vm1604, %v6626, 0
        %v6739 = vsel %vm1604, %v6627, 0
        %v6742 = vsel %vm1604, %v6628, 0
        %v6745 = vsel %vm1604, %v6629, 0
        %v6748 = vsel %vm1604, %v6630, 0
        %v6751 = vsel %vm1604, %v6631, 0
        %v6754 = vsel %vm1604, %v6632, 0
        %v6757 = vsel %vm1604, %v6633, 0
        %v6760 = vsel %vm1604, %v6634, 0
        %v6763 = vsel %vm1604, %v6635, 0
        %v6766 = vsel %vm1604, %v6636, 0
        %v6769 = vsel %vm1604, %v6637, 0
        %v6772 = vsel %vm1604, %v6638, 0
        %v6775 = vsel %vm1604, %v6639, 0
        %v6778 = vsel %vm1604, %v6640, 0
        %v6781 = vsel %vm1604, %v6641, 0
        %v6784 = vsel %vm1604, %v6642, 0
        %v6787 = vsel %vm1604, %v6643, 0
        %v6790 = vsel %vm1604, %v6644, 0
        %v6793 = vsel %vm1604, %v6645, 0
        %v6796 = vsel %vm1604, %v6646, 0
        %v6799 = vsel %vm1604, %v6647, 0
        %v6802 = vsel %vm1604, %v6648, 0
        %v6805 = vsel %vm1604, %v6649, 0
        %v6808 = vsel %vm1604, %v6650, 0
        %v6811 = vsel %vm1604, %v6651, 0
        %v6814 = vsel %vm1604, %v6652, 0
        %v6817 = vsel %vm1604, %v6653, 0
        %6819 = vmatprep.subr.mxu0 0.0
        %6820 = vmatpush1.xpose.msra.mxu0 %v6658
        %6821 = vmatprep.subr.mxu0 0.0
        %6822 = vmatpush1.xpose.msra.mxu0 %v6661
        %6823 = vmatprep.subr.mxu0 0.0
        %6824 = vmatpush1.xpose.msra.mxu0 %v6664
        %6825 = vmatprep.subr.mxu0 0.0
        %6826 = vmatpush1.xpose.msra.mxu0 %v6667
        %6827 = vmatprep.subr.mxu0 0.0
        %6828 = vmatpush1.xpose.msra.mxu0 %v6670
        %6829 = vmatprep.subr.mxu0 0.0
        %6830 = vmatpush1.xpose.msra.mxu0 %v6673
        %6831 = vmatprep.subr.mxu0 0.0
        %6832 = vmatpush1.xpose.msra.mxu0 %v6676
        %6833 = vmatprep.subr.mxu0 0.0
        %6834 = vmatpush1.xpose.msra.mxu0 %v6679
        %6835 = vmatprep.subr.mxu0 0.0
        %6836 = vmatpush1.xpose.msra.mxu0 %v6682
        %6837 = vmatprep.subr.mxu0 0.0
        %6838 = vmatpush1.xpose.msra.mxu0 %v6685
        %6839 = vmatprep.subr.mxu0 0.0
        %6840 = vmatpush1.xpose.msra.mxu0 %v6688
        %6841 = vmatprep.subr.mxu0 0.0
        %6842 = vmatpush1.xpose.msra.mxu0 %v6691
        %6843 = vmatprep.subr.mxu0 0.0
        %6844 = vmatpush1.xpose.msra.mxu0 %v6694
        %6845 = vmatprep.subr.mxu0 0.0
        %6846 = vmatpush1.xpose.msra.mxu0 %v6697
        %6847 = vmatprep.subr.mxu0 0.0
        %6848 = vmatpush1.xpose.msra.mxu0 %v6700
        %6849 = vmatprep.subr.mxu0 0.0
        %6850 = vmatpush1.xpose.msra.mxu0 %v6703
        %6851 = vmatprep.subr.mxu0 0.0
        %6852 = vmatpush1.xpose.msra.mxu0 %v6706
        %6853 = vmatprep.subr.mxu0 0.0
        %6854 = vmatpush1.xpose.msra.mxu0 %v6709
        %6855 = vmatprep.subr.mxu0 0.0
        %6856 = vmatpush1.xpose.msra.mxu0 %v6712
        %6857 = vmatprep.subr.mxu0 0.0
        %6858 = vmatpush1.xpose.msra.mxu0 %v6715
        %6859 = vmatprep.subr.mxu0 0.0
        %6860 = vmatpush1.xpose.msra.mxu0 %v6718
        %6861 = vmatprep.subr.mxu0 0.0
        %6862 = vmatpush1.xpose.msra.mxu0 %v6721
        %6863 = vmatprep.subr.mxu0 0.0
        %6864 = vmatpush1.xpose.msra.mxu0 %v6724
        %6865 = vmatprep.subr.mxu0 0.0
        %6866 = vmatpush1.xpose.msra.mxu0 %v6727
        %6867 = vmatprep.subr.mxu0 0.0
        %6868 = vmatpush1.xpose.msra.mxu0 %v6730
        %6869 = vmatprep.subr.mxu0 0.0
        %6870 = vmatpush1.xpose.msra.mxu0 %v6733
        %6871 = vmatprep.subr.mxu0 0.0
        %6872 = vmatpush1.xpose.msra.mxu0 %v6736
        %6873 = vmatprep.subr.mxu0 0.0
        %6874 = vmatpush1.xpose.msra.mxu0 %v6739
        %6875 = vmatprep.subr.mxu0 0.0
        %6876 = vmatpush1.xpose.msra.mxu0 %v6742
        %6877 = vmatprep.subr.mxu0 0.0
        %6878 = vmatpush1.xpose.msra.mxu0 %v6745
        %6879 = vmatprep.subr.mxu0 0.0
        %6880 = vmatpush1.xpose.msra.mxu0 %v6748
        %6881 = vmatprep.subr.mxu0 0.0
        %6882 = vmatpush1.xpose.msra.mxu0 %v6751
        %6883 = vmatprep.mubr.f32.mxu0 0.0
        %6884 = vmatmul.mubr.f32.gmra.mrb[0].mxu0 %v6655
        %v6885 = vpop.f32.mrb[0].mxu0
        %v6886 = vadd.f32 0.0, %v6885
        %v6887 = vpop.f32.mrb[0].mxu0
        %v6888 = vadd.f32 0.0, %v6887
        %6889 = vdwg.mxu0
        %6890 = vmatprep.subr.mxu0 0.0
        %6891 = vmatpush1.xpose.msra.mxu0 %v6754
        %6892 = vmatprep.subr.mxu0 0.0
        %6893 = vmatpush1.xpose.msra.mxu0 %v6757
        %6894 = vmatprep.subr.mxu0 0.0
        %6895 = vmatpush1.xpose.msra.mxu0 %v6760
        %6896 = vmatprep.subr.mxu0 0.0
        %6897 = vmatpush1.xpose.msra.mxu0 %v6763
        %6898 = vmatprep.subr.mxu0 0.0
        %6899 = vmatpush1.xpose.msra.mxu0 %v6766
        %6900 = vmatprep.subr.mxu0 0.0
        %6901 = vmatpush1.xpose.msra.mxu0 %v6769
        %6902 = vmatprep.subr.mxu0 0.0
        %6903 = vmatpush1.xpose.msra.mxu0 %v6772
        %6904 = vmatprep.subr.mxu0 0.0
        %6905 = vmatpush1.xpose.msra.mxu0 %v6775
        %6906 = vmatprep.subr.mxu0 0.0
        %6907 = vmatpush1.xpose.msra.mxu0 %v6778
        %6908 = vmatprep.subr.mxu0 0.0
        %6909 = vmatpush1.xpose.msra.mxu0 %v6781
        %6910 = vmatprep.subr.mxu0 0.0
        %6911 = vmatpush1.xpose.msra.mxu0 %v6784
        %6912 = vmatprep.subr.mxu0 0.0
        %6913 = vmatpush1.xpose.msra.mxu0 %v6787
        %6914 = vmatprep.subr.mxu0 0.0
        %6915 = vmatpush1.xpose.msra.mxu0 %v6790
        %6916 = vmatprep.subr.mxu0 0.0
        %6917 = vmatpush1.xpose.msra.mxu0 %v6793
        %6918 = vmatprep.subr.mxu0 0.0
        %6919 = vmatpush1.xpose.msra.mxu0 %v6796
        %6920 = vmatprep.subr.mxu0 0.0
        %6921 = vmatpush1.xpose.msra.mxu0 %v6799
        %6922 = vmatprep.subr.mxu0 0.0
        %6923 = vmatpush1.xpose.msra.mxu0 %v6802
        %6924 = vmatprep.subr.mxu0 0.0
        %6925 = vmatpush1.xpose.msra.mxu0 %v6805
        %6926 = vmatprep.subr.mxu0 0.0
        %6927 = vmatpush1.xpose.msra.mxu0 %v6808
        %6928 = vmatprep.subr.mxu0 0.0
        %6929 = vmatpush1.xpose.msra.mxu0 %v6811
        %6930 = vmatprep.subr.mxu0 0.0
        %6931 = vmatpush1.xpose.msra.mxu0 %v6814
        %6932 = vmatprep.subr.mxu0 0.0
        %6933 = vmatpush1.xpose.msra.mxu0 %v6817
        %6934 = vmatprep.subr.mxu0 0.0
        %6935 = vmatpush1.xpose.msra.mxu0 0.0
        %6936 = vmatprep.subr.mxu0 0.0
        %6937 = vmatpush1.xpose.msra.mxu0 0.0
        %6938 = vmatprep.subr.mxu0 0.0
        %6939 = vmatpush1.xpose.msra.mxu0 0.0
        %6940 = vmatprep.subr.mxu0 0.0
        %6941 = vmatpush1.xpose.msra.mxu0 0.0
        %6942 = vmatprep.subr.mxu0 0.0
        %6943 = vmatpush1.xpose.msra.mxu0 0.0
        %6944 = vmatprep.subr.mxu0 0.0
        %6945 = vmatpush1.xpose.msra.mxu0 0.0
        %6946 = vmatprep.subr.mxu0 0.0
        %6947 = vmatpush1.xpose.msra.mxu0 0.0
        %6948 = vmatprep.subr.mxu0 0.0
        %6949 = vmatpush1.xpose.msra.mxu0 0.0
        %6950 = vmatprep.subr.mxu0 0.0
        %6951 = vmatpush1.xpose.msra.mxu0 0.0
        %6952 = vmatprep.subr.mxu0 0.0
        %6953 = vmatpush1.xpose.msra.mxu0 0.0
        %6954 = vmatprep.mubr.f32.mxu0 0.0
        %6955 = vmatmul.mubr.f32.gmra.mrb[0].mxu0 %v6655
        %v6956 = vpop.f32.mrb[0].mxu0
        %v6957 = vadd.f32 0.0, %v6956
        %v6958 = vpop.f32.mrb[0].mxu0
        %v6959 = vadd.f32 0.0, %v6958
        %6960 = vdwg.mxu0
        %v6961 = vadd.f32 %v6594, %v6886
        %v6962 = vadd.f32 %v6595, %v6888
        %v6963 = vadd.f32 %v6596, %v6957
        %v6964 = vadd.f32 %v6597, %v6959
        %s6965 = scalar_lea.vmem %s4, 120
        %v6966 = vld [vmem:[%s6965] sm:$0xff]
        %v6967 = vld [vmem:[#allocation2 + $0x90] sm:$0xff]
        %v6968 = vld [vmem:[#allocation2 + $0x98] sm:$0xff]
        %v6969 = vld [vmem:[#allocation2 + $0xa0] sm:$0xff]
        %v6970 = vld [vmem:[#allocation2 + $0xa8] sm:$0xff]
        %v6971 = vld [vmem:[#allocation2 + $0xb0] sm:$0xff]
        %v6972 = vld [vmem:[#allocation2 + $0xb8] sm:$0xff]
        %v6973 = vld [vmem:[#allocation2 + $0xc0] sm:$0xff]
        %v6974 = vld [vmem:[#allocation2 + $0xc8] sm:$0xff]
        %v6975 = vld [vmem:[#allocation2 + $0xd0] sm:$0xff]
        %v6976 = vld [vmem:[#allocation2 + $0xd8] sm:$0xff]
        %v6977 = vld [vmem:[#allocation2 + $0xe0] sm:$0xff]
        %v6978 = vld [vmem:[#allocation2 + $0xe8] sm:$0xff]
        %v6979 = vld [vmem:[#allocation2 + $0xf0] sm:$0xff]
        %v6980 = vld [vmem:[#allocation2 + $0xf8] sm:$0xff]
        %v6981 = vld [vmem:[#allocation2 + $0x100] sm:$0xff]
        %v6982 = vld [vmem:[#allocation2 + $0x108] sm:$0xff]
        %v6983 = vld [vmem:[#allocation2 + $0x110] sm:$0xff]
        %v6984 = vld [vmem:[#allocation2 + $0x118] sm:$0xff]
        %v6985 = vld [vmem:[#allocation2 + $0x120] sm:$0xff]
        %v6986 = vld [vmem:[#allocation2 + $0x128] sm:$0xff]
        %v6987 = vld [vmem:[#allocation2 + $0x130] sm:$0xff]
        %v6988 = vld [vmem:[#allocation2 + $0x138] sm:$0xff]
        %v6989 = vld [vmem:[#allocation2 + $0x140] sm:$0xff]
        %v6990 = vld [vmem:[#allocation2 + $0x148] sm:$0xff]
        %v6991 = vld [vmem:[#allocation2 + $0x150] sm:$0xff]
        %v6992 = vld [vmem:[#allocation2 + $0x158] sm:$0xff]
        %v6993 = vld [vmem:[#allocation2 + $0x160] sm:$0xff]
        %v6994 = vld [vmem:[#allocation2 + $0x168] sm:$0xff]
        %v6995 = vld [vmem:[#allocation2 + $0x170] sm:$0xff]
        %v6996 = vld [vmem:[#allocation2 + $0x178] sm:$0xff]
        %v6997 = vld [vmem:[#allocation2 + $0x180] sm:$0xff]
        %v6998 = vld [vmem:[#allocation2 + $0x188] sm:$0xff]
        %v6999 = vld [vmem:[#allocation2 + $0x190] sm:$0xff]
        %v7000 = vld [vmem:[#allocation2 + $0x198] sm:$0xff]
        %v7001 = vld [vmem:[#allocation2 + $0x1a0] sm:$0xff]
        %v7002 = vld [vmem:[#allocation2 + $0x1a8] sm:$0xff]
        %v7003 = vld [vmem:[#allocation2 + $0x1b0] sm:$0xff]
        %v7004 = vld [vmem:[#allocation2 + $0x1b8] sm:$0xff]
        %v7005 = vld [vmem:[#allocation2 + $0x1c0] sm:$0xff]
        %v7006 = vld [vmem:[#allocation2 + $0x1c8] sm:$0xff]
        %v7007 = vld [vmem:[#allocation2 + $0x1d0] sm:$0xff]
        %v7008 = vld [vmem:[#allocation2 + $0x1d8] sm:$0xff]
        %v7009 = vld [vmem:[#allocation2 + $0x1e0] sm:$0xff]
        %v7010 = vld [vmem:[#allocation2 + $0x1e8] sm:$0xff]
        %v7011 = vld [vmem:[#allocation2 + $0x1f0] sm:$0xff]
        %v7012 = vld [vmem:[#allocation2 + $0x1f8] sm:$0xff]
        %v7013 = vld [vmem:[#allocation2 + $0x200] sm:$0xff]
        %v7014 = vld [vmem:[#allocation2 + $0x208] sm:$0xff]
        %v7015 = vld [vmem:[#allocation2 + $0x210] sm:$0xff]
        %v7016 = vld [vmem:[#allocation2 + $0x218] sm:$0xff]
        %v7017 = vld [vmem:[#allocation2 + $0x220] sm:$0xff]
        %v7018 = vld [vmem:[#allocation2 + $0x228] sm:$0xff]
        %v7019 = vld [vmem:[#allocation2 + $0x230] sm:$0xff]
        %v7020 = vld [vmem:[#allocation2 + $0x238] sm:$0xff]
        %v7022 = vsel %vm1604, %v6966, 0
        %v7025 = vsel %vm1604, %v6967, 0
        %v7028 = vsel %vm1604, %v6968, 0
        %v7031 = vsel %vm1604, %v6969, 0
        %v7034 = vsel %vm1604, %v6970, 0
        %v7037 = vsel %vm1604, %v6971, 0
        %v7040 = vsel %vm1604, %v6972, 0
        %v7043 = vsel %vm1604, %v6973, 0
        %v7046 = vsel %vm1604, %v6974, 0
        %v7049 = vsel %vm1604, %v6975, 0
        %v7052 = vsel %vm1604, %v6976, 0
        %v7055 = vsel %vm1604, %v6977, 0
        %v7058 = vsel %vm1604, %v6978, 0
        %v7061 = vsel %vm1604, %v6979, 0
        %v7064 = vsel %vm1604, %v6980, 0
        %v7067 = vsel %vm1604, %v6981, 0
        %v7070 = vsel %vm1604, %v6982, 0
        %v7073 = vsel %vm1604, %v6983, 0
        %v7076 = vsel %vm1604, %v6984, 0
        %v7079 = vsel %vm1604, %v6985, 0
        %v7082 = vsel %vm1604, %v6986, 0
        %v7085 = vsel %vm1604, %v6987, 0
        %v7088 = vsel %vm1604, %v6988, 0
        %v7091 = vsel %vm1604, %v6989, 0
        %v7094 = vsel %vm1604, %v6990, 0
        %v7097 = vsel %vm1604, %v6991, 0
        %v7100 = vsel %vm1604, %v6992, 0
        %v7103 = vsel %vm1604, %v6993, 0
        %v7106 = vsel %vm1604, %v6994, 0
        %v7109 = vsel %vm1604, %v6995, 0
        %v7112 = vsel %vm1604, %v6996, 0
        %v7115 = vsel %vm1604, %v6997, 0
        %v7118 = vsel %vm1604, %v6998, 0
        %v7121 = vsel %vm1604, %v6999, 0
        %v7124 = vsel %vm1604, %v7000, 0
        %v7127 = vsel %vm1604, %v7001, 0
        %v7130 = vsel %vm1604, %v7002, 0
        %v7133 = vsel %vm1604, %v7003, 0
        %v7136 = vsel %vm1604, %v7004, 0
        %v7139 = vsel %vm1604, %v7005, 0
        %v7142 = vsel %vm1604, %v7006, 0
        %v7145 = vsel %vm1604, %v7007, 0
        %v7148 = vsel %vm1604, %v7008, 0
        %v7151 = vsel %vm1604, %v7009, 0
        %v7154 = vsel %vm1604, %v7010, 0
        %v7157 = vsel %vm1604, %v7011, 0
        %v7160 = vsel %vm1604, %v7012, 0
        %v7163 = vsel %vm1604, %v7013, 0
        %v7166 = vsel %vm1604, %v7014, 0
        %v7169 = vsel %vm1604, %v7015, 0
        %v7172 = vsel %vm1604, %v7016, 0
        %v7175 = vsel %vm1604, %v7017, 0
        %v7178 = vsel %vm1604, %v7018, 0
        %v7181 = vsel %vm1604, %v7019, 0
        %v7184 = vsel %vm1604, %v7020, 0
        %7186 = vmatprep.subr.mxu0 0.0
        %7187 = vmatpush1.xpose.msra.mxu0 %v7025
        %7188 = vmatprep.subr.mxu0 0.0
        %7189 = vmatpush1.xpose.msra.mxu0 %v7028
        %7190 = vmatprep.subr.mxu0 0.0
        %7191 = vmatpush1.xpose.msra.mxu0 %v7031
        %7192 = vmatprep.subr.mxu0 0.0
        %7193 = vmatpush1.xpose.msra.mxu0 %v7034
        %7194 = vmatprep.subr.mxu0 0.0
        %7195 = vmatpush1.xpose.msra.mxu0 %v7037
        %7196 = vmatprep.subr.mxu0 0.0
        %7197 = vmatpush1.xpose.msra.mxu0 %v7040
        %7198 = vmatprep.subr.mxu0 0.0
        %7199 = vmatpush1.xpose.msra.mxu0 %v7043
        %7200 = vmatprep.subr.mxu0 0.0
        %7201 = vmatpush1.xpose.msra.mxu0 %v7046
        %7202 = vmatprep.subr.mxu0 0.0
        %7203 = vmatpush1.xpose.msra.mxu0 %v7049
        %7204 = vmatprep.subr.mxu0 0.0
        %7205 = vmatpush1.xpose.msra.mxu0 %v7052
        %7206 = vmatprep.subr.mxu0 0.0
        %7207 = vmatpush1.xpose.msra.mxu0 %v7055
        %7208 = vmatprep.subr.mxu0 0.0
        %7209 = vmatpush1.xpose.msra.mxu0 %v7058
        %7210 = vmatprep.subr.mxu0 0.0
        %7211 = vmatpush1.xpose.msra.mxu0 %v7061
        %7212 = vmatprep.subr.mxu0 0.0
        %7213 = vmatpush1.xpose.msra.mxu0 %v7064
        %7214 = vmatprep.subr.mxu0 0.0
        %7215 = vmatpush1.xpose.msra.mxu0 %v7067
        %7216 = vmatprep.subr.mxu0 0.0
        %7217 = vmatpush1.xpose.msra.mxu0 %v7070
        %7218 = vmatprep.subr.mxu0 0.0
        %7219 = vmatpush1.xpose.msra.mxu0 %v7073
        %7220 = vmatprep.subr.mxu0 0.0
        %7221 = vmatpush1.xpose.msra.mxu0 %v7076
        %7222 = vmatprep.subr.mxu0 0.0
        %7223 = vmatpush1.xpose.msra.mxu0 %v7079
        %7224 = vmatprep.subr.mxu0 0.0
        %7225 = vmatpush1.xpose.msra.mxu0 %v7082
        %7226 = vmatprep.subr.mxu0 0.0
        %7227 = vmatpush1.xpose.msra.mxu0 %v7085
        %7228 = vmatprep.subr.mxu0 0.0
        %7229 = vmatpush1.xpose.msra.mxu0 %v7088
        %7230 = vmatprep.subr.mxu0 0.0
        %7231 = vmatpush1.xpose.msra.mxu0 %v7091
        %7232 = vmatprep.subr.mxu0 0.0
        %7233 = vmatpush1.xpose.msra.mxu0 %v7094
        %7234 = vmatprep.subr.mxu0 0.0
        %7235 = vmatpush1.xpose.msra.mxu0 %v7097
        %7236 = vmatprep.subr.mxu0 0.0
        %7237 = vmatpush1.xpose.msra.mxu0 %v7100
        %7238 = vmatprep.subr.mxu0 0.0
        %7239 = vmatpush1.xpose.msra.mxu0 %v7103
        %7240 = vmatprep.subr.mxu0 0.0
        %7241 = vmatpush1.xpose.msra.mxu0 %v7106
        %7242 = vmatprep.subr.mxu0 0.0
        %7243 = vmatpush1.xpose.msra.mxu0 %v7109
        %7244 = vmatprep.subr.mxu0 0.0
        %7245 = vmatpush1.xpose.msra.mxu0 %v7112
        %7246 = vmatprep.subr.mxu0 0.0
        %7247 = vmatpush1.xpose.msra.mxu0 %v7115
        %7248 = vmatprep.subr.mxu0 0.0
        %7249 = vmatpush1.xpose.msra.mxu0 %v7118
        %7250 = vmatprep.mubr.f32.mxu0 0.0
        %7251 = vmatmul.mubr.f32.gmra.mrb[0].mxu0 %v7022
        %v7252 = vpop.f32.mrb[0].mxu0
        %v7253 = vadd.f32 0.0, %v7252
        %v7254 = vpop.f32.mrb[0].mxu0
        %v7255 = vadd.f32 0.0, %v7254
        %7256 = vdwg.mxu0
        %7257 = vmatprep.subr.mxu0 0.0
        %7258 = vmatpush1.xpose.msra.mxu0 %v7121
        %7259 = vmatprep.subr.mxu0 0.0
        %7260 = vmatpush1.xpose.msra.mxu0 %v7124
        %7261 = vmatprep.subr.mxu0 0.0
        %7262 = vmatpush1.xpose.msra.mxu0 %v7127
        %7263 = vmatprep.subr.mxu0 0.0
        %7264 = vmatpush1.xpose.msra.mxu0 %v7130
        %7265 = vmatprep.subr.mxu0 0.0
        %7266 = vmatpush1.xpose.msra.mxu0 %v7133
        %7267 = vmatprep.subr.mxu0 0.0
        %7268 = vmatpush1.xpose.msra.mxu0 %v7136
        %7269 = vmatprep.subr.mxu0 0.0
        %7270 = vmatpush1.xpose.msra.mxu0 %v7139
        %7271 = vmatprep.subr.mxu0 0.0
        %7272 = vmatpush1.xpose.msra.mxu0 %v7142
        %7273 = vmatprep.subr.mxu0 0.0
        %7274 = vmatpush1.xpose.msra.mxu0 %v7145
        %7275 = vmatprep.subr.mxu0 0.0
        %7276 = vmatpush1.xpose.msra.mxu0 %v7148
        %7277 = vmatprep.subr.mxu0 0.0
        %7278 = vmatpush1.xpose.msra.mxu0 %v7151
        %7279 = vmatprep.subr.mxu0 0.0
        %7280 = vmatpush1.xpose.msra.mxu0 %v7154
        %7281 = vmatprep.subr.mxu0 0.0
        %7282 = vmatpush1.xpose.msra.mxu0 %v7157
        %7283 = vmatprep.subr.mxu0 0.0
        %7284 = vmatpush1.xpose.msra.mxu0 %v7160
        %7285 = vmatprep.subr.mxu0 0.0
        %7286 = vmatpush1.xpose.msra.mxu0 %v7163
        %7287 = vmatprep.subr.mxu0 0.0
        %7288 = vmatpush1.xpose.msra.mxu0 %v7166
        %7289 = vmatprep.subr.mxu0 0.0
        %7290 = vmatpush1.xpose.msra.mxu0 %v7169
        %7291 = vmatprep.subr.mxu0 0.0
        %7292 = vmatpush1.xpose.msra.mxu0 %v7172
        %7293 = vmatprep.subr.mxu0 0.0
        %7294 = vmatpush1.xpose.msra.mxu0 %v7175
        %7295 = vmatprep.subr.mxu0 0.0
        %7296 = vmatpush1.xpose.msra.mxu0 %v7178
        %7297 = vmatprep.subr.mxu0 0.0
        %7298 = vmatpush1.xpose.msra.mxu0 %v7181
        %7299 = vmatprep.subr.mxu0 0.0
        %7300 = vmatpush1.xpose.msra.mxu0 %v7184
        %7301 = vmatprep.subr.mxu0 0.0
        %7302 = vmatpush1.xpose.msra.mxu0 0.0
        %7303 = vmatprep.subr.mxu0 0.0
        %7304 = vmatpush1.xpose.msra.mxu0 0.0
        %7305 = vmatprep.subr.mxu0 0.0
        %7306 = vmatpush1.xpose.msra.mxu0 0.0
        %7307 = vmatprep.subr.mxu0 0.0
        %7308 = vmatpush1.xpose.msra.mxu0 0.0
        %7309 = vmatprep.subr.mxu0 0.0
        %7310 = vmatpush1.xpose.msra.mxu0 0.0
        %7311 = vmatprep.subr.mxu0 0.0
        %7312 = vmatpush1.xpose.msra.mxu0 0.0
        %7313 = vmatprep.subr.mxu0 0.0
        %7314 = vmatpush1.xpose.msra.mxu0 0.0
        %7315 = vmatprep.subr.mxu0 0.0
        %7316 = vmatpush1.xpose.msra.mxu0 0.0
        %7317 = vmatprep.subr.mxu0 0.0
        %7318 = vmatpush1.xpose.msra.mxu0 0.0
        %7319 = vmatprep.subr.mxu0 0.0
        %7320 = vmatpush1.xpose.msra.mxu0 0.0
        %7321 = vmatprep.mubr.f32.mxu0 0.0
        %7322 = vmatmul.mubr.f32.gmra.mrb[0].mxu0 %v7022
        %v7323 = vpop.f32.mrb[0].mxu0
        %v7324 = vadd.f32 0.0, %v7323
        %v7325 = vpop.f32.mrb[0].mxu0
        %v7326 = vadd.f32 0.0, %v7325
        %7327 = vdwg.mxu0
        %v7328 = vadd.f32 %v6961, %v7253
        %v7329 = vadd.f32 %v6962, %v7255
        %v7330 = vadd.f32 %v6963, %v7324
        %v7331 = vadd.f32 %v6964, %v7326
        %s7332 = scalar_lea.vmem %s4, 128
        %v7333 = vld [vmem:[%s7332] sm:$0xff]
        %v7334 = vld [vmem:[#allocation2 + $0x93] sm:$0xff]
        %v7335 = vld [vmem:[#allocation2 + $0x9b] sm:$0xff]
        %v7336 = vld [vmem:[#allocation2 + $0xa3] sm:$0xff]
        %v7337 = vld [vmem:[#allocation2 + $0xab] sm:$0xff]
        %v7338 = vld [vmem:[#allocation2 + $0xb3] sm:$0xff]
        %v7339 = vld [vmem:[#allocation2 + $0xbb] sm:$0xff]
        %v7340 = vld [vmem:[#allocation2 + $0xc3] sm:$0xff]
        %v7341 = vld [vmem:[#allocation2 + $0xcb] sm:$0xff]
        %v7342 = vld [vmem:[#allocation2 + $0xd3] sm:$0xff]
        %v7343 = vld [vmem:[#allocation2 + $0xdb] sm:$0xff]
        %v7344 = vld [vmem:[#allocation2 + $0xe3] sm:$0xff]
        %v7345 = vld [vmem:[#allocation2 + $0xeb] sm:$0xff]
        %v7346 = vld [vmem:[#allocation2 + $0xf3] sm:$0xff]
        %v7347 = vld [vmem:[#allocation2 + $0xfb] sm:$0xff]
        %v7348 = vld [vmem:[#allocation2 + $0x103] sm:$0xff]
        %v7349 = vld [vmem:[#allocation2 + $0x10b] sm:$0xff]
        %v7350 = vld [vmem:[#allocation2 + $0x113] sm:$0xff]
        %v7351 = vld [vmem:[#allocation2 + $0x11b] sm:$0xff]
        %v7352 = vld [vmem:[#allocation2 + $0x123] sm:$0xff]
        %v7353 = vld [vmem:[#allocation2 + $0x12b] sm:$0xff]
        %v7354 = vld [vmem:[#allocation2 + $0x133] sm:$0xff]
        %v7355 = vld [vmem:[#allocation2 + $0x13b] sm:$0xff]
        %v7356 = vld [vmem:[#allocation2 + $0x143] sm:$0xff]
        %v7357 = vld [vmem:[#allocation2 + $0x14b] sm:$0xff]
        %v7358 = vld [vmem:[#allocation2 + $0x153] sm:$0xff]
        %v7359 = vld [vmem:[#allocation2 + $0x15b] sm:$0xff]
        %v7360 = vld [vmem:[#allocation2 + $0x163] sm:$0xff]
        %v7361 = vld [vmem:[#allocation2 + $0x16b] sm:$0xff]
        %v7362 = vld [vmem:[#allocation2 + $0x173] sm:$0xff]
        %v7363 = vld [vmem:[#allocation2 + $0x17b] sm:$0xff]
        %v7364 = vld [vmem:[#allocation2 + $0x183] sm:$0xff]
        %v7365 = vld [vmem:[#allocation2 + $0x18b] sm:$0xff]
        %v7366 = vld [vmem:[#allocation2 + $0x193] sm:$0xff]
        %v7367 = vld [vmem:[#allocation2 + $0x19b] sm:$0xff]
        %v7368 = vld [vmem:[#allocation2 + $0x1a3] sm:$0xff]
        %v7369 = vld [vmem:[#allocation2 + $0x1ab] sm:$0xff]
        %v7370 = vld [vmem:[#allocation2 + $0x1b3] sm:$0xff]
        %v7371 = vld [vmem:[#allocation2 + $0x1bb] sm:$0xff]
        %v7372 = vld [vmem:[#allocation2 + $0x1c3] sm:$0xff]
        %v7373 = vld [vmem:[#allocation2 + $0x1cb] sm:$0xff]
        %v7374 = vld [vmem:[#allocation2 + $0x1d3] sm:$0xff]
        %v7375 = vld [vmem:[#allocation2 + $0x1db] sm:$0xff]
        %v7376 = vld [vmem:[#allocation2 + $0x1e3] sm:$0xff]
        %v7377 = vld [vmem:[#allocation2 + $0x1eb] sm:$0xff]
        %v7378 = vld [vmem:[#allocation2 + $0x1f3] sm:$0xff]
        %v7379 = vld [vmem:[#allocation2 + $0x1fb] sm:$0xff]
        %v7380 = vld [vmem:[#allocation2 + $0x203] sm:$0xff]
        %v7381 = vld [vmem:[#allocation2 + $0x20b] sm:$0xff]
        %v7382 = vld [vmem:[#allocation2 + $0x213] sm:$0xff]
        %v7383 = vld [vmem:[#allocation2 + $0x21b] sm:$0xff]
        %v7384 = vld [vmem:[#allocation2 + $0x223] sm:$0xff]
        %v7385 = vld [vmem:[#allocation2 + $0x22b] sm:$0xff]
        %v7386 = vld [vmem:[#allocation2 + $0x233] sm:$0xff]
        %v7387 = vld [vmem:[#allocation2 + $0x23b] sm:$0xff]
        %v7389 = vsel %vm1604, %v7333, 0
        %v7392 = vsel %vm1604, %v7334, 0
        %v7395 = vsel %vm1604, %v7335, 0
        %v7398 = vsel %vm1604, %v7336, 0
        %v7401 = vsel %vm1604, %v7337, 0
        %v7404 = vsel %vm1604, %v7338, 0
        %v7407 = vsel %vm1604, %v7339, 0
        %v7410 = vsel %vm1604, %v7340, 0
        %v7413 = vsel %vm1604, %v7341, 0
        %v7416 = vsel %vm1604, %v7342, 0
        %v7419 = vsel %vm1604, %v7343, 0
        %v7422 = vsel %vm1604, %v7344, 0
        %v7425 = vsel %vm1604, %v7345, 0
        %v7428 = vsel %vm1604, %v7346, 0
        %v7431 = vsel %vm1604, %v7347, 0
        %v7434 = vsel %vm1604, %v7348, 0
        %v7437 = vsel %vm1604, %v7349, 0
        %v7440 = vsel %vm1604, %v7350, 0
        %v7443 = vsel %vm1604, %v7351, 0
        %v7446 = vsel %vm1604, %v7352, 0
        %v7449 = vsel %vm1604, %v7353, 0
        %v7452 = vsel %vm1604, %v7354, 0
        %v7455 = vsel %vm1604, %v7355, 0
        %v7458 = vsel %vm1604, %v7356, 0
        %v7461 = vsel %vm1604, %v7357, 0
        %v7464 = vsel %vm1604, %v7358, 0
        %v7467 = vsel %vm1604, %v7359, 0
        %v7470 = vsel %vm1604, %v7360, 0
        %v7473 = vsel %vm1604, %v7361, 0
        %v7476 = vsel %vm1604, %v7362, 0
        %v7479 = vsel %vm1604, %v7363, 0
        %v7482 = vsel %vm1604, %v7364, 0
        %v7485 = vsel %vm1604, %v7365, 0
        %v7488 = vsel %vm1604, %v7366, 0
        %v7491 = vsel %vm1604, %v7367, 0
        %v7494 = vsel %vm1604, %v7368, 0
        %v7497 = vsel %vm1604, %v7369, 0
        %v7500 = vsel %vm1604, %v7370, 0
        %v7503 = vsel %vm1604, %v7371, 0
        %v7506 = vsel %vm1604, %v7372, 0
        %v7509 = vsel %vm1604, %v7373, 0
        %v7512 = vsel %vm1604, %v7374, 0
        %v7515 = vsel %vm1604, %v7375, 0
        %v7518 = vsel %vm1604, %v7376, 0
        %v7521 = vsel %vm1604, %v7377, 0
        %v7524 = vsel %vm1604, %v7378, 0
        %v7527 = vsel %vm1604, %v7379, 0
        %v7530 = vsel %vm1604, %v7380, 0
        %v7533 = vsel %vm1604, %v7381, 0
        %v7536 = vsel %vm1604, %v7382, 0
        %v7539 = vsel %vm1604, %v7383, 0
        %v7542 = vsel %vm1604, %v7384, 0
        %v7545 = vsel %vm1604, %v7385, 0
        %v7548 = vsel %vm1604, %v7386, 0
        %v7551 = vsel %vm1604, %v7387, 0
        %7553 = vmatprep.subr.mxu0 0.0
        %7554 = vmatpush1.xpose.msra.mxu0 %v7392
        %7555 = vmatprep.subr.mxu0 0.0
        %7556 = vmatpush1.xpose.msra.mxu0 %v7395
        %7557 = vmatprep.subr.mxu0 0.0
        %7558 = vmatpush1.xpose.msra.mxu0 %v7398
        %7559 = vmatprep.subr.mxu0 0.0
        %7560 = vmatpush1.xpose.msra.mxu0 %v7401
        %7561 = vmatprep.subr.mxu0 0.0
        %7562 = vmatpush1.xpose.msra.mxu0 %v7404
        %7563 = vmatprep.subr.mxu0 0.0
        %7564 = vmatpush1.xpose.msra.mxu0 %v7407
        %7565 = vmatprep.subr.mxu0 0.0
        %7566 = vmatpush1.xpose.msra.mxu0 %v7410
        %7567 = vmatprep.subr.mxu0 0.0
        %7568 = vmatpush1.xpose.msra.mxu0 %v7413
        %7569 = vmatprep.subr.mxu0 0.0
        %7570 = vmatpush1.xpose.msra.mxu0 %v7416
        %7571 = vmatprep.subr.mxu0 0.0
        %7572 = vmatpush1.xpose.msra.mxu0 %v7419
        %7573 = vmatprep.subr.mxu0 0.0
        %7574 = vmatpush1.xpose.msra.mxu0 %v7422
        %7575 = vmatprep.subr.mxu0 0.0
        %7576 = vmatpush1.xpose.msra.mxu0 %v7425
        %7577 = vmatprep.subr.mxu0 0.0
        %7578 = vmatpush1.xpose.msra.mxu0 %v7428
        %7579 = vmatprep.subr.mxu0 0.0
        %7580 = vmatpush1.xpose.msra.mxu0 %v7431
        %7581 = vmatprep.subr.mxu0 0.0
        %7582 = vmatpush1.xpose.msra.mxu0 %v7434
        %7583 = vmatprep.subr.mxu0 0.0
        %7584 = vmatpush1.xpose.msra.mxu0 %v7437
        %7585 = vmatprep.subr.mxu0 0.0
        %7586 = vmatpush1.xpose.msra.mxu0 %v7440
        %7587 = vmatprep.subr.mxu0 0.0
        %7588 = vmatpush1.xpose.msra.mxu0 %v7443
        %7589 = vmatprep.subr.mxu0 0.0
        %7590 = vmatpush1.xpose.msra.mxu0 %v7446
        %7591 = vmatprep.subr.mxu0 0.0
        %7592 = vmatpush1.xpose.msra.mxu0 %v7449
        %7593 = vmatprep.subr.mxu0 0.0
        %7594 = vmatpush1.xpose.msra.mxu0 %v7452
        %7595 = vmatprep.subr.mxu0 0.0
        %7596 = vmatpush1.xpose.msra.mxu0 %v7455
        %7597 = vmatprep.subr.mxu0 0.0
        %7598 = vmatpush1.xpose.msra.mxu0 %v7458
        %7599 = vmatprep.subr.mxu0 0.0
        %7600 = vmatpush1.xpose.msra.mxu0 %v7461
        %7601 = vmatprep.subr.mxu0 0.0
        %7602 = vmatpush1.xpose.msra.mxu0 %v7464
        %7603 = vmatprep.subr.mxu0 0.0
        %7604 = vmatpush1.xpose.msra.mxu0 %v7467
        %7605 = vmatprep.subr.mxu0 0.0
        %7606 = vmatpush1.xpose.msra.mxu0 %v7470
        %7607 = vmatprep.subr.mxu0 0.0
        %7608 = vmatpush1.xpose.msra.mxu0 %v7473
        %7609 = vmatprep.subr.mxu0 0.0
        %7610 = vmatpush1.xpose.msra.mxu0 %v7476
        %7611 = vmatprep.subr.mxu0 0.0
        %7612 = vmatpush1.xpose.msra.mxu0 %v7479
        %7613 = vmatprep.subr.mxu0 0.0
        %7614 = vmatpush1.xpose.msra.mxu0 %v7482
        %7615 = vmatprep.subr.mxu0 0.0
        %7616 = vmatpush1.xpose.msra.mxu0 %v7485
        %7617 = vmatprep.mubr.f32.mxu0 0.0
        %7618 = vmatmul.mubr.f32.gmra.mrb[0].mxu0 %v7389
        %v7619 = vpop.f32.mrb[0].mxu0
        %v7620 = vadd.f32 0.0, %v7619
        %v7621 = vpop.f32.mrb[0].mxu0
        %v7622 = vadd.f32 0.0, %v7621
        %7623 = vdwg.mxu0
        %7624 = vmatprep.subr.mxu0 0.0
        %7625 = vmatpush1.xpose.msra.mxu0 %v7488
        %7626 = vmatprep.subr.mxu0 0.0
        %7627 = vmatpush1.xpose.msra.mxu0 %v7491
        %7628 = vmatprep.subr.mxu0 0.0
        %7629 = vmatpush1.xpose.msra.mxu0 %v7494
        %7630 = vmatprep.subr.mxu0 0.0
        %7631 = vmatpush1.xpose.msra.mxu0 %v7497
        %7632 = vmatprep.subr.mxu0 0.0
        %7633 = vmatpush1.xpose.msra.mxu0 %v7500
        %7634 = vmatprep.subr.mxu0 0.0
        %7635 = vmatpush1.xpose.msra.mxu0 %v7503
        %7636 = vmatprep.subr.mxu0 0.0
        %7637 = vmatpush1.xpose.msra.mxu0 %v7506
        %7638 = vmatprep.subr.mxu0 0.0
        %7639 = vmatpush1.xpose.msra.mxu0 %v7509
        %7640 = vmatprep.subr.mxu0 0.0
        %7641 = vmatpush1.xpose.msra.mxu0 %v7512
        %7642 = vmatprep.subr.mxu0 0.0
        %7643 = vmatpush1.xpose.msra.mxu0 %v7515
        %7644 = vmatprep.subr.mxu0 0.0
        %7645 = vmatpush1.xpose.msra.mxu0 %v7518
        %7646 = vmatprep.subr.mxu0 0.0
        %7647 = vmatpush1.xpose.msra.mxu0 %v7521
        %7648 = vmatprep.subr.mxu0 0.0
        %7649 = vmatpush1.xpose.msra.mxu0 %v7524
        %7650 = vmatprep.subr.mxu0 0.0
        %7651 = vmatpush1.xpose.msra.mxu0 %v7527
        %7652 = vmatprep.subr.mxu0 0.0
        %7653 = vmatpush1.xpose.msra.mxu0 %v7530
        %7654 = vmatprep.subr.mxu0 0.0
        %7655 = vmatpush1.xpose.msra.mxu0 %v7533
        %7656 = vmatprep.subr.mxu0 0.0
        %7657 = vmatpush1.xpose.msra.mxu0 %v7536
        %7658 = vmatprep.subr.mxu0 0.0
        %7659 = vmatpush1.xpose.msra.mxu0 %v7539
        %7660 = vmatprep.subr.mxu0 0.0
        %7661 = vmatpush1.xpose.msra.mxu0 %v7542
        %7662 = vmatprep.subr.mxu0 0.0
        %7663 = vmatpush1.xpose.msra.mxu0 %v7545
        %7664 = vmatprep.subr.mxu0 0.0
        %7665 = vmatpush1.xpose.msra.mxu0 %v7548
        %7666 = vmatprep.subr.mxu0 0.0
        %7667 = vmatpush1.xpose.msra.mxu0 %v7551
        %7668 = vmatprep.subr.mxu0 0.0
        %7669 = vmatpush1.xpose.msra.mxu0 0.0
        %7670 = vmatprep.subr.mxu0 0.0
        %7671 = vmatpush1.xpose.msra.mxu0 0.0
        %7672 = vmatprep.subr.mxu0 0.0
        %7673 = vmatpush1.xpose.msra.mxu0 0.0
        %7674 = vmatprep.subr.mxu0 0.0
        %7675 = vmatpush1.xpose.msra.mxu0 0.0
        %7676 = vmatprep.subr.mxu0 0.0
        %7677 = vmatpush1.xpose.msra.mxu0 0.0
        %7678 = vmatprep.subr.mxu0 0.0
        %7679 = vmatpush1.xpose.msra.mxu0 0.0
        %7680 = vmatprep.subr.mxu0 0.0
        %7681 = vmatpush1.xpose.msra.mxu0 0.0
        %7682 = vmatprep.subr.mxu0 0.0
        %7683 = vmatpush1.xpose.msra.mxu0 0.0
        %7684 = vmatprep.subr.mxu0 0.0
        %7685 = vmatpush1.xpose.msra.mxu0 0.0
        %7686 = vmatprep.subr.mxu0 0.0
        %7687 = vmatpush1.xpose.msra.mxu0 0.0
        %7688 = vmatprep.mubr.f32.mxu0 0.0
        %7689 = vmatmul.mubr.f32.gmra.mrb[0].mxu0 %v7389
        %v7690 = vpop.f32.mrb[0].mxu0
        %v7691 = vadd.f32 0.0, %v7690
        %v7692 = vpop.f32.mrb[0].mxu0
        %v7693 = vadd.f32 0.0, %v7692
        %7694 = vdwg.mxu0
        %v7695 = vadd.f32 %v7328, %v7620
        %v7696 = vadd.f32 %v7329, %v7622
        %v7697 = vadd.f32 %v7330, %v7691
        %v7698 = vadd.f32 %v7331, %v7693
        %s7699 = scalar_lea.vmem %s4, 136
        %v7700 = vld [vmem:[%s7699] sm:$0xff]
        %v7701 = vld [vmem:[#allocation2 + $0x96] sm:$0xff]
        %v7702 = vld [vmem:[#allocation2 + $0x9e] sm:$0xff]
        %v7703 = vld [vmem:[#allocation2 + $0xa6] sm:$0xff]
        %v7704 = vld [vmem:[#allocation2 + $0xae] sm:$0xff]
        %v7705 = vld [vmem:[#allocation2 + $0xb6] sm:$0xff]
        %v7706 = vld [vmem:[#allocation2 + $0xbe] sm:$0xff]
        %v7707 = vld [vmem:[#allocation2 + $0xc6] sm:$0xff]
        %v7708 = vld [vmem:[#allocation2 + $0xce] sm:$0xff]
        %v7709 = vld [vmem:[#allocation2 + $0xd6] sm:$0xff]
        %v7710 = vld [vmem:[#allocation2 + $0xde] sm:$0xff]
        %v7711 = vld [vmem:[#allocation2 + $0xe6] sm:$0xff]
        %v7712 = vld [vmem:[#allocation2 + $0xee] sm:$0xff]
        %v7713 = vld [vmem:[#allocation2 + $0xf6] sm:$0xff]
        %v7714 = vld [vmem:[#allocation2 + $0xfe] sm:$0xff]
        %v7715 = vld [vmem:[#allocation2 + $0x106] sm:$0xff]
        %v7716 = vld [vmem:[#allocation2 + $0x10e] sm:$0xff]
        %v7717 = vld [vmem:[#allocation2 + $0x116] sm:$0xff]
        %v7718 = vld [vmem:[#allocation2 + $0x11e] sm:$0xff]
        %v7719 = vld [vmem:[#allocation2 + $0x126] sm:$0xff]
        %v7720 = vld [vmem:[#allocation2 + $0x12e] sm:$0xff]
        %v7721 = vld [vmem:[#allocation2 + $0x136] sm:$0xff]
        %v7722 = vld [vmem:[#allocation2 + $0x13e] sm:$0xff]
        %v7723 = vld [vmem:[#allocation2 + $0x146] sm:$0xff]
        %v7724 = vld [vmem:[#allocation2 + $0x14e] sm:$0xff]
        %v7725 = vld [vmem:[#allocation2 + $0x156] sm:$0xff]
        %v7726 = vld [vmem:[#allocation2 + $0x15e] sm:$0xff]
        %v7727 = vld [vmem:[#allocation2 + $0x166] sm:$0xff]
        %v7728 = vld [vmem:[#allocation2 + $0x16e] sm:$0xff]
        %v7729 = vld [vmem:[#allocation2 + $0x176] sm:$0xff]
        %v7730 = vld [vmem:[#allocation2 + $0x17e] sm:$0xff]
        %v7731 = vld [vmem:[#allocation2 + $0x186] sm:$0xff]
        %v7732 = vld [vmem:[#allocation2 + $0x18e] sm:$0xff]
        %v7733 = vld [vmem:[#allocation2 + $0x196] sm:$0xff]
        %v7734 = vld [vmem:[#allocation2 + $0x19e] sm:$0xff]
        %v7735 = vld [vmem:[#allocation2 + $0x1a6] sm:$0xff]
        %v7736 = vld [vmem:[#allocation2 + $0x1ae] sm:$0xff]
        %v7737 = vld [vmem:[#allocation2 + $0x1b6] sm:$0xff]
        %v7738 = vld [vmem:[#allocation2 + $0x1be] sm:$0xff]
        %v7739 = vld [vmem:[#allocation2 + $0x1c6] sm:$0xff]
        %v7740 = vld [vmem:[#allocation2 + $0x1ce] sm:$0xff]
        %v7741 = vld [vmem:[#allocation2 + $0x1d6] sm:$0xff]
        %v7742 = vld [vmem:[#allocation2 + $0x1de] sm:$0xff]
        %v7743 = vld [vmem:[#allocation2 + $0x1e6] sm:$0xff]
        %v7744 = vld [vmem:[#allocation2 + $0x1ee] sm:$0xff]
        %v7745 = vld [vmem:[#allocation2 + $0x1f6] sm:$0xff]
        %v7746 = vld [vmem:[#allocation2 + $0x1fe] sm:$0xff]
        %v7747 = vld [vmem:[#allocation2 + $0x206] sm:$0xff]
        %v7748 = vld [vmem:[#allocation2 + $0x20e] sm:$0xff]
        %v7749 = vld [vmem:[#allocation2 + $0x216] sm:$0xff]
        %v7750 = vld [vmem:[#allocation2 + $0x21e] sm:$0xff]
        %v7751 = vld [vmem:[#allocation2 + $0x226] sm:$0xff]
        %v7752 = vld [vmem:[#allocation2 + $0x22e] sm:$0xff]
        %v7753 = vld [vmem:[#allocation2 + $0x236] sm:$0xff]
        %v7754 = vld [vmem:[#allocation2 + $0x23e] sm:$0xff]
        %v7756 = vsel %vm1604, %v7700, 0
        %v7759 = vsel %vm1604, %v7701, 0
        %v7762 = vsel %vm1604, %v7702, 0
        %v7765 = vsel %vm1604, %v7703, 0
        %v7768 = vsel %vm1604, %v7704, 0
        %v7771 = vsel %vm1604, %v7705, 0
        %v7774 = vsel %vm1604, %v7706, 0
        %v7777 = vsel %vm1604, %v7707, 0
        %v7780 = vsel %vm1604, %v7708, 0
        %v7783 = vsel %vm1604, %v7709, 0
        %v7786 = vsel %vm1604, %v7710, 0
        %v7789 = vsel %vm1604, %v7711, 0
        %v7792 = vsel %vm1604, %v7712, 0
        %v7795 = vsel %vm1604, %v7713, 0
        %v7798 = vsel %vm1604, %v7714, 0
        %v7801 = vsel %vm1604, %v7715, 0
        %v7804 = vsel %vm1604, %v7716, 0
        %v7807 = vsel %vm1604, %v7717, 0
        %v7810 = vsel %vm1604, %v7718, 0
        %v7813 = vsel %vm1604, %v7719, 0
        %v7816 = vsel %vm1604, %v7720, 0
        %v7819 = vsel %vm1604, %v7721, 0
        %v7822 = vsel %vm1604, %v7722, 0
        %v7825 = vsel %vm1604, %v7723, 0
        %v7828 = vsel %vm1604, %v7724, 0
        %v7831 = vsel %vm1604, %v7725, 0
        %v7834 = vsel %vm1604, %v7726, 0
        %v7837 = vsel %vm1604, %v7727, 0
        %v7840 = vsel %vm1604, %v7728, 0
        %v7843 = vsel %vm1604, %v7729, 0
        %v7846 = vsel %vm1604, %v7730, 0
        %v7849 = vsel %vm1604, %v7731, 0
        %v7852 = vsel %vm1604, %v7732, 0
        %v7855 = vsel %vm1604, %v7733, 0
        %v7858 = vsel %vm1604, %v7734, 0
        %v7861 = vsel %vm1604, %v7735, 0
        %v7864 = vsel %vm1604, %v7736, 0
        %v7867 = vsel %vm1604, %v7737, 0
        %v7870 = vsel %vm1604, %v7738, 0
        %v7873 = vsel %vm1604, %v7739, 0
        %v7876 = vsel %vm1604, %v7740, 0
        %v7879 = vsel %vm1604, %v7741, 0
        %v7882 = vsel %vm1604, %v7742, 0
        %v7885 = vsel %vm1604, %v7743, 0
        %v7888 = vsel %vm1604, %v7744, 0
        %v7891 = vsel %vm1604, %v7745, 0
        %v7894 = vsel %vm1604, %v7746, 0
        %v7897 = vsel %vm1604, %v7747, 0
        %v7900 = vsel %vm1604, %v7748, 0
        %v7903 = vsel %vm1604, %v7749, 0
        %v7906 = vsel %vm1604, %v7750, 0
        %v7909 = vsel %vm1604, %v7751, 0
        %v7912 = vsel %vm1604, %v7752, 0
        %v7915 = vsel %vm1604, %v7753, 0
        %v7918 = vsel %vm1604, %v7754, 0
        %7920 = vmatprep.subr.mxu0 0.0
        %7921 = vmatpush1.xpose.msra.mxu0 %v7759
        %7922 = vmatprep.subr.mxu0 0.0
        %7923 = vmatpush1.xpose.msra.mxu0 %v7762
        %7924 = vmatprep.subr.mxu0 0.0
        %7925 = vmatpush1.xpose.msra.mxu0 %v7765
        %7926 = vmatprep.subr.mxu0 0.0
        %7927 = vmatpush1.xpose.msra.mxu0 %v7768
        %7928 = vmatprep.subr.mxu0 0.0
        %7929 = vmatpush1.xpose.msra.mxu0 %v7771
        %7930 = vmatprep.subr.mxu0 0.0
        %7931 = vmatpush1.xpose.msra.mxu0 %v7774
        %7932 = vmatprep.subr.mxu0 0.0
        %7933 = vmatpush1.xpose.msra.mxu0 %v7777
        %7934 = vmatprep.subr.mxu0 0.0
        %7935 = vmatpush1.xpose.msra.mxu0 %v7780
        %7936 = vmatprep.subr.mxu0 0.0
        %7937 = vmatpush1.xpose.msra.mxu0 %v7783
        %7938 = vmatprep.subr.mxu0 0.0
        %7939 = vmatpush1.xpose.msra.mxu0 %v7786
        %7940 = vmatprep.subr.mxu0 0.0
        %7941 = vmatpush1.xpose.msra.mxu0 %v7789
        %7942 = vmatprep.subr.mxu0 0.0
        %7943 = vmatpush1.xpose.msra.mxu0 %v7792
        %7944 = vmatprep.subr.mxu0 0.0
        %7945 = vmatpush1.xpose.msra.mxu0 %v7795
        %7946 = vmatprep.subr.mxu0 0.0
        %7947 = vmatpush1.xpose.msra.mxu0 %v7798
        %7948 = vmatprep.subr.mxu0 0.0
        %7949 = vmatpush1.xpose.msra.mxu0 %v7801
        %7950 = vmatprep.subr.mxu0 0.0
        %7951 = vmatpush1.xpose.msra.mxu0 %v7804
        %7952 = vmatprep.subr.mxu0 0.0
        %7953 = vmatpush1.xpose.msra.mxu0 %v7807
        %7954 = vmatprep.subr.mxu0 0.0
        %7955 = vmatpush1.xpose.msra.mxu0 %v7810
        %7956 = vmatprep.subr.mxu0 0.0
        %7957 = vmatpush1.xpose.msra.mxu0 %v7813
        %7958 = vmatprep.subr.mxu0 0.0
        %7959 = vmatpush1.xpose.msra.mxu0 %v7816
        %7960 = vmatprep.subr.mxu0 0.0
        %7961 = vmatpush1.xpose.msra.mxu0 %v7819
        %7962 = vmatprep.subr.mxu0 0.0
        %7963 = vmatpush1.xpose.msra.mxu0 %v7822
        %7964 = vmatprep.subr.mxu0 0.0
        %7965 = vmatpush1.xpose.msra.mxu0 %v7825
        %7966 = vmatprep.subr.mxu0 0.0
        %7967 = vmatpush1.xpose.msra.mxu0 %v7828
        %7968 = vmatprep.subr.mxu0 0.0
        %7969 = vmatpush1.xpose.msra.mxu0 %v7831
        %7970 = vmatprep.subr.mxu0 0.0
        %7971 = vmatpush1.xpose.msra.mxu0 %v7834
        %7972 = vmatprep.subr.mxu0 0.0
        %7973 = vmatpush1.xpose.msra.mxu0 %v7837
        %7974 = vmatprep.subr.mxu0 0.0
        %7975 = vmatpush1.xpose.msra.mxu0 %v7840
        %7976 = vmatprep.subr.mxu0 0.0
        %7977 = vmatpush1.xpose.msra.mxu0 %v7843
        %7978 = vmatprep.subr.mxu0 0.0
        %7979 = vmatpush1.xpose.msra.mxu0 %v7846
        %7980 = vmatprep.subr.mxu0 0.0
        %7981 = vmatpush1.xpose.msra.mxu0 %v7849
        %7982 = vmatprep.subr.mxu0 0.0
        %7983 = vmatpush1.xpose.msra.mxu0 %v7852
        %7984 = vmatprep.mubr.f32.mxu0 0.0
        %7985 = vmatmul.mubr.f32.gmra.mrb[0].mxu0 %v7756
        %v7986 = vpop.f32.mrb[0].mxu0
        %v7987 = vadd.f32 0.0, %v7986
        %v7988 = vpop.f32.mrb[0].mxu0
        %v7989 = vadd.f32 0.0, %v7988
        %7990 = vdwg.mxu0
        %7991 = vmatprep.subr.mxu0 0.0
        %7992 = vmatpush1.xpose.msra.mxu0 %v7855
        %7993 = vmatprep.subr.mxu0 0.0
        %7994 = vmatpush1.xpose.msra.mxu0 %v7858
        %7995 = vmatprep.subr.mxu0 0.0
        %7996 = vmatpush1.xpose.msra.mxu0 %v7861
        %7997 = vmatprep.subr.mxu0 0.0
        %7998 = vmatpush1.xpose.msra.mxu0 %v7864
        %7999 = vmatprep.subr.mxu0 0.0
        %8000 = vmatpush1.xpose.msra.mxu0 %v7867
        %8001 = vmatprep.subr.mxu0 0.0
        %8002 = vmatpush1.xpose.msra.mxu0 %v7870
        %8003 = vmatprep.subr.mxu0 0.0
        %8004 = vmatpush1.xpose.msra.mxu0 %v7873
        %8005 = vmatprep.subr.mxu0 0.0
        %8006 = vmatpush1.xpose.msra.mxu0 %v7876
        %8007 = vmatprep.subr.mxu0 0.0
        %8008 = vmatpush1.xpose.msra.mxu0 %v7879
        %8009 = vmatprep.subr.mxu0 0.0
        %8010 = vmatpush1.xpose.msra.mxu0 %v7882
        %8011 = vmatprep.subr.mxu0 0.0
        %8012 = vmatpush1.xpose.msra.mxu0 %v7885
        %8013 = vmatprep.subr.mxu0 0.0
        %8014 = vmatpush1.xpose.msra.mxu0 %v7888
        %8015 = vmatprep.subr.mxu0 0.0
        %8016 = vmatpush1.xpose.msra.mxu0 %v7891
        %8017 = vmatprep.subr.mxu0 0.0
        %8018 = vmatpush1.xpose.msra.mxu0 %v7894
        %8019 = vmatprep.subr.mxu0 0.0
        %8020 = vmatpush1.xpose.msra.mxu0 %v7897
        %8021 = vmatprep.subr.mxu0 0.0
        %8022 = vmatpush1.xpose.msra.mxu0 %v7900
        %8023 = vmatprep.subr.mxu0 0.0
        %8024 = vmatpush1.xpose.msra.mxu0 %v7903
        %8025 = vmatprep.subr.mxu0 0.0
        %8026 = vmatpush1.xpose.msra.mxu0 %v7906
        %8027 = vmatprep.subr.mxu0 0.0
        %8028 = vmatpush1.xpose.msra.mxu0 %v7909
        %8029 = vmatprep.subr.mxu0 0.0
        %8030 = vmatpush1.xpose.msra.mxu0 %v7912
        %8031 = vmatprep.subr.mxu0 0.0
        %8032 = vmatpush1.xpose.msra.mxu0 %v7915
        %8033 = vmatprep.subr.mxu0 0.0
        %8034 = vmatpush1.xpose.msra.mxu0 %v7918
        %8035 = vmatprep.subr.mxu0 0.0
        %8036 = vmatpush1.xpose.msra.mxu0 0.0
        %8037 = vmatprep.subr.mxu0 0.0
        %8038 = vmatpush1.xpose.msra.mxu0 0.0
        %8039 = vmatprep.subr.mxu0 0.0
        %8040 = vmatpush1.xpose.msra.mxu0 0.0
        %8041 = vmatprep.subr.mxu0 0.0
        %8042 = vmatpush1.xpose.msra.mxu0 0.0
        %8043 = vmatprep.subr.mxu0 0.0
        %8044 = vmatpush1.xpose.msra.mxu0 0.0
        %8045 = vmatprep.subr.mxu0 0.0
        %8046 = vmatpush1.xpose.msra.mxu0 0.0
        %8047 = vmatprep.subr.mxu0 0.0
        %8048 = vmatpush1.xpose.msra.mxu0 0.0
        %8049 = vmatprep.subr.mxu0 0.0
        %8050 = vmatpush1.xpose.msra.mxu0 0.0
        %8051 = vmatprep.subr.mxu0 0.0
        %8052 = vmatpush1.xpose.msra.mxu0 0.0
        %8053 = vmatprep.subr.mxu0 0.0
        %8054 = vmatpush1.xpose.msra.mxu0 0.0
        %8055 = vmatprep.mubr.f32.mxu0 0.0
        %8056 = vmatmul.mubr.f32.gmra.mrb[0].mxu0 %v7756
        %v8057 = vpop.f32.mrb[0].mxu0
        %v8058 = vadd.f32 0.0, %v8057
        %v8059 = vpop.f32.mrb[0].mxu0
        %v8060 = vadd.f32 0.0, %v8059
        %8061 = vdwg.mxu0
        %v8062 = vadd.f32 %v7695, %v7987
        %v8063 = vadd.f32 %v7696, %v7989
        %v8064 = vadd.f32 %v7697, %v8058
        %v8065 = vadd.f32 %v7698, %v8060
        %v8066 = vld [vmem:[%s5] sm:$0xff]
        %8068 = vset.pattern.permute.xlu0 0
        %8069 = vperm.xlu0 %8068, %v8066
        %v8070 = vpop.permute.xlu0 %8069
        %v8072 = vadd.f32 %v8062, %v8070
        %v8073 = vadd.f32 %v8063, %v8070
        %v8074 = vadd.f32 %v8064, %v8070
        %v8075 = vadd.f32 %v8065, %v8070
        %8076 = vst [vmem:[%s244] sm:$0xff] %v8072
        %8077 = vst [vmem:[%s244 + $0x8] sm:$0xff] %v8073
        %8078 = vst [vmem:[%s244 + $0x10] sm:$0xff] %v8074
        %vm8079 = vcmask 392192
        %8080 = vst.msk [vmem:[%s244 + $0x18] sm:$0xff] %vm8079, %v8075
        %s8081 = sand.u32 %s159, 1
        %s8082 = scalar_lea.sflag [#allocation4], %s8081
        %s8083 = sand.u32 %s159, 1
        %s8084 = smul.addr %s8083, 32
        %s8085 = scalar_lea.vmem [#allocation3], %s8084
        // Predicated region
        $region45: #{tpu_custom_call.1} parent=43 // pred_check
          %p8086 = pneg %p169
        $region46: #{tpu_custom_call.1} parent=43 // pred_check_branch
          %8088 = sbr.rel (%p8086) target = $region48
        $region47: #{tpu_custom_call.1} parent=43 // pred_region
          %s8090 = ssub.s32 512, 512
          %8091 = vsyncadd %s8082, %s8090
          %s8092 = smul.addr %s20, 4
          %s8093 = smul.addr %s8092, 128
          %s8094 = scalar_lea.hbm %s6, %s8093
          %s8096 = sshll.u32 %s8085, 4
          %s8097 = int_to_ptr.vmem [resolvable:$true] %s8096
          %8099 = dma.vmem_to_hbm [thread:$0]  %s8097, 512, %s8094, %s8082
        $region48: #{tpu_custom_call.1} parent=43 // pred_fallthru
          _
      $region44: #{tpu_custom_call.1} parent=5 // pred_fallthru
        _
      %p8100 = scmp.le.s32.totalorder 2, %s15
      // Predicated region
      $region49: #{tpu_custom_call.1} parent=5 // pred_check
        %p8101 = pneg %p8100
      $region50: #{tpu_custom_call.1} parent=5 // pred_check_branch
        %8103 = sbr.rel (%p8101) target = $region52
      $region51: #{tpu_custom_call.1} parent=5 // pred_region
        %s8104 = ssub.s32 %s15, 2
        // Predicated region
        $region53: #{tpu_custom_call.1} parent=51 // pred_check
          %p8105 = pneg %p175
        $region54: #{tpu_custom_call.1} parent=51 // pred_check_branch
          %8107 = sbr.rel (%p8105) target = $region56
        $region55: #{tpu_custom_call.1} parent=51 // pred_region
          %s8108 = sand.u32 %s160, 1
          %s8109 = scalar_lea.sflag [#allocation4], %s8108
          %s8110 = sand.u32 %s160, 1
          %s8111 = smul.addr %s8110, 32
          %s8112 = scalar_lea.vmem [#allocation3], %s8111
          %8113 = dma.done %s8109, 512
        $region56: #{tpu_custom_call.1} parent=51 // pred_fallthru
          _
      $region52: #{tpu_custom_call.1} parent=5 // pred_fallthru
        _
    $region6: #{tpu_custom_call.1} parent=1 // loop_footer
      %s19 = sadd.s32 1, %s15
    $region7: #{tpu_custom_call.1} parent=1 // loop_footer_branch
      %14 = sbr.rel target = $region3
    $region8: #{tpu_custom_call.1} parent=1 // loop_exit
      _
    %8114 = vsyncpa [#allocation4], 1
    %s8115 = scalar_lea.sflag [#allocation4], 1
    %8116 = vsyncpa %s8115, 1

</llo_original>
